<compile_context>
chip_gen: v7x
topology: tpu7x:2x2x1
jax: 0.10.0
libtpu: 0.0.40
codegen_flags: <defaults>
</compile_context>

<pallas_src>
import functools

import jax
import jax.numpy as jnp
from jax.experimental import pallas as pl
from jax.experimental.pallas import tpu as pltpu

_WPAD = 8  # sublane-aligned column offset for the in-VMEM padded tile


# ----------------------------------------------------------------------------
# Pallas kernels
# ----------------------------------------------------------------------------
def _conv3x3_kernel(*refs, fuse_prologue, mm_dtype):
    """3x3 conv (stride 1, padding 1) on one image + BN partial sums.

    Optionally applies a fused per-channel scale/shift + ReLU prologue (this is
    the BatchNorm of the *previous* conv, deferred until its batch statistics
    are known), so the normalized activation never round-trips through HBM.
    """
    if fuse_prologue:
        x_ref, w_ref, sc_ref, sh_ref, y_ref, s_ref, ss_ref, xp_ref = refs
    else:
        x_ref, w_ref, y_ref, s_ref, ss_ref, xp_ref = refs
        sc_ref = sh_ref = None

    _, H, W, C = x_ref.shape
    F = w_ref.shape[-1]

    x = x_ref[0]                                            # (H, W, C) f32
    if fuse_prologue:
        # fused BN-normalize + ReLU of the previous conv's raw output
        x = jnp.maximum(x * sc_ref[...] + sh_ref[...], 0.0)

    # Zero-padded copy of the tile, built entirely in VMEM (no HBM im2col /
    # pad traffic).  The interior sits at sublane offset _WPAD so the store is
    # tile-aligned; the 3x3 taps are read back as static slices of the value.
    xp_ref[...] = jnp.zeros_like(xp_ref)
    xp_ref[1:H + 1, _WPAD:_WPAD + W, :] = x
    xp = xp_ref[...]                                        # (H+2, W+2*_WPAD, C)

    # 3x3 conv as 9 shifted (H*W, C) @ (C, F) MXU matmuls, f32 accumulation.
    acc = jnp.zeros((H * W, F), jnp.float32)
    for t in range(9):
        i, j = divmod(t, 3)
        tap = xp[i:i + H, _WPAD - 1 + j:_WPAD - 1 + j + W, :]
        lhs = tap.reshape(H * W, C).astype(mm_dtype)
        rhs = w_ref[t].astype(mm_dtype)
        acc = acc + jnp.dot(lhs, rhs, preferred_element_type=jnp.float32)

    y_ref[0] = acc.reshape(H, W, F)
    # per-image partial sums for the *following* BatchNorm's batch statistics
    s_ref[0] = jnp.sum(acc, axis=0, keepdims=True)
    ss_ref[0] = jnp.sum(acc * acc, axis=0, keepdims=True)


def _bn_add_relu_kernel(y_ref, x_ref, sc_ref, sh_ref, o_ref):
    # out = relu( BN2(y) + x ), with BN folded into per-channel scale/shift.
    o_ref[...] = jnp.maximum(
        y_ref[...] * sc_ref[...] + sh_ref[...] + x_ref[...], 0.0)


# ----------------------------------------------------------------------------
# Pallas wrappers
# ----------------------------------------------------------------------------
def conv3x3_bn_stats(x, w_taps, scale=None, shift=None, *,
                     mm_dtype=jnp.float32):
    """x: (N,H,W,C), w_taps: (9,C,F) -> (conv out (N,H,W,F), sum, sumsq)."""
    N, H, W, C = x.shape
    F = w_taps.shape[-1]
    fuse = scale is not None

    kern = functools.partial(_conv3x3_kernel, fuse_prologue=fuse,
                             mm_dtype=mm_dtype)
    in_specs = [
        pl.BlockSpec((1, H, W, C), lambda n: (n, 0, 0, 0)),
        pl.BlockSpec((9, C, F), lambda n: (0, 0, 0)),
    ]
    args = [x, w_taps]
    if fuse:
        in_specs += [pl.BlockSpec((1, C), lambda n: (0, 0)),
                     pl.BlockSpec((1, C), lambda n: (0, 0))]
        args += [scale.reshape(1, C), shift.reshape(1, C)]

    y, s, ss = pl.pallas_call(
        kern,
        out_shape=(jax.ShapeDtypeStruct((N, H, W, F), jnp.float32),
                   jax.ShapeDtypeStruct((N, 1, F), jnp.float32),
                   jax.ShapeDtypeStruct((N, 1, F), jnp.float32)),
        grid=(N,),
        in_specs=in_specs,
        out_specs=(pl.BlockSpec((1, H, W, F), lambda n: (n, 0, 0, 0)),
                   pl.BlockSpec((1, 1, F), lambda n: (n, 0, 0)),
                   pl.BlockSpec((1, 1, F), lambda n: (n, 0, 0))),
        scratch_shapes=[pltpu.VMEM((H + 2, W + 2 * _WPAD, C), jnp.float32)],
        compiler_params=pltpu.CompilerParams(
            dimension_semantics=("parallel",)),
    )(*args)
    return y, s, ss


def _largest_tile(n, target):
    t = min(n, target)
    while n % t:
        t -= 1
    return t


def bn_add_relu(y, x, scale, shift):
    """out = relu(y*scale + shift + x), tiled over (image, row-chunks)."""
    N, H, W, C = y.shape
    th = _largest_tile(H, 8)
    spec4 = pl.BlockSpec((1, th, W, C), lambda n, h: (n, h, 0, 0))
    spec_c = pl.BlockSpec((1, C), lambda n, h: (0, 0))
    return pl.pallas_call(
        _bn_add_relu_kernel,
        out_shape=jax.ShapeDtypeStruct((N, H, W, C), jnp.float32),
        grid=(N, H // th),
        in_specs=[spec4, spec4, spec_c, spec_c],
        out_specs=spec4,
        compiler_params=pltpu.CompilerParams(
            dimension_semantics=("parallel", "parallel")),
    )(y, x, scale.reshape(1, C), shift.reshape(1, C))


# ----------------------------------------------------------------------------
# Small JAX glue (all O(C) or layout-only)
# ----------------------------------------------------------------------------
def _weight_taps(w_oihw):
    """(F, C, 3, 3) -> (9, C, F); tap t = 3*i + j for kernel row i, col j."""
    f, c = w_oihw.shape[0], w_oihw.shape[1]
    return jnp.transpose(w_oihw, (2, 3, 1, 0)).reshape(9, c, f)


def _bn_fold(s, ss, gamma, beta, count, eps):
    """Fold batch stats + affine params into per-channel scale/shift."""
    mean = jnp.sum(s, axis=(0, 1)) / count
    var = jnp.sum(ss, axis=(0, 1)) / count - mean * mean   # biased variance
    scale = gamma * jax.lax.rsqrt(var + eps)
    shift = beta - mean * scale
    return scale, shift


def restnet_basic_block(x_nchw, params, *, eps=1e-5, mm_dtype=jnp.float32):
    """Forward of RestNetBasicBlock (training-mode BN, identity residual)."""
    # TODO(synk): stride > 1 is not implemented; the reference module's
    # `relu(x + output)` is only shape-valid for stride=1, in_ch == out_ch.
    x = jnp.transpose(x_nchw, (0, 2, 3, 1)).astype(jnp.float32)  # NCHW -> NHWC
    N, H, W, C = x.shape
    count = N * H * W

    w1 = _weight_taps(params["conv1_w"])
    w2 = _weight_taps(params["conv2_w"])
    # conv biases omitted: exactly cancelled by the training-mode BatchNorm
    # mean subtraction that immediately follows each conv.

    # pass 1: conv1 + per-image BN1 partial sums (fused epilogue)
    y1, s1, ss1 = conv3x3_bn_stats(x, w1, mm_dtype=mm_dtype)
    sc1, sh1 = _bn_fold(s1, ss1, params["bn1_g"], params["bn1_b"], count, eps)

    # pass 2: conv2 with fused BN1 normalize + ReLU prologue, + BN2 partials
    y2, s2, ss2 = conv3x3_bn_stats(y1, w2, sc1, sh1, mm_dtype=mm_dtype)
    sc2, sh2 = _bn_fold(s2, ss2, params["bn2_g"], params["bn2_b"], count, eps)

    # pass 3: BN2 normalize + identity residual add + ReLU
    out = bn_add_relu(y2, x, sc2, sh2)
    return jnp.transpose(out, (0, 3, 1, 2))  # NHWC -> NCHW


# ----------------------------------------------------------------------------
# Pure-JAX reference (correctness check only; includes the conv biases)
# ----------------------------------------------------------------------------
def _conv_ref(x, w_oihw, b):
    y = jax.lax.conv_general_dilated(
        x, jnp.transpose(w_oihw, (2, 3, 1, 0)), (1, 1), [(1, 1), (1, 1)],
        dimension_numbers=("NHWC", "HWIO", "NHWC"),
        precision=jax.lax.Precision.HIGHEST)
    return y + b


def _bn_ref(y, g, b, eps=1e-5):
    m = y.mean(axis=(0, 1, 2), keepdims=True)
    v = jnp.square(y - m).mean(axis=(0, 1, 2), keepdims=True)
    return (y - m) * jax.lax.rsqrt(v + eps) * g + b


def restnet_basic_block_ref(x_nchw, params, eps=1e-5):
    x = jnp.transpose(x_nchw, (0, 2, 3, 1)).astype(jnp.float32)
    h = jnp.maximum(_bn_ref(_conv_ref(x, params["conv1_w"], params["conv1_b"]),
                            params["bn1_g"], params["bn1_b"], eps), 0.0)
    h = _bn_ref(_conv_ref(h, params["conv2_w"], params["conv2_b"]),
                params["bn2_g"], params["bn2_b"], eps)
    return jnp.transpose(jnp.maximum(x + h, 0.0), (0, 3, 1, 2))


# ----------------------------------------------------------------------------
def make_params(key, c):
    ks = jax.random.split(key, 8)
    f32 = jnp.float32
    return {
        "conv1_w": 0.1 * jax.random.normal(ks[0], (c, c, 3, 3), f32),
        "conv1_b": 0.1 * jax.random.normal(ks[1], (c,), f32),
        "bn1_g": 1.0 + 0.1 * jax.random.normal(ks[2], (c,), f32),
        "bn1_b": 0.1 * jax.random.normal(ks[3], (c,), f32),
        "conv2_w": 0.1 * jax.random.normal(ks[4], (c, c, 3, 3), f32),
        "conv2_b": 0.1 * jax.random.normal(ks[5], (c,), f32),
        "bn2_g": 1.0 + 0.1 * jax.random.normal(ks[6], (c,), f32),
        "bn2_b": 0.1 * jax.random.normal(ks[7], (c,), f32),
    }


if __name__ == "__main__":
    N, C, H, W = 2, 8, 16, 16  # identity residual => in_ch == out_ch, stride 1

    key = jax.random.PRNGKey(0)
    kx, kp = jax.random.split(key)
    x = jax.random.normal(kx, (N, C, H, W), jnp.float32)  # NCHW, like PyTorch
    params = make_params(kp, C)

    out = jax.jit(restnet_basic_block)(x, params)
    out = jax.block_until_ready(out)

    ref = jax.block_until_ready(restnet_basic_block_ref(x, params))
    assert out.shape == (N, C, H, W), out.shape
    max_err = float(jnp.max(jnp.abs(out - ref)))
    assert jnp.allclose(out, ref, rtol=1e-3, atol=1e-3), max_err

    print("KERNEL_OK")
</pallas_src>

<mosaic_0001>
module attributes {stable_mosaic.version = 11 : i64} {
  func.func @_conv3x3_kernel(%arg0: i32, %arg1: memref<1x16x16x8xf32, #tpu.memory_space<vmem>>, %arg2: memref<9x8x8xf32, #tpu.memory_space<vmem>>, %arg3: memref<1x16x16x8xf32, #tpu.memory_space<vmem>>, %arg4: memref<1x1x8xf32, #tpu.memory_space<vmem>>, %arg5: memref<1x1x8xf32, #tpu.memory_space<vmem>>, %arg6: memref<18x32x8xf32, #tpu.memory_space<vmem>>) attributes {dimension_semantics = [#tpu.dimension_semantics<parallel>], iteration_bounds = array<i64: 2>, scalar_prefetch = 0 : i64, scratch_operands = 1 : i64, tpu.core_type = #tpu.core_type<tc>, window_params = [{transform_indices = @transform_0, window_bounds = array<i64: 1, 16, 16, 8>}, {pipeline_mode = #tpu.pipeline_mode<synchronous>, transform_indices = @transform_1, window_bounds = array<i64: 9, 8, 8>}, {transform_indices = @transform_2, window_bounds = array<i64: 1, 16, 16, 8>}, {transform_indices = @transform_3, window_bounds = array<i64: 1, 1, 8>}, {transform_indices = @transform_4, window_bounds = array<i64: 1, 1, 8>}]} {
    %c0 = arith.constant 0 : index
    %c0_0 = arith.constant 0 : index
    %c0_1 = arith.constant 0 : index
    %c0_2 = arith.constant 0 : index
    %0 = vector.load %arg1[%c0, %c0_0, %c0_1, %c0_2] : memref<1x16x16x8xf32, #tpu.memory_space<vmem>>, vector<1x16x16x8xf32>
    %1 = vector.shape_cast %0 : vector<1x16x16x8xf32> to vector<16x16x8xf32>
    %cst = arith.constant 0.000000e+00 : f32
    %2 = vector.broadcast %cst : f32 to vector<18x32x8xf32>
    %c0_3 = arith.constant 0 : index
    %c0_4 = arith.constant 0 : index
    %c0_5 = arith.constant 0 : index
    %3 = vector.load %arg6[%c0_3, %c0_4, %c0_5] : memref<18x32x8xf32, #tpu.memory_space<vmem>>, vector<18x32x8xf32>
    tpu.vector_store %arg6[%c0_3, %c0_4, %c0_5], %2 {strides = array<i32>} : memref<18x32x8xf32, #tpu.memory_space<vmem>>, vector<18x32x8xf32>,
    %c1 = arith.constant 1 : index
    %c8 = arith.constant 8 : index
    %c0_6 = arith.constant 0 : index
    %4 = vector.load %arg6[%c1, %c8, %c0_6] : memref<18x32x8xf32, #tpu.memory_space<vmem>>, vector<16x16x8xf32>
    tpu.vector_store %arg6[%c1, %c8, %c0_6], %1 {strides = array<i32>} : memref<18x32x8xf32, #tpu.memory_space<vmem>>, vector<16x16x8xf32>,
    %c0_7 = arith.constant 0 : index
    %c0_8 = arith.constant 0 : index
    %c0_9 = arith.constant 0 : index
    %5 = vector.load %arg6[%c0_7, %c0_8, %c0_9] : memref<18x32x8xf32, #tpu.memory_space<vmem>>, vector<18x32x8xf32>
    %cst_10 = arith.constant 0.000000e+00 : f32
    %6 = vector.broadcast %cst_10 : f32 to vector<256x8xf32>
    %7 = vector.extract_strided_slice %5 {offsets = [0, 7, 0], sizes = [16, 16, 8], strides = [1, 1, 1]} : vector<18x32x8xf32> to vector<16x16x8xf32>
    %8 = vector.shape_cast %7 : vector<16x16x8xf32> to vector<256x8xf32>
    %c0_11 = arith.constant 0 : index
    %c0_12 = arith.constant 0 : index
    %c0_13 = arith.constant 0 : index
    %9 = vector.load %arg2[%c0_11, %c0_12, %c0_13] : memref<9x8x8xf32, #tpu.memory_space<vmem>>, vector<1x8x8xf32>
    %10 = vector.shape_cast %9 : vector<1x8x8xf32> to vector<8x8xf32>
    %cst_14 = arith.constant dense<0.000000e+00> : vector<256x8xf32>
    %11 = tpu.matmul %8, %10, %cst_14 {dimension_numbers = #tpu.dot_dimension_numbers<[1], [0], [0], [1], [0, 0, 1, 1], [], []>} : vector<256x8xf32>, vector<8x8xf32>, vector<256x8xf32> -> vector<256x8xf32>
    %12 = arith.addf %6, %11 : vector<256x8xf32>
    %13 = vector.extract_strided_slice %5 {offsets = [0, 8, 0], sizes = [16, 16, 8], strides = [1, 1, 1]} : vector<18x32x8xf32> to vector<16x16x8xf32>
    %14 = vector.shape_cast %13 : vector<16x16x8xf32> to vector<256x8xf32>
    %c1_15 = arith.constant 1 : index
    %c0_16 = arith.constant 0 : index
    %c0_17 = arith.constant 0 : index
    %15 = vector.load %arg2[%c1_15, %c0_16, %c0_17] : memref<9x8x8xf32, #tpu.memory_space<vmem>>, vector<1x8x8xf32>
    %16 = vector.shape_cast %15 : vector<1x8x8xf32> to vector<8x8xf32>
    %cst_18 = arith.constant dense<0.000000e+00> : vector<256x8xf32>
    %17 = tpu.matmul %14, %16, %cst_18 {dimension_numbers = #tpu.dot_dimension_numbers<[1], [0], [0], [1], [0, 0, 1, 1], [], []>} : vector<256x8xf32>, vector<8x8xf32>, vector<256x8xf32> -> vector<256x8xf32>
    %18 = arith.addf %12, %17 : vector<256x8xf32>
    %19 = vector.extract_strided_slice %5 {offsets = [0, 9, 0], sizes = [16, 16, 8], strides = [1, 1, 1]} : vector<18x32x8xf32> to vector<16x16x8xf32>
    %20 = vector.shape_cast %19 : vector<16x16x8xf32> to vector<256x8xf32>
    %c2 = arith.constant 2 : index
    %c0_19 = arith.constant 0 : index
    %c0_20 = arith.constant 0 : index
    %21 = vector.load %arg2[%c2, %c0_19, %c0_20] : memref<9x8x8xf32, #tpu.memory_space<vmem>>, vector<1x8x8xf32>
    %22 = vector.shape_cast %21 : vector<1x8x8xf32> to vector<8x8xf32>
    %cst_21 = arith.constant dense<0.000000e+00> : vector<256x8xf32>
    %23 = tpu.matmul %20, %22, %cst_21 {dimension_numbers = #tpu.dot_dimension_numbers<[1], [0], [0], [1], [0, 0, 1, 1], [], []>} : vector<256x8xf32>, vector<8x8xf32>, vector<256x8xf32> -> vector<256x8xf32>
    %24 = arith.addf %18, %23 : vector<256x8xf32>
    %25 = vector.extract_strided_slice %5 {offsets = [1, 7, 0], sizes = [16, 16, 8], strides = [1, 1, 1]} : vector<18x32x8xf32> to vector<16x16x8xf32>
    %26 = vector.shape_cast %25 : vector<16x16x8xf32> to vector<256x8xf32>
    %c3 = arith.constant 3 : index
    %c0_22 = arith.constant 0 : index
    %c0_23 = arith.constant 0 : index
    %27 = vector.load %arg2[%c3, %c0_22, %c0_23] : memref<9x8x8xf32, #tpu.memory_space<vmem>>, vector<1x8x8xf32>
    %28 = vector.shape_cast %27 : vector<1x8x8xf32> to vector<8x8xf32>
    %cst_24 = arith.constant dense<0.000000e+00> : vector<256x8xf32>
    %29 = tpu.matmul %26, %28, %cst_24 {dimension_numbers = #tpu.dot_dimension_numbers<[1], [0], [0], [1], [0, 0, 1, 1], [], []>} : vector<256x8xf32>, vector<8x8xf32>, vector<256x8xf32> -> vector<256x8xf32>
    %30 = arith.addf %24, %29 : vector<256x8xf32>
    %31 = vector.extract_strided_slice %5 {offsets = [1, 8, 0], sizes = [16, 16, 8], strides = [1, 1, 1]} : vector<18x32x8xf32> to vector<16x16x8xf32>
    %32 = vector.shape_cast %31 : vector<16x16x8xf32> to vector<256x8xf32>
    %c4 = arith.constant 4 : index
    %c0_25 = arith.constant 0 : index
    %c0_26 = arith.constant 0 : index
    %33 = vector.load %arg2[%c4, %c0_25, %c0_26] : memref<9x8x8xf32, #tpu.memory_space<vmem>>, vector<1x8x8xf32>
    %34 = vector.shape_cast %33 : vector<1x8x8xf32> to vector<8x8xf32>
    %cst_27 = arith.constant dense<0.000000e+00> : vector<256x8xf32>
    %35 = tpu.matmul %32, %34, %cst_27 {dimension_numbers = #tpu.dot_dimension_numbers<[1], [0], [0], [1], [0, 0, 1, 1], [], []>} : vector<256x8xf32>, vector<8x8xf32>, vector<256x8xf32> -> vector<256x8xf32>
    %36 = arith.addf %30, %35 : vector<256x8xf32>
    %37 = vector.extract_strided_slice %5 {offsets = [1, 9, 0], sizes = [16, 16, 8], strides = [1, 1, 1]} : vector<18x32x8xf32> to vector<16x16x8xf32>
    %38 = vector.shape_cast %37 : vector<16x16x8xf32> to vector<256x8xf32>
    %c5 = arith.constant 5 : index
    %c0_28 = arith.constant 0 : index
    %c0_29 = arith.constant 0 : index
    %39 = vector.load %arg2[%c5, %c0_28, %c0_29] : memref<9x8x8xf32, #tpu.memory_space<vmem>>, vector<1x8x8xf32>
    %40 = vector.shape_cast %39 : vector<1x8x8xf32> to vector<8x8xf32>
    %cst_30 = arith.constant dense<0.000000e+00> : vector<256x8xf32>
    %41 = tpu.matmul %38, %40, %cst_30 {dimension_numbers = #tpu.dot_dimension_numbers<[1], [0], [0], [1], [0, 0, 1, 1], [], []>} : vector<256x8xf32>, vector<8x8xf32>, vector<256x8xf32> -> vector<256x8xf32>
    %42 = arith.addf %36, %41 : vector<256x8xf32>
    %43 = vector.extract_strided_slice %5 {offsets = [2, 7, 0], sizes = [16, 16, 8], strides = [1, 1, 1]} : vector<18x32x8xf32> to vector<16x16x8xf32>
    %44 = vector.shape_cast %43 : vector<16x16x8xf32> to vector<256x8xf32>
    %c6 = arith.constant 6 : index
    %c0_31 = arith.constant 0 : index
    %c0_32 = arith.constant 0 : index
    %45 = vector.load %arg2[%c6, %c0_31, %c0_32] : memref<9x8x8xf32, #tpu.memory_space<vmem>>, vector<1x8x8xf32>
    %46 = vector.shape_cast %45 : vector<1x8x8xf32> to vector<8x8xf32>
    %cst_33 = arith.constant dense<0.000000e+00> : vector<256x8xf32>
    %47 = tpu.matmul %44, %46, %cst_33 {dimension_numbers = #tpu.dot_dimension_numbers<[1], [0], [0], [1], [0, 0, 1, 1], [], []>} : vector<256x8xf32>, vector<8x8xf32>, vector<256x8xf32> -> vector<256x8xf32>
    %48 = arith.addf %42, %47 : vector<256x8xf32>
    %49 = vector.extract_strided_slice %5 {offsets = [2, 8, 0], sizes = [16, 16, 8], strides = [1, 1, 1]} : vector<18x32x8xf32> to vector<16x16x8xf32>
    %50 = vector.shape_cast %49 : vector<16x16x8xf32> to vector<256x8xf32>
    %c7 = arith.constant 7 : index
    %c0_34 = arith.constant 0 : index
    %c0_35 = arith.constant 0 : index
    %51 = vector.load %arg2[%c7, %c0_34, %c0_35] : memref<9x8x8xf32, #tpu.memory_space<vmem>>, vector<1x8x8xf32>
    %52 = vector.shape_cast %51 : vector<1x8x8xf32> to vector<8x8xf32>
    %cst_36 = arith.constant dense<0.000000e+00> : vector<256x8xf32>
    %53 = tpu.matmul %50, %52, %cst_36 {dimension_numbers = #tpu.dot_dimension_numbers<[1], [0], [0], [1], [0, 0, 1, 1], [], []>} : vector<256x8xf32>, vector<8x8xf32>, vector<256x8xf32> -> vector<256x8xf32>
    %54 = arith.addf %48, %53 : vector<256x8xf32>
    %55 = vector.extract_strided_slice %5 {offsets = [2, 9, 0], sizes = [16, 16, 8], strides = [1, 1, 1]} : vector<18x32x8xf32> to vector<16x16x8xf32>
    %56 = vector.shape_cast %55 : vector<16x16x8xf32> to vector<256x8xf32>
    %c8_37 = arith.constant 8 : index
    %c0_38 = arith.constant 0 : index
    %c0_39 = arith.constant 0 : index
    %57 = vector.load %arg2[%c8_37, %c0_38, %c0_39] : memref<9x8x8xf32, #tpu.memory_space<vmem>>, vector<1x8x8xf32>
    %58 = vector.shape_cast %57 : vector<1x8x8xf32> to vector<8x8xf32>
    %cst_40 = arith.constant dense<0.000000e+00> : vector<256x8xf32>
    %59 = tpu.matmul %56, %58, %cst_40 {dimension_numbers = #tpu.dot_dimension_numbers<[1], [0], [0], [1], [0, 0, 1, 1], [], []>} : vector<256x8xf32>, vector<8x8xf32>, vector<256x8xf32> -> vector<256x8xf32>
    %60 = arith.addf %54, %59 : vector<256x8xf32>
    %61 = vector.shape_cast %60 : vector<256x8xf32> to vector<16x16x8xf32>
    %c0_41 = arith.constant 0 : index
    %c0_42 = arith.constant 0 : index
    %c0_43 = arith.constant 0 : index
    %c0_44 = arith.constant 0 : index
    %62 = vector.load %arg3[%c0_41, %c0_42, %c0_43, %c0_44] : memref<1x16x16x8xf32, #tpu.memory_space<vmem>>, vector<1x16x16x8xf32>
    %63 = vector.shape_cast %62 : vector<1x16x16x8xf32> to vector<16x16x8xf32>
    %64 = vector.shape_cast %61 : vector<16x16x8xf32> to vector<1x16x16x8xf32>
    tpu.vector_store %arg3[%c0_41, %c0_42, %c0_43, %c0_44], %64 {strides = array<i32>} : memref<1x16x16x8xf32, #tpu.memory_space<vmem>>, vector<1x16x16x8xf32>,
    %cst_45 = arith.constant dense<0.000000e+00> : vector<8xf32>
    %65 = vector.multi_reduction <add>, %60, %cst_45 [0] : vector<256x8xf32> to vector<8xf32>
    %66 = vector.shape_cast %65 : vector<8xf32> to vector<1x8xf32>
    %c0_46 = arith.constant 0 : index
    %c0_47 = arith.constant 0 : index
    %c0_48 = arith.constant 0 : index
    %67 = vector.load %arg4[%c0_46, %c0_47, %c0_48] : memref<1x1x8xf32, #tpu.memory_space<vmem>>, vector<1x1x8xf32>
    %68 = vector.shape_cast %67 : vector<1x1x8xf32> to vector<1x8xf32>
    %69 = vector.shape_cast %66 : vector<1x8xf32> to vector<1x1x8xf32>
    tpu.vector_store %arg4[%c0_46, %c0_47, %c0_48], %69 {strides = array<i32>} : memref<1x1x8xf32, #tpu.memory_space<vmem>>, vector<1x1x8xf32>,
    %70 = arith.mulf %60, %60 : vector<256x8xf32>
    %cst_49 = arith.constant dense<0.000000e+00> : vector<8xf32>
    %71 = vector.multi_reduction <add>, %70, %cst_49 [0] : vector<256x8xf32> to vector<8xf32>
    %72 = vector.shape_cast %71 : vector<8xf32> to vector<1x8xf32>
    %c0_50 = arith.constant 0 : index
    %c0_51 = arith.constant 0 : index
    %c0_52 = arith.constant 0 : index
    %73 = vector.load %arg5[%c0_50, %c0_51, %c0_52] : memref<1x1x8xf32, #tpu.memory_space<vmem>>, vector<1x1x8xf32>
    %74 = vector.shape_cast %73 : vector<1x1x8xf32> to vector<1x8xf32>
    %75 = vector.shape_cast %72 : vector<1x8xf32> to vector<1x1x8xf32>
    tpu.vector_store %arg5[%c0_50, %c0_51, %c0_52], %75 {strides = array<i32>} : memref<1x1x8xf32, #tpu.memory_space<vmem>>, vector<1x1x8xf32>,
    return
  }
  func.func @transform_0(%arg0: i32) -> (i32, i32, i32, i32) {
    %c0_i32 = arith.constant 0 : i32
    %c0_i32_0 = arith.constant 0 : i32
    %c0_i32_1 = arith.constant 0 : i32
    %c0_i32_2 = arith.constant 0 : i32
    return %arg0, %c0_i32, %c0_i32_0, %c0_i32_1 : i32, i32, i32, i32
  }
  func.func @transform_1(%arg0: i32) -> (i32, i32, i32) {
    %c0_i32 = arith.constant 0 : i32
    %c0_i32_0 = arith.constant 0 : i32
    %c0_i32_1 = arith.constant 0 : i32
    %c0_i32_2 = arith.constant 0 : i32
    return %c0_i32, %c0_i32_0, %c0_i32_1 : i32, i32, i32
  }
  func.func @transform_2(%arg0: i32) -> (i32, i32, i32, i32) {
    %c0_i32 = arith.constant 0 : i32
    %c0_i32_0 = arith.constant 0 : i32
    %c0_i32_1 = arith.constant 0 : i32
    %c0_i32_2 = arith.constant 0 : i32
    return %arg0, %c0_i32, %c0_i32_0, %c0_i32_1 : i32, i32, i32, i32
  }
  func.func @transform_3(%arg0: i32) -> (i32, i32, i32) {
    %c0_i32 = arith.constant 0 : i32
    %c0_i32_0 = arith.constant 0 : i32
    %c0_i32_1 = arith.constant 0 : i32
    return %arg0, %c0_i32, %c0_i32_0 : i32, i32, i32
  }
  func.func @transform_4(%arg0: i32) -> (i32, i32, i32) {
    %c0_i32 = arith.constant 0 : i32
    %c0_i32_0 = arith.constant 0 : i32
    %c0_i32_1 = arith.constant 0 : i32
    return %arg0, %c0_i32, %c0_i32_0 : i32, i32, i32
  }
}

module attributes {stable_mosaic.version = 11 : i64} {
  func.func @_conv3x3_kernel(%arg0: i32, %arg1: memref<1x16x16x8xf32, #tpu.memory_space<vmem>>, %arg2: memref<9x8x8xf32, #tpu.memory_space<vmem>>, %arg3: memref<1x8xf32, #tpu.memory_space<vmem>>, %arg4: memref<1x8xf32, #tpu.memory_space<vmem>>, %arg5: memref<1x16x16x8xf32, #tpu.memory_space<vmem>>, %arg6: memref<1x1x8xf32, #tpu.memory_space<vmem>>, %arg7: memref<1x1x8xf32, #tpu.memory_space<vmem>>, %arg8: memref<18x32x8xf32, #tpu.memory_space<vmem>>) attributes {dimension_semantics = [#tpu.dimension_semantics<parallel>], iteration_bounds = array<i64: 2>, scalar_prefetch = 0 : i64, scratch_operands = 1 : i64, tpu.core_type = #tpu.core_type<tc>, window_params = [{transform_indices = @transform_0, window_bounds = array<i64: 1, 16, 16, 8>}, {pipeline_mode = #tpu.pipeline_mode<synchronous>, transform_indices = @transform_1, window_bounds = array<i64: 9, 8, 8>}, {pipeline_mode = #tpu.pipeline_mode<synchronous>, transform_indices = @transform_2, window_bounds = array<i64: 1, 8>}, {pipeline_mode = #tpu.pipeline_mode<synchronous>, transform_indices = @transform_3, window_bounds = array<i64: 1, 8>}, {transform_indices = @transform_4, window_bounds = array<i64: 1, 16, 16, 8>}, {transform_indices = @transform_5, window_bounds = array<i64: 1, 1, 8>}, {transform_indices = @transform_6, window_bounds = array<i64: 1, 1, 8>}]} {
    %c0 = arith.constant 0 : index
    %c0_0 = arith.constant 0 : index
    %c0_1 = arith.constant 0 : index
    %c0_2 = arith.constant 0 : index
    %0 = vector.load %arg1[%c0, %c0_0, %c0_1, %c0_2] : memref<1x16x16x8xf32, #tpu.memory_space<vmem>>, vector<1x16x16x8xf32>
    %1 = vector.shape_cast %0 : vector<1x16x16x8xf32> to vector<16x16x8xf32>
    %c0_3 = arith.constant 0 : index
    %c0_4 = arith.constant 0 : index
    %2 = vector.load %arg3[%c0_3, %c0_4] : memref<1x8xf32, #tpu.memory_space<vmem>>, vector<1x8xf32>
    %3 = vector.shape_cast %2 : vector<1x8xf32> to vector<1x1x8xf32>
    %4 = vector.broadcast %3 : vector<1x1x8xf32> to vector<16x16x8xf32>
    %5 = arith.mulf %1, %4 : vector<16x16x8xf32>
    %c0_5 = arith.constant 0 : index
    %c0_6 = arith.constant 0 : index
    %6 = vector.load %arg4[%c0_5, %c0_6] : memref<1x8xf32, #tpu.memory_space<vmem>>, vector<1x8xf32>
    %7 = vector.shape_cast %6 : vector<1x8xf32> to vector<1x1x8xf32>
    %8 = vector.broadcast %7 : vector<1x1x8xf32> to vector<16x16x8xf32>
    %9 = arith.addf %5, %8 : vector<16x16x8xf32>
    %cst = arith.constant 0.000000e+00 : f32
    %10 = vector.broadcast %cst : f32 to vector<16x16x8xf32>
    %11 = arith.maximumf %9, %10 : vector<16x16x8xf32>
    %cst_7 = arith.constant 0.000000e+00 : f32
    %12 = vector.broadcast %cst_7 : f32 to vector<18x32x8xf32>
    %c0_8 = arith.constant 0 : index
    %c0_9 = arith.constant 0 : index
    %c0_10 = arith.constant 0 : index
    %13 = vector.load %arg8[%c0_8, %c0_9, %c0_10] : memref<18x32x8xf32, #tpu.memory_space<vmem>>, vector<18x32x8xf32>
    tpu.vector_store %arg8[%c0_8, %c0_9, %c0_10], %12 {strides = array<i32>} : memref<18x32x8xf32, #tpu.memory_space<vmem>>, vector<18x32x8xf32>,
    %c1 = arith.constant 1 : index
    %c8 = arith.constant 8 : index
    %c0_11 = arith.constant 0 : index
    %14 = vector.load %arg8[%c1, %c8, %c0_11] : memref<18x32x8xf32, #tpu.memory_space<vmem>>, vector<16x16x8xf32>
    tpu.vector_store %arg8[%c1, %c8, %c0_11], %11 {strides = array<i32>} : memref<18x32x8xf32, #tpu.memory_space<vmem>>, vector<16x16x8xf32>,
    %c0_12 = arith.constant 0 : index
    %c0_13 = arith.constant 0 : index
    %c0_14 = arith.constant 0 : index
    %15 = vector.load %arg8[%c0_12, %c0_13, %c0_14] : memref<18x32x8xf32, #tpu.memory_space<vmem>>, vector<18x32x8xf32>
    %cst_15 = arith.constant 0.000000e+00 : f32
    %16 = vector.broadcast %cst_15 : f32 to vector<256x8xf32>
    %17 = vector.extract_strided_slice %15 {offsets = [0, 7, 0], sizes = [16, 16, 8], strides = [1, 1, 1]} : vector<18x32x8xf32> to vector<16x16x8xf32>
    %18 = vector.shape_cast %17 : vector<16x16x8xf32> to vector<256x8xf32>
    %c0_16 = arith.constant 0 : index
    %c0_17 = arith.constant 0 : index
    %c0_18 = arith.constant 0 : index
    %19 = vector.load %arg2[%c0_16, %c0_17, %c0_18] : memref<9x8x8xf32, #tpu.memory_space<vmem>>, vector<1x8x8xf32>
    %20 = vector.shape_cast %19 : vector<1x8x8xf32> to vector<8x8xf32>
    %cst_19 = arith.constant dense<0.000000e+00> : vector<256x8xf32>
    %21 = tpu.matmul %18, %20, %cst_19 {dimension_numbers = #tpu.dot_dimension_numbers<[1], [0], [0], [1], [0, 0, 1, 1], [], []>} : vector<256x8xf32>, vector<8x8xf32>, vector<256x8xf32> -> vector<256x8xf32>
    %22 = arith.addf %16, %21 : vector<256x8xf32>
    %23 = vector.extract_strided_slice %15 {offsets = [0, 8, 0], sizes = [16, 16, 8], strides = [1, 1, 1]} : vector<18x32x8xf32> to vector<16x16x8xf32>
    %24 = vector.shape_cast %23 : vector<16x16x8xf32> to vector<256x8xf32>
    %c1_20 = arith.constant 1 : index
    %c0_21 = arith.constant 0 : index
    %c0_22 = arith.constant 0 : index
    %25 = vector.load %arg2[%c1_20, %c0_21, %c0_22] : memref<9x8x8xf32, #tpu.memory_space<vmem>>, vector<1x8x8xf32>
    %26 = vector.shape_cast %25 : vector<1x8x8xf32> to vector<8x8xf32>
    %cst_23 = arith.constant dense<0.000000e+00> : vector<256x8xf32>
    %27 = tpu.matmul %24, %26, %cst_23 {dimension_numbers = #tpu.dot_dimension_numbers<[1], [0], [0], [1], [0, 0, 1, 1], [], []>} : vector<256x8xf32>, vector<8x8xf32>, vector<256x8xf32> -> vector<256x8xf32>
    %28 = arith.addf %22, %27 : vector<256x8xf32>
    %29 = vector.extract_strided_slice %15 {offsets = [0, 9, 0], sizes = [16, 16, 8], strides = [1, 1, 1]} : vector<18x32x8xf32> to vector<16x16x8xf32>
    %30 = vector.shape_cast %29 : vector<16x16x8xf32> to vector<256x8xf32>
    %c2 = arith.constant 2 : index
    %c0_24 = arith.constant 0 : index
    %c0_25 = arith.constant 0 : index
    %31 = vector.load %arg2[%c2, %c0_24, %c0_25] : memref<9x8x8xf32, #tpu.memory_space<vmem>>, vector<1x8x8xf32>
    %32 = vector.shape_cast %31 : vector<1x8x8xf32> to vector<8x8xf32>
    %cst_26 = arith.constant dense<0.000000e+00> : vector<256x8xf32>
    %33 = tpu.matmul %30, %32, %cst_26 {dimension_numbers = #tpu.dot_dimension_numbers<[1], [0], [0], [1], [0, 0, 1, 1], [], []>} : vector<256x8xf32>, vector<8x8xf32>, vector<256x8xf32> -> vector<256x8xf32>
    %34 = arith.addf %28, %33 : vector<256x8xf32>
    %35 = vector.extract_strided_slice %15 {offsets = [1, 7, 0], sizes = [16, 16, 8], strides = [1, 1, 1]} : vector<18x32x8xf32> to vector<16x16x8xf32>
    %36 = vector.shape_cast %35 : vector<16x16x8xf32> to vector<256x8xf32>
    %c3 = arith.constant 3 : index
    %c0_27 = arith.constant 0 : index
    %c0_28 = arith.constant 0 : index
    %37 = vector.load %arg2[%c3, %c0_27, %c0_28] : memref<9x8x8xf32, #tpu.memory_space<vmem>>, vector<1x8x8xf32>
    %38 = vector.shape_cast %37 : vector<1x8x8xf32> to vector<8x8xf32>
    %cst_29 = arith.constant dense<0.000000e+00> : vector<256x8xf32>
    %39 = tpu.matmul %36, %38, %cst_29 {dimension_numbers = #tpu.dot_dimension_numbers<[1], [0], [0], [1], [0, 0, 1, 1], [], []>} : vector<256x8xf32>, vector<8x8xf32>, vector<256x8xf32> -> vector<256x8xf32>
    %40 = arith.addf %34, %39 : vector<256x8xf32>
    %41 = vector.extract_strided_slice %15 {offsets = [1, 8, 0], sizes = [16, 16, 8], strides = [1, 1, 1]} : vector<18x32x8xf32> to vector<16x16x8xf32>
    %42 = vector.shape_cast %41 : vector<16x16x8xf32> to vector<256x8xf32>
    %c4 = arith.constant 4 : index
    %c0_30 = arith.constant 0 : index
    %c0_31 = arith.constant 0 : index
    %43 = vector.load %arg2[%c4, %c0_30, %c0_31] : memref<9x8x8xf32, #tpu.memory_space<vmem>>, vector<1x8x8xf32>
    %44 = vector.shape_cast %43 : vector<1x8x8xf32> to vector<8x8xf32>
    %cst_32 = arith.constant dense<0.000000e+00> : vector<256x8xf32>
    %45 = tpu.matmul %42, %44, %cst_32 {dimension_numbers = #tpu.dot_dimension_numbers<[1], [0], [0], [1], [0, 0, 1, 1], [], []>} : vector<256x8xf32>, vector<8x8xf32>, vector<256x8xf32> -> vector<256x8xf32>
    %46 = arith.addf %40, %45 : vector<256x8xf32>
    %47 = vector.extract_strided_slice %15 {offsets = [1, 9, 0], sizes = [16, 16, 8], strides = [1, 1, 1]} : vector<18x32x8xf32> to vector<16x16x8xf32>
    %48 = vector.shape_cast %47 : vector<16x16x8xf32> to vector<256x8xf32>
    %c5 = arith.constant 5 : index
    %c0_33 = arith.constant 0 : index
    %c0_34 = arith.constant 0 : index
    %49 = vector.load %arg2[%c5, %c0_33, %c0_34] : memref<9x8x8xf32, #tpu.memory_space<vmem>>, vector<1x8x8xf32>
    %50 = vector.shape_cast %49 : vector<1x8x8xf32> to vector<8x8xf32>
    %cst_35 = arith.constant dense<0.000000e+00> : vector<256x8xf32>
    %51 = tpu.matmul %48, %50, %cst_35 {dimension_numbers = #tpu.dot_dimension_numbers<[1], [0], [0], [1], [0, 0, 1, 1], [], []>} : vector<256x8xf32>, vector<8x8xf32>, vector<256x8xf32> -> vector<256x8xf32>
    %52 = arith.addf %46, %51 : vector<256x8xf32>
    %53 = vector.extract_strided_slice %15 {offsets = [2, 7, 0], sizes = [16, 16, 8], strides = [1, 1, 1]} : vector<18x32x8xf32> to vector<16x16x8xf32>
    %54 = vector.shape_cast %53 : vector<16x16x8xf32> to vector<256x8xf32>
    %c6 = arith.constant 6 : index
    %c0_36 = arith.constant 0 : index
    %c0_37 = arith.constant 0 : index
    %55 = vector.load %arg2[%c6, %c0_36, %c0_37] : memref<9x8x8xf32, #tpu.memory_space<vmem>>, vector<1x8x8xf32>
    %56 = vector.shape_cast %55 : vector<1x8x8xf32> to vector<8x8xf32>
    %cst_38 = arith.constant dense<0.000000e+00> : vector<256x8xf32>
    %57 = tpu.matmul %54, %56, %cst_38 {dimension_numbers = #tpu.dot_dimension_numbers<[1], [0], [0], [1], [0, 0, 1, 1], [], []>} : vector<256x8xf32>, vector<8x8xf32>, vector<256x8xf32> -> vector<256x8xf32>
    %58 = arith.addf %52, %57 : vector<256x8xf32>
    %59 = vector.extract_strided_slice %15 {offsets = [2, 8, 0], sizes = [16, 16, 8], strides = [1, 1, 1]} : vector<18x32x8xf32> to vector<16x16x8xf32>
    %60 = vector.shape_cast %59 : vector<16x16x8xf32> to vector<256x8xf32>
    %c7 = arith.constant 7 : index
    %c0_39 = arith.constant 0 : index
    %c0_40 = arith.constant 0 : index
    %61 = vector.load %arg2[%c7, %c0_39, %c0_40] : memref<9x8x8xf32, #tpu.memory_space<vmem>>, vector<1x8x8xf32>
    %62 = vector.shape_cast %61 : vector<1x8x8xf32> to vector<8x8xf32>
    %cst_41 = arith.constant dense<0.000000e+00> : vector<256x8xf32>
    %63 = tpu.matmul %60, %62, %cst_41 {dimension_numbers = #tpu.dot_dimension_numbers<[1], [0], [0], [1], [0, 0, 1, 1], [], []>} : vector<256x8xf32>, vector<8x8xf32>, vector<256x8xf32> -> vector<256x8xf32>
    %64 = arith.addf %58, %63 : vector<256x8xf32>
    %65 = vector.extract_strided_slice %15 {offsets = [2, 9, 0], sizes = [16, 16, 8], strides = [1, 1, 1]} : vector<18x32x8xf32> to vector<16x16x8xf32>
    %66 = vector.shape_cast %65 : vector<16x16x8xf32> to vector<256x8xf32>
    %c8_42 = arith.constant 8 : index
    %c0_43 = arith.constant 0 : index
    %c0_44 = arith.constant 0 : index
    %67 = vector.load %arg2[%c8_42, %c0_43, %c0_44] : memref<9x8x8xf32, #tpu.memory_space<vmem>>, vector<1x8x8xf32>
    %68 = vector.shape_cast %67 : vector<1x8x8xf32> to vector<8x8xf32>
    %cst_45 = arith.constant dense<0.000000e+00> : vector<256x8xf32>
    %69 = tpu.matmul %66, %68, %cst_45 {dimension_numbers = #tpu.dot_dimension_numbers<[1], [0], [0], [1], [0, 0, 1, 1], [], []>} : vector<256x8xf32>, vector<8x8xf32>, vector<256x8xf32> -> vector<256x8xf32>
    %70 = arith.addf %64, %69 : vector<256x8xf32>
    %71 = vector.shape_cast %70 : vector<256x8xf32> to vector<16x16x8xf32>
    %c0_46 = arith.constant 0 : index
    %c0_47 = arith.constant 0 : index
    %c0_48 = arith.constant 0 : index
    %c0_49 = arith.constant 0 : index
    %72 = vector.load %arg5[%c0_46, %c0_47, %c0_48, %c0_49] : memref<1x16x16x8xf32, #tpu.memory_space<vmem>>, vector<1x16x16x8xf32>
    %73 = vector.shape_cast %72 : vector<1x16x16x8xf32> to vector<16x16x8xf32>
    %74 = vector.shape_cast %71 : vector<16x16x8xf32> to vector<1x16x16x8xf32>
    tpu.vector_store %arg5[%c0_46, %c0_47, %c0_48, %c0_49], %74 {strides = array<i32>} : memref<1x16x16x8xf32, #tpu.memory_space<vmem>>, vector<1x16x16x8xf32>,
    %cst_50 = arith.constant dense<0.000000e+00> : vector<8xf32>
    %75 = vector.multi_reduction <add>, %70, %cst_50 [0] : vector<256x8xf32> to vector<8xf32>
    %76 = vector.shape_cast %75 : vector<8xf32> to vector<1x8xf32>
    %c0_51 = arith.constant 0 : index
    %c0_52 = arith.constant 0 : index
    %c0_53 = arith.constant 0 : index
    %77 = vector.load %arg6[%c0_51, %c0_52, %c0_53] : memref<1x1x8xf32, #tpu.memory_space<vmem>>, vector<1x1x8xf32>
    %78 = vector.shape_cast %77 : vector<1x1x8xf32> to vector<1x8xf32>
    %79 = vector.shape_cast %76 : vector<1x8xf32> to vector<1x1x8xf32>
    tpu.vector_store %arg6[%c0_51, %c0_52, %c0_53], %79 {strides = array<i32>} : memref<1x1x8xf32, #tpu.memory_space<vmem>>, vector<1x1x8xf32>,
    %80 = arith.mulf %70, %70 : vector<256x8xf32>
    %cst_54 = arith.constant dense<0.000000e+00> : vector<8xf32>
    %81 = vector.multi_reduction <add>, %80, %cst_54 [0] : vector<256x8xf32> to vector<8xf32>
    %82 = vector.shape_cast %81 : vector<8xf32> to vector<1x8xf32>
    %c0_55 = arith.constant 0 : index
    %c0_56 = arith.constant 0 : index
    %c0_57 = arith.constant 0 : index
    %83 = vector.load %arg7[%c0_55, %c0_56, %c0_57] : memref<1x1x8xf32, #tpu.memory_space<vmem>>, vector<1x1x8xf32>
    %84 = vector.shape_cast %83 : vector<1x1x8xf32> to vector<1x8xf32>
    %85 = vector.shape_cast %82 : vector<1x8xf32> to vector<1x1x8xf32>
    tpu.vector_store %arg7[%c0_55, %c0_56, %c0_57], %85 {strides = array<i32>} : memref<1x1x8xf32, #tpu.memory_space<vmem>>, vector<1x1x8xf32>,
    return
  }
  func.func @transform_0(%arg0: i32) -> (i32, i32, i32, i32) {
    %c0_i32 = arith.constant 0 : i32
    %c0_i32_0 = arith.constant 0 : i32
    %c0_i32_1 = arith.constant 0 : i32
    %c0_i32_2 = arith.constant 0 : i32
    return %arg0, %c0_i32, %c0_i32_0, %c0_i32_1 : i32, i32, i32, i32
  }
  func.func @transform_1(%arg0: i32) -> (i32, i32, i32) {
    %c0_i32 = arith.constant 0 : i32
    %c0_i32_0 = arith.constant 0 : i32
    %c0_i32_1 = arith.constant 0 : i32
    %c0_i32_2 = arith.constant 0 : i32
    return %c0_i32, %c0_i32_0, %c0_i32_1 : i32, i32, i32
  }
  func.func @transform_2(%arg0: i32) -> (i32, i32) {
    %c0_i32 = arith.constant 0 : i32
    %c0_i32_0 = arith.constant 0 : i32
    %c0_i32_1 = arith.constant 0 : i32
    return %c0_i32, %c0_i32_0 : i32, i32
  }
  func.func @transform_3(%arg0: i32) -> (i32, i32) {
    %c0_i32 = arith.constant 0 : i32
    %c0_i32_0 = arith.constant 0 : i32
    %c0_i32_1 = arith.constant 0 : i32
    return %c0_i32, %c0_i32_0 : i32, i32
  }
  func.func @transform_4(%arg0: i32) -> (i32, i32, i32, i32) {
    %c0_i32 = arith.constant 0 : i32
    %c0_i32_0 = arith.constant 0 : i32
    %c0_i32_1 = arith.constant 0 : i32
    %c0_i32_2 = arith.constant 0 : i32
    return %arg0, %c0_i32, %c0_i32_0, %c0_i32_1 : i32, i32, i32, i32
  }
  func.func @transform_5(%arg0: i32) -> (i32, i32, i32) {
    %c0_i32 = arith.constant 0 : i32
    %c0_i32_0 = arith.constant 0 : i32
    %c0_i32_1 = arith.constant 0 : i32
    return %arg0, %c0_i32, %c0_i32_0 : i32, i32, i32
  }
  func.func @transform_6(%arg0: i32) -> (i32, i32, i32) {
    %c0_i32 = arith.constant 0 : i32
    %c0_i32_0 = arith.constant 0 : i32
    %c0_i32_1 = arith.constant 0 : i32
    return %arg0, %c0_i32, %c0_i32_0 : i32, i32, i32
  }
}

module attributes {stable_mosaic.version = 11 : i64} {
  func.func @_bn_add_relu_kernel(%arg0: i32, %arg1: i32, %arg2: memref<1x8x16x8xf32, #tpu.memory_space<vmem>>, %arg3: memref<1x8x16x8xf32, #tpu.memory_space<vmem>>, %arg4: memref<1x8xf32, #tpu.memory_space<vmem>>, %arg5: memref<1x8xf32, #tpu.memory_space<vmem>>, %arg6: memref<1x8x16x8xf32, #tpu.memory_space<vmem>>) attributes {dimension_semantics = [#tpu.dimension_semantics<parallel>, #tpu.dimension_semantics<parallel>], iteration_bounds = array<i64: 2, 2>, scalar_prefetch = 0 : i64, scratch_operands = 0 : i64, tpu.core_type = #tpu.core_type<tc>, window_params = [{transform_indices = @transform_0, window_bounds = array<i64: 1, 8, 16, 8>}, {transform_indices = @transform_1, window_bounds = array<i64: 1, 8, 16, 8>}, {pipeline_mode = #tpu.pipeline_mode<synchronous>, transform_indices = @transform_2, window_bounds = array<i64: 1, 8>}, {pipeline_mode = #tpu.pipeline_mode<synchronous>, transform_indices = @transform_3, window_bounds = array<i64: 1, 8>}, {transform_indices = @transform_4, window_bounds = array<i64: 1, 8, 16, 8>}]} {
    %c0 = arith.constant 0 : index
    %c0_0 = arith.constant 0 : index
    %c0_1 = arith.constant 0 : index
    %c0_2 = arith.constant 0 : index
    %0 = vector.load %arg2[%c0, %c0_0, %c0_1, %c0_2] : memref<1x8x16x8xf32, #tpu.memory_space<vmem>>, vector<1x8x16x8xf32>
    %c0_3 = arith.constant 0 : index
    %c0_4 = arith.constant 0 : index
    %1 = vector.load %arg4[%c0_3, %c0_4] : memref<1x8xf32, #tpu.memory_space<vmem>>, vector<1x8xf32>
    %2 = vector.shape_cast %1 : vector<1x8xf32> to vector<1x1x1x8xf32>
    %3 = vector.broadcast %2 : vector<1x1x1x8xf32> to vector<1x8x16x8xf32>
    %4 = arith.mulf %0, %3 : vector<1x8x16x8xf32>
    %c0_5 = arith.constant 0 : index
    %c0_6 = arith.constant 0 : index
    %5 = vector.load %arg5[%c0_5, %c0_6] : memref<1x8xf32, #tpu.memory_space<vmem>>, vector<1x8xf32>
    %6 = vector.shape_cast %5 : vector<1x8xf32> to vector<1x1x1x8xf32>
    %7 = vector.broadcast %6 : vector<1x1x1x8xf32> to vector<1x8x16x8xf32>
    %8 = arith.addf %4, %7 : vector<1x8x16x8xf32>
    %c0_7 = arith.constant 0 : index
    %c0_8 = arith.constant 0 : index
    %c0_9 = arith.constant 0 : index
    %c0_10 = arith.constant 0 : index
    %9 = vector.load %arg3[%c0_7, %c0_8, %c0_9, %c0_10] : memref<1x8x16x8xf32, #tpu.memory_space<vmem>>, vector<1x8x16x8xf32>
    %10 = arith.addf %8, %9 : vector<1x8x16x8xf32>
    %cst = arith.constant 0.000000e+00 : f32
    %11 = vector.broadcast %cst : f32 to vector<1x8x16x8xf32>
    %12 = arith.maximumf %10, %11 : vector<1x8x16x8xf32>
    %c0_11 = arith.constant 0 : index
    %c0_12 = arith.constant 0 : index
    %c0_13 = arith.constant 0 : index
    %c0_14 = arith.constant 0 : index
    %13 = vector.load %arg6[%c0_11, %c0_12, %c0_13, %c0_14] : memref<1x8x16x8xf32, #tpu.memory_space<vmem>>, vector<1x8x16x8xf32>
    tpu.vector_store %arg6[%c0_11, %c0_12, %c0_13, %c0_14], %12 {strides = array<i32>} : memref<1x8x16x8xf32, #tpu.memory_space<vmem>>, vector<1x8x16x8xf32>,
    return
  }
  func.func @transform_0(%arg0: i32, %arg1: i32) -> (i32, i32, i32, i32) {
    %c0_i32 = arith.constant 0 : i32
    %c0_i32_0 = arith.constant 0 : i32
    %c0_i32_1 = arith.constant 0 : i32
    return %arg0, %arg1, %c0_i32, %c0_i32_0 : i32, i32, i32, i32
  }
  func.func @transform_1(%arg0: i32, %arg1: i32) -> (i32, i32, i32, i32) {
    %c0_i32 = arith.constant 0 : i32
    %c0_i32_0 = arith.constant 0 : i32
    %c0_i32_1 = arith.constant 0 : i32
    return %arg0, %arg1, %c0_i32, %c0_i32_0 : i32, i32, i32, i32
  }
  func.func @transform_2(%arg0: i32, %arg1: i32) -> (i32, i32) {
    %c0_i32 = arith.constant 0 : i32
    %c0_i32_0 = arith.constant 0 : i32
    %c0_i32_1 = arith.constant 0 : i32
    return %c0_i32, %c0_i32_0 : i32, i32
  }
  func.func @transform_3(%arg0: i32, %arg1: i32) -> (i32, i32) {
    %c0_i32 = arith.constant 0 : i32
    %c0_i32_0 = arith.constant 0 : i32
    %c0_i32_1 = arith.constant 0 : i32
    return %c0_i32, %c0_i32_0 : i32, i32
  }
  func.func @transform_4(%arg0: i32, %arg1: i32) -> (i32, i32, i32, i32) {
    %c0_i32 = arith.constant 0 : i32
    %c0_i32_0 = arith.constant 0 : i32
    %c0_i32_1 = arith.constant 0 : i32
    return %arg0, %arg1, %c0_i32, %c0_i32_0 : i32, i32, i32, i32
  }
}

</mosaic_0001>

<llo_original>
// kernel: restnet_basic_block.5
$region0: #{restnet_basic_block.5}
  #allocation0 [shape = 'u32[]', space=smem, size = 0x4, offset = 0x4, fixed_abs, tag = 'smem constant byte address 0x4 - core index']
  #allocation1 [shape = 'u32[144,128]{1,0:T(1,128)}', space=vmem, size = 0x12000, scoped, tag = 'internal scratch']
  %s0 = inlined_call_operand.vmem [shape: f32[2,16,16,8], index: 0, kind: input, shape index: {}]
  %s1 = inlined_call_operand.vmem [shape: f32[2,16,16,8], index: 1, kind: input, shape index: {}]
  %s2 = inlined_call_operand.vmem [shape: f32[1,8], index: 2, kind: input, shape index: {}]
  %s3 = inlined_call_operand.vmem [shape: f32[1,8], index: 3, kind: input, shape index: {}]
  %s4 = inlined_call_operand.vmem [shape: f32[2,16,16,8], index: 4, kind: output, shape index: {}]
  %s5 = sld [smem:[#allocation0]]
  $region49: #{restnet_basic_block.5} parent=0
    _
  %s7 = ssub.s32 1, %s5
  %s8 = scalar_select 0, %s7, %s5
  loop: start=0, step=1, limit=6
  $region2: #{restnet_basic_block.5} parent=0 // loop_pre_header
    _
  $region3: #{restnet_basic_block.5} parent=0 // loop_header
    %s10 = sphi 0, %s14
    %p11 = scmp.ge.s32.totalorder %s10, 6
    %s17 = sphi 0, %s29
    %s18 = sphi 0, %s25
    %s19 = sphi 0, %s17
    %s20 = sphi 0, %s18
    %s21 = sphi 0, %s19
    %s22 = sphi 0, %s20
    %s34 = sphi 0, %s36
    %s37 = sphi 0, %s34
    %s38 = sphi 0, %s37
    %s54 = sphi 0, %s38
    %s62 = sphi 0, %s64
    %s65 = sphi 0, %s62
    %s66 = sphi 0, %s65
    %s82 = sphi 0, %s66
    %s86 = sphi 0, %s86
    %s88 = sphi 0, %s86
    %s89 = sphi 0, %s88
    %s103 = sphi 0, %s89
    %s107 = sphi 0, %s107
    %s109 = sphi 0, %s107
    %s110 = sphi 0, %s109
    %s124 = sphi 0, %s110
    %s132 = sphi 0, %s134
    %s135 = sphi 0, %s132
    %s136 = sphi 0, %s135
    %s152 = sphi 0, %s136
  $region4: #{restnet_basic_block.5} parent=0 // loop_header_branch
    %13 = sbr.rel (%p11) target = $region8
  $region5: #{restnet_basic_block.5} parent=0 // loop_body
    %s15 = ssub.s32 %s10, 1
    %s16 = ssub.s32 %s10, 2
    %s23 = sadd.s32 1, %s18
    %p24 = scmp.ge.s32.totalorder %s23, 2
    %s25 = scalar_select %p24, 0, %s23
    %s26 = sadd.s32 1, %s17
    %s27 = scalar_select %p24, %s26, %s17
    %p28 = scmp.ge.s32.totalorder %s27, 2
    %s29 = scalar_select %p28, 0, %s27
    %s30 = ssub.s32 %s17, %s29
    %s31 = ssub.s32 %s18, %s25
    %s32 = sor.u32 %s30, %s31
    %p33 = scmp.eq.s32.totalorder %s32, 0
    %s35 = sadd.s32 %s34, 1
    %s36 = scalar_select %p33, %s34, %s35
    %p39 = pneg %p33
    %p40 = scmp.eq.s32.totalorder %s10, 3
    %p41 = por %p39, %p40
    %p42 = scmp.ne.s32.totalorder %s34, %s37
    %p43 = scmp.eq.s32.totalorder %s10, 0
    %p44 = por %p42, %p43
    %p45 = scmp.ne.s32.totalorder %s34, %s37
    %p46 = scmp.eq.s32.totalorder %s15, 3
    %p47 = por %p45, %p46
    %p48 = scmp.ne.s32.totalorder %s37, %s38
    %p49 = scmp.eq.s32.totalorder %s15, 0
    %p50 = por %p48, %p49
    %p51 = scmp.ne.s32.totalorder %s37, %s38
    %p52 = scmp.eq.s32.totalorder %s16, 3
    %p53 = por %p51, %p52
    %p55 = scmp.ne.s32.totalorder %s38, %s54
    %p56 = scmp.eq.s32.totalorder %s16, 0
    %p57 = por %p55, %p56
    %s58 = ssub.s32 %s17, %s29
    %s59 = ssub.s32 %s18, %s25
    %s60 = sor.u32 %s58, %s59
    %p61 = scmp.eq.s32.totalorder %s60, 0
    %s63 = sadd.s32 %s62, 1
    %s64 = scalar_select %p61, %s62, %s63
    %p67 = pneg %p61
    %p68 = scmp.eq.s32.totalorder %s10, 3
    %p69 = por %p67, %p68
    %p70 = scmp.ne.s32.totalorder %s62, %s65
    %p71 = scmp.eq.s32.totalorder %s10, 0
    %p72 = por %p70, %p71
    %p73 = scmp.ne.s32.totalorder %s62, %s65
    %p74 = scmp.eq.s32.totalorder %s15, 3
    %p75 = por %p73, %p74
    %p76 = scmp.ne.s32.totalorder %s65, %s66
    %p77 = scmp.eq.s32.totalorder %s15, 0
    %p78 = por %p76, %p77
    %p79 = scmp.ne.s32.totalorder %s65, %s66
    %p80 = scmp.eq.s32.totalorder %s16, 3
    %p81 = por %p79, %p80
    %p83 = scmp.ne.s32.totalorder %s66, %s82
    %p84 = scmp.eq.s32.totalorder %s16, 0
    %p85 = por %p83, %p84
    %s87 = sadd.s32 %s86, 1
    %p90 = scmp.eq.s32.totalorder %s10, 3
    %p91 = scmp.ne.s32.totalorder %s86, %s88
    %p92 = scmp.eq.s32.totalorder %s10, 0
    %p93 = por %p91, %p92
    %p94 = scmp.ne.s32.totalorder %s86, %s88
    %p95 = scmp.eq.s32.totalorder %s15, 3
    %p96 = por %p94, %p95
    %p97 = scmp.ne.s32.totalorder %s88, %s89
    %p98 = scmp.eq.s32.totalorder %s15, 0
    %p99 = por %p97, %p98
    %p100 = scmp.ne.s32.totalorder %s88, %s89
    %p101 = scmp.eq.s32.totalorder %s16, 3
    %p102 = por %p100, %p101
    %p104 = scmp.ne.s32.totalorder %s89, %s103
    %p105 = scmp.eq.s32.totalorder %s16, 0
    %p106 = por %p104, %p105
    %s108 = sadd.s32 %s107, 1
    %p111 = scmp.eq.s32.totalorder %s10, 3
    %p112 = scmp.ne.s32.totalorder %s107, %s109
    %p113 = scmp.eq.s32.totalorder %s10, 0
    %p114 = por %p112, %p113
    %p115 = scmp.ne.s32.totalorder %s107, %s109
    %p116 = scmp.eq.s32.totalorder %s15, 3
    %p117 = por %p115, %p116
    %p118 = scmp.ne.s32.totalorder %s109, %s110
    %p119 = scmp.eq.s32.totalorder %s15, 0
    %p120 = por %p118, %p119
    %p121 = scmp.ne.s32.totalorder %s109, %s110
    %p122 = scmp.eq.s32.totalorder %s16, 3
    %p123 = por %p121, %p122
    %p125 = scmp.ne.s32.totalorder %s110, %s124
    %p126 = scmp.eq.s32.totalorder %s16, 0
    %p127 = por %p125, %p126
    %s128 = ssub.s32 %s17, %s29
    %s129 = ssub.s32 %s18, %s25
    %s130 = sor.u32 %s128, %s129
    %p131 = scmp.eq.s32.totalorder %s130, 0
    %s133 = sadd.s32 %s132, 1
    %s134 = scalar_select %p131, %s132, %s133
    %p137 = pneg %p131
    %p138 = scmp.eq.s32.totalorder %s10, 3
    %p139 = por %p137, %p138
    %p140 = scmp.ne.s32.totalorder %s132, %s135
    %p141 = scmp.eq.s32.totalorder %s10, 0
    %p142 = por %p140, %p141
    %p143 = scmp.ne.s32.totalorder %s132, %s135
    %p144 = scmp.eq.s32.totalorder %s15, 3
    %p145 = por %p143, %p144
    %p146 = scmp.ne.s32.totalorder %s135, %s136
    %p147 = scmp.eq.s32.totalorder %s15, 0
    %p148 = por %p146, %p147
    %p149 = scmp.ne.s32.totalorder %s135, %s136
    %p150 = scmp.eq.s32.totalorder %s16, 3
    %p151 = por %p149, %p150
    %p153 = scmp.ne.s32.totalorder %s136, %s152
    %p154 = scmp.eq.s32.totalorder %s16, 0
    %p155 = por %p153, %p154
    %p156 = scmp.le.s32.totalorder 1, %s10
    %p157 = scmp.lt.s32.totalorder %s10, 5
    %p158 = pnand %p156, %p157
    %p159 = pneg %p158
    // Predicated region
    $region9: #{restnet_basic_block.5} parent=5 // pred_check
      _
    $region10: #{restnet_basic_block.5} parent=5 // pred_check_branch
      %161 = sbr.rel (%p158) target = $region12
    $region11: #{restnet_basic_block.5} parent=5 // pred_region
      %s162 = ssub.s32 %s10, 1
      // Predicated region
      $region13: #{restnet_basic_block.5} parent=11 // pred_check
        %p163 = pneg %p99
      $region14: #{restnet_basic_block.5} parent=11 // pred_check_branch
        %165 = sbr.rel (%p163) target = $region16
      $region15: #{restnet_basic_block.5} parent=11 // pred_region
        _
      $region16: #{restnet_basic_block.5} parent=11 // pred_fallthru
        _
      // Predicated region
      $region17: #{restnet_basic_block.5} parent=11 // pred_check
        %p166 = pneg %p120
      $region18: #{restnet_basic_block.5} parent=11 // pred_check_branch
        %168 = sbr.rel (%p166) target = $region20
      $region19: #{restnet_basic_block.5} parent=11 // pred_region
        _
      $region20: #{restnet_basic_block.5} parent=11 // pred_fallthru
        _
    $region12: #{restnet_basic_block.5} parent=5 // pred_fallthru
      _
    %p169 = scmp.lt.s32.totalorder %s10, 4
    // Predicated region
    $region21: #{restnet_basic_block.5} parent=5 // pred_check
      %p170 = pneg %p169
    $region22: #{restnet_basic_block.5} parent=5 // pred_check_branch
      %172 = sbr.rel (%p170) target = $region24
    $region23: #{restnet_basic_block.5} parent=5 // pred_region
      // Predicated region
      $region25: #{restnet_basic_block.5} parent=23 // pred_check
        %p173 = pneg %p44
      $region26: #{restnet_basic_block.5} parent=23 // pred_check_branch
        %175 = sbr.rel (%p173) target = $region28
      $region27: #{restnet_basic_block.5} parent=23 // pred_region
        %s176 = smul.u32 8, %s18
        %p177 = scmp.lt.s32.totalorder %s17, 1
        %s178 = scalar_select %p177, %s17, 1
        %p179 = scmp.lt.s32.totalorder %s176, 15
        %s180 = scalar_select %p179, %s176, 15
        %s181 = smul.addr %s180, 2
        %s182 = smul.addr %s178, 32
        %s183 = sadd.s32 %s181, %s182
        %s184 = smul.addr %s183, 8
        %s185 = scalar_lea.vmem %s0, %s184
        %s186 = smul.u32 8, %s18
      $region28: #{restnet_basic_block.5} parent=23 // pred_fallthru
        _
      // Predicated region
      $region29: #{restnet_basic_block.5} parent=23 // pred_check
        %p187 = pneg %p72
      $region30: #{restnet_basic_block.5} parent=23 // pred_check_branch
        %189 = sbr.rel (%p187) target = $region32
      $region31: #{restnet_basic_block.5} parent=23 // pred_region
        %s190 = smul.u32 8, %s18
        %p191 = scmp.lt.s32.totalorder %s17, 1
        %s192 = scalar_select %p191, %s17, 1
        %p193 = scmp.lt.s32.totalorder %s190, 15
        %s194 = scalar_select %p193, %s190, 15
        %s195 = smul.addr %s194, 2
        %s196 = smul.addr %s192, 32
        %s197 = sadd.s32 %s195, %s196
        %s198 = smul.addr %s197, 8
        %s199 = scalar_lea.vmem %s1, %s198
        %s200 = smul.u32 8, %s18
      $region32: #{restnet_basic_block.5} parent=23 // pred_fallthru
        _
    $region24: #{restnet_basic_block.5} parent=5 // pred_fallthru
      _
    %p201 = scmp.le.s32.totalorder 1, %s10
    %p202 = scmp.lt.s32.totalorder %s10, 5
    %p203 = pnand %p201, %p202
    %p204 = pneg %p203
    // Predicated region
    $region33: #{restnet_basic_block.5} parent=5 // pred_check
      _
    $region34: #{restnet_basic_block.5} parent=5 // pred_check_branch
      %206 = sbr.rel (%p203) target = $region36
    $region35: #{restnet_basic_block.5} parent=5 // pred_region
      %s207 = ssub.s32 %s10, 1
      %s208 = smul.u32 8, %s20
      %p209 = scmp.lt.s32.totalorder %s19, 1
      %s210 = scalar_select %p209, %s19, 1
      %p211 = scmp.lt.s32.totalorder %s208, 15
      %s212 = scalar_select %p211, %s208, 15
      %s213 = smul.addr %s212, 2
      %s214 = smul.addr %s210, 32
      %s215 = sadd.s32 %s213, %s214
      %s216 = smul.addr %s215, 8
      %s217 = scalar_lea.vmem %s0, %s216
      %p218 = pneg %p50
      %p219 = pneg %p47
      %s220 = smul.u32 8, %s20
      %p221 = scmp.lt.s32.totalorder %s19, 1
      %s222 = scalar_select %p221, %s19, 1
      %p223 = scmp.lt.s32.totalorder %s220, 15
      %s224 = scalar_select %p223, %s220, 15
      %s225 = smul.addr %s224, 2
      %s226 = smul.addr %s222, 32
      %s227 = sadd.s32 %s225, %s226
      %s228 = smul.addr %s227, 8
      %s229 = scalar_lea.vmem %s1, %s228
      %p230 = pneg %p78
      %p231 = pneg %p75
      %p232 = pneg %p99
      %p233 = pneg %p96
      %p234 = pneg %p120
      %p235 = pneg %p117
      %p236 = pneg %p148
      %p237 = pneg %p145
      %s238 = smul.u32 8, %s20
      %p239 = scmp.lt.s32.totalorder %s19, 1
      %s240 = scalar_select %p239, %s19, 1
      %p241 = scmp.lt.s32.totalorder %s238, 15
      %s242 = scalar_select %p241, %s238, 15
      %s243 = smul.addr %s242, 2
      %s244 = smul.addr %s240, 32
      %s245 = sadd.s32 %s243, %s244
      %s246 = smul.addr %s245, 8
      %s247 = scalar_lea.vmem %s4, %s246
      %s248 = smul.u32 8, %s20
      %p249 = scmp.lt.s32.totalorder %s19, 1
      %s250 = scalar_select %p249, %s19, 1
      %p251 = scmp.lt.s32.totalorder %s248, 15
      %s252 = scalar_select %p251, %s248, 15
      %s253 = smul.addr %s252, 2
      %s254 = smul.addr %s250, 32
      %s255 = sadd.s32 %s253, %s254
      %s256 = smul.addr %s255, 8
      %s257 = scalar_lea.vmem %s0, %s256
      %s258 = smul.u32 8, %s20
      %s259 = smul.u32 8, %s20
      %p260 = scmp.lt.s32.totalorder %s19, 1
      %s261 = scalar_select %p260, %s19, 1
      %p262 = scmp.lt.s32.totalorder %s259, 15
      %s263 = scalar_select %p262, %s259, 15
      %s264 = smul.addr %s263, 2
      %s265 = smul.addr %s261, 32
      %s266 = sadd.s32 %s264, %s265
      %s267 = smul.addr %s266, 8
      %s268 = scalar_lea.vmem %s1, %s267
      %s269 = smul.u32 8, %s20
      %s270 = smul.u32 8, %s20
      %p271 = scmp.lt.s32.totalorder %s19, 1
      %s272 = scalar_select %p271, %s19, 1
      %p273 = scmp.lt.s32.totalorder %s270, 15
      %s274 = scalar_select %p273, %s270, 15
      %s275 = smul.addr %s274, 2
      %s276 = smul.addr %s272, 32
      %s277 = sadd.s32 %s275, %s276
      %s278 = smul.addr %s277, 8
      %s279 = scalar_lea.vmem %s4, %s278
      %s280 = smul.u32 8, %s20
      %v281 = vld [vmem:[%s257] sm:$0xff]
      %v282 = vld [vmem:[%s257 + $0x8] sm:$0xff]
      %v283 = vld [vmem:[%s257 + $0x10] sm:$0xff]
      %v284 = vld [vmem:[%s257 + $0x18] sm:$0xff]
      %v285 = vld [vmem:[%s257 + $0x20] sm:$0xff]
      %v286 = vld [vmem:[%s257 + $0x28] sm:$0xff]
      %v287 = vld [vmem:[%s257 + $0x30] sm:$0xff]
      %v288 = vld [vmem:[%s257 + $0x38] sm:$0xff]
      %v289 = vld [vmem:[%s257 + $0x40] sm:$0xff]
      %v290 = vld [vmem:[%s257 + $0x48] sm:$0xff]
      %v291 = vld [vmem:[%s257 + $0x50] sm:$0xff]
      %v292 = vld [vmem:[%s257 + $0x58] sm:$0xff]
      %v293 = vld [vmem:[%s257 + $0x60] sm:$0xff]
      %v294 = vld [vmem:[%s257 + $0x68] sm:$0xff]
      %v295 = vld [vmem:[%s257 + $0x70] sm:$0xff]
      %v296 = vld [vmem:[%s257 + $0x78] sm:$0xff]
      %v297 = vld [vmem:[%s2] sm:$0x1]
      %v299 = vlaneseq
      %v300 = vshrl.u32 %v299, 7
      %v301 = vsub.s32 0, %v300
      %v302 = vrot.slane %v297, %v301
      %v304 = vmul.f32 %v281, %v302
      %v305 = vmul.f32 %v282, %v302
      %v306 = vmul.f32 %v283, %v302
      %v307 = vmul.f32 %v284, %v302
      %v308 = vmul.f32 %v285, %v302
      %v309 = vmul.f32 %v286, %v302
      %v310 = vmul.f32 %v287, %v302
      %v311 = vmul.f32 %v288, %v302
      %v312 = vmul.f32 %v289, %v302
      %v313 = vmul.f32 %v290, %v302
      %v314 = vmul.f32 %v291, %v302
      %v315 = vmul.f32 %v292, %v302
      %v316 = vmul.f32 %v293, %v302
      %v317 = vmul.f32 %v294, %v302
      %v318 = vmul.f32 %v295, %v302
      %v319 = vmul.f32 %v296, %v302
      %v320 = vld [vmem:[%s3] sm:$0x1]
      %v322 = vlaneseq
      %v323 = vshrl.u32 %v322, 7
      %v324 = vsub.s32 0, %v323
      %v325 = vrot.slane %v320, %v324
      %v327 = vadd.f32 %v304, %v325
      %v328 = vadd.f32 %v305, %v325
      %v329 = vadd.f32 %v306, %v325
      %v330 = vadd.f32 %v307, %v325
      %v331 = vadd.f32 %v308, %v325
      %v332 = vadd.f32 %v309, %v325
      %v333 = vadd.f32 %v310, %v325
      %v334 = vadd.f32 %v311, %v325
      %v335 = vadd.f32 %v312, %v325
      %v336 = vadd.f32 %v313, %v325
      %v337 = vadd.f32 %v314, %v325
      %v338 = vadd.f32 %v315, %v325
      %v339 = vadd.f32 %v316, %v325
      %v340 = vadd.f32 %v317, %v325
      %v341 = vadd.f32 %v318, %v325
      %v342 = vadd.f32 %v319, %v325
      %v343 = vld [vmem:[%s268] sm:$0xff]
      %v344 = vld [vmem:[%s268 + $0x8] sm:$0xff]
      %v345 = vld [vmem:[%s268 + $0x10] sm:$0xff]
      %v346 = vld [vmem:[%s268 + $0x18] sm:$0xff]
      %v347 = vld [vmem:[%s268 + $0x20] sm:$0xff]
      %v348 = vld [vmem:[%s268 + $0x28] sm:$0xff]
      %v349 = vld [vmem:[%s268 + $0x30] sm:$0xff]
      %v350 = vld [vmem:[%s268 + $0x38] sm:$0xff]
      %v351 = vld [vmem:[%s268 + $0x40] sm:$0xff]
      %v352 = vld [vmem:[%s268 + $0x48] sm:$0xff]
      %v353 = vld [vmem:[%s268 + $0x50] sm:$0xff]
      %v354 = vld [vmem:[%s268 + $0x58] sm:$0xff]
      %v355 = vld [vmem:[%s268 + $0x60] sm:$0xff]
      %v356 = vld [vmem:[%s268 + $0x68] sm:$0xff]
      %v357 = vld [vmem:[%s268 + $0x70] sm:$0xff]
      %v358 = vld [vmem:[%s268 + $0x78] sm:$0xff]
      %v359 = vadd.f32 %v327, %v343
      %v360 = vadd.f32 %v328, %v344
      %v361 = vadd.f32 %v329, %v345
      %v362 = vadd.f32 %v330, %v346
      %v363 = vadd.f32 %v331, %v347
      %v364 = vadd.f32 %v332, %v348
      %v365 = vadd.f32 %v333, %v349
      %v366 = vadd.f32 %v334, %v350
      %v367 = vadd.f32 %v335, %v351
      %v368 = vadd.f32 %v336, %v352
      %v369 = vadd.f32 %v337, %v353
      %v370 = vadd.f32 %v338, %v354
      %v371 = vadd.f32 %v339, %v355
      %v372 = vadd.f32 %v340, %v356
      %v373 = vadd.f32 %v341, %v357
      %v374 = vadd.f32 %v342, %v358
      %v375 = vmax.f32 %v359, 0.0
      %v376 = vmax.f32 %v360, 0.0
      %v377 = vmax.f32 %v361, 0.0
      %v378 = vmax.f32 %v362, 0.0
      %v379 = vmax.f32 %v363, 0.0
      %v380 = vmax.f32 %v364, 0.0
      %v381 = vmax.f32 %v365, 0.0
      %v382 = vmax.f32 %v366, 0.0
      %v383 = vmax.f32 %v367, 0.0
      %v384 = vmax.f32 %v368, 0.0
      %v385 = vmax.f32 %v369, 0.0
      %v386 = vmax.f32 %v370, 0.0
      %v387 = vmax.f32 %v371, 0.0
      %v388 = vmax.f32 %v372, 0.0
      %v389 = vmax.f32 %v373, 0.0
      %v390 = vmax.f32 %v374, 0.0
      %vm391 = vcmask 64512
      %392 = vst.msk [vmem:[%s279] sm:$0xff] %vm391, %v375
      %393 = vst.msk [vmem:[%s279 + $0x8] sm:$0xff] %vm391, %v376
      %394 = vst.msk [vmem:[%s279 + $0x10] sm:$0xff] %vm391, %v377
      %395 = vst.msk [vmem:[%s279 + $0x18] sm:$0xff] %vm391, %v378
      %396 = vst.msk [vmem:[%s279 + $0x20] sm:$0xff] %vm391, %v379
      %397 = vst.msk [vmem:[%s279 + $0x28] sm:$0xff] %vm391, %v380
      %398 = vst.msk [vmem:[%s279 + $0x30] sm:$0xff] %vm391, %v381
      %399 = vst.msk [vmem:[%s279 + $0x38] sm:$0xff] %vm391, %v382
      %400 = vst.msk [vmem:[%s279 + $0x40] sm:$0xff] %vm391, %v383
      %401 = vst.msk [vmem:[%s279 + $0x48] sm:$0xff] %vm391, %v384
      %402 = vst.msk [vmem:[%s279 + $0x50] sm:$0xff] %vm391, %v385
      %403 = vst.msk [vmem:[%s279 + $0x58] sm:$0xff] %vm391, %v386
      %404 = vst.msk [vmem:[%s279 + $0x60] sm:$0xff] %vm391, %v387
      %405 = vst.msk [vmem:[%s279 + $0x68] sm:$0xff] %vm391, %v388
      %406 = vst.msk [vmem:[%s279 + $0x70] sm:$0xff] %vm391, %v389
      %407 = vst.msk [vmem:[%s279 + $0x78] sm:$0xff] %vm391, %v390
      %s408 = smul.u32 8, %s20
      %p409 = scmp.lt.s32.totalorder %s19, 1
      %s410 = scalar_select %p409, %s19, 1
      %p411 = scmp.lt.s32.totalorder %s408, 15
      %s412 = scalar_select %p411, %s408, 15
      %s413 = smul.addr %s412, 2
      %s414 = smul.addr %s410, 32
      %s415 = sadd.s32 %s413, %s414
      %s416 = smul.addr %s415, 8
      %s417 = scalar_lea.vmem %s4, %s416
      // Predicated region
      $region37: #{restnet_basic_block.5} parent=35 // pred_check
        %p418 = pneg %p145
      $region38: #{restnet_basic_block.5} parent=35 // pred_check_branch
        %420 = sbr.rel (%p418) target = $region40
      $region39: #{restnet_basic_block.5} parent=35 // pred_region
        %s421 = smul.u32 8, %s20
      $region40: #{restnet_basic_block.5} parent=35 // pred_fallthru
        _
    $region36: #{restnet_basic_block.5} parent=5 // pred_fallthru
      _
    %p422 = scmp.le.s32.totalorder 2, %s10
    // Predicated region
    $region41: #{restnet_basic_block.5} parent=5 // pred_check
      %p423 = pneg %p422
    $region42: #{restnet_basic_block.5} parent=5 // pred_check_branch
      %425 = sbr.rel (%p423) target = $region44
    $region43: #{restnet_basic_block.5} parent=5 // pred_region
      %s426 = ssub.s32 %s10, 2
      // Predicated region
      $region45: #{restnet_basic_block.5} parent=43 // pred_check
        %p427 = pneg %p151
      $region46: #{restnet_basic_block.5} parent=43 // pred_check_branch
        %429 = sbr.rel (%p427) target = $region48
      $region47: #{restnet_basic_block.5} parent=43 // pred_region
        %s430 = smul.u32 8, %s22
        %p431 = scmp.lt.s32.totalorder %s21, 1
        %s432 = scalar_select %p431, %s21, 1
        %p433 = scmp.lt.s32.totalorder %s430, 15
        %s434 = scalar_select %p433, %s430, 15
        %s435 = smul.addr %s434, 2
        %s436 = smul.addr %s432, 32
        %s437 = sadd.s32 %s435, %s436
        %s438 = smul.addr %s437, 8
        %s439 = scalar_lea.vmem %s4, %s438
      $region48: #{restnet_basic_block.5} parent=43 // pred_fallthru
        _
    $region44: #{restnet_basic_block.5} parent=5 // pred_fallthru
      _
  $region6: #{restnet_basic_block.5} parent=0 // loop_footer
    %s14 = sadd.s32 1, %s10
  $region7: #{restnet_basic_block.5} parent=0 // loop_footer_branch
    %9 = sbr.rel target = $region3
  $region8: #{restnet_basic_block.5} parent=0 // loop_exit
    _

// kernel: restnet_basic_block.3
$region0: #{restnet_basic_block.3}
  #allocation0 [shape = 'u32[]', space=smem, size = 0x4, offset = 0x4, fixed_abs, tag = 'smem constant byte address 0x4 - core index']
  #allocation1 [shape = 'u32[144,128]{1,0:T(1,128)}', space=vmem, size = 0x12000, scoped, tag = 'internal scratch']
  #allocation2 [shape = 'f32[18,32,8]{2,1,0:T(8,128)}', space=vmem, size = 0x48000, scoped, tag = 'scratch operand']
  %s0 = inlined_call_operand.vmem [shape: f32[2,16,16,8], index: 0, kind: input, shape index: {}]
  %s1 = inlined_call_operand.vmem [shape: f32[9,8,8], index: 1, kind: input, shape index: {}]
  %s2 = inlined_call_operand.vmem [shape: f32[2,16,16,8], index: 2, kind: output, shape index: {0}]
  %s3 = inlined_call_operand.vmem [shape: f32[2,1,8], index: 3, kind: output, shape index: {1}]
  %s4 = inlined_call_operand.vmem [shape: f32[2,1,8], index: 4, kind: output, shape index: {2}]
  %5 = xla_tuple %s2, %s3, %s4
  %s6 = sld [smem:[#allocation0]]
  $region57: #{restnet_basic_block.3} parent=0
    _
  %s8 = ssub.s32 1, %s6
  %s9 = scalar_select 0, %s8, %s6
  loop: start=0, step=1, limit=4
  $region2: #{restnet_basic_block.3} parent=0 // loop_pre_header
    _
  $region3: #{restnet_basic_block.3} parent=0 // loop_header
    %s11 = sphi 0, %s15
    %p12 = scmp.ge.s32.totalorder %s11, 4
    %s21 = sphi 0, %s23
    %s24 = sphi 0, %s21
    %s25 = sphi 0, %s24
    %s41 = sphi 0, %s25
    %s45 = sphi 0, %s45
    %s47 = sphi 0, %s45
    %s48 = sphi 0, %s47
    %s62 = sphi 0, %s48
    %s68 = sphi 0, %s70
    %s71 = sphi 0, %s68
    %s72 = sphi 0, %s71
    %s88 = sphi 0, %s72
    %s94 = sphi 0, %s96
    %s97 = sphi 0, %s94
    %s98 = sphi 0, %s97
    %s114 = sphi 0, %s98
    %s120 = sphi 0, %s122
    %s123 = sphi 0, %s120
    %s124 = sphi 0, %s123
    %s140 = sphi 0, %s124
  $region4: #{restnet_basic_block.3} parent=0 // loop_header_branch
    %14 = sbr.rel (%p12) target = $region8
  $region5: #{restnet_basic_block.3} parent=0 // loop_body
    %s16 = ssub.s32 %s11, 1
    %s17 = ssub.s32 %s11, 2
    %s18 = sadd.s32 %s11, 1
    %s19 = ssub.s32 %s11, %s18
    %p20 = scmp.eq.s32.totalorder %s19, 0
    %s22 = sadd.s32 %s21, 1
    %s23 = scalar_select %p20, %s21, %s22
    %p26 = pneg %p20
    %p27 = scmp.eq.s32.totalorder %s11, 1
    %p28 = por %p26, %p27
    %p29 = scmp.ne.s32.totalorder %s21, %s24
    %p30 = scmp.eq.s32.totalorder %s11, 0
    %p31 = por %p29, %p30
    %p32 = scmp.ne.s32.totalorder %s21, %s24
    %p33 = scmp.eq.s32.totalorder %s16, 1
    %p34 = por %p32, %p33
    %p35 = scmp.ne.s32.totalorder %s24, %s25
    %p36 = scmp.eq.s32.totalorder %s16, 0
    %p37 = por %p35, %p36
    %p38 = scmp.ne.s32.totalorder %s24, %s25
    %p39 = scmp.eq.s32.totalorder %s17, 1
    %p40 = por %p38, %p39
    %p42 = scmp.ne.s32.totalorder %s25, %s41
    %p43 = scmp.eq.s32.totalorder %s17, 0
    %p44 = por %p42, %p43
    %s46 = sadd.s32 %s45, 1
    %p49 = scmp.eq.s32.totalorder %s11, 1
    %p50 = scmp.ne.s32.totalorder %s45, %s47
    %p51 = scmp.eq.s32.totalorder %s11, 0
    %p52 = por %p50, %p51
    %p53 = scmp.ne.s32.totalorder %s45, %s47
    %p54 = scmp.eq.s32.totalorder %s16, 1
    %p55 = por %p53, %p54
    %p56 = scmp.ne.s32.totalorder %s47, %s48
    %p57 = scmp.eq.s32.totalorder %s16, 0
    %p58 = por %p56, %p57
    %p59 = scmp.ne.s32.totalorder %s47, %s48
    %p60 = scmp.eq.s32.totalorder %s17, 1
    %p61 = por %p59, %p60
    %p63 = scmp.ne.s32.totalorder %s48, %s62
    %p64 = scmp.eq.s32.totalorder %s17, 0
    %p65 = por %p63, %p64
    %s66 = ssub.s32 %s11, %s18
    %p67 = scmp.eq.s32.totalorder %s66, 0
    %s69 = sadd.s32 %s68, 1
    %s70 = scalar_select %p67, %s68, %s69
    %p73 = pneg %p67
    %p74 = scmp.eq.s32.totalorder %s11, 1
    %p75 = por %p73, %p74
    %p76 = scmp.ne.s32.totalorder %s68, %s71
    %p77 = scmp.eq.s32.totalorder %s11, 0
    %p78 = por %p76, %p77
    %p79 = scmp.ne.s32.totalorder %s68, %s71
    %p80 = scmp.eq.s32.totalorder %s16, 1
    %p81 = por %p79, %p80
    %p82 = scmp.ne.s32.totalorder %s71, %s72
    %p83 = scmp.eq.s32.totalorder %s16, 0
    %p84 = por %p82, %p83
    %p85 = scmp.ne.s32.totalorder %s71, %s72
    %p86 = scmp.eq.s32.totalorder %s17, 1
    %p87 = por %p85, %p86
    %p89 = scmp.ne.s32.totalorder %s72, %s88
    %p90 = scmp.eq.s32.totalorder %s17, 0
    %p91 = por %p89, %p90
    %s92 = ssub.s32 %s11, %s18
    %p93 = scmp.eq.s32.totalorder %s92, 0
    %s95 = sadd.s32 %s94, 1
    %s96 = scalar_select %p93, %s94, %s95
    %p99 = pneg %p93
    %p100 = scmp.eq.s32.totalorder %s11, 1
    %p101 = por %p99, %p100
    %p102 = scmp.ne.s32.totalorder %s94, %s97
    %p103 = scmp.eq.s32.totalorder %s11, 0
    %p104 = por %p102, %p103
    %p105 = scmp.ne.s32.totalorder %s94, %s97
    %p106 = scmp.eq.s32.totalorder %s16, 1
    %p107 = por %p105, %p106
    %p108 = scmp.ne.s32.totalorder %s97, %s98
    %p109 = scmp.eq.s32.totalorder %s16, 0
    %p110 = por %p108, %p109
    %p111 = scmp.ne.s32.totalorder %s97, %s98
    %p112 = scmp.eq.s32.totalorder %s17, 1
    %p113 = por %p111, %p112
    %p115 = scmp.ne.s32.totalorder %s98, %s114
    %p116 = scmp.eq.s32.totalorder %s17, 0
    %p117 = por %p115, %p116
    %s118 = ssub.s32 %s11, %s18
    %p119 = scmp.eq.s32.totalorder %s118, 0
    %s121 = sadd.s32 %s120, 1
    %s122 = scalar_select %p119, %s120, %s121
    %p125 = pneg %p119
    %p126 = scmp.eq.s32.totalorder %s11, 1
    %p127 = por %p125, %p126
    %p128 = scmp.ne.s32.totalorder %s120, %s123
    %p129 = scmp.eq.s32.totalorder %s11, 0
    %p130 = por %p128, %p129
    %p131 = scmp.ne.s32.totalorder %s120, %s123
    %p132 = scmp.eq.s32.totalorder %s16, 1
    %p133 = por %p131, %p132
    %p134 = scmp.ne.s32.totalorder %s123, %s124
    %p135 = scmp.eq.s32.totalorder %s16, 0
    %p136 = por %p134, %p135
    %p137 = scmp.ne.s32.totalorder %s123, %s124
    %p138 = scmp.eq.s32.totalorder %s17, 1
    %p139 = por %p137, %p138
    %p141 = scmp.ne.s32.totalorder %s124, %s140
    %p142 = scmp.eq.s32.totalorder %s17, 0
    %p143 = por %p141, %p142
    %p144 = scmp.le.s32.totalorder 1, %s11
    %p145 = scmp.lt.s32.totalorder %s11, 3
    %p146 = pnand %p144, %p145
    %p147 = pneg %p146
    // Predicated region
    $region9: #{restnet_basic_block.3} parent=5 // pred_check
      _
    $region10: #{restnet_basic_block.3} parent=5 // pred_check_branch
      %149 = sbr.rel (%p146) target = $region12
    $region11: #{restnet_basic_block.3} parent=5 // pred_region
      %s150 = ssub.s32 %s11, 1
      // Predicated region
      $region13: #{restnet_basic_block.3} parent=11 // pred_check
        %p151 = pneg %p58
      $region14: #{restnet_basic_block.3} parent=11 // pred_check_branch
        %153 = sbr.rel (%p151) target = $region16
      $region15: #{restnet_basic_block.3} parent=11 // pred_region
        _
      $region16: #{restnet_basic_block.3} parent=11 // pred_fallthru
        _
    $region12: #{restnet_basic_block.3} parent=5 // pred_fallthru
      _
    %p154 = scmp.lt.s32.totalorder %s11, 2
    // Predicated region
    $region17: #{restnet_basic_block.3} parent=5 // pred_check
      %p155 = pneg %p154
    $region18: #{restnet_basic_block.3} parent=5 // pred_check_branch
      %157 = sbr.rel (%p155) target = $region20
    $region19: #{restnet_basic_block.3} parent=5 // pred_region
      // Predicated region
      $region21: #{restnet_basic_block.3} parent=19 // pred_check
        %p158 = pneg %p31
      $region22: #{restnet_basic_block.3} parent=19 // pred_check_branch
        %160 = sbr.rel (%p158) target = $region24
      $region23: #{restnet_basic_block.3} parent=19 // pred_region
        %p161 = scmp.lt.s32.totalorder %s11, 1
        %s162 = scalar_select %p161, %s11, 1
        %s163 = smul.addr %s162, 32
        %s164 = smul.addr %s163, 8
        %s165 = scalar_lea.vmem %s0, %s164
      $region24: #{restnet_basic_block.3} parent=19 // pred_fallthru
        _
    $region20: #{restnet_basic_block.3} parent=5 // pred_fallthru
      _
    %p166 = scmp.le.s32.totalorder 1, %s11
    %p167 = scmp.lt.s32.totalorder %s11, 3
    %p168 = pnand %p166, %p167
    %p169 = pneg %p168
    // Predicated region
    $region25: #{restnet_basic_block.3} parent=5 // pred_check
      _
    $region26: #{restnet_basic_block.3} parent=5 // pred_check_branch
      %171 = sbr.rel (%p168) target = $region28
    $region27: #{restnet_basic_block.3} parent=5 // pred_region
      %s172 = ssub.s32 %s11, 1
      %p173 = scmp.lt.s32.totalorder %s16, 1
      %s174 = scalar_select %p173, %s16, 1
      %s175 = smul.addr %s174, 32
      %s176 = smul.addr %s175, 8
      %s177 = scalar_lea.vmem %s0, %s176
      %p178 = pneg %p37
      %p179 = pneg %p34
      %p180 = pneg %p58
      %p181 = pneg %p55
      %p182 = pneg %p84
      %p183 = pneg %p81
      %p184 = scmp.lt.s32.totalorder %s16, 1
      %s185 = scalar_select %p184, %s16, 1
      %s186 = smul.addr %s185, 32
      %s187 = smul.addr %s186, 8
      %s188 = scalar_lea.vmem %s2, %s187
      %p189 = pneg %p110
      %p190 = pneg %p107
      %p191 = scmp.lt.s32.totalorder %s16, 1
      %s192 = scalar_select %p191, %s16, 1
      %s193 = scalar_lea.vmem %s3, %s192
      %p194 = pneg %p136
      %p195 = pneg %p133
      %p196 = scmp.lt.s32.totalorder %s16, 1
      %s197 = scalar_select %p196, %s16, 1
      %s198 = scalar_lea.vmem %s4, %s197
      %p199 = scmp.lt.s32.totalorder %s16, 1
      %s200 = scalar_select %p199, %s16, 1
      %s201 = smul.addr %s200, 32
      %s202 = smul.addr %s201, 8
      %s203 = scalar_lea.vmem %s0, %s202
      %p204 = scmp.lt.s32.totalorder %s16, 1
      %s205 = scalar_select %p204, %s16, 1
      %s206 = smul.addr %s205, 32
      %s207 = smul.addr %s206, 8
      %s208 = scalar_lea.vmem %s2, %s207
      %p209 = scmp.lt.s32.totalorder %s16, 1
      %s210 = scalar_select %p209, %s16, 1
      %s211 = scalar_lea.vmem %s3, %s210
      %p212 = scmp.lt.s32.totalorder %s16, 1
      %s213 = scalar_select %p212, %s16, 1
      %s214 = scalar_lea.vmem %s4, %s213
      %v215 = vld [vmem:[%s203] sm:$0xff]
      %v216 = vld [vmem:[%s203 + $0x8] sm:$0xff]
      %v217 = vld [vmem:[%s203 + $0x10] sm:$0xff]
      %v218 = vld [vmem:[%s203 + $0x18] sm:$0xff]
      %v219 = vld [vmem:[%s203 + $0x20] sm:$0xff]
      %v220 = vld [vmem:[%s203 + $0x28] sm:$0xff]
      %v221 = vld [vmem:[%s203 + $0x30] sm:$0xff]
      %v222 = vld [vmem:[%s203 + $0x38] sm:$0xff]
      %v223 = vld [vmem:[%s203 + $0x40] sm:$0xff]
      %v224 = vld [vmem:[%s203 + $0x48] sm:$0xff]
      %v225 = vld [vmem:[%s203 + $0x50] sm:$0xff]
      %v226 = vld [vmem:[%s203 + $0x58] sm:$0xff]
      %v227 = vld [vmem:[%s203 + $0x60] sm:$0xff]
      %v228 = vld [vmem:[%s203 + $0x68] sm:$0xff]
      %v229 = vld [vmem:[%s203 + $0x70] sm:$0xff]
      %v230 = vld [vmem:[%s203 + $0x78] sm:$0xff]
      %v231 = vld [vmem:[%s203 + $0x80] sm:$0xff]
      %v232 = vld [vmem:[%s203 + $0x88] sm:$0xff]
      %v233 = vld [vmem:[%s203 + $0x90] sm:$0xff]
      %v234 = vld [vmem:[%s203 + $0x98] sm:$0xff]
      %v235 = vld [vmem:[%s203 + $0xa0] sm:$0xff]
      %v236 = vld [vmem:[%s203 + $0xa8] sm:$0xff]
      %v237 = vld [vmem:[%s203 + $0xb0] sm:$0xff]
      %v238 = vld [vmem:[%s203 + $0xb8] sm:$0xff]
      %v239 = vld [vmem:[%s203 + $0xc0] sm:$0xff]
      %v240 = vld [vmem:[%s203 + $0xc8] sm:$0xff]
      %v241 = vld [vmem:[%s203 + $0xd0] sm:$0xff]
      %v242 = vld [vmem:[%s203 + $0xd8] sm:$0xff]
      %v243 = vld [vmem:[%s203 + $0xe0] sm:$0xff]
      %v244 = vld [vmem:[%s203 + $0xe8] sm:$0xff]
      %v245 = vld [vmem:[%s203 + $0xf0] sm:$0xff]
      %v246 = vld [vmem:[%s203 + $0xf8] sm:$0xff]
      %vm247 = vcmask 64512
      %248 = vst.msk [vmem:[#allocation2] sm:$0xff] %vm247, 0.0
      %249 = vst.msk [vmem:[#allocation2 + $0x8] sm:$0xff] %vm247, 0.0
      %250 = vst.msk [vmem:[#allocation2 + $0x10] sm:$0xff] %vm247, 0.0
      %251 = vst.msk [vmem:[#allocation2 + $0x18] sm:$0xff] %vm247, 0.0
      %252 = vst.msk [vmem:[#allocation2 + $0x20] sm:$0xff] %vm247, 0.0
      %253 = vst.msk [vmem:[#allocation2 + $0x28] sm:$0xff] %vm247, 0.0
      %254 = vst.msk [vmem:[#allocation2 + $0x30] sm:$0xff] %vm247, 0.0
      %255 = vst.msk [vmem:[#allocation2 + $0x38] sm:$0xff] %vm247, 0.0
      %256 = vst.msk [vmem:[#allocation2 + $0x40] sm:$0xff] %vm247, 0.0
      %257 = vst.msk [vmem:[#allocation2 + $0x48] sm:$0xff] %vm247, 0.0
      %258 = vst.msk [vmem:[#allocation2 + $0x50] sm:$0xff] %vm247, 0.0
      %259 = vst.msk [vmem:[#allocation2 + $0x58] sm:$0xff] %vm247, 0.0
      %260 = vst.msk [vmem:[#allocation2 + $0x60] sm:$0xff] %vm247, 0.0
      %261 = vst.msk [vmem:[#allocation2 + $0x68] sm:$0xff] %vm247, 0.0
      %262 = vst.msk [vmem:[#allocation2 + $0x70] sm:$0xff] %vm247, 0.0
      %263 = vst.msk [vmem:[#allocation2 + $0x78] sm:$0xff] %vm247, 0.0
      %264 = vst.msk [vmem:[#allocation2 + $0x80] sm:$0xff] %vm247, 0.0
      %265 = vst.msk [vmem:[#allocation2 + $0x88] sm:$0xff] %vm247, 0.0
      %266 = vst.msk [vmem:[#allocation2 + $0x90] sm:$0xff] %vm247, 0.0
      %267 = vst.msk [vmem:[#allocation2 + $0x98] sm:$0xff] %vm247, 0.0
      %268 = vst.msk [vmem:[#allocation2 + $0xa0] sm:$0xff] %vm247, 0.0
      %269 = vst.msk [vmem:[#allocation2 + $0xa8] sm:$0xff] %vm247, 0.0
      %270 = vst.msk [vmem:[#allocation2 + $0xb0] sm:$0xff] %vm247, 0.0
      %271 = vst.msk [vmem:[#allocation2 + $0xb8] sm:$0xff] %vm247, 0.0
      %272 = vst.msk [vmem:[#allocation2 + $0xc0] sm:$0xff] %vm247, 0.0
      %273 = vst.msk [vmem:[#allocation2 + $0xc8] sm:$0xff] %vm247, 0.0
      %274 = vst.msk [vmem:[#allocation2 + $0xd0] sm:$0xff] %vm247, 0.0
      %275 = vst.msk [vmem:[#allocation2 + $0xd8] sm:$0xff] %vm247, 0.0
      %276 = vst.msk [vmem:[#allocation2 + $0xe0] sm:$0xff] %vm247, 0.0
      %277 = vst.msk [vmem:[#allocation2 + $0xe8] sm:$0xff] %vm247, 0.0
      %278 = vst.msk [vmem:[#allocation2 + $0xf0] sm:$0xff] %vm247, 0.0
      %279 = vst.msk [vmem:[#allocation2 + $0xf8] sm:$0xff] %vm247, 0.0
      %280 = vst.msk [vmem:[#allocation2 + $0x100] sm:$0xff] %vm247, 0.0
      %281 = vst.msk [vmem:[#allocation2 + $0x108] sm:$0xff] %vm247, 0.0
      %282 = vst.msk [vmem:[#allocation2 + $0x110] sm:$0xff] %vm247, 0.0
      %283 = vst.msk [vmem:[#allocation2 + $0x118] sm:$0xff] %vm247, 0.0
      %284 = vst.msk [vmem:[#allocation2 + $0x120] sm:$0xff] %vm247, 0.0
      %285 = vst.msk [vmem:[#allocation2 + $0x128] sm:$0xff] %vm247, 0.0
      %286 = vst.msk [vmem:[#allocation2 + $0x130] sm:$0xff] %vm247, 0.0
      %287 = vst.msk [vmem:[#allocation2 + $0x138] sm:$0xff] %vm247, 0.0
      %288 = vst.msk [vmem:[#allocation2 + $0x140] sm:$0xff] %vm247, 0.0
      %289 = vst.msk [vmem:[#allocation2 + $0x148] sm:$0xff] %vm247, 0.0
      %290 = vst.msk [vmem:[#allocation2 + $0x150] sm:$0xff] %vm247, 0.0
      %291 = vst.msk [vmem:[#allocation2 + $0x158] sm:$0xff] %vm247, 0.0
      %292 = vst.msk [vmem:[#allocation2 + $0x160] sm:$0xff] %vm247, 0.0
      %293 = vst.msk [vmem:[#allocation2 + $0x168] sm:$0xff] %vm247, 0.0
      %294 = vst.msk [vmem:[#allocation2 + $0x170] sm:$0xff] %vm247, 0.0
      %295 = vst.msk [vmem:[#allocation2 + $0x178] sm:$0xff] %vm247, 0.0
      %296 = vst.msk [vmem:[#allocation2 + $0x180] sm:$0xff] %vm247, 0.0
      %297 = vst.msk [vmem:[#allocation2 + $0x188] sm:$0xff] %vm247, 0.0
      %298 = vst.msk [vmem:[#allocation2 + $0x190] sm:$0xff] %vm247, 0.0
      %299 = vst.msk [vmem:[#allocation2 + $0x198] sm:$0xff] %vm247, 0.0
      %300 = vst.msk [vmem:[#allocation2 + $0x1a0] sm:$0xff] %vm247, 0.0
      %301 = vst.msk [vmem:[#allocation2 + $0x1a8] sm:$0xff] %vm247, 0.0
      %302 = vst.msk [vmem:[#allocation2 + $0x1b0] sm:$0xff] %vm247, 0.0
      %303 = vst.msk [vmem:[#allocation2 + $0x1b8] sm:$0xff] %vm247, 0.0
      %304 = vst.msk [vmem:[#allocation2 + $0x1c0] sm:$0xff] %vm247, 0.0
      %305 = vst.msk [vmem:[#allocation2 + $0x1c8] sm:$0xff] %vm247, 0.0
      %306 = vst.msk [vmem:[#allocation2 + $0x1d0] sm:$0xff] %vm247, 0.0
      %307 = vst.msk [vmem:[#allocation2 + $0x1d8] sm:$0xff] %vm247, 0.0
      %308 = vst.msk [vmem:[#allocation2 + $0x1e0] sm:$0xff] %vm247, 0.0
      %309 = vst.msk [vmem:[#allocation2 + $0x1e8] sm:$0xff] %vm247, 0.0
      %310 = vst.msk [vmem:[#allocation2 + $0x1f0] sm:$0xff] %vm247, 0.0
      %311 = vst.msk [vmem:[#allocation2 + $0x1f8] sm:$0xff] %vm247, 0.0
      %312 = vst.msk [vmem:[#allocation2 + $0x200] sm:$0xff] %vm247, 0.0
      %313 = vst.msk [vmem:[#allocation2 + $0x208] sm:$0xff] %vm247, 0.0
      %314 = vst.msk [vmem:[#allocation2 + $0x210] sm:$0xff] %vm247, 0.0
      %315 = vst.msk [vmem:[#allocation2 + $0x218] sm:$0xff] %vm247, 0.0
      %316 = vst.msk [vmem:[#allocation2 + $0x220] sm:$0xff] %vm247, 0.0
      %317 = vst.msk [vmem:[#allocation2 + $0x228] sm:$0xff] %vm247, 0.0
      %318 = vst.msk [vmem:[#allocation2 + $0x230] sm:$0xff] %vm247, 0.0
      %319 = vst.msk [vmem:[#allocation2 + $0x238] sm:$0xff] %vm247, 0.0
      %s320 = scalar_lea.vmem [#allocation2], 32
      %321 = vst.msk [vmem:[%s320 + $0x8] sm:$0xff] %vm247, %v215
      %322 = vst.msk [vmem:[%s320 + $0x10] sm:$0xff] %vm247, %v216
      %323 = vst.msk [vmem:[%s320 + $0x28] sm:$0xff] %vm247, %v217
      %324 = vst.msk [vmem:[%s320 + $0x30] sm:$0xff] %vm247, %v218
      %325 = vst.msk [vmem:[%s320 + $0x48] sm:$0xff] %vm247, %v219
      %326 = vst.msk [vmem:[%s320 + $0x50] sm:$0xff] %vm247, %v220
      %327 = vst.msk [vmem:[%s320 + $0x68] sm:$0xff] %vm247, %v221
      %328 = vst.msk [vmem:[%s320 + $0x70] sm:$0xff] %vm247, %v222
      %329 = vst.msk [vmem:[%s320 + $0x88] sm:$0xff] %vm247, %v223
      %330 = vst.msk [vmem:[%s320 + $0x90] sm:$0xff] %vm247, %v224
      %331 = vst.msk [vmem:[%s320 + $0xa8] sm:$0xff] %vm247, %v225
      %332 = vst.msk [vmem:[%s320 + $0xb0] sm:$0xff] %vm247, %v226
      %333 = vst.msk [vmem:[%s320 + $0xc8] sm:$0xff] %vm247, %v227
      %334 = vst.msk [vmem:[%s320 + $0xd0] sm:$0xff] %vm247, %v228
      %335 = vst.msk [vmem:[%s320 + $0xe8] sm:$0xff] %vm247, %v229
      %336 = vst.msk [vmem:[%s320 + $0xf0] sm:$0xff] %vm247, %v230
      %337 = vst.msk [vmem:[%s320 + $0x108] sm:$0xff] %vm247, %v231
      %338 = vst.msk [vmem:[%s320 + $0x110] sm:$0xff] %vm247, %v232
      %339 = vst.msk [vmem:[%s320 + $0x128] sm:$0xff] %vm247, %v233
      %340 = vst.msk [vmem:[%s320 + $0x130] sm:$0xff] %vm247, %v234
      %341 = vst.msk [vmem:[%s320 + $0x148] sm:$0xff] %vm247, %v235
      %342 = vst.msk [vmem:[%s320 + $0x150] sm:$0xff] %vm247, %v236
      %343 = vst.msk [vmem:[%s320 + $0x168] sm:$0xff] %vm247, %v237
      %344 = vst.msk [vmem:[%s320 + $0x170] sm:$0xff] %vm247, %v238
      %345 = vst.msk [vmem:[%s320 + $0x188] sm:$0xff] %vm247, %v239
      %346 = vst.msk [vmem:[%s320 + $0x190] sm:$0xff] %vm247, %v240
      %347 = vst.msk [vmem:[%s320 + $0x1a8] sm:$0xff] %vm247, %v241
      %348 = vst.msk [vmem:[%s320 + $0x1b0] sm:$0xff] %vm247, %v242
      %349 = vst.msk [vmem:[%s320 + $0x1c8] sm:$0xff] %vm247, %v243
      %350 = vst.msk [vmem:[%s320 + $0x1d0] sm:$0xff] %vm247, %v244
      %351 = vst.msk [vmem:[%s320 + $0x1e8] sm:$0xff] %vm247, %v245
      %352 = vst.msk [vmem:[%s320 + $0x1f0] sm:$0xff] %vm247, %v246
      %v353 = vld [vmem:[#allocation2] sm:$0xff]
      %v354 = vld [vmem:[#allocation2 + $0x8] sm:$0xff]
      %v355 = vld [vmem:[#allocation2 + $0x10] sm:$0xff]
      %v356 = vld [vmem:[#allocation2 + $0x18] sm:$0xff]
      %v357 = vld [vmem:[#allocation2 + $0x20] sm:$0xff]
      %v358 = vld [vmem:[#allocation2 + $0x28] sm:$0xff]
      %v359 = vld [vmem:[#allocation2 + $0x30] sm:$0xff]
      %v360 = vld [vmem:[#allocation2 + $0x38] sm:$0xff]
      %v361 = vld [vmem:[#allocation2 + $0x40] sm:$0xff]
      %v362 = vld [vmem:[#allocation2 + $0x48] sm:$0xff]
      %v363 = vld [vmem:[#allocation2 + $0x50] sm:$0xff]
      %v364 = vld [vmem:[#allocation2 + $0x58] sm:$0xff]
      %v365 = vld [vmem:[#allocation2 + $0x60] sm:$0xff]
      %v366 = vld [vmem:[#allocation2 + $0x68] sm:$0xff]
      %v367 = vld [vmem:[#allocation2 + $0x70] sm:$0xff]
      %v368 = vld [vmem:[#allocation2 + $0x78] sm:$0xff]
      %v369 = vld [vmem:[#allocation2 + $0x80] sm:$0xff]
      %v370 = vld [vmem:[#allocation2 + $0x88] sm:$0xff]
      %v371 = vld [vmem:[#allocation2 + $0x90] sm:$0xff]
      %v372 = vld [vmem:[#allocation2 + $0x98] sm:$0xff]
      %v373 = vld [vmem:[#allocation2 + $0xa0] sm:$0xff]
      %v374 = vld [vmem:[#allocation2 + $0xa8] sm:$0xff]
      %v375 = vld [vmem:[#allocation2 + $0xb0] sm:$0xff]
      %v376 = vld [vmem:[#allocation2 + $0xb8] sm:$0xff]
      %v377 = vld [vmem:[#allocation2 + $0xc0] sm:$0xff]
      %v378 = vld [vmem:[#allocation2 + $0xc8] sm:$0xff]
      %v379 = vld [vmem:[#allocation2 + $0xd0] sm:$0xff]
      %v380 = vld [vmem:[#allocation2 + $0xd8] sm:$0xff]
      %v381 = vld [vmem:[#allocation2 + $0xe0] sm:$0xff]
      %v382 = vld [vmem:[#allocation2 + $0xe8] sm:$0xff]
      %v383 = vld [vmem:[#allocation2 + $0xf0] sm:$0xff]
      %v384 = vld [vmem:[#allocation2 + $0xf8] sm:$0xff]
      %v385 = vld [vmem:[#allocation2 + $0x100] sm:$0xff]
      %v386 = vld [vmem:[#allocation2 + $0x108] sm:$0xff]
      %v387 = vld [vmem:[#allocation2 + $0x110] sm:$0xff]
      %v388 = vld [vmem:[#allocation2 + $0x118] sm:$0xff]
      %v389 = vld [vmem:[#allocation2 + $0x120] sm:$0xff]
      %v390 = vld [vmem:[#allocation2 + $0x128] sm:$0xff]
      %v391 = vld [vmem:[#allocation2 + $0x130] sm:$0xff]
      %v392 = vld [vmem:[#allocation2 + $0x138] sm:$0xff]
      %v393 = vld [vmem:[#allocation2 + $0x140] sm:$0xff]
      %v394 = vld [vmem:[#allocation2 + $0x148] sm:$0xff]
      %v395 = vld [vmem:[#allocation2 + $0x150] sm:$0xff]
      %v396 = vld [vmem:[#allocation2 + $0x158] sm:$0xff]
      %v397 = vld [vmem:[#allocation2 + $0x160] sm:$0xff]
      %v398 = vld [vmem:[#allocation2 + $0x168] sm:$0xff]
      %v399 = vld [vmem:[#allocation2 + $0x170] sm:$0xff]
      %v400 = vld [vmem:[#allocation2 + $0x178] sm:$0xff]
      %v401 = vld [vmem:[#allocation2 + $0x180] sm:$0xff]
      %v402 = vld [vmem:[#allocation2 + $0x188] sm:$0xff]
      %v403 = vld [vmem:[#allocation2 + $0x190] sm:$0xff]
      %v404 = vld [vmem:[#allocation2 + $0x198] sm:$0xff]
      %v405 = vld [vmem:[#allocation2 + $0x1a0] sm:$0xff]
      %v406 = vld [vmem:[#allocation2 + $0x1a8] sm:$0xff]
      %v407 = vld [vmem:[#allocation2 + $0x1b0] sm:$0xff]
      %v408 = vld [vmem:[#allocation2 + $0x1b8] sm:$0xff]
      %v409 = vld [vmem:[#allocation2 + $0x1c0] sm:$0xff]
      %v410 = vld [vmem:[#allocation2 + $0x1c8] sm:$0xff]
      %v411 = vld [vmem:[#allocation2 + $0x1d0] sm:$0xff]
      %v412 = vld [vmem:[#allocation2 + $0x1d8] sm:$0xff]
      %v413 = vld [vmem:[#allocation2 + $0x1e0] sm:$0xff]
      %v414 = vld [vmem:[#allocation2 + $0x1e8] sm:$0xff]
      %v415 = vld [vmem:[#allocation2 + $0x1f0] sm:$0xff]
      %v416 = vld [vmem:[#allocation2 + $0x1f8] sm:$0xff]
      %v417 = vld [vmem:[#allocation2 + $0x200] sm:$0xff]
      %v418 = vld [vmem:[#allocation2 + $0x208] sm:$0xff]
      %v419 = vld [vmem:[#allocation2 + $0x210] sm:$0xff]
      %v420 = vld [vmem:[#allocation2 + $0x218] sm:$0xff]
      %v421 = vld [vmem:[#allocation2 + $0x220] sm:$0xff]
      %v422 = vld [vmem:[#allocation2 + $0x228] sm:$0xff]
      %v423 = vld [vmem:[#allocation2 + $0x230] sm:$0xff]
      %v424 = vld [vmem:[#allocation2 + $0x238] sm:$0xff]
      %vm473 = vcmask 1040384
      %v474 = vrot.slane %v353, 7
      %v475 = vrot.slane %v354, 7
      %v476 = vsel %vm473, %v474, %v475
      %v477 = vrot.slane %v355, 7
      %v478 = vsel %vm473, %v475, %v477
      %v479 = vrot.slane %v357, 7
      %v480 = vrot.slane %v358, 7
      %v481 = vsel %vm473, %v479, %v480
      %v482 = vrot.slane %v359, 7
      %v483 = vsel %vm473, %v480, %v482
      %v484 = vrot.slane %v361, 7
      %v485 = vrot.slane %v362, 7
      %v486 = vsel %vm473, %v484, %v485
      %v487 = vrot.slane %v363, 7
      %v488 = vsel %vm473, %v485, %v487
      %v489 = vrot.slane %v365, 7
      %v490 = vrot.slane %v366, 7
      %v491 = vsel %vm473, %v489, %v490
      %v492 = vrot.slane %v367, 7
      %v493 = vsel %vm473, %v490, %v492
      %v494 = vrot.slane %v369, 7
      %v495 = vrot.slane %v370, 7
      %v496 = vsel %vm473, %v494, %v495
      %v497 = vrot.slane %v371, 7
      %v498 = vsel %vm473, %v495, %v497
      %v499 = vrot.slane %v373, 7
      %v500 = vrot.slane %v374, 7
      %v501 = vsel %vm473, %v499, %v500
      %v502 = vrot.slane %v375, 7
      %v503 = vsel %vm473, %v500, %v502
      %v504 = vrot.slane %v377, 7
      %v505 = vrot.slane %v378, 7
      %v506 = vsel %vm473, %v504, %v505
      %v507 = vrot.slane %v379, 7
      %v508 = vsel %vm473, %v505, %v507
      %v509 = vrot.slane %v381, 7
      %v510 = vrot.slane %v382, 7
      %v511 = vsel %vm473, %v509, %v510
      %v512 = vrot.slane %v383, 7
      %v513 = vsel %vm473, %v510, %v512
      %v514 = vrot.slane %v385, 7
      %v515 = vrot.slane %v386, 7
      %v516 = vsel %vm473, %v514, %v515
      %v517 = vrot.slane %v387, 7
      %v518 = vsel %vm473, %v515, %v517
      %v519 = vrot.slane %v389, 7
      %v520 = vrot.slane %v390, 7
      %v521 = vsel %vm473, %v519, %v520
      %v522 = vrot.slane %v391, 7
      %v523 = vsel %vm473, %v520, %v522
      %v524 = vrot.slane %v393, 7
      %v525 = vrot.slane %v394, 7
      %v526 = vsel %vm473, %v524, %v525
      %v527 = vrot.slane %v395, 7
      %v528 = vsel %vm473, %v525, %v527
      %v529 = vrot.slane %v397, 7
      %v530 = vrot.slane %v398, 7
      %v531 = vsel %vm473, %v529, %v530
      %v532 = vrot.slane %v399, 7
      %v533 = vsel %vm473, %v530, %v532
      %v534 = vrot.slane %v401, 7
      %v535 = vrot.slane %v402, 7
      %v536 = vsel %vm473, %v534, %v535
      %v537 = vrot.slane %v403, 7
      %v538 = vsel %vm473, %v535, %v537
      %v539 = vrot.slane %v405, 7
      %v540 = vrot.slane %v406, 7
      %v541 = vsel %vm473, %v539, %v540
      %v542 = vrot.slane %v407, 7
      %v543 = vsel %vm473, %v540, %v542
      %v544 = vrot.slane %v409, 7
      %v545 = vrot.slane %v410, 7
      %v546 = vsel %vm473, %v544, %v545
      %v547 = vrot.slane %v411, 7
      %v548 = vsel %vm473, %v545, %v547
      %v549 = vrot.slane %v413, 7
      %v550 = vrot.slane %v414, 7
      %v551 = vsel %vm473, %v549, %v550
      %v552 = vrot.slane %v415, 7
      %v553 = vsel %vm473, %v550, %v552
      %v554 = vld [vmem:[%s1] sm:$0xff]
      %s555 = scalar_lea.vmem %s1, 8
      %v556 = vld [vmem:[%s555] sm:$0xff]
      %v557 = vsel %vm247, %v354, 0
      %v559 = vsel %vm247, %v355, 0
      %v561 = vsel %vm247, %v358, 0
      %v563 = vsel %vm247, %v359, 0
      %v565 = vsel %vm247, %v362, 0
      %v567 = vsel %vm247, %v363, 0
      %v569 = vsel %vm247, %v366, 0
      %v571 = vsel %vm247, %v367, 0
      %v573 = vsel %vm247, %v370, 0
      %v575 = vsel %vm247, %v371, 0
      %v577 = vsel %vm247, %v374, 0
      %v579 = vsel %vm247, %v375, 0
      %v581 = vsel %vm247, %v378, 0
      %v583 = vsel %vm247, %v379, 0
      %v585 = vsel %vm247, %v382, 0
      %v587 = vsel %vm247, %v383, 0
      %v589 = vsel %vm247, %v386, 0
      %v591 = vsel %vm247, %v387, 0
      %v593 = vsel %vm247, %v390, 0
      %v595 = vsel %vm247, %v391, 0
      %v597 = vsel %vm247, %v394, 0
      %v599 = vsel %vm247, %v395, 0
      %v601 = vsel %vm247, %v398, 0
      %v603 = vsel %vm247, %v399, 0
      %v605 = vsel %vm247, %v402, 0
      %v607 = vsel %vm247, %v403, 0
      %v609 = vsel %vm247, %v406, 0
      %v611 = vsel %vm247, %v407, 0
      %v613 = vsel %vm247, %v410, 0
      %v615 = vsel %vm247, %v411, 0
      %v617 = vsel %vm247, %v414, 0
      %v619 = vsel %vm247, %v415, 0
      %621 = vmatprep.subr.mxu0 0.0
      %622 = vmatpush1.msra.mxu0 %v556
      %623 = vmatprep.subr.mxu0 0.0
      %624 = vmatpush1.msra.mxu0 0.0
      %625 = vmatprep.subr.mxu0 0.0
      %626 = vmatpush1.msra.mxu0 0.0
      %627 = vmatprep.subr.mxu0 0.0
      %628 = vmatpush1.msra.mxu0 0.0
      %629 = vmatprep.subr.mxu0 0.0
      %630 = vmatpush1.msra.mxu0 0.0
      %631 = vmatprep.subr.mxu0 0.0
      %632 = vmatpush1.msra.mxu0 0.0
      %633 = vmatprep.subr.mxu0 0.0
      %634 = vmatpush1.msra.mxu0 0.0
      %635 = vmatprep.subr.mxu0 0.0
      %636 = vmatpush1.msra.mxu0 0.0
      %637 = vmatprep.subr.mxu0 0.0
      %638 = vmatpush1.msra.mxu0 0.0
      %639 = vmatprep.subr.mxu0 0.0
      %640 = vmatpush1.msra.mxu0 0.0
      %641 = vmatprep.subr.mxu0 0.0
      %642 = vmatpush1.msra.mxu0 0.0
      %643 = vmatprep.subr.mxu0 0.0
      %644 = vmatpush1.msra.mxu0 0.0
      %645 = vmatprep.subr.mxu0 0.0
      %646 = vmatpush1.msra.mxu0 0.0
      %647 = vmatprep.subr.mxu0 0.0
      %648 = vmatpush1.msra.mxu0 0.0
      %649 = vmatprep.subr.mxu0 0.0
      %650 = vmatpush1.msra.mxu0 0.0
      %651 = vmatprep.subr.mxu0 0.0
      %652 = vmatpush1.msra.mxu0 0.0
      %653 = vmatprep.subr.mxu0 0.0
      %654 = vmatpush1.msra.mxu0 0.0
      %655 = vmatprep.subr.mxu0 0.0
      %656 = vmatpush1.msra.mxu0 0.0
      %657 = vmatprep.subr.mxu0 0.0
      %658 = vmatpush1.msra.mxu0 0.0
      %659 = vmatprep.subr.mxu0 0.0
      %660 = vmatpush1.msra.mxu0 0.0
      %661 = vmatprep.subr.mxu0 0.0
      %662 = vmatpush1.msra.mxu0 0.0
      %663 = vmatprep.subr.mxu0 0.0
      %664 = vmatpush1.msra.mxu0 0.0
      %665 = vmatprep.subr.mxu0 0.0
      %666 = vmatpush1.msra.mxu0 0.0
      %667 = vmatprep.subr.mxu0 0.0
      %668 = vmatpush1.msra.mxu0 0.0
      %669 = vmatprep.subr.mxu0 0.0
      %670 = vmatpush1.msra.mxu0 0.0
      %671 = vmatprep.subr.mxu0 0.0
      %672 = vmatpush1.msra.mxu0 0.0
      %673 = vmatprep.subr.mxu0 0.0
      %674 = vmatpush1.msra.mxu0 0.0
      %675 = vmatprep.subr.mxu0 0.0
      %676 = vmatpush1.msra.mxu0 0.0
      %677 = vmatprep.subr.mxu0 0.0
      %678 = vmatpush1.msra.mxu0 0.0
      %679 = vmatprep.subr.mxu0 0.0
      %680 = vmatpush1.msra.mxu0 0.0
      %681 = vmatprep.subr.mxu0 0.0
      %682 = vmatpush1.msra.mxu0 0.0
      %683 = vmatprep.subr.mxu0 0.0
      %684 = vmatpush1.msra.mxu0 0.0
      %685 = vmatprep.mubr.f32.mxu0 0.0
      %686 = vmatmul.mubr.f32.gmra.mrb[0].mxu0 %v557
      %v687 = vpop.f32.mrb[0].mxu0
      %v688 = vadd.f32 0.0, %v687
      %v689 = vpop.f32.mrb[0].mxu0
      %690 = vmatprep.mubr.f32.mxu0 0.0
      %691 = vmatmul.mubr.f32.gmra.mrb[0].mxu0 %v559
      %v692 = vpop.f32.mrb[0].mxu0
      %v693 = vadd.f32 0.0, %v692
      %v694 = vpop.f32.mrb[0].mxu0
      %695 = vmatprep.mubr.f32.mxu0 0.0
      %696 = vmatmul.mubr.f32.gmra.mrb[0].mxu0 %v561
      %v697 = vpop.f32.mrb[0].mxu0
      %v698 = vadd.f32 0.0, %v697
      %v699 = vpop.f32.mrb[0].mxu0
      %700 = vmatprep.mubr.f32.mxu0 0.0
      %701 = vmatmul.mubr.f32.gmra.mrb[0].mxu0 %v563
      %v702 = vpop.f32.mrb[0].mxu0
      %v703 = vadd.f32 0.0, %v702
      %v704 = vpop.f32.mrb[0].mxu0
      %705 = vmatprep.mubr.f32.mxu0 0.0
      %706 = vmatmul.mubr.f32.gmra.mrb[0].mxu0 %v565
      %v707 = vpop.f32.mrb[0].mxu0
      %v708 = vadd.f32 0.0, %v707
      %v709 = vpop.f32.mrb[0].mxu0
      %710 = vmatprep.mubr.f32.mxu0 0.0
      %711 = vmatmul.mubr.f32.gmra.mrb[0].mxu0 %v567
      %v712 = vpop.f32.mrb[0].mxu0
      %v713 = vadd.f32 0.0, %v712
      %v714 = vpop.f32.mrb[0].mxu0
      %715 = vmatprep.mubr.f32.mxu0 0.0
      %716 = vmatmul.mubr.f32.gmra.mrb[0].mxu0 %v569
      %v717 = vpop.f32.mrb[0].mxu0
      %v718 = vadd.f32 0.0, %v717
      %v719 = vpop.f32.mrb[0].mxu0
      %720 = vmatprep.mubr.f32.mxu0 0.0
      %721 = vmatmul.mubr.f32.gmra.mrb[0].mxu0 %v571
      %v722 = vpop.f32.mrb[0].mxu0
      %v723 = vadd.f32 0.0, %v722
      %v724 = vpop.f32.mrb[0].mxu0
      %725 = vmatprep.mubr.f32.mxu0 0.0
      %726 = vmatmul.mubr.f32.gmra.mrb[0].mxu0 %v573
      %v727 = vpop.f32.mrb[0].mxu0
      %v728 = vadd.f32 0.0, %v727
      %v729 = vpop.f32.mrb[0].mxu0
      %730 = vmatprep.mubr.f32.mxu0 0.0
      %731 = vmatmul.mubr.f32.gmra.mrb[0].mxu0 %v575
      %v732 = vpop.f32.mrb[0].mxu0
      %v733 = vadd.f32 0.0, %v732
      %v734 = vpop.f32.mrb[0].mxu0
      %735 = vmatprep.mubr.f32.mxu0 0.0
      %736 = vmatmul.mubr.f32.gmra.mrb[0].mxu0 %v577
      %v737 = vpop.f32.mrb[0].mxu0
      %v738 = vadd.f32 0.0, %v737
      %v739 = vpop.f32.mrb[0].mxu0
      %740 = vmatprep.mubr.f32.mxu0 0.0
      %741 = vmatmul.mubr.f32.gmra.mrb[0].mxu0 %v579
      %v742 = vpop.f32.mrb[0].mxu0
      %v743 = vadd.f32 0.0, %v742
      %v744 = vpop.f32.mrb[0].mxu0
      %745 = vmatprep.mubr.f32.mxu0 0.0
      %746 = vmatmul.mubr.f32.gmra.mrb[0].mxu0 %v581
      %v747 = vpop.f32.mrb[0].mxu0
      %v748 = vadd.f32 0.0, %v747
      %v749 = vpop.f32.mrb[0].mxu0
      %750 = vmatprep.mubr.f32.mxu0 0.0
      %751 = vmatmul.mubr.f32.gmra.mrb[0].mxu0 %v583
      %v752 = vpop.f32.mrb[0].mxu0
      %v753 = vadd.f32 0.0, %v752
      %v754 = vpop.f32.mrb[0].mxu0
      %755 = vmatprep.mubr.f32.mxu0 0.0
      %756 = vmatmul.mubr.f32.gmra.mrb[0].mxu0 %v585
      %v757 = vpop.f32.mrb[0].mxu0
      %v758 = vadd.f32 0.0, %v757
      %v759 = vpop.f32.mrb[0].mxu0
      %760 = vmatprep.mubr.f32.mxu0 0.0
      %761 = vmatmul.mubr.f32.gmra.mrb[0].mxu0 %v587
      %v762 = vpop.f32.mrb[0].mxu0
      %v763 = vadd.f32 0.0, %v762
      %v764 = vpop.f32.mrb[0].mxu0
      %765 = vmatprep.mubr.f32.mxu0 0.0
      %766 = vmatmul.mubr.f32.gmra.mrb[0].mxu0 %v589
      %v767 = vpop.f32.mrb[0].mxu0
      %v768 = vadd.f32 0.0, %v767
      %v769 = vpop.f32.mrb[0].mxu0
      %770 = vmatprep.mubr.f32.mxu0 0.0
      %771 = vmatmul.mubr.f32.gmra.mrb[0].mxu0 %v591
      %v772 = vpop.f32.mrb[0].mxu0
      %v773 = vadd.f32 0.0, %v772
      %v774 = vpop.f32.mrb[0].mxu0
      %775 = vmatprep.mubr.f32.mxu0 0.0
      %776 = vmatmul.mubr.f32.gmra.mrb[0].mxu0 %v593
      %v777 = vpop.f32.mrb[0].mxu0
      %v778 = vadd.f32 0.0, %v777
      %v779 = vpop.f32.mrb[0].mxu0
      %780 = vmatprep.mubr.f32.mxu0 0.0
      %781 = vmatmul.mubr.f32.gmra.mrb[0].mxu0 %v595
      %v782 = vpop.f32.mrb[0].mxu0
      %v783 = vadd.f32 0.0, %v782
      %v784 = vpop.f32.mrb[0].mxu0
      %785 = vmatprep.mubr.f32.mxu0 0.0
      %786 = vmatmul.mubr.f32.gmra.mrb[0].mxu0 %v597
      %v787 = vpop.f32.mrb[0].mxu0
      %v788 = vadd.f32 0.0, %v787
      %v789 = vpop.f32.mrb[0].mxu0
      %790 = vmatprep.mubr.f32.mxu0 0.0
      %791 = vmatmul.mubr.f32.gmra.mrb[0].mxu0 %v599
      %v792 = vpop.f32.mrb[0].mxu0
      %v793 = vadd.f32 0.0, %v792
      %v794 = vpop.f32.mrb[0].mxu0
      %795 = vmatprep.mubr.f32.mxu0 0.0
      %796 = vmatmul.mubr.f32.gmra.mrb[0].mxu0 %v601
      %v797 = vpop.f32.mrb[0].mxu0
      %v798 = vadd.f32 0.0, %v797
      %v799 = vpop.f32.mrb[0].mxu0
      %800 = vmatprep.mubr.f32.mxu0 0.0
      %801 = vmatmul.mubr.f32.gmra.mrb[0].mxu0 %v603
      %v802 = vpop.f32.mrb[0].mxu0
      %v803 = vadd.f32 0.0, %v802
      %v804 = vpop.f32.mrb[0].mxu0
      %805 = vmatprep.mubr.f32.mxu0 0.0
      %806 = vmatmul.mubr.f32.gmra.mrb[0].mxu0 %v605
      %v807 = vpop.f32.mrb[0].mxu0
      %v808 = vadd.f32 0.0, %v807
      %v809 = vpop.f32.mrb[0].mxu0
      %810 = vmatprep.mubr.f32.mxu0 0.0
      %811 = vmatmul.mubr.f32.gmra.mrb[0].mxu0 %v607
      %v812 = vpop.f32.mrb[0].mxu0
      %v813 = vadd.f32 0.0, %v812
      %v814 = vpop.f32.mrb[0].mxu0
      %815 = vmatprep.mubr.f32.mxu0 0.0
      %816 = vmatmul.mubr.f32.gmra.mrb[0].mxu0 %v609
      %v817 = vpop.f32.mrb[0].mxu0
      %v818 = vadd.f32 0.0, %v817
      %v819 = vpop.f32.mrb[0].mxu0
      %820 = vmatprep.mubr.f32.mxu0 0.0
      %821 = vmatmul.mubr.f32.gmra.mrb[0].mxu0 %v611
      %v822 = vpop.f32.mrb[0].mxu0
      %v823 = vadd.f32 0.0, %v822
      %v824 = vpop.f32.mrb[0].mxu0
      %825 = vmatprep.mubr.f32.mxu0 0.0
      %826 = vmatmul.mubr.f32.gmra.mrb[0].mxu0 %v613
      %v827 = vpop.f32.mrb[0].mxu0
      %v828 = vadd.f32 0.0, %v827
      %v829 = vpop.f32.mrb[0].mxu0
      %830 = vmatprep.mubr.f32.mxu0 0.0
      %831 = vmatmul.mubr.f32.gmra.mrb[0].mxu0 %v615
      %v832 = vpop.f32.mrb[0].mxu0
      %v833 = vadd.f32 0.0, %v832
      %v834 = vpop.f32.mrb[0].mxu0
      %835 = vmatprep.mubr.f32.mxu0 0.0
      %836 = vmatmul.mubr.f32.gmra.mrb[0].mxu0 %v617
      %v837 = vpop.f32.mrb[0].mxu0
      %v838 = vadd.f32 0.0, %v837
      %v839 = vpop.f32.mrb[0].mxu0
      %840 = vmatprep.mubr.f32.mxu0 0.0
      %841 = vmatmul.mubr.f32.gmra.mrb[0].mxu0 %v619
      %v842 = vpop.f32.mrb[0].mxu0
      %v843 = vadd.f32 0.0, %v842
      %v844 = vpop.f32.mrb[0].mxu0
      %845 = vdwg.mxu0
      %v846 = vsel %vm247, %v476, 0
      %v848 = vsel %vm247, %v478, 0
      %v850 = vsel %vm247, %v481, 0
      %v852 = vsel %vm247, %v483, 0
      %v854 = vsel %vm247, %v486, 0
      %v856 = vsel %vm247, %v488, 0
      %v858 = vsel %vm247, %v491, 0
      %v860 = vsel %vm247, %v493, 0
      %v862 = vsel %vm247, %v496, 0
      %v864 = vsel %vm247, %v498, 0
      %v866 = vsel %vm247, %v501, 0
      %v868 = vsel %vm247, %v503, 0
      %v870 = vsel %vm247, %v506, 0
      %v872 = vsel %vm247, %v508, 0
      %v874 = vsel %vm247, %v511, 0
      %v876 = vsel %vm247, %v513, 0
      %v878 = vsel %vm247, %v516, 0
      %v880 = vsel %vm247, %v518, 0
      %v882 = vsel %vm247, %v521, 0
      %v884 = vsel %vm247, %v523, 0
      %v886 = vsel %vm247, %v526, 0
      %v888 = vsel %vm247, %v528, 0
      %v890 = vsel %vm247, %v531, 0
      %v892 = vsel %vm247, %v533, 0
      %v894 = vsel %vm247, %v536, 0
      %v896 = vsel %vm247, %v538, 0
      %v898 = vsel %vm247, %v541, 0
      %v900 = vsel %vm247, %v543, 0
      %v902 = vsel %vm247, %v546, 0
      %v904 = vsel %vm247, %v548, 0
      %v906 = vsel %vm247, %v551, 0
      %v908 = vsel %vm247, %v553, 0
      %910 = vmatprep.subr.mxu0 0.0
      %911 = vmatpush1.msra.mxu0 %v554
      %912 = vmatprep.subr.mxu0 0.0
      %913 = vmatpush1.msra.mxu0 0.0
      %914 = vmatprep.subr.mxu0 0.0
      %915 = vmatpush1.msra.mxu0 0.0
      %916 = vmatprep.subr.mxu0 0.0
      %917 = vmatpush1.msra.mxu0 0.0
      %918 = vmatprep.subr.mxu0 0.0
      %919 = vmatpush1.msra.mxu0 0.0
      %920 = vmatprep.subr.mxu0 0.0
      %921 = vmatpush1.msra.mxu0 0.0
      %922 = vmatprep.subr.mxu0 0.0
      %923 = vmatpush1.msra.mxu0 0.0
      %924 = vmatprep.subr.mxu0 0.0
      %925 = vmatpush1.msra.mxu0 0.0
      %926 = vmatprep.subr.mxu0 0.0
      %927 = vmatpush1.msra.mxu0 0.0
      %928 = vmatprep.subr.mxu0 0.0
      %929 = vmatpush1.msra.mxu0 0.0
      %930 = vmatprep.subr.mxu0 0.0
      %931 = vmatpush1.msra.mxu0 0.0
      %932 = vmatprep.subr.mxu0 0.0
      %933 = vmatpush1.msra.mxu0 0.0
      %934 = vmatprep.subr.mxu0 0.0
      %935 = vmatpush1.msra.mxu0 0.0
      %936 = vmatprep.subr.mxu0 0.0
      %937 = vmatpush1.msra.mxu0 0.0
      %938 = vmatprep.subr.mxu0 0.0
      %939 = vmatpush1.msra.mxu0 0.0
      %940 = vmatprep.subr.mxu0 0.0
      %941 = vmatpush1.msra.mxu0 0.0
      %942 = vmatprep.subr.mxu0 0.0
      %943 = vmatpush1.msra.mxu0 0.0
      %944 = vmatprep.subr.mxu0 0.0
      %945 = vmatpush1.msra.mxu0 0.0
      %946 = vmatprep.subr.mxu0 0.0
      %947 = vmatpush1.msra.mxu0 0.0
      %948 = vmatprep.subr.mxu0 0.0
      %949 = vmatpush1.msra.mxu0 0.0
      %950 = vmatprep.subr.mxu0 0.0
      %951 = vmatpush1.msra.mxu0 0.0
      %952 = vmatprep.subr.mxu0 0.0
      %953 = vmatpush1.msra.mxu0 0.0
      %954 = vmatprep.subr.mxu0 0.0
      %955 = vmatpush1.msra.mxu0 0.0
      %956 = vmatprep.subr.mxu0 0.0
      %957 = vmatpush1.msra.mxu0 0.0
      %958 = vmatprep.subr.mxu0 0.0
      %959 = vmatpush1.msra.mxu0 0.0
      %960 = vmatprep.subr.mxu0 0.0
      %961 = vmatpush1.msra.mxu0 0.0
      %962 = vmatprep.subr.mxu0 0.0
      %963 = vmatpush1.msra.mxu0 0.0
      %964 = vmatprep.subr.mxu0 0.0
      %965 = vmatpush1.msra.mxu0 0.0
      %966 = vmatprep.subr.mxu0 0.0
      %967 = vmatpush1.msra.mxu0 0.0
      %968 = vmatprep.subr.mxu0 0.0
      %969 = vmatpush1.msra.mxu0 0.0
      %970 = vmatprep.subr.mxu0 0.0
      %971 = vmatpush1.msra.mxu0 0.0
      %972 = vmatprep.subr.mxu0 0.0
      %973 = vmatpush1.msra.mxu0 0.0
      %974 = vmatprep.mubr.f32.mxu0 0.0
      %975 = vmatmul.mubr.f32.gmra.mrb[0].mxu0 %v846
      %v976 = vpop.f32.mrb[0].mxu0
      %v977 = vadd.f32 %v688, %v976
      %v978 = vpop.f32.mrb[0].mxu0
      %979 = vmatprep.mubr.f32.mxu0 0.0
      %980 = vmatmul.mubr.f32.gmra.mrb[0].mxu0 %v848
      %v981 = vpop.f32.mrb[0].mxu0
      %v982 = vadd.f32 %v693, %v981
      %v983 = vpop.f32.mrb[0].mxu0
      %984 = vmatprep.mubr.f32.mxu0 0.0
      %985 = vmatmul.mubr.f32.gmra.mrb[0].mxu0 %v850
      %v986 = vpop.f32.mrb[0].mxu0
      %v987 = vadd.f32 %v698, %v986
      %v988 = vpop.f32.mrb[0].mxu0
      %989 = vmatprep.mubr.f32.mxu0 0.0
      %990 = vmatmul.mubr.f32.gmra.mrb[0].mxu0 %v852
      %v991 = vpop.f32.mrb[0].mxu0
      %v992 = vadd.f32 %v703, %v991
      %v993 = vpop.f32.mrb[0].mxu0
      %994 = vmatprep.mubr.f32.mxu0 0.0
      %995 = vmatmul.mubr.f32.gmra.mrb[0].mxu0 %v854
      %v996 = vpop.f32.mrb[0].mxu0
      %v997 = vadd.f32 %v708, %v996
      %v998 = vpop.f32.mrb[0].mxu0
      %999 = vmatprep.mubr.f32.mxu0 0.0
      %1000 = vmatmul.mubr.f32.gmra.mrb[0].mxu0 %v856
      %v1001 = vpop.f32.mrb[0].mxu0
      %v1002 = vadd.f32 %v713, %v1001
      %v1003 = vpop.f32.mrb[0].mxu0
      %1004 = vmatprep.mubr.f32.mxu0 0.0
      %1005 = vmatmul.mubr.f32.gmra.mrb[0].mxu0 %v858
      %v1006 = vpop.f32.mrb[0].mxu0
      %v1007 = vadd.f32 %v718, %v1006
      %v1008 = vpop.f32.mrb[0].mxu0
      %1009 = vmatprep.mubr.f32.mxu0 0.0
      %1010 = vmatmul.mubr.f32.gmra.mrb[0].mxu0 %v860
      %v1011 = vpop.f32.mrb[0].mxu0
      %v1012 = vadd.f32 %v723, %v1011
      %v1013 = vpop.f32.mrb[0].mxu0
      %1014 = vmatprep.mubr.f32.mxu0 0.0
      %1015 = vmatmul.mubr.f32.gmra.mrb[0].mxu0 %v862
      %v1016 = vpop.f32.mrb[0].mxu0
      %v1017 = vadd.f32 %v728, %v1016
      %v1018 = vpop.f32.mrb[0].mxu0
      %1019 = vmatprep.mubr.f32.mxu0 0.0
      %1020 = vmatmul.mubr.f32.gmra.mrb[0].mxu0 %v864
      %v1021 = vpop.f32.mrb[0].mxu0
      %v1022 = vadd.f32 %v733, %v1021
      %v1023 = vpop.f32.mrb[0].mxu0
      %1024 = vmatprep.mubr.f32.mxu0 0.0
      %1025 = vmatmul.mubr.f32.gmra.mrb[0].mxu0 %v866
      %v1026 = vpop.f32.mrb[0].mxu0
      %v1027 = vadd.f32 %v738, %v1026
      %v1028 = vpop.f32.mrb[0].mxu0
      %1029 = vmatprep.mubr.f32.mxu0 0.0
      %1030 = vmatmul.mubr.f32.gmra.mrb[0].mxu0 %v868
      %v1031 = vpop.f32.mrb[0].mxu0
      %v1032 = vadd.f32 %v743, %v1031
      %v1033 = vpop.f32.mrb[0].mxu0
      %1034 = vmatprep.mubr.f32.mxu0 0.0
      %1035 = vmatmul.mubr.f32.gmra.mrb[0].mxu0 %v870
      %v1036 = vpop.f32.mrb[0].mxu0
      %v1037 = vadd.f32 %v748, %v1036
      %v1038 = vpop.f32.mrb[0].mxu0
      %1039 = vmatprep.mubr.f32.mxu0 0.0
      %1040 = vmatmul.mubr.f32.gmra.mrb[0].mxu0 %v872
      %v1041 = vpop.f32.mrb[0].mxu0
      %v1042 = vadd.f32 %v753, %v1041
      %v1043 = vpop.f32.mrb[0].mxu0
      %1044 = vmatprep.mubr.f32.mxu0 0.0
      %1045 = vmatmul.mubr.f32.gmra.mrb[0].mxu0 %v874
      %v1046 = vpop.f32.mrb[0].mxu0
      %v1047 = vadd.f32 %v758, %v1046
      %v1048 = vpop.f32.mrb[0].mxu0
      %1049 = vmatprep.mubr.f32.mxu0 0.0
      %1050 = vmatmul.mubr.f32.gmra.mrb[0].mxu0 %v876
      %v1051 = vpop.f32.mrb[0].mxu0
      %v1052 = vadd.f32 %v763, %v1051
      %v1053 = vpop.f32.mrb[0].mxu0
      %1054 = vmatprep.mubr.f32.mxu0 0.0
      %1055 = vmatmul.mubr.f32.gmra.mrb[0].mxu0 %v878
      %v1056 = vpop.f32.mrb[0].mxu0
      %v1057 = vadd.f32 %v768, %v1056
      %v1058 = vpop.f32.mrb[0].mxu0
      %1059 = vmatprep.mubr.f32.mxu0 0.0
      %1060 = vmatmul.mubr.f32.gmra.mrb[0].mxu0 %v880
      %v1061 = vpop.f32.mrb[0].mxu0
      %v1062 = vadd.f32 %v773, %v1061
      %v1063 = vpop.f32.mrb[0].mxu0
      %1064 = vmatprep.mubr.f32.mxu0 0.0
      %1065 = vmatmul.mubr.f32.gmra.mrb[0].mxu0 %v882
      %v1066 = vpop.f32.mrb[0].mxu0
      %v1067 = vadd.f32 %v778, %v1066
      %v1068 = vpop.f32.mrb[0].mxu0
      %1069 = vmatprep.mubr.f32.mxu0 0.0
      %1070 = vmatmul.mubr.f32.gmra.mrb[0].mxu0 %v884
      %v1071 = vpop.f32.mrb[0].mxu0
      %v1072 = vadd.f32 %v783, %v1071
      %v1073 = vpop.f32.mrb[0].mxu0
      %1074 = vmatprep.mubr.f32.mxu0 0.0
      %1075 = vmatmul.mubr.f32.gmra.mrb[0].mxu0 %v886
      %v1076 = vpop.f32.mrb[0].mxu0
      %v1077 = vadd.f32 %v788, %v1076
      %v1078 = vpop.f32.mrb[0].mxu0
      %1079 = vmatprep.mubr.f32.mxu0 0.0
      %1080 = vmatmul.mubr.f32.gmra.mrb[0].mxu0 %v888
      %v1081 = vpop.f32.mrb[0].mxu0
      %v1082 = vadd.f32 %v793, %v1081
      %v1083 = vpop.f32.mrb[0].mxu0
      %1084 = vmatprep.mubr.f32.mxu0 0.0
      %1085 = vmatmul.mubr.f32.gmra.mrb[0].mxu0 %v890
      %v1086 = vpop.f32.mrb[0].mxu0
      %v1087 = vadd.f32 %v798, %v1086
      %v1088 = vpop.f32.mrb[0].mxu0
      %1089 = vmatprep.mubr.f32.mxu0 0.0
      %1090 = vmatmul.mubr.f32.gmra.mrb[0].mxu0 %v892
      %v1091 = vpop.f32.mrb[0].mxu0
      %v1092 = vadd.f32 %v803, %v1091
      %v1093 = vpop.f32.mrb[0].mxu0
      %1094 = vmatprep.mubr.f32.mxu0 0.0
      %1095 = vmatmul.mubr.f32.gmra.mrb[0].mxu0 %v894
      %v1096 = vpop.f32.mrb[0].mxu0
      %v1097 = vadd.f32 %v808, %v1096
      %v1098 = vpop.f32.mrb[0].mxu0
      %1099 = vmatprep.mubr.f32.mxu0 0.0
      %1100 = vmatmul.mubr.f32.gmra.mrb[0].mxu0 %v896
      %v1101 = vpop.f32.mrb[0].mxu0
      %v1102 = vadd.f32 %v813, %v1101
      %v1103 = vpop.f32.mrb[0].mxu0
      %1104 = vmatprep.mubr.f32.mxu0 0.0
      %1105 = vmatmul.mubr.f32.gmra.mrb[0].mxu0 %v898
      %v1106 = vpop.f32.mrb[0].mxu0
      %v1107 = vadd.f32 %v818, %v1106
      %v1108 = vpop.f32.mrb[0].mxu0
      %1109 = vmatprep.mubr.f32.mxu0 0.0
      %1110 = vmatmul.mubr.f32.gmra.mrb[0].mxu0 %v900
      %v1111 = vpop.f32.mrb[0].mxu0
      %v1112 = vadd.f32 %v823, %v1111
      %v1113 = vpop.f32.mrb[0].mxu0
      %1114 = vmatprep.mubr.f32.mxu0 0.0
      %1115 = vmatmul.mubr.f32.gmra.mrb[0].mxu0 %v902
      %v1116 = vpop.f32.mrb[0].mxu0
      %v1117 = vadd.f32 %v828, %v1116
      %v1118 = vpop.f32.mrb[0].mxu0
      %1119 = vmatprep.mubr.f32.mxu0 0.0
      %1120 = vmatmul.mubr.f32.gmra.mrb[0].mxu0 %v904
      %v1121 = vpop.f32.mrb[0].mxu0
      %v1122 = vadd.f32 %v833, %v1121
      %v1123 = vpop.f32.mrb[0].mxu0
      %1124 = vmatprep.mubr.f32.mxu0 0.0
      %1125 = vmatmul.mubr.f32.gmra.mrb[0].mxu0 %v906
      %v1126 = vpop.f32.mrb[0].mxu0
      %v1127 = vadd.f32 %v838, %v1126
      %v1128 = vpop.f32.mrb[0].mxu0
      %1129 = vmatprep.mubr.f32.mxu0 0.0
      %1130 = vmatmul.mubr.f32.gmra.mrb[0].mxu0 %v908
      %v1131 = vpop.f32.mrb[0].mxu0
      %v1132 = vadd.f32 %v843, %v1131
      %v1133 = vpop.f32.mrb[0].mxu0
      %1134 = vdwg.mxu0
      %vm1151 = vcmask 1046528
      %v1152 = vrot.slane %v354, 1
      %v1153 = vrot.slane %v355, 1
      %v1154 = vsel %vm1151, %v1152, %v1153
      %v1155 = vrot.slane %v356, 1
      %v1156 = vsel %vm1151, %v1153, %v1155
      %v1157 = vrot.slane %v358, 1
      %v1158 = vrot.slane %v359, 1
      %v1159 = vsel %vm1151, %v1157, %v1158
      %v1160 = vrot.slane %v360, 1
      %v1161 = vsel %vm1151, %v1158, %v1160
      %v1162 = vrot.slane %v362, 1
      %v1163 = vrot.slane %v363, 1
      %v1164 = vsel %vm1151, %v1162, %v1163
      %v1165 = vrot.slane %v364, 1
      %v1166 = vsel %vm1151, %v1163, %v1165
      %v1167 = vrot.slane %v366, 1
      %v1168 = vrot.slane %v367, 1
      %v1169 = vsel %vm1151, %v1167, %v1168
      %v1170 = vrot.slane %v368, 1
      %v1171 = vsel %vm1151, %v1168, %v1170
      %v1172 = vrot.slane %v370, 1
      %v1173 = vrot.slane %v371, 1
      %v1174 = vsel %vm1151, %v1172, %v1173
      %v1175 = vrot.slane %v372, 1
      %v1176 = vsel %vm1151, %v1173, %v1175
      %v1177 = vrot.slane %v374, 1
      %v1178 = vrot.slane %v375, 1
      %v1179 = vsel %vm1151, %v1177, %v1178
      %v1180 = vrot.slane %v376, 1
      %v1181 = vsel %vm1151, %v1178, %v1180
      %v1182 = vrot.slane %v378, 1
      %v1183 = vrot.slane %v379, 1
      %v1184 = vsel %vm1151, %v1182, %v1183
      %v1185 = vrot.slane %v380, 1
      %v1186 = vsel %vm1151, %v1183, %v1185
      %v1187 = vrot.slane %v382, 1
      %v1188 = vrot.slane %v383, 1
      %v1189 = vsel %vm1151, %v1187, %v1188
      %v1190 = vrot.slane %v384, 1
      %v1191 = vsel %vm1151, %v1188, %v1190
      %v1192 = vrot.slane %v386, 1
      %v1193 = vrot.slane %v387, 1
      %v1194 = vsel %vm1151, %v1192, %v1193
      %v1195 = vrot.slane %v388, 1
      %v1196 = vsel %vm1151, %v1193, %v1195
      %v1197 = vrot.slane %v390, 1
      %v1198 = vrot.slane %v391, 1
      %v1199 = vsel %vm1151, %v1197, %v1198
      %v1200 = vrot.slane %v392, 1
      %v1201 = vsel %vm1151, %v1198, %v1200
      %v1202 = vrot.slane %v394, 1
      %v1203 = vrot.slane %v395, 1
      %v1204 = vsel %vm1151, %v1202, %v1203
      %v1205 = vrot.slane %v396, 1
      %v1206 = vsel %vm1151, %v1203, %v1205
      %v1207 = vrot.slane %v398, 1
      %v1208 = vrot.slane %v399, 1
      %v1209 = vsel %vm1151, %v1207, %v1208
      %v1210 = vrot.slane %v400, 1
      %v1211 = vsel %vm1151, %v1208, %v1210
      %v1212 = vrot.slane %v402, 1
      %v1213 = vrot.slane %v403, 1
      %v1214 = vsel %vm1151, %v1212, %v1213
      %v1215 = vrot.slane %v404, 1
      %v1216 = vsel %vm1151, %v1213, %v1215
      %v1217 = vrot.slane %v406, 1
      %v1218 = vrot.slane %v407, 1
      %v1219 = vsel %vm1151, %v1217, %v1218
      %v1220 = vrot.slane %v408, 1
      %v1221 = vsel %vm1151, %v1218, %v1220
      %v1222 = vrot.slane %v410, 1
      %v1223 = vrot.slane %v411, 1
      %v1224 = vsel %vm1151, %v1222, %v1223
      %v1225 = vrot.slane %v412, 1
      %v1226 = vsel %vm1151, %v1223, %v1225
      %v1227 = vrot.slane %v414, 1
      %v1228 = vrot.slane %v415, 1
      %v1229 = vsel %vm1151, %v1227, %v1228
      %v1230 = vrot.slane %v416, 1
      %v1231 = vsel %vm1151, %v1228, %v1230
      %s1232 = scalar_lea.vmem %s1, 16
      %v1233 = vld [vmem:[%s1232] sm:$0xff]
      %v1234 = vsel %vm247, %v1154, 0
      %v1236 = vsel %vm247, %v1156, 0
      %v1238 = vsel %vm247, %v1159, 0
      %v1240 = vsel %vm247, %v1161, 0
      %v1242 = vsel %vm247, %v1164, 0
      %v1244 = vsel %vm247, %v1166, 0
      %v1246 = vsel %vm247, %v1169, 0
      %v1248 = vsel %vm247, %v1171, 0
      %v1250 = vsel %vm247, %v1174, 0
      %v1252 = vsel %vm247, %v1176, 0
      %v1254 = vsel %vm247, %v1179, 0
      %v1256 = vsel %vm247, %v1181, 0
      %v1258 = vsel %vm247, %v1184, 0
      %v1260 = vsel %vm247, %v1186, 0
      %v1262 = vsel %vm247, %v1189, 0
      %v1264 = vsel %vm247, %v1191, 0
      %v1266 = vsel %vm247, %v1194, 0
      %v1268 = vsel %vm247, %v1196, 0
      %v1270 = vsel %vm247, %v1199, 0
      %v1272 = vsel %vm247, %v1201, 0
      %v1274 = vsel %vm247, %v1204, 0
      %v1276 = vsel %vm247, %v1206, 0
      %v1278 = vsel %vm247, %v1209, 0
      %v1280 = vsel %vm247, %v1211, 0
      %v1282 = vsel %vm247, %v1214, 0
      %v1284 = vsel %vm247, %v1216, 0
      %v1286 = vsel %vm247, %v1219, 0
      %v1288 = vsel %vm247, %v1221, 0
      %v1290 = vsel %vm247, %v1224, 0
      %v1292 = vsel %vm247, %v1226, 0
      %v1294 = vsel %vm247, %v1229, 0
      %v1296 = vsel %vm247, %v1231, 0
      %1298 = vmatprep.subr.mxu0 0.0
      %1299 = vmatpush1.msra.mxu0 %v1233
      %1300 = vmatprep.subr.mxu0 0.0
      %1301 = vmatpush1.msra.mxu0 0.0
      %1302 = vmatprep.subr.mxu0 0.0
      %1303 = vmatpush1.msra.mxu0 0.0
      %1304 = vmatprep.subr.mxu0 0.0
      %1305 = vmatpush1.msra.mxu0 0.0
      %1306 = vmatprep.subr.mxu0 0.0
      %1307 = vmatpush1.msra.mxu0 0.0
      %1308 = vmatprep.subr.mxu0 0.0
      %1309 = vmatpush1.msra.mxu0 0.0
      %1310 = vmatprep.subr.mxu0 0.0
      %1311 = vmatpush1.msra.mxu0 0.0
      %1312 = vmatprep.subr.mxu0 0.0
      %1313 = vmatpush1.msra.mxu0 0.0
      %1314 = vmatprep.subr.mxu0 0.0
      %1315 = vmatpush1.msra.mxu0 0.0
      %1316 = vmatprep.subr.mxu0 0.0
      %1317 = vmatpush1.msra.mxu0 0.0
      %1318 = vmatprep.subr.mxu0 0.0
      %1319 = vmatpush1.msra.mxu0 0.0
      %1320 = vmatprep.subr.mxu0 0.0
      %1321 = vmatpush1.msra.mxu0 0.0
      %1322 = vmatprep.subr.mxu0 0.0
      %1323 = vmatpush1.msra.mxu0 0.0
      %1324 = vmatprep.subr.mxu0 0.0
      %1325 = vmatpush1.msra.mxu0 0.0
      %1326 = vmatprep.subr.mxu0 0.0
      %1327 = vmatpush1.msra.mxu0 0.0
      %1328 = vmatprep.subr.mxu0 0.0
      %1329 = vmatpush1.msra.mxu0 0.0
      %1330 = vmatprep.subr.mxu0 0.0
      %1331 = vmatpush1.msra.mxu0 0.0
      %1332 = vmatprep.subr.mxu0 0.0
      %1333 = vmatpush1.msra.mxu0 0.0
      %1334 = vmatprep.subr.mxu0 0.0
      %1335 = vmatpush1.msra.mxu0 0.0
      %1336 = vmatprep.subr.mxu0 0.0
      %1337 = vmatpush1.msra.mxu0 0.0
      %1338 = vmatprep.subr.mxu0 0.0
      %1339 = vmatpush1.msra.mxu0 0.0
      %1340 = vmatprep.subr.mxu0 0.0
      %1341 = vmatpush1.msra.mxu0 0.0
      %1342 = vmatprep.subr.mxu0 0.0
      %1343 = vmatpush1.msra.mxu0 0.0
      %1344 = vmatprep.subr.mxu0 0.0
      %1345 = vmatpush1.msra.mxu0 0.0
      %1346 = vmatprep.subr.mxu0 0.0
      %1347 = vmatpush1.msra.mxu0 0.0
      %1348 = vmatprep.subr.mxu0 0.0
      %1349 = vmatpush1.msra.mxu0 0.0
      %1350 = vmatprep.subr.mxu0 0.0
      %1351 = vmatpush1.msra.mxu0 0.0
      %1352 = vmatprep.subr.mxu0 0.0
      %1353 = vmatpush1.msra.mxu0 0.0
      %1354 = vmatprep.subr.mxu0 0.0
      %1355 = vmatpush1.msra.mxu0 0.0
      %1356 = vmatprep.subr.mxu0 0.0
      %1357 = vmatpush1.msra.mxu0 0.0
      %1358 = vmatprep.subr.mxu0 0.0
      %1359 = vmatpush1.msra.mxu0 0.0
      %1360 = vmatprep.subr.mxu0 0.0
      %1361 = vmatpush1.msra.mxu0 0.0
      %1362 = vmatprep.mubr.f32.mxu0 0.0
      %1363 = vmatmul.mubr.f32.gmra.mrb[0].mxu0 %v1234
      %v1364 = vpop.f32.mrb[0].mxu0
      %v1365 = vadd.f32 0.0, %v1364
      %v1366 = vpop.f32.mrb[0].mxu0
      %1367 = vmatprep.mubr.f32.mxu0 0.0
      %1368 = vmatmul.mubr.f32.gmra.mrb[0].mxu0 %v1236
      %v1369 = vpop.f32.mrb[0].mxu0
      %v1370 = vadd.f32 0.0, %v1369
      %v1371 = vpop.f32.mrb[0].mxu0
      %1372 = vmatprep.mubr.f32.mxu0 0.0
      %1373 = vmatmul.mubr.f32.gmra.mrb[0].mxu0 %v1238
      %v1374 = vpop.f32.mrb[0].mxu0
      %v1375 = vadd.f32 0.0, %v1374
      %v1376 = vpop.f32.mrb[0].mxu0
      %1377 = vmatprep.mubr.f32.mxu0 0.0
      %1378 = vmatmul.mubr.f32.gmra.mrb[0].mxu0 %v1240
      %v1379 = vpop.f32.mrb[0].mxu0
      %v1380 = vadd.f32 0.0, %v1379
      %v1381 = vpop.f32.mrb[0].mxu0
      %1382 = vmatprep.mubr.f32.mxu0 0.0
      %1383 = vmatmul.mubr.f32.gmra.mrb[0].mxu0 %v1242
      %v1384 = vpop.f32.mrb[0].mxu0
      %v1385 = vadd.f32 0.0, %v1384
      %v1386 = vpop.f32.mrb[0].mxu0
      %1387 = vmatprep.mubr.f32.mxu0 0.0
      %1388 = vmatmul.mubr.f32.gmra.mrb[0].mxu0 %v1244
      %v1389 = vpop.f32.mrb[0].mxu0
      %v1390 = vadd.f32 0.0, %v1389
      %v1391 = vpop.f32.mrb[0].mxu0
      %1392 = vmatprep.mubr.f32.mxu0 0.0
      %1393 = vmatmul.mubr.f32.gmra.mrb[0].mxu0 %v1246
      %v1394 = vpop.f32.mrb[0].mxu0
      %v1395 = vadd.f32 0.0, %v1394
      %v1396 = vpop.f32.mrb[0].mxu0
      %1397 = vmatprep.mubr.f32.mxu0 0.0
      %1398 = vmatmul.mubr.f32.gmra.mrb[0].mxu0 %v1248
      %v1399 = vpop.f32.mrb[0].mxu0
      %v1400 = vadd.f32 0.0, %v1399
      %v1401 = vpop.f32.mrb[0].mxu0
      %1402 = vmatprep.mubr.f32.mxu0 0.0
      %1403 = vmatmul.mubr.f32.gmra.mrb[0].mxu0 %v1250
      %v1404 = vpop.f32.mrb[0].mxu0
      %v1405 = vadd.f32 0.0, %v1404
      %v1406 = vpop.f32.mrb[0].mxu0
      %1407 = vmatprep.mubr.f32.mxu0 0.0
      %1408 = vmatmul.mubr.f32.gmra.mrb[0].mxu0 %v1252
      %v1409 = vpop.f32.mrb[0].mxu0
      %v1410 = vadd.f32 0.0, %v1409
      %v1411 = vpop.f32.mrb[0].mxu0
      %1412 = vmatprep.mubr.f32.mxu0 0.0
      %1413 = vmatmul.mubr.f32.gmra.mrb[0].mxu0 %v1254
      %v1414 = vpop.f32.mrb[0].mxu0
      %v1415 = vadd.f32 0.0, %v1414
      %v1416 = vpop.f32.mrb[0].mxu0
      %1417 = vmatprep.mubr.f32.mxu0 0.0
      %1418 = vmatmul.mubr.f32.gmra.mrb[0].mxu0 %v1256
      %v1419 = vpop.f32.mrb[0].mxu0
      %v1420 = vadd.f32 0.0, %v1419
      %v1421 = vpop.f32.mrb[0].mxu0
      %1422 = vmatprep.mubr.f32.mxu0 0.0
      %1423 = vmatmul.mubr.f32.gmra.mrb[0].mxu0 %v1258
      %v1424 = vpop.f32.mrb[0].mxu0
      %v1425 = vadd.f32 0.0, %v1424
      %v1426 = vpop.f32.mrb[0].mxu0
      %1427 = vmatprep.mubr.f32.mxu0 0.0
      %1428 = vmatmul.mubr.f32.gmra.mrb[0].mxu0 %v1260
      %v1429 = vpop.f32.mrb[0].mxu0
      %v1430 = vadd.f32 0.0, %v1429
      %v1431 = vpop.f32.mrb[0].mxu0
      %1432 = vmatprep.mubr.f32.mxu0 0.0
      %1433 = vmatmul.mubr.f32.gmra.mrb[0].mxu0 %v1262
      %v1434 = vpop.f32.mrb[0].mxu0
      %v1435 = vadd.f32 0.0, %v1434
      %v1436 = vpop.f32.mrb[0].mxu0
      %1437 = vmatprep.mubr.f32.mxu0 0.0
      %1438 = vmatmul.mubr.f32.gmra.mrb[0].mxu0 %v1264
      %v1439 = vpop.f32.mrb[0].mxu0
      %v1440 = vadd.f32 0.0, %v1439
      %v1441 = vpop.f32.mrb[0].mxu0
      %1442 = vmatprep.mubr.f32.mxu0 0.0
      %1443 = vmatmul.mubr.f32.gmra.mrb[0].mxu0 %v1266
      %v1444 = vpop.f32.mrb[0].mxu0
      %v1445 = vadd.f32 0.0, %v1444
      %v1446 = vpop.f32.mrb[0].mxu0
      %1447 = vmatprep.mubr.f32.mxu0 0.0
      %1448 = vmatmul.mubr.f32.gmra.mrb[0].mxu0 %v1268
      %v1449 = vpop.f32.mrb[0].mxu0
      %v1450 = vadd.f32 0.0, %v1449
      %v1451 = vpop.f32.mrb[0].mxu0
      %1452 = vmatprep.mubr.f32.mxu0 0.0
      %1453 = vmatmul.mubr.f32.gmra.mrb[0].mxu0 %v1270
      %v1454 = vpop.f32.mrb[0].mxu0
      %v1455 = vadd.f32 0.0, %v1454
      %v1456 = vpop.f32.mrb[0].mxu0
      %1457 = vmatprep.mubr.f32.mxu0 0.0
      %1458 = vmatmul.mubr.f32.gmra.mrb[0].mxu0 %v1272
      %v1459 = vpop.f32.mrb[0].mxu0
      %v1460 = vadd.f32 0.0, %v1459
      %v1461 = vpop.f32.mrb[0].mxu0
      %1462 = vmatprep.mubr.f32.mxu0 0.0
      %1463 = vmatmul.mubr.f32.gmra.mrb[0].mxu0 %v1274
      %v1464 = vpop.f32.mrb[0].mxu0
      %v1465 = vadd.f32 0.0, %v1464
      %v1466 = vpop.f32.mrb[0].mxu0
      %1467 = vmatprep.mubr.f32.mxu0 0.0
      %1468 = vmatmul.mubr.f32.gmra.mrb[0].mxu0 %v1276
      %v1469 = vpop.f32.mrb[0].mxu0
      %v1470 = vadd.f32 0.0, %v1469
      %v1471 = vpop.f32.mrb[0].mxu0
      %1472 = vmatprep.mubr.f32.mxu0 0.0
      %1473 = vmatmul.mubr.f32.gmra.mrb[0].mxu0 %v1278
      %v1474 = vpop.f32.mrb[0].mxu0
      %v1475 = vadd.f32 0.0, %v1474
      %v1476 = vpop.f32.mrb[0].mxu0
      %1477 = vmatprep.mubr.f32.mxu0 0.0
      %1478 = vmatmul.mubr.f32.gmra.mrb[0].mxu0 %v1280
      %v1479 = vpop.f32.mrb[0].mxu0
      %v1480 = vadd.f32 0.0, %v1479
      %v1481 = vpop.f32.mrb[0].mxu0
      %1482 = vmatprep.mubr.f32.mxu0 0.0
      %1483 = vmatmul.mubr.f32.gmra.mrb[0].mxu0 %v1282
      %v1484 = vpop.f32.mrb[0].mxu0
      %v1485 = vadd.f32 0.0, %v1484
      %v1486 = vpop.f32.mrb[0].mxu0
      %1487 = vmatprep.mubr.f32.mxu0 0.0
      %1488 = vmatmul.mubr.f32.gmra.mrb[0].mxu0 %v1284
      %v1489 = vpop.f32.mrb[0].mxu0
      %v1490 = vadd.f32 0.0, %v1489
      %v1491 = vpop.f32.mrb[0].mxu0
      %1492 = vmatprep.mubr.f32.mxu0 0.0
      %1493 = vmatmul.mubr.f32.gmra.mrb[0].mxu0 %v1286
      %v1494 = vpop.f32.mrb[0].mxu0
      %v1495 = vadd.f32 0.0, %v1494
      %v1496 = vpop.f32.mrb[0].mxu0
      %1497 = vmatprep.mubr.f32.mxu0 0.0
      %1498 = vmatmul.mubr.f32.gmra.mrb[0].mxu0 %v1288
      %v1499 = vpop.f32.mrb[0].mxu0
      %v1500 = vadd.f32 0.0, %v1499
      %v1501 = vpop.f32.mrb[0].mxu0
      %1502 = vmatprep.mubr.f32.mxu0 0.0
      %1503 = vmatmul.mubr.f32.gmra.mrb[0].mxu0 %v1290
      %v1504 = vpop.f32.mrb[0].mxu0
      %v1505 = vadd.f32 0.0, %v1504
      %v1506 = vpop.f32.mrb[0].mxu0
      %1507 = vmatprep.mubr.f32.mxu0 0.0
      %1508 = vmatmul.mubr.f32.gmra.mrb[0].mxu0 %v1292
      %v1509 = vpop.f32.mrb[0].mxu0
      %v1510 = vadd.f32 0.0, %v1509
      %v1511 = vpop.f32.mrb[0].mxu0
      %1512 = vmatprep.mubr.f32.mxu0 0.0
      %1513 = vmatmul.mubr.f32.gmra.mrb[0].mxu0 %v1294
      %v1514 = vpop.f32.mrb[0].mxu0
      %v1515 = vadd.f32 0.0, %v1514
      %v1516 = vpop.f32.mrb[0].mxu0
      %1517 = vmatprep.mubr.f32.mxu0 0.0
      %1518 = vmatmul.mubr.f32.gmra.mrb[0].mxu0 %v1296
      %v1519 = vpop.f32.mrb[0].mxu0
      %v1520 = vadd.f32 0.0, %v1519
      %v1521 = vpop.f32.mrb[0].mxu0
      %1522 = vdwg.mxu0
      %v1523 = vadd.f32 %v977, %v1365
      %v1524 = vadd.f32 %v982, %v1370
      %v1525 = vadd.f32 %v987, %v1375
      %v1526 = vadd.f32 %v992, %v1380
      %v1527 = vadd.f32 %v997, %v1385
      %v1528 = vadd.f32 %v1002, %v1390
      %v1529 = vadd.f32 %v1007, %v1395
      %v1530 = vadd.f32 %v1012, %v1400
      %v1531 = vadd.f32 %v1017, %v1405
      %v1532 = vadd.f32 %v1022, %v1410
      %v1533 = vadd.f32 %v1027, %v1415
      %v1534 = vadd.f32 %v1032, %v1420
      %v1535 = vadd.f32 %v1037, %v1425
      %v1536 = vadd.f32 %v1042, %v1430
      %v1537 = vadd.f32 %v1047, %v1435
      %v1538 = vadd.f32 %v1052, %v1440
      %v1539 = vadd.f32 %v1057, %v1445
      %v1540 = vadd.f32 %v1062, %v1450
      %v1541 = vadd.f32 %v1067, %v1455
      %v1542 = vadd.f32 %v1072, %v1460
      %v1543 = vadd.f32 %v1077, %v1465
      %v1544 = vadd.f32 %v1082, %v1470
      %v1545 = vadd.f32 %v1087, %v1475
      %v1546 = vadd.f32 %v1092, %v1480
      %v1547 = vadd.f32 %v1097, %v1485
      %v1548 = vadd.f32 %v1102, %v1490
      %v1549 = vadd.f32 %v1107, %v1495
      %v1550 = vadd.f32 %v1112, %v1500
      %v1551 = vadd.f32 %v1117, %v1505
      %v1552 = vadd.f32 %v1122, %v1510
      %v1553 = vadd.f32 %v1127, %v1515
      %v1554 = vadd.f32 %v1132, %v1520
      %v1558 = vrot.slane %v417, 7
      %v1559 = vrot.slane %v418, 7
      %v1560 = vsel %vm473, %v1558, %v1559
      %v1561 = vrot.slane %v419, 7
      %v1562 = vsel %vm473, %v1559, %v1561
      %s1563 = scalar_lea.vmem %s1, 24
      %v1564 = vld [vmem:[%s1563] sm:$0xff]
      %v1565 = vsel %vm247, %v1560, 0
      %v1567 = vsel %vm247, %v1562, 0
      %1569 = vmatprep.subr.mxu0 0.0
      %1570 = vmatpush1.msra.mxu0 %v1564
      %1571 = vmatprep.subr.mxu0 0.0
      %1572 = vmatpush1.msra.mxu0 0.0
      %1573 = vmatprep.subr.mxu0 0.0
      %1574 = vmatpush1.msra.mxu0 0.0
      %1575 = vmatprep.subr.mxu0 0.0
      %1576 = vmatpush1.msra.mxu0 0.0
      %1577 = vmatprep.subr.mxu0 0.0
      %1578 = vmatpush1.msra.mxu0 0.0
      %1579 = vmatprep.subr.mxu0 0.0
      %1580 = vmatpush1.msra.mxu0 0.0
      %1581 = vmatprep.subr.mxu0 0.0
      %1582 = vmatpush1.msra.mxu0 0.0
      %1583 = vmatprep.subr.mxu0 0.0
      %1584 = vmatpush1.msra.mxu0 0.0
      %1585 = vmatprep.subr.mxu0 0.0
      %1586 = vmatpush1.msra.mxu0 0.0
      %1587 = vmatprep.subr.mxu0 0.0
      %1588 = vmatpush1.msra.mxu0 0.0
      %1589 = vmatprep.subr.mxu0 0.0
      %1590 = vmatpush1.msra.mxu0 0.0
      %1591 = vmatprep.subr.mxu0 0.0
      %1592 = vmatpush1.msra.mxu0 0.0
      %1593 = vmatprep.subr.mxu0 0.0
      %1594 = vmatpush1.msra.mxu0 0.0
      %1595 = vmatprep.subr.mxu0 0.0
      %1596 = vmatpush1.msra.mxu0 0.0
      %1597 = vmatprep.subr.mxu0 0.0
      %1598 = vmatpush1.msra.mxu0 0.0
      %1599 = vmatprep.subr.mxu0 0.0
      %1600 = vmatpush1.msra.mxu0 0.0
      %1601 = vmatprep.subr.mxu0 0.0
      %1602 = vmatpush1.msra.mxu0 0.0
      %1603 = vmatprep.subr.mxu0 0.0
      %1604 = vmatpush1.msra.mxu0 0.0
      %1605 = vmatprep.subr.mxu0 0.0
      %1606 = vmatpush1.msra.mxu0 0.0
      %1607 = vmatprep.subr.mxu0 0.0
      %1608 = vmatpush1.msra.mxu0 0.0
      %1609 = vmatprep.subr.mxu0 0.0
      %1610 = vmatpush1.msra.mxu0 0.0
      %1611 = vmatprep.subr.mxu0 0.0
      %1612 = vmatpush1.msra.mxu0 0.0
      %1613 = vmatprep.subr.mxu0 0.0
      %1614 = vmatpush1.msra.mxu0 0.0
      %1615 = vmatprep.subr.mxu0 0.0
      %1616 = vmatpush1.msra.mxu0 0.0
      %1617 = vmatprep.subr.mxu0 0.0
      %1618 = vmatpush1.msra.mxu0 0.0
      %1619 = vmatprep.subr.mxu0 0.0
      %1620 = vmatpush1.msra.mxu0 0.0
      %1621 = vmatprep.subr.mxu0 0.0
      %1622 = vmatpush1.msra.mxu0 0.0
      %1623 = vmatprep.subr.mxu0 0.0
      %1624 = vmatpush1.msra.mxu0 0.0
      %1625 = vmatprep.subr.mxu0 0.0
      %1626 = vmatpush1.msra.mxu0 0.0
      %1627 = vmatprep.subr.mxu0 0.0
      %1628 = vmatpush1.msra.mxu0 0.0
      %1629 = vmatprep.subr.mxu0 0.0
      %1630 = vmatpush1.msra.mxu0 0.0
      %1631 = vmatprep.subr.mxu0 0.0
      %1632 = vmatpush1.msra.mxu0 0.0
      %1633 = vmatprep.mubr.f32.mxu0 0.0
      %1634 = vmatmul.mubr.f32.gmra.mrb[0].mxu0 %v850
      %v1635 = vpop.f32.mrb[0].mxu0
      %v1636 = vadd.f32 0.0, %v1635
      %v1637 = vpop.f32.mrb[0].mxu0
      %1638 = vmatprep.mubr.f32.mxu0 0.0
      %1639 = vmatmul.mubr.f32.gmra.mrb[0].mxu0 %v852
      %v1640 = vpop.f32.mrb[0].mxu0
      %v1641 = vadd.f32 0.0, %v1640
      %v1642 = vpop.f32.mrb[0].mxu0
      %1643 = vmatprep.mubr.f32.mxu0 0.0
      %1644 = vmatmul.mubr.f32.gmra.mrb[0].mxu0 %v854
      %v1645 = vpop.f32.mrb[0].mxu0
      %v1646 = vadd.f32 0.0, %v1645
      %v1647 = vpop.f32.mrb[0].mxu0
      %1648 = vmatprep.mubr.f32.mxu0 0.0
      %1649 = vmatmul.mubr.f32.gmra.mrb[0].mxu0 %v856
      %v1650 = vpop.f32.mrb[0].mxu0
      %v1651 = vadd.f32 0.0, %v1650
      %v1652 = vpop.f32.mrb[0].mxu0
      %1653 = vmatprep.mubr.f32.mxu0 0.0
      %1654 = vmatmul.mubr.f32.gmra.mrb[0].mxu0 %v858
      %v1655 = vpop.f32.mrb[0].mxu0
      %v1656 = vadd.f32 0.0, %v1655
      %v1657 = vpop.f32.mrb[0].mxu0
      %1658 = vmatprep.mubr.f32.mxu0 0.0
      %1659 = vmatmul.mubr.f32.gmra.mrb[0].mxu0 %v860
      %v1660 = vpop.f32.mrb[0].mxu0
      %v1661 = vadd.f32 0.0, %v1660
      %v1662 = vpop.f32.mrb[0].mxu0
      %1663 = vmatprep.mubr.f32.mxu0 0.0
      %1664 = vmatmul.mubr.f32.gmra.mrb[0].mxu0 %v862
      %v1665 = vpop.f32.mrb[0].mxu0
      %v1666 = vadd.f32 0.0, %v1665
      %v1667 = vpop.f32.mrb[0].mxu0
      %1668 = vmatprep.mubr.f32.mxu0 0.0
      %1669 = vmatmul.mubr.f32.gmra.mrb[0].mxu0 %v864
      %v1670 = vpop.f32.mrb[0].mxu0
      %v1671 = vadd.f32 0.0, %v1670
      %v1672 = vpop.f32.mrb[0].mxu0
      %1673 = vmatprep.mubr.f32.mxu0 0.0
      %1674 = vmatmul.mubr.f32.gmra.mrb[0].mxu0 %v866
      %v1675 = vpop.f32.mrb[0].mxu0
      %v1676 = vadd.f32 0.0, %v1675
      %v1677 = vpop.f32.mrb[0].mxu0
      %1678 = vmatprep.mubr.f32.mxu0 0.0
      %1679 = vmatmul.mubr.f32.gmra.mrb[0].mxu0 %v868
      %v1680 = vpop.f32.mrb[0].mxu0
      %v1681 = vadd.f32 0.0, %v1680
      %v1682 = vpop.f32.mrb[0].mxu0
      %1683 = vmatprep.mubr.f32.mxu0 0.0
      %1684 = vmatmul.mubr.f32.gmra.mrb[0].mxu0 %v870
      %v1685 = vpop.f32.mrb[0].mxu0
      %v1686 = vadd.f32 0.0, %v1685
      %v1687 = vpop.f32.mrb[0].mxu0
      %1688 = vmatprep.mubr.f32.mxu0 0.0
      %1689 = vmatmul.mubr.f32.gmra.mrb[0].mxu0 %v872
      %v1690 = vpop.f32.mrb[0].mxu0
      %v1691 = vadd.f32 0.0, %v1690
      %v1692 = vpop.f32.mrb[0].mxu0
      %1693 = vmatprep.mubr.f32.mxu0 0.0
      %1694 = vmatmul.mubr.f32.gmra.mrb[0].mxu0 %v874
      %v1695 = vpop.f32.mrb[0].mxu0
      %v1696 = vadd.f32 0.0, %v1695
      %v1697 = vpop.f32.mrb[0].mxu0
      %1698 = vmatprep.mubr.f32.mxu0 0.0
      %1699 = vmatmul.mubr.f32.gmra.mrb[0].mxu0 %v876
      %v1700 = vpop.f32.mrb[0].mxu0
      %v1701 = vadd.f32 0.0, %v1700
      %v1702 = vpop.f32.mrb[0].mxu0
      %1703 = vmatprep.mubr.f32.mxu0 0.0
      %1704 = vmatmul.mubr.f32.gmra.mrb[0].mxu0 %v878
      %v1705 = vpop.f32.mrb[0].mxu0
      %v1706 = vadd.f32 0.0, %v1705
      %v1707 = vpop.f32.mrb[0].mxu0
      %1708 = vmatprep.mubr.f32.mxu0 0.0
      %1709 = vmatmul.mubr.f32.gmra.mrb[0].mxu0 %v880
      %v1710 = vpop.f32.mrb[0].mxu0
      %v1711 = vadd.f32 0.0, %v1710
      %v1712 = vpop.f32.mrb[0].mxu0
      %1713 = vmatprep.mubr.f32.mxu0 0.0
      %1714 = vmatmul.mubr.f32.gmra.mrb[0].mxu0 %v882
      %v1715 = vpop.f32.mrb[0].mxu0
      %v1716 = vadd.f32 0.0, %v1715
      %v1717 = vpop.f32.mrb[0].mxu0
      %1718 = vmatprep.mubr.f32.mxu0 0.0
      %1719 = vmatmul.mubr.f32.gmra.mrb[0].mxu0 %v884
      %v1720 = vpop.f32.mrb[0].mxu0
      %v1721 = vadd.f32 0.0, %v1720
      %v1722 = vpop.f32.mrb[0].mxu0
      %1723 = vmatprep.mubr.f32.mxu0 0.0
      %1724 = vmatmul.mubr.f32.gmra.mrb[0].mxu0 %v886
      %v1725 = vpop.f32.mrb[0].mxu0
      %v1726 = vadd.f32 0.0, %v1725
      %v1727 = vpop.f32.mrb[0].mxu0
      %1728 = vmatprep.mubr.f32.mxu0 0.0
      %1729 = vmatmul.mubr.f32.gmra.mrb[0].mxu0 %v888
      %v1730 = vpop.f32.mrb[0].mxu0
      %v1731 = vadd.f32 0.0, %v1730
      %v1732 = vpop.f32.mrb[0].mxu0
      %1733 = vmatprep.mubr.f32.mxu0 0.0
      %1734 = vmatmul.mubr.f32.gmra.mrb[0].mxu0 %v890
      %v1735 = vpop.f32.mrb[0].mxu0
      %v1736 = vadd.f32 0.0, %v1735
      %v1737 = vpop.f32.mrb[0].mxu0
      %1738 = vmatprep.mubr.f32.mxu0 0.0
      %1739 = vmatmul.mubr.f32.gmra.mrb[0].mxu0 %v892
      %v1740 = vpop.f32.mrb[0].mxu0
      %v1741 = vadd.f32 0.0, %v1740
      %v1742 = vpop.f32.mrb[0].mxu0
      %1743 = vmatprep.mubr.f32.mxu0 0.0
      %1744 = vmatmul.mubr.f32.gmra.mrb[0].mxu0 %v894
      %v1745 = vpop.f32.mrb[0].mxu0
      %v1746 = vadd.f32 0.0, %v1745
      %v1747 = vpop.f32.mrb[0].mxu0
      %1748 = vmatprep.mubr.f32.mxu0 0.0
      %1749 = vmatmul.mubr.f32.gmra.mrb[0].mxu0 %v896
      %v1750 = vpop.f32.mrb[0].mxu0
      %v1751 = vadd.f32 0.0, %v1750
      %v1752 = vpop.f32.mrb[0].mxu0
      %1753 = vmatprep.mubr.f32.mxu0 0.0
      %1754 = vmatmul.mubr.f32.gmra.mrb[0].mxu0 %v898
      %v1755 = vpop.f32.mrb[0].mxu0
      %v1756 = vadd.f32 0.0, %v1755
      %v1757 = vpop.f32.mrb[0].mxu0
      %1758 = vmatprep.mubr.f32.mxu0 0.0
      %1759 = vmatmul.mubr.f32.gmra.mrb[0].mxu0 %v900
      %v1760 = vpop.f32.mrb[0].mxu0
      %v1761 = vadd.f32 0.0, %v1760
      %v1762 = vpop.f32.mrb[0].mxu0
      %1763 = vmatprep.mubr.f32.mxu0 0.0
      %1764 = vmatmul.mubr.f32.gmra.mrb[0].mxu0 %v902
      %v1765 = vpop.f32.mrb[0].mxu0
      %v1766 = vadd.f32 0.0, %v1765
      %v1767 = vpop.f32.mrb[0].mxu0
      %1768 = vmatprep.mubr.f32.mxu0 0.0
      %1769 = vmatmul.mubr.f32.gmra.mrb[0].mxu0 %v904
      %v1770 = vpop.f32.mrb[0].mxu0
      %v1771 = vadd.f32 0.0, %v1770
      %v1772 = vpop.f32.mrb[0].mxu0
      %1773 = vmatprep.mubr.f32.mxu0 0.0
      %1774 = vmatmul.mubr.f32.gmra.mrb[0].mxu0 %v906
      %v1775 = vpop.f32.mrb[0].mxu0
      %v1776 = vadd.f32 0.0, %v1775
      %v1777 = vpop.f32.mrb[0].mxu0
      %1778 = vmatprep.mubr.f32.mxu0 0.0
      %1779 = vmatmul.mubr.f32.gmra.mrb[0].mxu0 %v908
      %v1780 = vpop.f32.mrb[0].mxu0
      %v1781 = vadd.f32 0.0, %v1780
      %v1782 = vpop.f32.mrb[0].mxu0
      %1783 = vmatprep.mubr.f32.mxu0 0.0
      %1784 = vmatmul.mubr.f32.gmra.mrb[0].mxu0 %v1565
      %v1785 = vpop.f32.mrb[0].mxu0
      %v1786 = vadd.f32 0.0, %v1785
      %v1787 = vpop.f32.mrb[0].mxu0
      %1788 = vmatprep.mubr.f32.mxu0 0.0
      %1789 = vmatmul.mubr.f32.gmra.mrb[0].mxu0 %v1567
      %v1790 = vpop.f32.mrb[0].mxu0
      %v1791 = vadd.f32 0.0, %v1790
      %v1792 = vpop.f32.mrb[0].mxu0
      %1793 = vdwg.mxu0
      %v1794 = vadd.f32 %v1523, %v1636
      %v1795 = vadd.f32 %v1524, %v1641
      %v1796 = vadd.f32 %v1525, %v1646
      %v1797 = vadd.f32 %v1526, %v1651
      %v1798 = vadd.f32 %v1527, %v1656
      %v1799 = vadd.f32 %v1528, %v1661
      %v1800 = vadd.f32 %v1529, %v1666
      %v1801 = vadd.f32 %v1530, %v1671
      %v1802 = vadd.f32 %v1531, %v1676
      %v1803 = vadd.f32 %v1532, %v1681
      %v1804 = vadd.f32 %v1533, %v1686
      %v1805 = vadd.f32 %v1534, %v1691
      %v1806 = vadd.f32 %v1535, %v1696
      %v1807 = vadd.f32 %v1536, %v1701
      %v1808 = vadd.f32 %v1537, %v1706
      %v1809 = vadd.f32 %v1538, %v1711
      %v1810 = vadd.f32 %v1539, %v1716
      %v1811 = vadd.f32 %v1540, %v1721
      %v1812 = vadd.f32 %v1541, %v1726
      %v1813 = vadd.f32 %v1542, %v1731
      %v1814 = vadd.f32 %v1543, %v1736
      %v1815 = vadd.f32 %v1544, %v1741
      %v1816 = vadd.f32 %v1545, %v1746
      %v1817 = vadd.f32 %v1546, %v1751
      %v1818 = vadd.f32 %v1547, %v1756
      %v1819 = vadd.f32 %v1548, %v1761
      %v1820 = vadd.f32 %v1549, %v1766
      %v1821 = vadd.f32 %v1550, %v1771
      %v1822 = vadd.f32 %v1551, %v1776
      %v1823 = vadd.f32 %v1552, %v1781
      %v1824 = vadd.f32 %v1553, %v1786
      %v1825 = vadd.f32 %v1554, %v1791
      %s1826 = scalar_lea.vmem %s1, 32
      %v1827 = vld [vmem:[%s1826] sm:$0xff]
      %v1828 = vsel %vm247, %v418, 0
      %v1830 = vsel %vm247, %v419, 0
      %1832 = vmatprep.subr.mxu0 0.0
      %1833 = vmatpush1.msra.mxu0 %v1827
      %1834 = vmatprep.subr.mxu0 0.0
      %1835 = vmatpush1.msra.mxu0 0.0
      %1836 = vmatprep.subr.mxu0 0.0
      %1837 = vmatpush1.msra.mxu0 0.0
      %1838 = vmatprep.subr.mxu0 0.0
      %1839 = vmatpush1.msra.mxu0 0.0
      %1840 = vmatprep.subr.mxu0 0.0
      %1841 = vmatpush1.msra.mxu0 0.0
      %1842 = vmatprep.subr.mxu0 0.0
      %1843 = vmatpush1.msra.mxu0 0.0
      %1844 = vmatprep.subr.mxu0 0.0
      %1845 = vmatpush1.msra.mxu0 0.0
      %1846 = vmatprep.subr.mxu0 0.0
      %1847 = vmatpush1.msra.mxu0 0.0
      %1848 = vmatprep.subr.mxu0 0.0
      %1849 = vmatpush1.msra.mxu0 0.0
      %1850 = vmatprep.subr.mxu0 0.0
      %1851 = vmatpush1.msra.mxu0 0.0
      %1852 = vmatprep.subr.mxu0 0.0
      %1853 = vmatpush1.msra.mxu0 0.0
      %1854 = vmatprep.subr.mxu0 0.0
      %1855 = vmatpush1.msra.mxu0 0.0
      %1856 = vmatprep.subr.mxu0 0.0
      %1857 = vmatpush1.msra.mxu0 0.0
      %1858 = vmatprep.subr.mxu0 0.0
      %1859 = vmatpush1.msra.mxu0 0.0
      %1860 = vmatprep.subr.mxu0 0.0
      %1861 = vmatpush1.msra.mxu0 0.0
      %1862 = vmatprep.subr.mxu0 0.0
      %1863 = vmatpush1.msra.mxu0 0.0
      %1864 = vmatprep.subr.mxu0 0.0
      %1865 = vmatpush1.msra.mxu0 0.0
      %1866 = vmatprep.subr.mxu0 0.0
      %1867 = vmatpush1.msra.mxu0 0.0
      %1868 = vmatprep.subr.mxu0 0.0
      %1869 = vmatpush1.msra.mxu0 0.0
      %1870 = vmatprep.subr.mxu0 0.0
      %1871 = vmatpush1.msra.mxu0 0.0
      %1872 = vmatprep.subr.mxu0 0.0
      %1873 = vmatpush1.msra.mxu0 0.0
      %1874 = vmatprep.subr.mxu0 0.0
      %1875 = vmatpush1.msra.mxu0 0.0
      %1876 = vmatprep.subr.mxu0 0.0
      %1877 = vmatpush1.msra.mxu0 0.0
      %1878 = vmatprep.subr.mxu0 0.0
      %1879 = vmatpush1.msra.mxu0 0.0
      %1880 = vmatprep.subr.mxu0 0.0
      %1881 = vmatpush1.msra.mxu0 0.0
      %1882 = vmatprep.subr.mxu0 0.0
      %1883 = vmatpush1.msra.mxu0 0.0
      %1884 = vmatprep.subr.mxu0 0.0
      %1885 = vmatpush1.msra.mxu0 0.0
      %1886 = vmatprep.subr.mxu0 0.0
      %1887 = vmatpush1.msra.mxu0 0.0
      %1888 = vmatprep.subr.mxu0 0.0
      %1889 = vmatpush1.msra.mxu0 0.0
      %1890 = vmatprep.subr.mxu0 0.0
      %1891 = vmatpush1.msra.mxu0 0.0
      %1892 = vmatprep.subr.mxu0 0.0
      %1893 = vmatpush1.msra.mxu0 0.0
      %1894 = vmatprep.subr.mxu0 0.0
      %1895 = vmatpush1.msra.mxu0 0.0
      %1896 = vmatprep.mubr.f32.mxu0 0.0
      %1897 = vmatmul.mubr.f32.gmra.mrb[0].mxu0 %v561
      %v1898 = vpop.f32.mrb[0].mxu0
      %v1899 = vadd.f32 0.0, %v1898
      %v1900 = vpop.f32.mrb[0].mxu0
      %1901 = vmatprep.mubr.f32.mxu0 0.0
      %1902 = vmatmul.mubr.f32.gmra.mrb[0].mxu0 %v563
      %v1903 = vpop.f32.mrb[0].mxu0
      %v1904 = vadd.f32 0.0, %v1903
      %v1905 = vpop.f32.mrb[0].mxu0
      %1906 = vmatprep.mubr.f32.mxu0 0.0
      %1907 = vmatmul.mubr.f32.gmra.mrb[0].mxu0 %v565
      %v1908 = vpop.f32.mrb[0].mxu0
      %v1909 = vadd.f32 0.0, %v1908
      %v1910 = vpop.f32.mrb[0].mxu0
      %1911 = vmatprep.mubr.f32.mxu0 0.0
      %1912 = vmatmul.mubr.f32.gmra.mrb[0].mxu0 %v567
      %v1913 = vpop.f32.mrb[0].mxu0
      %v1914 = vadd.f32 0.0, %v1913
      %v1915 = vpop.f32.mrb[0].mxu0
      %1916 = vmatprep.mubr.f32.mxu0 0.0
      %1917 = vmatmul.mubr.f32.gmra.mrb[0].mxu0 %v569
      %v1918 = vpop.f32.mrb[0].mxu0
      %v1919 = vadd.f32 0.0, %v1918
      %v1920 = vpop.f32.mrb[0].mxu0
      %1921 = vmatprep.mubr.f32.mxu0 0.0
      %1922 = vmatmul.mubr.f32.gmra.mrb[0].mxu0 %v571
      %v1923 = vpop.f32.mrb[0].mxu0
      %v1924 = vadd.f32 0.0, %v1923
      %v1925 = vpop.f32.mrb[0].mxu0
      %1926 = vmatprep.mubr.f32.mxu0 0.0
      %1927 = vmatmul.mubr.f32.gmra.mrb[0].mxu0 %v573
      %v1928 = vpop.f32.mrb[0].mxu0
      %v1929 = vadd.f32 0.0, %v1928
      %v1930 = vpop.f32.mrb[0].mxu0
      %1931 = vmatprep.mubr.f32.mxu0 0.0
      %1932 = vmatmul.mubr.f32.gmra.mrb[0].mxu0 %v575
      %v1933 = vpop.f32.mrb[0].mxu0
      %v1934 = vadd.f32 0.0, %v1933
      %v1935 = vpop.f32.mrb[0].mxu0
      %1936 = vmatprep.mubr.f32.mxu0 0.0
      %1937 = vmatmul.mubr.f32.gmra.mrb[0].mxu0 %v577
      %v1938 = vpop.f32.mrb[0].mxu0
      %v1939 = vadd.f32 0.0, %v1938
      %v1940 = vpop.f32.mrb[0].mxu0
      %1941 = vmatprep.mubr.f32.mxu0 0.0
      %1942 = vmatmul.mubr.f32.gmra.mrb[0].mxu0 %v579
      %v1943 = vpop.f32.mrb[0].mxu0
      %v1944 = vadd.f32 0.0, %v1943
      %v1945 = vpop.f32.mrb[0].mxu0
      %1946 = vmatprep.mubr.f32.mxu0 0.0
      %1947 = vmatmul.mubr.f32.gmra.mrb[0].mxu0 %v581
      %v1948 = vpop.f32.mrb[0].mxu0
      %v1949 = vadd.f32 0.0, %v1948
      %v1950 = vpop.f32.mrb[0].mxu0
      %1951 = vmatprep.mubr.f32.mxu0 0.0
      %1952 = vmatmul.mubr.f32.gmra.mrb[0].mxu0 %v583
      %v1953 = vpop.f32.mrb[0].mxu0
      %v1954 = vadd.f32 0.0, %v1953
      %v1955 = vpop.f32.mrb[0].mxu0
      %1956 = vmatprep.mubr.f32.mxu0 0.0
      %1957 = vmatmul.mubr.f32.gmra.mrb[0].mxu0 %v585
      %v1958 = vpop.f32.mrb[0].mxu0
      %v1959 = vadd.f32 0.0, %v1958
      %v1960 = vpop.f32.mrb[0].mxu0
      %1961 = vmatprep.mubr.f32.mxu0 0.0
      %1962 = vmatmul.mubr.f32.gmra.mrb[0].mxu0 %v587
      %v1963 = vpop.f32.mrb[0].mxu0
      %v1964 = vadd.f32 0.0, %v1963
      %v1965 = vpop.f32.mrb[0].mxu0
      %1966 = vmatprep.mubr.f32.mxu0 0.0
      %1967 = vmatmul.mubr.f32.gmra.mrb[0].mxu0 %v589
      %v1968 = vpop.f32.mrb[0].mxu0
      %v1969 = vadd.f32 0.0, %v1968
      %v1970 = vpop.f32.mrb[0].mxu0
      %1971 = vmatprep.mubr.f32.mxu0 0.0
      %1972 = vmatmul.mubr.f32.gmra.mrb[0].mxu0 %v591
      %v1973 = vpop.f32.mrb[0].mxu0
      %v1974 = vadd.f32 0.0, %v1973
      %v1975 = vpop.f32.mrb[0].mxu0
      %1976 = vmatprep.mubr.f32.mxu0 0.0
      %1977 = vmatmul.mubr.f32.gmra.mrb[0].mxu0 %v593
      %v1978 = vpop.f32.mrb[0].mxu0
      %v1979 = vadd.f32 0.0, %v1978
      %v1980 = vpop.f32.mrb[0].mxu0
      %1981 = vmatprep.mubr.f32.mxu0 0.0
      %1982 = vmatmul.mubr.f32.gmra.mrb[0].mxu0 %v595
      %v1983 = vpop.f32.mrb[0].mxu0
      %v1984 = vadd.f32 0.0, %v1983
      %v1985 = vpop.f32.mrb[0].mxu0
      %1986 = vmatprep.mubr.f32.mxu0 0.0
      %1987 = vmatmul.mubr.f32.gmra.mrb[0].mxu0 %v597
      %v1988 = vpop.f32.mrb[0].mxu0
      %v1989 = vadd.f32 0.0, %v1988
      %v1990 = vpop.f32.mrb[0].mxu0
      %1991 = vmatprep.mubr.f32.mxu0 0.0
      %1992 = vmatmul.mubr.f32.gmra.mrb[0].mxu0 %v599
      %v1993 = vpop.f32.mrb[0].mxu0
      %v1994 = vadd.f32 0.0, %v1993
      %v1995 = vpop.f32.mrb[0].mxu0
      %1996 = vmatprep.mubr.f32.mxu0 0.0
      %1997 = vmatmul.mubr.f32.gmra.mrb[0].mxu0 %v601
      %v1998 = vpop.f32.mrb[0].mxu0
      %v1999 = vadd.f32 0.0, %v1998
      %v2000 = vpop.f32.mrb[0].mxu0
      %2001 = vmatprep.mubr.f32.mxu0 0.0
      %2002 = vmatmul.mubr.f32.gmra.mrb[0].mxu0 %v603
      %v2003 = vpop.f32.mrb[0].mxu0
      %v2004 = vadd.f32 0.0, %v2003
      %v2005 = vpop.f32.mrb[0].mxu0
      %2006 = vmatprep.mubr.f32.mxu0 0.0
      %2007 = vmatmul.mubr.f32.gmra.mrb[0].mxu0 %v605
      %v2008 = vpop.f32.mrb[0].mxu0
      %v2009 = vadd.f32 0.0, %v2008
      %v2010 = vpop.f32.mrb[0].mxu0
      %2011 = vmatprep.mubr.f32.mxu0 0.0
      %2012 = vmatmul.mubr.f32.gmra.mrb[0].mxu0 %v607
      %v2013 = vpop.f32.mrb[0].mxu0
      %v2014 = vadd.f32 0.0, %v2013
      %v2015 = vpop.f32.mrb[0].mxu0
      %2016 = vmatprep.mubr.f32.mxu0 0.0
      %2017 = vmatmul.mubr.f32.gmra.mrb[0].mxu0 %v609
      %v2018 = vpop.f32.mrb[0].mxu0
      %v2019 = vadd.f32 0.0, %v2018
      %v2020 = vpop.f32.mrb[0].mxu0
      %2021 = vmatprep.mubr.f32.mxu0 0.0
      %2022 = vmatmul.mubr.f32.gmra.mrb[0].mxu0 %v611
      %v2023 = vpop.f32.mrb[0].mxu0
      %v2024 = vadd.f32 0.0, %v2023
      %v2025 = vpop.f32.mrb[0].mxu0
      %2026 = vmatprep.mubr.f32.mxu0 0.0
      %2027 = vmatmul.mubr.f32.gmra.mrb[0].mxu0 %v613
      %v2028 = vpop.f32.mrb[0].mxu0
      %v2029 = vadd.f32 0.0, %v2028
      %v2030 = vpop.f32.mrb[0].mxu0
      %2031 = vmatprep.mubr.f32.mxu0 0.0
      %2032 = vmatmul.mubr.f32.gmra.mrb[0].mxu0 %v615
      %v2033 = vpop.f32.mrb[0].mxu0
      %v2034 = vadd.f32 0.0, %v2033
      %v2035 = vpop.f32.mrb[0].mxu0
      %2036 = vmatprep.mubr.f32.mxu0 0.0
      %2037 = vmatmul.mubr.f32.gmra.mrb[0].mxu0 %v617
      %v2038 = vpop.f32.mrb[0].mxu0
      %v2039 = vadd.f32 0.0, %v2038
      %v2040 = vpop.f32.mrb[0].mxu0
      %2041 = vmatprep.mubr.f32.mxu0 0.0
      %2042 = vmatmul.mubr.f32.gmra.mrb[0].mxu0 %v619
      %v2043 = vpop.f32.mrb[0].mxu0
      %v2044 = vadd.f32 0.0, %v2043
      %v2045 = vpop.f32.mrb[0].mxu0
      %2046 = vmatprep.mubr.f32.mxu0 0.0
      %2047 = vmatmul.mubr.f32.gmra.mrb[0].mxu0 %v1828
      %v2048 = vpop.f32.mrb[0].mxu0
      %v2049 = vadd.f32 0.0, %v2048
      %v2050 = vpop.f32.mrb[0].mxu0
      %2051 = vmatprep.mubr.f32.mxu0 0.0
      %2052 = vmatmul.mubr.f32.gmra.mrb[0].mxu0 %v1830
      %v2053 = vpop.f32.mrb[0].mxu0
      %v2054 = vadd.f32 0.0, %v2053
      %v2055 = vpop.f32.mrb[0].mxu0
      %2056 = vdwg.mxu0
      %v2057 = vadd.f32 %v1794, %v1899
      %v2058 = vadd.f32 %v1795, %v1904
      %v2059 = vadd.f32 %v1796, %v1909
      %v2060 = vadd.f32 %v1797, %v1914
      %v2061 = vadd.f32 %v1798, %v1919
      %v2062 = vadd.f32 %v1799, %v1924
      %v2063 = vadd.f32 %v1800, %v1929
      %v2064 = vadd.f32 %v1801, %v1934
      %v2065 = vadd.f32 %v1802, %v1939
      %v2066 = vadd.f32 %v1803, %v1944
      %v2067 = vadd.f32 %v1804, %v1949
      %v2068 = vadd.f32 %v1805, %v1954
      %v2069 = vadd.f32 %v1806, %v1959
      %v2070 = vadd.f32 %v1807, %v1964
      %v2071 = vadd.f32 %v1808, %v1969
      %v2072 = vadd.f32 %v1809, %v1974
      %v2073 = vadd.f32 %v1810, %v1979
      %v2074 = vadd.f32 %v1811, %v1984
      %v2075 = vadd.f32 %v1812, %v1989
      %v2076 = vadd.f32 %v1813, %v1994
      %v2077 = vadd.f32 %v1814, %v1999
      %v2078 = vadd.f32 %v1815, %v2004
      %v2079 = vadd.f32 %v1816, %v2009
      %v2080 = vadd.f32 %v1817, %v2014
      %v2081 = vadd.f32 %v1818, %v2019
      %v2082 = vadd.f32 %v1819, %v2024
      %v2083 = vadd.f32 %v1820, %v2029
      %v2084 = vadd.f32 %v1821, %v2034
      %v2085 = vadd.f32 %v1822, %v2039
      %v2086 = vadd.f32 %v1823, %v2044
      %v2087 = vadd.f32 %v1824, %v2049
      %v2088 = vadd.f32 %v1825, %v2054
      %v2090 = vrot.slane %v418, 1
      %v2091 = vrot.slane %v419, 1
      %v2092 = vsel %vm1151, %v2090, %v2091
      %v2093 = vrot.slane %v420, 1
      %v2094 = vsel %vm1151, %v2091, %v2093
      %s2095 = scalar_lea.vmem %s1, 40
      %v2096 = vld [vmem:[%s2095] sm:$0xff]
      %v2097 = vsel %vm247, %v2092, 0
      %v2099 = vsel %vm247, %v2094, 0
      %2101 = vmatprep.subr.mxu0 0.0
      %2102 = vmatpush1.msra.mxu0 %v2096
      %2103 = vmatprep.subr.mxu0 0.0
      %2104 = vmatpush1.msra.mxu0 0.0
      %2105 = vmatprep.subr.mxu0 0.0
      %2106 = vmatpush1.msra.mxu0 0.0
      %2107 = vmatprep.subr.mxu0 0.0
      %2108 = vmatpush1.msra.mxu0 0.0
      %2109 = vmatprep.subr.mxu0 0.0
      %2110 = vmatpush1.msra.mxu0 0.0
      %2111 = vmatprep.subr.mxu0 0.0
      %2112 = vmatpush1.msra.mxu0 0.0
      %2113 = vmatprep.subr.mxu0 0.0
      %2114 = vmatpush1.msra.mxu0 0.0
      %2115 = vmatprep.subr.mxu0 0.0
      %2116 = vmatpush1.msra.mxu0 0.0
      %2117 = vmatprep.subr.mxu0 0.0
      %2118 = vmatpush1.msra.mxu0 0.0
      %2119 = vmatprep.subr.mxu0 0.0
      %2120 = vmatpush1.msra.mxu0 0.0
      %2121 = vmatprep.subr.mxu0 0.0
      %2122 = vmatpush1.msra.mxu0 0.0
      %2123 = vmatprep.subr.mxu0 0.0
      %2124 = vmatpush1.msra.mxu0 0.0
      %2125 = vmatprep.subr.mxu0 0.0
      %2126 = vmatpush1.msra.mxu0 0.0
      %2127 = vmatprep.subr.mxu0 0.0
      %2128 = vmatpush1.msra.mxu0 0.0
      %2129 = vmatprep.subr.mxu0 0.0
      %2130 = vmatpush1.msra.mxu0 0.0
      %2131 = vmatprep.subr.mxu0 0.0
      %2132 = vmatpush1.msra.mxu0 0.0
      %2133 = vmatprep.subr.mxu0 0.0
      %2134 = vmatpush1.msra.mxu0 0.0
      %2135 = vmatprep.subr.mxu0 0.0
      %2136 = vmatpush1.msra.mxu0 0.0
      %2137 = vmatprep.subr.mxu0 0.0
      %2138 = vmatpush1.msra.mxu0 0.0
      %2139 = vmatprep.subr.mxu0 0.0
      %2140 = vmatpush1.msra.mxu0 0.0
      %2141 = vmatprep.subr.mxu0 0.0
      %2142 = vmatpush1.msra.mxu0 0.0
      %2143 = vmatprep.subr.mxu0 0.0
      %2144 = vmatpush1.msra.mxu0 0.0
      %2145 = vmatprep.subr.mxu0 0.0
      %2146 = vmatpush1.msra.mxu0 0.0
      %2147 = vmatprep.subr.mxu0 0.0
      %2148 = vmatpush1.msra.mxu0 0.0
      %2149 = vmatprep.subr.mxu0 0.0
      %2150 = vmatpush1.msra.mxu0 0.0
      %2151 = vmatprep.subr.mxu0 0.0
      %2152 = vmatpush1.msra.mxu0 0.0
      %2153 = vmatprep.subr.mxu0 0.0
      %2154 = vmatpush1.msra.mxu0 0.0
      %2155 = vmatprep.subr.mxu0 0.0
      %2156 = vmatpush1.msra.mxu0 0.0
      %2157 = vmatprep.subr.mxu0 0.0
      %2158 = vmatpush1.msra.mxu0 0.0
      %2159 = vmatprep.subr.mxu0 0.0
      %2160 = vmatpush1.msra.mxu0 0.0
      %2161 = vmatprep.subr.mxu0 0.0
      %2162 = vmatpush1.msra.mxu0 0.0
      %2163 = vmatprep.subr.mxu0 0.0
      %2164 = vmatpush1.msra.mxu0 0.0
      %2165 = vmatprep.mubr.f32.mxu0 0.0
      %2166 = vmatmul.mubr.f32.gmra.mrb[0].mxu0 %v1238
      %v2167 = vpop.f32.mrb[0].mxu0
      %v2168 = vadd.f32 0.0, %v2167
      %v2169 = vpop.f32.mrb[0].mxu0
      %2170 = vmatprep.mubr.f32.mxu0 0.0
      %2171 = vmatmul.mubr.f32.gmra.mrb[0].mxu0 %v1240
      %v2172 = vpop.f32.mrb[0].mxu0
      %v2173 = vadd.f32 0.0, %v2172
      %v2174 = vpop.f32.mrb[0].mxu0
      %2175 = vmatprep.mubr.f32.mxu0 0.0
      %2176 = vmatmul.mubr.f32.gmra.mrb[0].mxu0 %v1242
      %v2177 = vpop.f32.mrb[0].mxu0
      %v2178 = vadd.f32 0.0, %v2177
      %v2179 = vpop.f32.mrb[0].mxu0
      %2180 = vmatprep.mubr.f32.mxu0 0.0
      %2181 = vmatmul.mubr.f32.gmra.mrb[0].mxu0 %v1244
      %v2182 = vpop.f32.mrb[0].mxu0
      %v2183 = vadd.f32 0.0, %v2182
      %v2184 = vpop.f32.mrb[0].mxu0
      %2185 = vmatprep.mubr.f32.mxu0 0.0
      %2186 = vmatmul.mubr.f32.gmra.mrb[0].mxu0 %v1246
      %v2187 = vpop.f32.mrb[0].mxu0
      %v2188 = vadd.f32 0.0, %v2187
      %v2189 = vpop.f32.mrb[0].mxu0
      %2190 = vmatprep.mubr.f32.mxu0 0.0
      %2191 = vmatmul.mubr.f32.gmra.mrb[0].mxu0 %v1248
      %v2192 = vpop.f32.mrb[0].mxu0
      %v2193 = vadd.f32 0.0, %v2192
      %v2194 = vpop.f32.mrb[0].mxu0
      %2195 = vmatprep.mubr.f32.mxu0 0.0
      %2196 = vmatmul.mubr.f32.gmra.mrb[0].mxu0 %v1250
      %v2197 = vpop.f32.mrb[0].mxu0
      %v2198 = vadd.f32 0.0, %v2197
      %v2199 = vpop.f32.mrb[0].mxu0
      %2200 = vmatprep.mubr.f32.mxu0 0.0
      %2201 = vmatmul.mubr.f32.gmra.mrb[0].mxu0 %v1252
      %v2202 = vpop.f32.mrb[0].mxu0
      %v2203 = vadd.f32 0.0, %v2202
      %v2204 = vpop.f32.mrb[0].mxu0
      %2205 = vmatprep.mubr.f32.mxu0 0.0
      %2206 = vmatmul.mubr.f32.gmra.mrb[0].mxu0 %v1254
      %v2207 = vpop.f32.mrb[0].mxu0
      %v2208 = vadd.f32 0.0, %v2207
      %v2209 = vpop.f32.mrb[0].mxu0
      %2210 = vmatprep.mubr.f32.mxu0 0.0
      %2211 = vmatmul.mubr.f32.gmra.mrb[0].mxu0 %v1256
      %v2212 = vpop.f32.mrb[0].mxu0
      %v2213 = vadd.f32 0.0, %v2212
      %v2214 = vpop.f32.mrb[0].mxu0
      %2215 = vmatprep.mubr.f32.mxu0 0.0
      %2216 = vmatmul.mubr.f32.gmra.mrb[0].mxu0 %v1258
      %v2217 = vpop.f32.mrb[0].mxu0
      %v2218 = vadd.f32 0.0, %v2217
      %v2219 = vpop.f32.mrb[0].mxu0
      %2220 = vmatprep.mubr.f32.mxu0 0.0
      %2221 = vmatmul.mubr.f32.gmra.mrb[0].mxu0 %v1260
      %v2222 = vpop.f32.mrb[0].mxu0
      %v2223 = vadd.f32 0.0, %v2222
      %v2224 = vpop.f32.mrb[0].mxu0
      %2225 = vmatprep.mubr.f32.mxu0 0.0
      %2226 = vmatmul.mubr.f32.gmra.mrb[0].mxu0 %v1262
      %v2227 = vpop.f32.mrb[0].mxu0
      %v2228 = vadd.f32 0.0, %v2227
      %v2229 = vpop.f32.mrb[0].mxu0
      %2230 = vmatprep.mubr.f32.mxu0 0.0
      %2231 = vmatmul.mubr.f32.gmra.mrb[0].mxu0 %v1264
      %v2232 = vpop.f32.mrb[0].mxu0
      %v2233 = vadd.f32 0.0, %v2232
      %v2234 = vpop.f32.mrb[0].mxu0
      %2235 = vmatprep.mubr.f32.mxu0 0.0
      %2236 = vmatmul.mubr.f32.gmra.mrb[0].mxu0 %v1266
      %v2237 = vpop.f32.mrb[0].mxu0
      %v2238 = vadd.f32 0.0, %v2237
      %v2239 = vpop.f32.mrb[0].mxu0
      %2240 = vmatprep.mubr.f32.mxu0 0.0
      %2241 = vmatmul.mubr.f32.gmra.mrb[0].mxu0 %v1268
      %v2242 = vpop.f32.mrb[0].mxu0
      %v2243 = vadd.f32 0.0, %v2242
      %v2244 = vpop.f32.mrb[0].mxu0
      %2245 = vmatprep.mubr.f32.mxu0 0.0
      %2246 = vmatmul.mubr.f32.gmra.mrb[0].mxu0 %v1270
      %v2247 = vpop.f32.mrb[0].mxu0
      %v2248 = vadd.f32 0.0, %v2247
      %v2249 = vpop.f32.mrb[0].mxu0
      %2250 = vmatprep.mubr.f32.mxu0 0.0
      %2251 = vmatmul.mubr.f32.gmra.mrb[0].mxu0 %v1272
      %v2252 = vpop.f32.mrb[0].mxu0
      %v2253 = vadd.f32 0.0, %v2252
      %v2254 = vpop.f32.mrb[0].mxu0
      %2255 = vmatprep.mubr.f32.mxu0 0.0
      %2256 = vmatmul.mubr.f32.gmra.mrb[0].mxu0 %v1274
      %v2257 = vpop.f32.mrb[0].mxu0
      %v2258 = vadd.f32 0.0, %v2257
      %v2259 = vpop.f32.mrb[0].mxu0
      %2260 = vmatprep.mubr.f32.mxu0 0.0
      %2261 = vmatmul.mubr.f32.gmra.mrb[0].mxu0 %v1276
      %v2262 = vpop.f32.mrb[0].mxu0
      %v2263 = vadd.f32 0.0, %v2262
      %v2264 = vpop.f32.mrb[0].mxu0
      %2265 = vmatprep.mubr.f32.mxu0 0.0
      %2266 = vmatmul.mubr.f32.gmra.mrb[0].mxu0 %v1278
      %v2267 = vpop.f32.mrb[0].mxu0
      %v2268 = vadd.f32 0.0, %v2267
      %v2269 = vpop.f32.mrb[0].mxu0
      %2270 = vmatprep.mubr.f32.mxu0 0.0
      %2271 = vmatmul.mubr.f32.gmra.mrb[0].mxu0 %v1280
      %v2272 = vpop.f32.mrb[0].mxu0
      %v2273 = vadd.f32 0.0, %v2272
      %v2274 = vpop.f32.mrb[0].mxu0
      %2275 = vmatprep.mubr.f32.mxu0 0.0
      %2276 = vmatmul.mubr.f32.gmra.mrb[0].mxu0 %v1282
      %v2277 = vpop.f32.mrb[0].mxu0
      %v2278 = vadd.f32 0.0, %v2277
      %v2279 = vpop.f32.mrb[0].mxu0
      %2280 = vmatprep.mubr.f32.mxu0 0.0
      %2281 = vmatmul.mubr.f32.gmra.mrb[0].mxu0 %v1284
      %v2282 = vpop.f32.mrb[0].mxu0
      %v2283 = vadd.f32 0.0, %v2282
      %v2284 = vpop.f32.mrb[0].mxu0
      %2285 = vmatprep.mubr.f32.mxu0 0.0
      %2286 = vmatmul.mubr.f32.gmra.mrb[0].mxu0 %v1286
      %v2287 = vpop.f32.mrb[0].mxu0
      %v2288 = vadd.f32 0.0, %v2287
      %v2289 = vpop.f32.mrb[0].mxu0
      %2290 = vmatprep.mubr.f32.mxu0 0.0
      %2291 = vmatmul.mubr.f32.gmra.mrb[0].mxu0 %v1288
      %v2292 = vpop.f32.mrb[0].mxu0
      %v2293 = vadd.f32 0.0, %v2292
      %v2294 = vpop.f32.mrb[0].mxu0
      %2295 = vmatprep.mubr.f32.mxu0 0.0
      %2296 = vmatmul.mubr.f32.gmra.mrb[0].mxu0 %v1290
      %v2297 = vpop.f32.mrb[0].mxu0
      %v2298 = vadd.f32 0.0, %v2297
      %v2299 = vpop.f32.mrb[0].mxu0
      %2300 = vmatprep.mubr.f32.mxu0 0.0
      %2301 = vmatmul.mubr.f32.gmra.mrb[0].mxu0 %v1292
      %v2302 = vpop.f32.mrb[0].mxu0
      %v2303 = vadd.f32 0.0, %v2302
      %v2304 = vpop.f32.mrb[0].mxu0
      %2305 = vmatprep.mubr.f32.mxu0 0.0
      %2306 = vmatmul.mubr.f32.gmra.mrb[0].mxu0 %v1294
      %v2307 = vpop.f32.mrb[0].mxu0
      %v2308 = vadd.f32 0.0, %v2307
      %v2309 = vpop.f32.mrb[0].mxu0
      %2310 = vmatprep.mubr.f32.mxu0 0.0
      %2311 = vmatmul.mubr.f32.gmra.mrb[0].mxu0 %v1296
      %v2312 = vpop.f32.mrb[0].mxu0
      %v2313 = vadd.f32 0.0, %v2312
      %v2314 = vpop.f32.mrb[0].mxu0
      %2315 = vmatprep.mubr.f32.mxu0 0.0
      %2316 = vmatmul.mubr.f32.gmra.mrb[0].mxu0 %v2097
      %v2317 = vpop.f32.mrb[0].mxu0
      %v2318 = vadd.f32 0.0, %v2317
      %v2319 = vpop.f32.mrb[0].mxu0
      %2320 = vmatprep.mubr.f32.mxu0 0.0
      %2321 = vmatmul.mubr.f32.gmra.mrb[0].mxu0 %v2099
      %v2322 = vpop.f32.mrb[0].mxu0
      %v2323 = vadd.f32 0.0, %v2322
      %v2324 = vpop.f32.mrb[0].mxu0
      %2325 = vdwg.mxu0
      %v2326 = vadd.f32 %v2057, %v2168
      %v2327 = vadd.f32 %v2058, %v2173
      %v2328 = vadd.f32 %v2059, %v2178
      %v2329 = vadd.f32 %v2060, %v2183
      %v2330 = vadd.f32 %v2061, %v2188
      %v2331 = vadd.f32 %v2062, %v2193
      %v2332 = vadd.f32 %v2063, %v2198
      %v2333 = vadd.f32 %v2064, %v2203
      %v2334 = vadd.f32 %v2065, %v2208
      %v2335 = vadd.f32 %v2066, %v2213
      %v2336 = vadd.f32 %v2067, %v2218
      %v2337 = vadd.f32 %v2068, %v2223
      %v2338 = vadd.f32 %v2069, %v2228
      %v2339 = vadd.f32 %v2070, %v2233
      %v2340 = vadd.f32 %v2071, %v2238
      %v2341 = vadd.f32 %v2072, %v2243
      %v2342 = vadd.f32 %v2073, %v2248
      %v2343 = vadd.f32 %v2074, %v2253
      %v2344 = vadd.f32 %v2075, %v2258
      %v2345 = vadd.f32 %v2076, %v2263
      %v2346 = vadd.f32 %v2077, %v2268
      %v2347 = vadd.f32 %v2078, %v2273
      %v2348 = vadd.f32 %v2079, %v2278
      %v2349 = vadd.f32 %v2080, %v2283
      %v2350 = vadd.f32 %v2081, %v2288
      %v2351 = vadd.f32 %v2082, %v2293
      %v2352 = vadd.f32 %v2083, %v2298
      %v2353 = vadd.f32 %v2084, %v2303
      %v2354 = vadd.f32 %v2085, %v2308
      %v2355 = vadd.f32 %v2086, %v2313
      %v2356 = vadd.f32 %v2087, %v2318
      %v2357 = vadd.f32 %v2088, %v2323
      %v2361 = vrot.slane %v421, 7
      %v2362 = vrot.slane %v422, 7
      %v2363 = vsel %vm473, %v2361, %v2362
      %v2364 = vrot.slane %v423, 7
      %v2365 = vsel %vm473, %v2362, %v2364
      %s2366 = scalar_lea.vmem %s1, 48
      %v2367 = vld [vmem:[%s2366] sm:$0xff]
      %v2368 = vsel %vm247, %v2363, 0
      %v2370 = vsel %vm247, %v2365, 0
      %2372 = vmatprep.subr.mxu0 0.0
      %2373 = vmatpush1.msra.mxu0 %v2367
      %2374 = vmatprep.subr.mxu0 0.0
      %2375 = vmatpush1.msra.mxu0 0.0
      %2376 = vmatprep.subr.mxu0 0.0
      %2377 = vmatpush1.msra.mxu0 0.0
      %2378 = vmatprep.subr.mxu0 0.0
      %2379 = vmatpush1.msra.mxu0 0.0
      %2380 = vmatprep.subr.mxu0 0.0
      %2381 = vmatpush1.msra.mxu0 0.0
      %2382 = vmatprep.subr.mxu0 0.0
      %2383 = vmatpush1.msra.mxu0 0.0
      %2384 = vmatprep.subr.mxu0 0.0
      %2385 = vmatpush1.msra.mxu0 0.0
      %2386 = vmatprep.subr.mxu0 0.0
      %2387 = vmatpush1.msra.mxu0 0.0
      %2388 = vmatprep.subr.mxu0 0.0
      %2389 = vmatpush1.msra.mxu0 0.0
      %2390 = vmatprep.subr.mxu0 0.0
      %2391 = vmatpush1.msra.mxu0 0.0
      %2392 = vmatprep.subr.mxu0 0.0
      %2393 = vmatpush1.msra.mxu0 0.0
      %2394 = vmatprep.subr.mxu0 0.0
      %2395 = vmatpush1.msra.mxu0 0.0
      %2396 = vmatprep.subr.mxu0 0.0
      %2397 = vmatpush1.msra.mxu0 0.0
      %2398 = vmatprep.subr.mxu0 0.0
      %2399 = vmatpush1.msra.mxu0 0.0
      %2400 = vmatprep.subr.mxu0 0.0
      %2401 = vmatpush1.msra.mxu0 0.0
      %2402 = vmatprep.subr.mxu0 0.0
      %2403 = vmatpush1.msra.mxu0 0.0
      %2404 = vmatprep.subr.mxu0 0.0
      %2405 = vmatpush1.msra.mxu0 0.0
      %2406 = vmatprep.subr.mxu0 0.0
      %2407 = vmatpush1.msra.mxu0 0.0
      %2408 = vmatprep.subr.mxu0 0.0
      %2409 = vmatpush1.msra.mxu0 0.0
      %2410 = vmatprep.subr.mxu0 0.0
      %2411 = vmatpush1.msra.mxu0 0.0
      %2412 = vmatprep.subr.mxu0 0.0
      %2413 = vmatpush1.msra.mxu0 0.0
      %2414 = vmatprep.subr.mxu0 0.0
      %2415 = vmatpush1.msra.mxu0 0.0
      %2416 = vmatprep.subr.mxu0 0.0
      %2417 = vmatpush1.msra.mxu0 0.0
      %2418 = vmatprep.subr.mxu0 0.0
      %2419 = vmatpush1.msra.mxu0 0.0
      %2420 = vmatprep.subr.mxu0 0.0
      %2421 = vmatpush1.msra.mxu0 0.0
      %2422 = vmatprep.subr.mxu0 0.0
      %2423 = vmatpush1.msra.mxu0 0.0
      %2424 = vmatprep.subr.mxu0 0.0
      %2425 = vmatpush1.msra.mxu0 0.0
      %2426 = vmatprep.subr.mxu0 0.0
      %2427 = vmatpush1.msra.mxu0 0.0
      %2428 = vmatprep.subr.mxu0 0.0
      %2429 = vmatpush1.msra.mxu0 0.0
      %2430 = vmatprep.subr.mxu0 0.0
      %2431 = vmatpush1.msra.mxu0 0.0
      %2432 = vmatprep.subr.mxu0 0.0
      %2433 = vmatpush1.msra.mxu0 0.0
      %2434 = vmatprep.subr.mxu0 0.0
      %2435 = vmatpush1.msra.mxu0 0.0
      %2436 = vmatprep.mubr.f32.mxu0 0.0
      %2437 = vmatmul.mubr.f32.gmra.mrb[0].mxu0 %v854
      %v2438 = vpop.f32.mrb[0].mxu0
      %v2439 = vadd.f32 0.0, %v2438
      %v2440 = vpop.f32.mrb[0].mxu0
      %2441 = vmatprep.mubr.f32.mxu0 0.0
      %2442 = vmatmul.mubr.f32.gmra.mrb[0].mxu0 %v856
      %v2443 = vpop.f32.mrb[0].mxu0
      %v2444 = vadd.f32 0.0, %v2443
      %v2445 = vpop.f32.mrb[0].mxu0
      %2446 = vmatprep.mubr.f32.mxu0 0.0
      %2447 = vmatmul.mubr.f32.gmra.mrb[0].mxu0 %v858
      %v2448 = vpop.f32.mrb[0].mxu0
      %v2449 = vadd.f32 0.0, %v2448
      %v2450 = vpop.f32.mrb[0].mxu0
      %2451 = vmatprep.mubr.f32.mxu0 0.0
      %2452 = vmatmul.mubr.f32.gmra.mrb[0].mxu0 %v860
      %v2453 = vpop.f32.mrb[0].mxu0
      %v2454 = vadd.f32 0.0, %v2453
      %v2455 = vpop.f32.mrb[0].mxu0
      %2456 = vmatprep.mubr.f32.mxu0 0.0
      %2457 = vmatmul.mubr.f32.gmra.mrb[0].mxu0 %v862
      %v2458 = vpop.f32.mrb[0].mxu0
      %v2459 = vadd.f32 0.0, %v2458
      %v2460 = vpop.f32.mrb[0].mxu0
      %2461 = vmatprep.mubr.f32.mxu0 0.0
      %2462 = vmatmul.mubr.f32.gmra.mrb[0].mxu0 %v864
      %v2463 = vpop.f32.mrb[0].mxu0
      %v2464 = vadd.f32 0.0, %v2463
      %v2465 = vpop.f32.mrb[0].mxu0
      %2466 = vmatprep.mubr.f32.mxu0 0.0
      %2467 = vmatmul.mubr.f32.gmra.mrb[0].mxu0 %v866
      %v2468 = vpop.f32.mrb[0].mxu0
      %v2469 = vadd.f32 0.0, %v2468
      %v2470 = vpop.f32.mrb[0].mxu0
      %2471 = vmatprep.mubr.f32.mxu0 0.0
      %2472 = vmatmul.mubr.f32.gmra.mrb[0].mxu0 %v868
      %v2473 = vpop.f32.mrb[0].mxu0
      %v2474 = vadd.f32 0.0, %v2473
      %v2475 = vpop.f32.mrb[0].mxu0
      %2476 = vmatprep.mubr.f32.mxu0 0.0
      %2477 = vmatmul.mubr.f32.gmra.mrb[0].mxu0 %v870
      %v2478 = vpop.f32.mrb[0].mxu0
      %v2479 = vadd.f32 0.0, %v2478
      %v2480 = vpop.f32.mrb[0].mxu0
      %2481 = vmatprep.mubr.f32.mxu0 0.0
      %2482 = vmatmul.mubr.f32.gmra.mrb[0].mxu0 %v872
      %v2483 = vpop.f32.mrb[0].mxu0
      %v2484 = vadd.f32 0.0, %v2483
      %v2485 = vpop.f32.mrb[0].mxu0
      %2486 = vmatprep.mubr.f32.mxu0 0.0
      %2487 = vmatmul.mubr.f32.gmra.mrb[0].mxu0 %v874
      %v2488 = vpop.f32.mrb[0].mxu0
      %v2489 = vadd.f32 0.0, %v2488
      %v2490 = vpop.f32.mrb[0].mxu0
      %2491 = vmatprep.mubr.f32.mxu0 0.0
      %2492 = vmatmul.mubr.f32.gmra.mrb[0].mxu0 %v876
      %v2493 = vpop.f32.mrb[0].mxu0
      %v2494 = vadd.f32 0.0, %v2493
      %v2495 = vpop.f32.mrb[0].mxu0
      %2496 = vmatprep.mubr.f32.mxu0 0.0
      %2497 = vmatmul.mubr.f32.gmra.mrb[0].mxu0 %v878
      %v2498 = vpop.f32.mrb[0].mxu0
      %v2499 = vadd.f32 0.0, %v2498
      %v2500 = vpop.f32.mrb[0].mxu0
      %2501 = vmatprep.mubr.f32.mxu0 0.0
      %2502 = vmatmul.mubr.f32.gmra.mrb[0].mxu0 %v880
      %v2503 = vpop.f32.mrb[0].mxu0
      %v2504 = vadd.f32 0.0, %v2503
      %v2505 = vpop.f32.mrb[0].mxu0
      %2506 = vmatprep.mubr.f32.mxu0 0.0
      %2507 = vmatmul.mubr.f32.gmra.mrb[0].mxu0 %v882
      %v2508 = vpop.f32.mrb[0].mxu0
      %v2509 = vadd.f32 0.0, %v2508
      %v2510 = vpop.f32.mrb[0].mxu0
      %2511 = vmatprep.mubr.f32.mxu0 0.0
      %2512 = vmatmul.mubr.f32.gmra.mrb[0].mxu0 %v884
      %v2513 = vpop.f32.mrb[0].mxu0
      %v2514 = vadd.f32 0.0, %v2513
      %v2515 = vpop.f32.mrb[0].mxu0
      %2516 = vmatprep.mubr.f32.mxu0 0.0
      %2517 = vmatmul.mubr.f32.gmra.mrb[0].mxu0 %v886
      %v2518 = vpop.f32.mrb[0].mxu0
      %v2519 = vadd.f32 0.0, %v2518
      %v2520 = vpop.f32.mrb[0].mxu0
      %2521 = vmatprep.mubr.f32.mxu0 0.0
      %2522 = vmatmul.mubr.f32.gmra.mrb[0].mxu0 %v888
      %v2523 = vpop.f32.mrb[0].mxu0
      %v2524 = vadd.f32 0.0, %v2523
      %v2525 = vpop.f32.mrb[0].mxu0
      %2526 = vmatprep.mubr.f32.mxu0 0.0
      %2527 = vmatmul.mubr.f32.gmra.mrb[0].mxu0 %v890
      %v2528 = vpop.f32.mrb[0].mxu0
      %v2529 = vadd.f32 0.0, %v2528
      %v2530 = vpop.f32.mrb[0].mxu0
      %2531 = vmatprep.mubr.f32.mxu0 0.0
      %2532 = vmatmul.mubr.f32.gmra.mrb[0].mxu0 %v892
      %v2533 = vpop.f32.mrb[0].mxu0
      %v2534 = vadd.f32 0.0, %v2533
      %v2535 = vpop.f32.mrb[0].mxu0
      %2536 = vmatprep.mubr.f32.mxu0 0.0
      %2537 = vmatmul.mubr.f32.gmra.mrb[0].mxu0 %v894
      %v2538 = vpop.f32.mrb[0].mxu0
      %v2539 = vadd.f32 0.0, %v2538
      %v2540 = vpop.f32.mrb[0].mxu0
      %2541 = vmatprep.mubr.f32.mxu0 0.0
      %2542 = vmatmul.mubr.f32.gmra.mrb[0].mxu0 %v896
      %v2543 = vpop.f32.mrb[0].mxu0
      %v2544 = vadd.f32 0.0, %v2543
      %v2545 = vpop.f32.mrb[0].mxu0
      %2546 = vmatprep.mubr.f32.mxu0 0.0
      %2547 = vmatmul.mubr.f32.gmra.mrb[0].mxu0 %v898
      %v2548 = vpop.f32.mrb[0].mxu0
      %v2549 = vadd.f32 0.0, %v2548
      %v2550 = vpop.f32.mrb[0].mxu0
      %2551 = vmatprep.mubr.f32.mxu0 0.0
      %2552 = vmatmul.mubr.f32.gmra.mrb[0].mxu0 %v900
      %v2553 = vpop.f32.mrb[0].mxu0
      %v2554 = vadd.f32 0.0, %v2553
      %v2555 = vpop.f32.mrb[0].mxu0
      %2556 = vmatprep.mubr.f32.mxu0 0.0
      %2557 = vmatmul.mubr.f32.gmra.mrb[0].mxu0 %v902
      %v2558 = vpop.f32.mrb[0].mxu0
      %v2559 = vadd.f32 0.0, %v2558
      %v2560 = vpop.f32.mrb[0].mxu0
      %2561 = vmatprep.mubr.f32.mxu0 0.0
      %2562 = vmatmul.mubr.f32.gmra.mrb[0].mxu0 %v904
      %v2563 = vpop.f32.mrb[0].mxu0
      %v2564 = vadd.f32 0.0, %v2563
      %v2565 = vpop.f32.mrb[0].mxu0
      %2566 = vmatprep.mubr.f32.mxu0 0.0
      %2567 = vmatmul.mubr.f32.gmra.mrb[0].mxu0 %v906
      %v2568 = vpop.f32.mrb[0].mxu0
      %v2569 = vadd.f32 0.0, %v2568
      %v2570 = vpop.f32.mrb[0].mxu0
      %2571 = vmatprep.mubr.f32.mxu0 0.0
      %2572 = vmatmul.mubr.f32.gmra.mrb[0].mxu0 %v908
      %v2573 = vpop.f32.mrb[0].mxu0
      %v2574 = vadd.f32 0.0, %v2573
      %v2575 = vpop.f32.mrb[0].mxu0
      %2576 = vmatprep.mubr.f32.mxu0 0.0
      %2577 = vmatmul.mubr.f32.gmra.mrb[0].mxu0 %v1565
      %v2578 = vpop.f32.mrb[0].mxu0
      %v2579 = vadd.f32 0.0, %v2578
      %v2580 = vpop.f32.mrb[0].mxu0
      %2581 = vmatprep.mubr.f32.mxu0 0.0
      %2582 = vmatmul.mubr.f32.gmra.mrb[0].mxu0 %v1567
      %v2583 = vpop.f32.mrb[0].mxu0
      %v2584 = vadd.f32 0.0, %v2583
      %v2585 = vpop.f32.mrb[0].mxu0
      %2586 = vmatprep.mubr.f32.mxu0 0.0
      %2587 = vmatmul.mubr.f32.gmra.mrb[0].mxu0 %v2368
      %v2588 = vpop.f32.mrb[0].mxu0
      %v2589 = vadd.f32 0.0, %v2588
      %v2590 = vpop.f32.mrb[0].mxu0
      %2591 = vmatprep.mubr.f32.mxu0 0.0
      %2592 = vmatmul.mubr.f32.gmra.mrb[0].mxu0 %v2370
      %v2593 = vpop.f32.mrb[0].mxu0
      %v2594 = vadd.f32 0.0, %v2593
      %v2595 = vpop.f32.mrb[0].mxu0
      %2596 = vdwg.mxu0
      %v2597 = vadd.f32 %v2326, %v2439
      %v2598 = vadd.f32 %v2327, %v2444
      %v2599 = vadd.f32 %v2328, %v2449
      %v2600 = vadd.f32 %v2329, %v2454
      %v2601 = vadd.f32 %v2330, %v2459
      %v2602 = vadd.f32 %v2331, %v2464
      %v2603 = vadd.f32 %v2332, %v2469
      %v2604 = vadd.f32 %v2333, %v2474
      %v2605 = vadd.f32 %v2334, %v2479
      %v2606 = vadd.f32 %v2335, %v2484
      %v2607 = vadd.f32 %v2336, %v2489
      %v2608 = vadd.f32 %v2337, %v2494
      %v2609 = vadd.f32 %v2338, %v2499
      %v2610 = vadd.f32 %v2339, %v2504
      %v2611 = vadd.f32 %v2340, %v2509
      %v2612 = vadd.f32 %v2341, %v2514
      %v2613 = vadd.f32 %v2342, %v2519
      %v2614 = vadd.f32 %v2343, %v2524
      %v2615 = vadd.f32 %v2344, %v2529
      %v2616 = vadd.f32 %v2345, %v2534
      %v2617 = vadd.f32 %v2346, %v2539
      %v2618 = vadd.f32 %v2347, %v2544
      %v2619 = vadd.f32 %v2348, %v2549
      %v2620 = vadd.f32 %v2349, %v2554
      %v2621 = vadd.f32 %v2350, %v2559
      %v2622 = vadd.f32 %v2351, %v2564
      %v2623 = vadd.f32 %v2352, %v2569
      %v2624 = vadd.f32 %v2353, %v2574
      %v2625 = vadd.f32 %v2354, %v2579
      %v2626 = vadd.f32 %v2355, %v2584
      %v2627 = vadd.f32 %v2356, %v2589
      %v2628 = vadd.f32 %v2357, %v2594
      %s2629 = scalar_lea.vmem %s1, 56
      %v2630 = vld [vmem:[%s2629] sm:$0xff]
      %v2631 = vsel %vm247, %v422, 0
      %v2633 = vsel %vm247, %v423, 0
      %2635 = vmatprep.subr.mxu0 0.0
      %2636 = vmatpush1.msra.mxu0 %v2630
      %2637 = vmatprep.subr.mxu0 0.0
      %2638 = vmatpush1.msra.mxu0 0.0
      %2639 = vmatprep.subr.mxu0 0.0
      %2640 = vmatpush1.msra.mxu0 0.0
      %2641 = vmatprep.subr.mxu0 0.0
      %2642 = vmatpush1.msra.mxu0 0.0
      %2643 = vmatprep.subr.mxu0 0.0
      %2644 = vmatpush1.msra.mxu0 0.0
      %2645 = vmatprep.subr.mxu0 0.0
      %2646 = vmatpush1.msra.mxu0 0.0
      %2647 = vmatprep.subr.mxu0 0.0
      %2648 = vmatpush1.msra.mxu0 0.0
      %2649 = vmatprep.subr.mxu0 0.0
      %2650 = vmatpush1.msra.mxu0 0.0
      %2651 = vmatprep.subr.mxu0 0.0
      %2652 = vmatpush1.msra.mxu0 0.0
      %2653 = vmatprep.subr.mxu0 0.0
      %2654 = vmatpush1.msra.mxu0 0.0
      %2655 = vmatprep.subr.mxu0 0.0
      %2656 = vmatpush1.msra.mxu0 0.0
      %2657 = vmatprep.subr.mxu0 0.0
      %2658 = vmatpush1.msra.mxu0 0.0
      %2659 = vmatprep.subr.mxu0 0.0
      %2660 = vmatpush1.msra.mxu0 0.0
      %2661 = vmatprep.subr.mxu0 0.0
      %2662 = vmatpush1.msra.mxu0 0.0
      %2663 = vmatprep.subr.mxu0 0.0
      %2664 = vmatpush1.msra.mxu0 0.0
      %2665 = vmatprep.subr.mxu0 0.0
      %2666 = vmatpush1.msra.mxu0 0.0
      %2667 = vmatprep.subr.mxu0 0.0
      %2668 = vmatpush1.msra.mxu0 0.0
      %2669 = vmatprep.subr.mxu0 0.0
      %2670 = vmatpush1.msra.mxu0 0.0
      %2671 = vmatprep.subr.mxu0 0.0
      %2672 = vmatpush1.msra.mxu0 0.0
      %2673 = vmatprep.subr.mxu0 0.0
      %2674 = vmatpush1.msra.mxu0 0.0
      %2675 = vmatprep.subr.mxu0 0.0
      %2676 = vmatpush1.msra.mxu0 0.0
      %2677 = vmatprep.subr.mxu0 0.0
      %2678 = vmatpush1.msra.mxu0 0.0
      %2679 = vmatprep.subr.mxu0 0.0
      %2680 = vmatpush1.msra.mxu0 0.0
      %2681 = vmatprep.subr.mxu0 0.0
      %2682 = vmatpush1.msra.mxu0 0.0
      %2683 = vmatprep.subr.mxu0 0.0
      %2684 = vmatpush1.msra.mxu0 0.0
      %2685 = vmatprep.subr.mxu0 0.0
      %2686 = vmatpush1.msra.mxu0 0.0
      %2687 = vmatprep.subr.mxu0 0.0
      %2688 = vmatpush1.msra.mxu0 0.0
      %2689 = vmatprep.subr.mxu0 0.0
      %2690 = vmatpush1.msra.mxu0 0.0
      %2691 = vmatprep.subr.mxu0 0.0
      %2692 = vmatpush1.msra.mxu0 0.0
      %2693 = vmatprep.subr.mxu0 0.0
      %2694 = vmatpush1.msra.mxu0 0.0
      %2695 = vmatprep.subr.mxu0 0.0
      %2696 = vmatpush1.msra.mxu0 0.0
      %2697 = vmatprep.subr.mxu0 0.0
      %2698 = vmatpush1.msra.mxu0 0.0
      %2699 = vmatprep.mubr.f32.mxu0 0.0
      %2700 = vmatmul.mubr.f32.gmra.mrb[0].mxu0 %v565
      %v2701 = vpop.f32.mrb[0].mxu0
      %v2702 = vadd.f32 0.0, %v2701
      %v2703 = vpop.f32.mrb[0].mxu0
      %2704 = vmatprep.mubr.f32.mxu0 0.0
      %2705 = vmatmul.mubr.f32.gmra.mrb[0].mxu0 %v567
      %v2706 = vpop.f32.mrb[0].mxu0
      %v2707 = vadd.f32 0.0, %v2706
      %v2708 = vpop.f32.mrb[0].mxu0
      %2709 = vmatprep.mubr.f32.mxu0 0.0
      %2710 = vmatmul.mubr.f32.gmra.mrb[0].mxu0 %v569
      %v2711 = vpop.f32.mrb[0].mxu0
      %v2712 = vadd.f32 0.0, %v2711
      %v2713 = vpop.f32.mrb[0].mxu0
      %2714 = vmatprep.mubr.f32.mxu0 0.0
      %2715 = vmatmul.mubr.f32.gmra.mrb[0].mxu0 %v571
      %v2716 = vpop.f32.mrb[0].mxu0
      %v2717 = vadd.f32 0.0, %v2716
      %v2718 = vpop.f32.mrb[0].mxu0
      %2719 = vmatprep.mubr.f32.mxu0 0.0
      %2720 = vmatmul.mubr.f32.gmra.mrb[0].mxu0 %v573
      %v2721 = vpop.f32.mrb[0].mxu0
      %v2722 = vadd.f32 0.0, %v2721
      %v2723 = vpop.f32.mrb[0].mxu0
      %2724 = vmatprep.mubr.f32.mxu0 0.0
      %2725 = vmatmul.mubr.f32.gmra.mrb[0].mxu0 %v575
      %v2726 = vpop.f32.mrb[0].mxu0
      %v2727 = vadd.f32 0.0, %v2726
      %v2728 = vpop.f32.mrb[0].mxu0
      %2729 = vmatprep.mubr.f32.mxu0 0.0
      %2730 = vmatmul.mubr.f32.gmra.mrb[0].mxu0 %v577
      %v2731 = vpop.f32.mrb[0].mxu0
      %v2732 = vadd.f32 0.0, %v2731
      %v2733 = vpop.f32.mrb[0].mxu0
      %2734 = vmatprep.mubr.f32.mxu0 0.0
      %2735 = vmatmul.mubr.f32.gmra.mrb[0].mxu0 %v579
      %v2736 = vpop.f32.mrb[0].mxu0
      %v2737 = vadd.f32 0.0, %v2736
      %v2738 = vpop.f32.mrb[0].mxu0
      %2739 = vmatprep.mubr.f32.mxu0 0.0
      %2740 = vmatmul.mubr.f32.gmra.mrb[0].mxu0 %v581
      %v2741 = vpop.f32.mrb[0].mxu0
      %v2742 = vadd.f32 0.0, %v2741
      %v2743 = vpop.f32.mrb[0].mxu0
      %2744 = vmatprep.mubr.f32.mxu0 0.0
      %2745 = vmatmul.mubr.f32.gmra.mrb[0].mxu0 %v583
      %v2746 = vpop.f32.mrb[0].mxu0
      %v2747 = vadd.f32 0.0, %v2746
      %v2748 = vpop.f32.mrb[0].mxu0
      %2749 = vmatprep.mubr.f32.mxu0 0.0
      %2750 = vmatmul.mubr.f32.gmra.mrb[0].mxu0 %v585
      %v2751 = vpop.f32.mrb[0].mxu0
      %v2752 = vadd.f32 0.0, %v2751
      %v2753 = vpop.f32.mrb[0].mxu0
      %2754 = vmatprep.mubr.f32.mxu0 0.0
      %2755 = vmatmul.mubr.f32.gmra.mrb[0].mxu0 %v587
      %v2756 = vpop.f32.mrb[0].mxu0
      %v2757 = vadd.f32 0.0, %v2756
      %v2758 = vpop.f32.mrb[0].mxu0
      %2759 = vmatprep.mubr.f32.mxu0 0.0
      %2760 = vmatmul.mubr.f32.gmra.mrb[0].mxu0 %v589
      %v2761 = vpop.f32.mrb[0].mxu0
      %v2762 = vadd.f32 0.0, %v2761
      %v2763 = vpop.f32.mrb[0].mxu0
      %2764 = vmatprep.mubr.f32.mxu0 0.0
      %2765 = vmatmul.mubr.f32.gmra.mrb[0].mxu0 %v591
      %v2766 = vpop.f32.mrb[0].mxu0
      %v2767 = vadd.f32 0.0, %v2766
      %v2768 = vpop.f32.mrb[0].mxu0
      %2769 = vmatprep.mubr.f32.mxu0 0.0
      %2770 = vmatmul.mubr.f32.gmra.mrb[0].mxu0 %v593
      %v2771 = vpop.f32.mrb[0].mxu0
      %v2772 = vadd.f32 0.0, %v2771
      %v2773 = vpop.f32.mrb[0].mxu0
      %2774 = vmatprep.mubr.f32.mxu0 0.0
      %2775 = vmatmul.mubr.f32.gmra.mrb[0].mxu0 %v595
      %v2776 = vpop.f32.mrb[0].mxu0
      %v2777 = vadd.f32 0.0, %v2776
      %v2778 = vpop.f32.mrb[0].mxu0
      %2779 = vmatprep.mubr.f32.mxu0 0.0
      %2780 = vmatmul.mubr.f32.gmra.mrb[0].mxu0 %v597
      %v2781 = vpop.f32.mrb[0].mxu0
      %v2782 = vadd.f32 0.0, %v2781
      %v2783 = vpop.f32.mrb[0].mxu0
      %2784 = vmatprep.mubr.f32.mxu0 0.0
      %2785 = vmatmul.mubr.f32.gmra.mrb[0].mxu0 %v599
      %v2786 = vpop.f32.mrb[0].mxu0
      %v2787 = vadd.f32 0.0, %v2786
      %v2788 = vpop.f32.mrb[0].mxu0
      %2789 = vmatprep.mubr.f32.mxu0 0.0
      %2790 = vmatmul.mubr.f32.gmra.mrb[0].mxu0 %v601
      %v2791 = vpop.f32.mrb[0].mxu0
      %v2792 = vadd.f32 0.0, %v2791
      %v2793 = vpop.f32.mrb[0].mxu0
      %2794 = vmatprep.mubr.f32.mxu0 0.0
      %2795 = vmatmul.mubr.f32.gmra.mrb[0].mxu0 %v603
      %v2796 = vpop.f32.mrb[0].mxu0
      %v2797 = vadd.f32 0.0, %v2796
      %v2798 = vpop.f32.mrb[0].mxu0
      %2799 = vmatprep.mubr.f32.mxu0 0.0
      %2800 = vmatmul.mubr.f32.gmra.mrb[0].mxu0 %v605
      %v2801 = vpop.f32.mrb[0].mxu0
      %v2802 = vadd.f32 0.0, %v2801
      %v2803 = vpop.f32.mrb[0].mxu0
      %2804 = vmatprep.mubr.f32.mxu0 0.0
      %2805 = vmatmul.mubr.f32.gmra.mrb[0].mxu0 %v607
      %v2806 = vpop.f32.mrb[0].mxu0
      %v2807 = vadd.f32 0.0, %v2806
      %v2808 = vpop.f32.mrb[0].mxu0
      %2809 = vmatprep.mubr.f32.mxu0 0.0
      %2810 = vmatmul.mubr.f32.gmra.mrb[0].mxu0 %v609
      %v2811 = vpop.f32.mrb[0].mxu0
      %v2812 = vadd.f32 0.0, %v2811
      %v2813 = vpop.f32.mrb[0].mxu0
      %2814 = vmatprep.mubr.f32.mxu0 0.0
      %2815 = vmatmul.mubr.f32.gmra.mrb[0].mxu0 %v611
      %v2816 = vpop.f32.mrb[0].mxu0
      %v2817 = vadd.f32 0.0, %v2816
      %v2818 = vpop.f32.mrb[0].mxu0
      %2819 = vmatprep.mubr.f32.mxu0 0.0
      %2820 = vmatmul.mubr.f32.gmra.mrb[0].mxu0 %v613
      %v2821 = vpop.f32.mrb[0].mxu0
      %v2822 = vadd.f32 0.0, %v2821
      %v2823 = vpop.f32.mrb[0].mxu0
      %2824 = vmatprep.mubr.f32.mxu0 0.0
      %2825 = vmatmul.mubr.f32.gmra.mrb[0].mxu0 %v615
      %v2826 = vpop.f32.mrb[0].mxu0
      %v2827 = vadd.f32 0.0, %v2826
      %v2828 = vpop.f32.mrb[0].mxu0
      %2829 = vmatprep.mubr.f32.mxu0 0.0
      %2830 = vmatmul.mubr.f32.gmra.mrb[0].mxu0 %v617
      %v2831 = vpop.f32.mrb[0].mxu0
      %v2832 = vadd.f32 0.0, %v2831
      %v2833 = vpop.f32.mrb[0].mxu0
      %2834 = vmatprep.mubr.f32.mxu0 0.0
      %2835 = vmatmul.mubr.f32.gmra.mrb[0].mxu0 %v619
      %v2836 = vpop.f32.mrb[0].mxu0
      %v2837 = vadd.f32 0.0, %v2836
      %v2838 = vpop.f32.mrb[0].mxu0
      %2839 = vmatprep.mubr.f32.mxu0 0.0
      %2840 = vmatmul.mubr.f32.gmra.mrb[0].mxu0 %v1828
      %v2841 = vpop.f32.mrb[0].mxu0
      %v2842 = vadd.f32 0.0, %v2841
      %v2843 = vpop.f32.mrb[0].mxu0
      %2844 = vmatprep.mubr.f32.mxu0 0.0
      %2845 = vmatmul.mubr.f32.gmra.mrb[0].mxu0 %v1830
      %v2846 = vpop.f32.mrb[0].mxu0
      %v2847 = vadd.f32 0.0, %v2846
      %v2848 = vpop.f32.mrb[0].mxu0
      %2849 = vmatprep.mubr.f32.mxu0 0.0
      %2850 = vmatmul.mubr.f32.gmra.mrb[0].mxu0 %v2631
      %v2851 = vpop.f32.mrb[0].mxu0
      %v2852 = vadd.f32 0.0, %v2851
      %v2853 = vpop.f32.mrb[0].mxu0
      %2854 = vmatprep.mubr.f32.mxu0 0.0
      %2855 = vmatmul.mubr.f32.gmra.mrb[0].mxu0 %v2633
      %v2856 = vpop.f32.mrb[0].mxu0
      %v2857 = vadd.f32 0.0, %v2856
      %v2858 = vpop.f32.mrb[0].mxu0
      %2859 = vdwg.mxu0
      %v2860 = vadd.f32 %v2597, %v2702
      %v2861 = vadd.f32 %v2598, %v2707
      %v2862 = vadd.f32 %v2599, %v2712
      %v2863 = vadd.f32 %v2600, %v2717
      %v2864 = vadd.f32 %v2601, %v2722
      %v2865 = vadd.f32 %v2602, %v2727
      %v2866 = vadd.f32 %v2603, %v2732
      %v2867 = vadd.f32 %v2604, %v2737
      %v2868 = vadd.f32 %v2605, %v2742
      %v2869 = vadd.f32 %v2606, %v2747
      %v2870 = vadd.f32 %v2607, %v2752
      %v2871 = vadd.f32 %v2608, %v2757
      %v2872 = vadd.f32 %v2609, %v2762
      %v2873 = vadd.f32 %v2610, %v2767
      %v2874 = vadd.f32 %v2611, %v2772
      %v2875 = vadd.f32 %v2612, %v2777
      %v2876 = vadd.f32 %v2613, %v2782
      %v2877 = vadd.f32 %v2614, %v2787
      %v2878 = vadd.f32 %v2615, %v2792
      %v2879 = vadd.f32 %v2616, %v2797
      %v2880 = vadd.f32 %v2617, %v2802
      %v2881 = vadd.f32 %v2618, %v2807
      %v2882 = vadd.f32 %v2619, %v2812
      %v2883 = vadd.f32 %v2620, %v2817
      %v2884 = vadd.f32 %v2621, %v2822
      %v2885 = vadd.f32 %v2622, %v2827
      %v2886 = vadd.f32 %v2623, %v2832
      %v2887 = vadd.f32 %v2624, %v2837
      %v2888 = vadd.f32 %v2625, %v2842
      %v2889 = vadd.f32 %v2626, %v2847
      %v2890 = vadd.f32 %v2627, %v2852
      %v2891 = vadd.f32 %v2628, %v2857
      %v2893 = vrot.slane %v422, 1
      %v2894 = vrot.slane %v423, 1
      %v2895 = vsel %vm1151, %v2893, %v2894
      %v2896 = vrot.slane %v424, 1
      %v2897 = vsel %vm1151, %v2894, %v2896
      %s2898 = scalar_lea.vmem %s1, 64
      %v2899 = vld [vmem:[%s2898] sm:$0xff]
      %v2900 = vsel %vm247, %v2895, 0
      %v2902 = vsel %vm247, %v2897, 0
      %2904 = vmatprep.subr.mxu0 0.0
      %2905 = vmatpush1.msra.mxu0 %v2899
      %2906 = vmatprep.subr.mxu0 0.0
      %2907 = vmatpush1.msra.mxu0 0.0
      %2908 = vmatprep.subr.mxu0 0.0
      %2909 = vmatpush1.msra.mxu0 0.0
      %2910 = vmatprep.subr.mxu0 0.0
      %2911 = vmatpush1.msra.mxu0 0.0
      %2912 = vmatprep.subr.mxu0 0.0
      %2913 = vmatpush1.msra.mxu0 0.0
      %2914 = vmatprep.subr.mxu0 0.0
      %2915 = vmatpush1.msra.mxu0 0.0
      %2916 = vmatprep.subr.mxu0 0.0
      %2917 = vmatpush1.msra.mxu0 0.0
      %2918 = vmatprep.subr.mxu0 0.0
      %2919 = vmatpush1.msra.mxu0 0.0
      %2920 = vmatprep.subr.mxu0 0.0
      %2921 = vmatpush1.msra.mxu0 0.0
      %2922 = vmatprep.subr.mxu0 0.0
      %2923 = vmatpush1.msra.mxu0 0.0
      %2924 = vmatprep.subr.mxu0 0.0
      %2925 = vmatpush1.msra.mxu0 0.0
      %2926 = vmatprep.subr.mxu0 0.0
      %2927 = vmatpush1.msra.mxu0 0.0
      %2928 = vmatprep.subr.mxu0 0.0
      %2929 = vmatpush1.msra.mxu0 0.0
      %2930 = vmatprep.subr.mxu0 0.0
      %2931 = vmatpush1.msra.mxu0 0.0
      %2932 = vmatprep.subr.mxu0 0.0
      %2933 = vmatpush1.msra.mxu0 0.0
      %2934 = vmatprep.subr.mxu0 0.0
      %2935 = vmatpush1.msra.mxu0 0.0
      %2936 = vmatprep.subr.mxu0 0.0
      %2937 = vmatpush1.msra.mxu0 0.0
      %2938 = vmatprep.subr.mxu0 0.0
      %2939 = vmatpush1.msra.mxu0 0.0
      %2940 = vmatprep.subr.mxu0 0.0
      %2941 = vmatpush1.msra.mxu0 0.0
      %2942 = vmatprep.subr.mxu0 0.0
      %2943 = vmatpush1.msra.mxu0 0.0
      %2944 = vmatprep.subr.mxu0 0.0
      %2945 = vmatpush1.msra.mxu0 0.0
      %2946 = vmatprep.subr.mxu0 0.0
      %2947 = vmatpush1.msra.mxu0 0.0
      %2948 = vmatprep.subr.mxu0 0.0
      %2949 = vmatpush1.msra.mxu0 0.0
      %2950 = vmatprep.subr.mxu0 0.0
      %2951 = vmatpush1.msra.mxu0 0.0
      %2952 = vmatprep.subr.mxu0 0.0
      %2953 = vmatpush1.msra.mxu0 0.0
      %2954 = vmatprep.subr.mxu0 0.0
      %2955 = vmatpush1.msra.mxu0 0.0
      %2956 = vmatprep.subr.mxu0 0.0
      %2957 = vmatpush1.msra.mxu0 0.0
      %2958 = vmatprep.subr.mxu0 0.0
      %2959 = vmatpush1.msra.mxu0 0.0
      %2960 = vmatprep.subr.mxu0 0.0
      %2961 = vmatpush1.msra.mxu0 0.0
      %2962 = vmatprep.subr.mxu0 0.0
      %2963 = vmatpush1.msra.mxu0 0.0
      %2964 = vmatprep.subr.mxu0 0.0
      %2965 = vmatpush1.msra.mxu0 0.0
      %2966 = vmatprep.subr.mxu0 0.0
      %2967 = vmatpush1.msra.mxu0 0.0
      %2968 = vmatprep.mubr.f32.mxu0 0.0
      %2969 = vmatmul.mubr.f32.gmra.mrb[0].mxu0 %v1242
      %v2970 = vpop.f32.mrb[0].mxu0
      %v2971 = vadd.f32 0.0, %v2970
      %v2972 = vpop.f32.mrb[0].mxu0
      %2973 = vmatprep.mubr.f32.mxu0 0.0
      %2974 = vmatmul.mubr.f32.gmra.mrb[0].mxu0 %v1244
      %v2975 = vpop.f32.mrb[0].mxu0
      %v2976 = vadd.f32 0.0, %v2975
      %v2977 = vpop.f32.mrb[0].mxu0
      %2978 = vmatprep.mubr.f32.mxu0 0.0
      %2979 = vmatmul.mubr.f32.gmra.mrb[0].mxu0 %v1246
      %v2980 = vpop.f32.mrb[0].mxu0
      %v2981 = vadd.f32 0.0, %v2980
      %v2982 = vpop.f32.mrb[0].mxu0
      %2983 = vmatprep.mubr.f32.mxu0 0.0
      %2984 = vmatmul.mubr.f32.gmra.mrb[0].mxu0 %v1248
      %v2985 = vpop.f32.mrb[0].mxu0
      %v2986 = vadd.f32 0.0, %v2985
      %v2987 = vpop.f32.mrb[0].mxu0
      %2988 = vmatprep.mubr.f32.mxu0 0.0
      %2989 = vmatmul.mubr.f32.gmra.mrb[0].mxu0 %v1250
      %v2990 = vpop.f32.mrb[0].mxu0
      %v2991 = vadd.f32 0.0, %v2990
      %v2992 = vpop.f32.mrb[0].mxu0
      %2993 = vmatprep.mubr.f32.mxu0 0.0
      %2994 = vmatmul.mubr.f32.gmra.mrb[0].mxu0 %v1252
      %v2995 = vpop.f32.mrb[0].mxu0
      %v2996 = vadd.f32 0.0, %v2995
      %v2997 = vpop.f32.mrb[0].mxu0
      %2998 = vmatprep.mubr.f32.mxu0 0.0
      %2999 = vmatmul.mubr.f32.gmra.mrb[0].mxu0 %v1254
      %v3000 = vpop.f32.mrb[0].mxu0
      %v3001 = vadd.f32 0.0, %v3000
      %v3002 = vpop.f32.mrb[0].mxu0
      %3003 = vmatprep.mubr.f32.mxu0 0.0
      %3004 = vmatmul.mubr.f32.gmra.mrb[0].mxu0 %v1256
      %v3005 = vpop.f32.mrb[0].mxu0
      %v3006 = vadd.f32 0.0, %v3005
      %v3007 = vpop.f32.mrb[0].mxu0
      %3008 = vmatprep.mubr.f32.mxu0 0.0
      %3009 = vmatmul.mubr.f32.gmra.mrb[0].mxu0 %v1258
      %v3010 = vpop.f32.mrb[0].mxu0
      %v3011 = vadd.f32 0.0, %v3010
      %v3012 = vpop.f32.mrb[0].mxu0
      %3013 = vmatprep.mubr.f32.mxu0 0.0
      %3014 = vmatmul.mubr.f32.gmra.mrb[0].mxu0 %v1260
      %v3015 = vpop.f32.mrb[0].mxu0
      %v3016 = vadd.f32 0.0, %v3015
      %v3017 = vpop.f32.mrb[0].mxu0
      %3018 = vmatprep.mubr.f32.mxu0 0.0
      %3019 = vmatmul.mubr.f32.gmra.mrb[0].mxu0 %v1262
      %v3020 = vpop.f32.mrb[0].mxu0
      %v3021 = vadd.f32 0.0, %v3020
      %v3022 = vpop.f32.mrb[0].mxu0
      %3023 = vmatprep.mubr.f32.mxu0 0.0
      %3024 = vmatmul.mubr.f32.gmra.mrb[0].mxu0 %v1264
      %v3025 = vpop.f32.mrb[0].mxu0
      %v3026 = vadd.f32 0.0, %v3025
      %v3027 = vpop.f32.mrb[0].mxu0
      %3028 = vmatprep.mubr.f32.mxu0 0.0
      %3029 = vmatmul.mubr.f32.gmra.mrb[0].mxu0 %v1266
      %v3030 = vpop.f32.mrb[0].mxu0
      %v3031 = vadd.f32 0.0, %v3030
      %v3032 = vpop.f32.mrb[0].mxu0
      %3033 = vmatprep.mubr.f32.mxu0 0.0
      %3034 = vmatmul.mubr.f32.gmra.mrb[0].mxu0 %v1268
      %v3035 = vpop.f32.mrb[0].mxu0
      %v3036 = vadd.f32 0.0, %v3035
      %v3037 = vpop.f32.mrb[0].mxu0
      %3038 = vmatprep.mubr.f32.mxu0 0.0
      %3039 = vmatmul.mubr.f32.gmra.mrb[0].mxu0 %v1270
      %v3040 = vpop.f32.mrb[0].mxu0
      %v3041 = vadd.f32 0.0, %v3040
      %v3042 = vpop.f32.mrb[0].mxu0
      %3043 = vmatprep.mubr.f32.mxu0 0.0
      %3044 = vmatmul.mubr.f32.gmra.mrb[0].mxu0 %v1272
      %v3045 = vpop.f32.mrb[0].mxu0
      %v3046 = vadd.f32 0.0, %v3045
      %v3047 = vpop.f32.mrb[0].mxu0
      %3048 = vmatprep.mubr.f32.mxu0 0.0
      %3049 = vmatmul.mubr.f32.gmra.mrb[0].mxu0 %v1274
      %v3050 = vpop.f32.mrb[0].mxu0
      %v3051 = vadd.f32 0.0, %v3050
      %v3052 = vpop.f32.mrb[0].mxu0
      %3053 = vmatprep.mubr.f32.mxu0 0.0
      %3054 = vmatmul.mubr.f32.gmra.mrb[0].mxu0 %v1276
      %v3055 = vpop.f32.mrb[0].mxu0
      %v3056 = vadd.f32 0.0, %v3055
      %v3057 = vpop.f32.mrb[0].mxu0
      %3058 = vmatprep.mubr.f32.mxu0 0.0
      %3059 = vmatmul.mubr.f32.gmra.mrb[0].mxu0 %v1278
      %v3060 = vpop.f32.mrb[0].mxu0
      %v3061 = vadd.f32 0.0, %v3060
      %v3062 = vpop.f32.mrb[0].mxu0
      %3063 = vmatprep.mubr.f32.mxu0 0.0
      %3064 = vmatmul.mubr.f32.gmra.mrb[0].mxu0 %v1280
      %v3065 = vpop.f32.mrb[0].mxu0
      %v3066 = vadd.f32 0.0, %v3065
      %v3067 = vpop.f32.mrb[0].mxu0
      %3068 = vmatprep.mubr.f32.mxu0 0.0
      %3069 = vmatmul.mubr.f32.gmra.mrb[0].mxu0 %v1282
      %v3070 = vpop.f32.mrb[0].mxu0
      %v3071 = vadd.f32 0.0, %v3070
      %v3072 = vpop.f32.mrb[0].mxu0
      %3073 = vmatprep.mubr.f32.mxu0 0.0
      %3074 = vmatmul.mubr.f32.gmra.mrb[0].mxu0 %v1284
      %v3075 = vpop.f32.mrb[0].mxu0
      %v3076 = vadd.f32 0.0, %v3075
      %v3077 = vpop.f32.mrb[0].mxu0
      %3078 = vmatprep.mubr.f32.mxu0 0.0
      %3079 = vmatmul.mubr.f32.gmra.mrb[0].mxu0 %v1286
      %v3080 = vpop.f32.mrb[0].mxu0
      %v3081 = vadd.f32 0.0, %v3080
      %v3082 = vpop.f32.mrb[0].mxu0
      %3083 = vmatprep.mubr.f32.mxu0 0.0
      %3084 = vmatmul.mubr.f32.gmra.mrb[0].mxu0 %v1288
      %v3085 = vpop.f32.mrb[0].mxu0
      %v3086 = vadd.f32 0.0, %v3085
      %v3087 = vpop.f32.mrb[0].mxu0
      %3088 = vmatprep.mubr.f32.mxu0 0.0
      %3089 = vmatmul.mubr.f32.gmra.mrb[0].mxu0 %v1290
      %v3090 = vpop.f32.mrb[0].mxu0
      %v3091 = vadd.f32 0.0, %v3090
      %v3092 = vpop.f32.mrb[0].mxu0
      %3093 = vmatprep.mubr.f32.mxu0 0.0
      %3094 = vmatmul.mubr.f32.gmra.mrb[0].mxu0 %v1292
      %v3095 = vpop.f32.mrb[0].mxu0
      %v3096 = vadd.f32 0.0, %v3095
      %v3097 = vpop.f32.mrb[0].mxu0
      %3098 = vmatprep.mubr.f32.mxu0 0.0
      %3099 = vmatmul.mubr.f32.gmra.mrb[0].mxu0 %v1294
      %v3100 = vpop.f32.mrb[0].mxu0
      %v3101 = vadd.f32 0.0, %v3100
      %v3102 = vpop.f32.mrb[0].mxu0
      %3103 = vmatprep.mubr.f32.mxu0 0.0
      %3104 = vmatmul.mubr.f32.gmra.mrb[0].mxu0 %v1296
      %v3105 = vpop.f32.mrb[0].mxu0
      %v3106 = vadd.f32 0.0, %v3105
      %v3107 = vpop.f32.mrb[0].mxu0
      %3108 = vmatprep.mubr.f32.mxu0 0.0
      %3109 = vmatmul.mubr.f32.gmra.mrb[0].mxu0 %v2097
      %v3110 = vpop.f32.mrb[0].mxu0
      %v3111 = vadd.f32 0.0, %v3110
      %v3112 = vpop.f32.mrb[0].mxu0
      %3113 = vmatprep.mubr.f32.mxu0 0.0
      %3114 = vmatmul.mubr.f32.gmra.mrb[0].mxu0 %v2099
      %v3115 = vpop.f32.mrb[0].mxu0
      %v3116 = vadd.f32 0.0, %v3115
      %v3117 = vpop.f32.mrb[0].mxu0
      %3118 = vmatprep.mubr.f32.mxu0 0.0
      %3119 = vmatmul.mubr.f32.gmra.mrb[0].mxu0 %v2900
      %v3120 = vpop.f32.mrb[0].mxu0
      %v3121 = vadd.f32 0.0, %v3120
      %v3122 = vpop.f32.mrb[0].mxu0
      %3123 = vmatprep.mubr.f32.mxu0 0.0
      %3124 = vmatmul.mubr.f32.gmra.mrb[0].mxu0 %v2902
      %v3125 = vpop.f32.mrb[0].mxu0
      %v3126 = vadd.f32 0.0, %v3125
      %v3127 = vpop.f32.mrb[0].mxu0
      %3128 = vdwg.mxu0
      %v3129 = vadd.f32 %v2860, %v2971
      %v3130 = vadd.f32 %v2861, %v2976
      %v3131 = vadd.f32 %v2862, %v2981
      %v3132 = vadd.f32 %v2863, %v2986
      %v3133 = vadd.f32 %v2864, %v2991
      %v3134 = vadd.f32 %v2865, %v2996
      %v3135 = vadd.f32 %v2866, %v3001
      %v3136 = vadd.f32 %v2867, %v3006
      %v3137 = vadd.f32 %v2868, %v3011
      %v3138 = vadd.f32 %v2869, %v3016
      %v3139 = vadd.f32 %v2870, %v3021
      %v3140 = vadd.f32 %v2871, %v3026
      %v3141 = vadd.f32 %v2872, %v3031
      %v3142 = vadd.f32 %v2873, %v3036
      %v3143 = vadd.f32 %v2874, %v3041
      %v3144 = vadd.f32 %v2875, %v3046
      %v3145 = vadd.f32 %v2876, %v3051
      %v3146 = vadd.f32 %v2877, %v3056
      %v3147 = vadd.f32 %v2878, %v3061
      %v3148 = vadd.f32 %v2879, %v3066
      %v3149 = vadd.f32 %v2880, %v3071
      %v3150 = vadd.f32 %v2881, %v3076
      %v3151 = vadd.f32 %v2882, %v3081
      %v3152 = vadd.f32 %v2883, %v3086
      %v3153 = vadd.f32 %v2884, %v3091
      %v3154 = vadd.f32 %v2885, %v3096
      %v3155 = vadd.f32 %v2886, %v3101
      %v3156 = vadd.f32 %v2887, %v3106
      %v3157 = vadd.f32 %v2888, %v3111
      %v3158 = vadd.f32 %v2889, %v3116
      %v3159 = vadd.f32 %v2890, %v3121
      %v3160 = vadd.f32 %v2891, %v3126
      %3161 = vst.msk [vmem:[%s208] sm:$0xff] %vm247, %v3129
      %3162 = vst.msk [vmem:[%s208 + $0x8] sm:$0xff] %vm247, %v3130
      %3163 = vst.msk [vmem:[%s208 + $0x10] sm:$0xff] %vm247, %v3131
      %3164 = vst.msk [vmem:[%s208 + $0x18] sm:$0xff] %vm247, %v3132
      %3165 = vst.msk [vmem:[%s208 + $0x20] sm:$0xff] %vm247, %v3133
      %3166 = vst.msk [vmem:[%s208 + $0x28] sm:$0xff] %vm247, %v3134
      %3167 = vst.msk [vmem:[%s208 + $0x30] sm:$0xff] %vm247, %v3135
      %3168 = vst.msk [vmem:[%s208 + $0x38] sm:$0xff] %vm247, %v3136
      %3169 = vst.msk [vmem:[%s208 + $0x40] sm:$0xff] %vm247, %v3137
      %3170 = vst.msk [vmem:[%s208 + $0x48] sm:$0xff] %vm247, %v3138
      %3171 = vst.msk [vmem:[%s208 + $0x50] sm:$0xff] %vm247, %v3139
      %3172 = vst.msk [vmem:[%s208 + $0x58] sm:$0xff] %vm247, %v3140
      %3173 = vst.msk [vmem:[%s208 + $0x60] sm:$0xff] %vm247, %v3141
      %3174 = vst.msk [vmem:[%s208 + $0x68] sm:$0xff] %vm247, %v3142
      %3175 = vst.msk [vmem:[%s208 + $0x70] sm:$0xff] %vm247, %v3143
      %3176 = vst.msk [vmem:[%s208 + $0x78] sm:$0xff] %vm247, %v3144
      %3177 = vst.msk [vmem:[%s208 + $0x80] sm:$0xff] %vm247, %v3145
      %3178 = vst.msk [vmem:[%s208 + $0x88] sm:$0xff] %vm247, %v3146
      %3179 = vst.msk [vmem:[%s208 + $0x90] sm:$0xff] %vm247, %v3147
      %3180 = vst.msk [vmem:[%s208 + $0x98] sm:$0xff] %vm247, %v3148
      %3181 = vst.msk [vmem:[%s208 + $0xa0] sm:$0xff] %vm247, %v3149
      %3182 = vst.msk [vmem:[%s208 + $0xa8] sm:$0xff] %vm247, %v3150
      %3183 = vst.msk [vmem:[%s208 + $0xb0] sm:$0xff] %vm247, %v3151
      %3184 = vst.msk [vmem:[%s208 + $0xb8] sm:$0xff] %vm247, %v3152
      %3185 = vst.msk [vmem:[%s208 + $0xc0] sm:$0xff] %vm247, %v3153
      %3186 = vst.msk [vmem:[%s208 + $0xc8] sm:$0xff] %vm247, %v3154
      %3187 = vst.msk [vmem:[%s208 + $0xd0] sm:$0xff] %vm247, %v3155
      %3188 = vst.msk [vmem:[%s208 + $0xd8] sm:$0xff] %vm247, %v3156
      %3189 = vst.msk [vmem:[%s208 + $0xe0] sm:$0xff] %vm247, %v3157
      %3190 = vst.msk [vmem:[%s208 + $0xe8] sm:$0xff] %vm247, %v3158
      %3191 = vst.msk [vmem:[%s208 + $0xf0] sm:$0xff] %vm247, %v3159
      %3192 = vst.msk [vmem:[%s208 + $0xf8] sm:$0xff] %vm247, %v3160
      %v3193 = vsel %vm247, %v3129, 0.0
      %v3194 = vsel %vm247, %v3130, 0.0
      %v3195 = vadd.f32 %v3193, %v3194
      %v3196 = vsel %vm247, %v3131, 0.0
      %v3197 = vadd.f32 %v3195, %v3196
      %v3198 = vsel %vm247, %v3132, 0.0
      %v3199 = vadd.f32 %v3197, %v3198
      %v3200 = vsel %vm247, %v3133, 0.0
      %v3201 = vadd.f32 %v3199, %v3200
      %v3202 = vsel %vm247, %v3134, 0.0
      %v3203 = vadd.f32 %v3201, %v3202
      %v3204 = vsel %vm247, %v3135, 0.0
      %v3205 = vadd.f32 %v3203, %v3204
      %v3206 = vsel %vm247, %v3136, 0.0
      %v3207 = vadd.f32 %v3205, %v3206
      %v3208 = vsel %vm247, %v3137, 0.0
      %v3209 = vadd.f32 %v3207, %v3208
      %v3210 = vsel %vm247, %v3138, 0.0
      %v3211 = vadd.f32 %v3209, %v3210
      %v3212 = vsel %vm247, %v3139, 0.0
      %v3213 = vadd.f32 %v3211, %v3212
      %v3214 = vsel %vm247, %v3140, 0.0
      %v3215 = vadd.f32 %v3213, %v3214
      %v3216 = vsel %vm247, %v3141, 0.0
      %v3217 = vadd.f32 %v3215, %v3216
      %v3218 = vsel %vm247, %v3142, 0.0
      %v3219 = vadd.f32 %v3217, %v3218
      %v3220 = vsel %vm247, %v3143, 0.0
      %v3221 = vadd.f32 %v3219, %v3220
      %v3222 = vsel %vm247, %v3144, 0.0
      %v3223 = vadd.f32 %v3221, %v3222
      %v3224 = vsel %vm247, %v3145, 0.0
      %v3225 = vadd.f32 %v3223, %v3224
      %v3226 = vsel %vm247, %v3146, 0.0
      %v3227 = vadd.f32 %v3225, %v3226
      %v3228 = vsel %vm247, %v3147, 0.0
      %v3229 = vadd.f32 %v3227, %v3228
      %v3230 = vsel %vm247, %v3148, 0.0
      %v3231 = vadd.f32 %v3229, %v3230
      %v3232 = vsel %vm247, %v3149, 0.0
      %v3233 = vadd.f32 %v3231, %v3232
      %v3234 = vsel %vm247, %v3150, 0.0
      %v3235 = vadd.f32 %v3233, %v3234
      %v3236 = vsel %vm247, %v3151, 0.0
      %v3237 = vadd.f32 %v3235, %v3236
      %v3238 = vsel %vm247, %v3152, 0.0
      %v3239 = vadd.f32 %v3237, %v3238
      %v3240 = vsel %vm247, %v3153, 0.0
      %v3241 = vadd.f32 %v3239, %v3240
      %v3242 = vsel %vm247, %v3154, 0.0
      %v3243 = vadd.f32 %v3241, %v3242
      %v3244 = vsel %vm247, %v3155, 0.0
      %v3245 = vadd.f32 %v3243, %v3244
      %v3246 = vsel %vm247, %v3156, 0.0
      %v3247 = vadd.f32 %v3245, %v3246
      %v3248 = vsel %vm247, %v3157, 0.0
      %v3249 = vadd.f32 %v3247, %v3248
      %v3250 = vsel %vm247, %v3158, 0.0
      %v3251 = vadd.f32 %v3249, %v3250
      %v3252 = vsel %vm247, %v3159, 0.0
      %v3253 = vadd.f32 %v3251, %v3252
      %v3254 = vsel %vm247, %v3160, 0.0
      %v3255 = vadd.f32 %v3253, %v3254
      %v3256 = vrot.slane %v3255, 4
      %v3257 = vadd.f32 %v3255, %v3256
      %v3258 = vrot.slane %v3257, 2
      %v3259 = vadd.f32 %v3257, %v3258
      %v3260 = vrot.slane %v3259, 1
      %v3261 = vadd.f32 %v3259, %v3260
      %vm3262 = vcmask 57344
      %3263 = vst.msk [vmem:[%s211] sm:$0x1] %vm3262, %v3261
      %v3264 = vmul.f32 %v3129, %v3129
      %v3265 = vmul.f32 %v3130, %v3130
      %v3266 = vmul.f32 %v3131, %v3131
      %v3267 = vmul.f32 %v3132, %v3132
      %v3268 = vmul.f32 %v3133, %v3133
      %v3269 = vmul.f32 %v3134, %v3134
      %v3270 = vmul.f32 %v3135, %v3135
      %v3271 = vmul.f32 %v3136, %v3136
      %v3272 = vmul.f32 %v3137, %v3137
      %v3273 = vmul.f32 %v3138, %v3138
      %v3274 = vmul.f32 %v3139, %v3139
      %v3275 = vmul.f32 %v3140, %v3140
      %v3276 = vmul.f32 %v3141, %v3141
      %v3277 = vmul.f32 %v3142, %v3142
      %v3278 = vmul.f32 %v3143, %v3143
      %v3279 = vmul.f32 %v3144, %v3144
      %v3280 = vmul.f32 %v3145, %v3145
      %v3281 = vmul.f32 %v3146, %v3146
      %v3282 = vmul.f32 %v3147, %v3147
      %v3283 = vmul.f32 %v3148, %v3148
      %v3284 = vmul.f32 %v3149, %v3149
      %v3285 = vmul.f32 %v3150, %v3150
      %v3286 = vmul.f32 %v3151, %v3151
      %v3287 = vmul.f32 %v3152, %v3152
      %v3288 = vmul.f32 %v3153, %v3153
      %v3289 = vmul.f32 %v3154, %v3154
      %v3290 = vmul.f32 %v3155, %v3155
      %v3291 = vmul.f32 %v3156, %v3156
      %v3292 = vmul.f32 %v3157, %v3157
      %v3293 = vmul.f32 %v3158, %v3158
      %v3294 = vmul.f32 %v3159, %v3159
      %v3295 = vmul.f32 %v3160, %v3160
      %v3296 = vsel %vm247, %v3264, 0.0
      %v3297 = vsel %vm247, %v3265, 0.0
      %v3298 = vadd.f32 %v3296, %v3297
      %v3299 = vsel %vm247, %v3266, 0.0
      %v3300 = vadd.f32 %v3298, %v3299
      %v3301 = vsel %vm247, %v3267, 0.0
      %v3302 = vadd.f32 %v3300, %v3301
      %v3303 = vsel %vm247, %v3268, 0.0
      %v3304 = vadd.f32 %v3302, %v3303
      %v3305 = vsel %vm247, %v3269, 0.0
      %v3306 = vadd.f32 %v3304, %v3305
      %v3307 = vsel %vm247, %v3270, 0.0
      %v3308 = vadd.f32 %v3306, %v3307
      %v3309 = vsel %vm247, %v3271, 0.0
      %v3310 = vadd.f32 %v3308, %v3309
      %v3311 = vsel %vm247, %v3272, 0.0
      %v3312 = vadd.f32 %v3310, %v3311
      %v3313 = vsel %vm247, %v3273, 0.0
      %v3314 = vadd.f32 %v3312, %v3313
      %v3315 = vsel %vm247, %v3274, 0.0
      %v3316 = vadd.f32 %v3314, %v3315
      %v3317 = vsel %vm247, %v3275, 0.0
      %v3318 = vadd.f32 %v3316, %v3317
      %v3319 = vsel %vm247, %v3276, 0.0
      %v3320 = vadd.f32 %v3318, %v3319
      %v3321 = vsel %vm247, %v3277, 0.0
      %v3322 = vadd.f32 %v3320, %v3321
      %v3323 = vsel %vm247, %v3278, 0.0
      %v3324 = vadd.f32 %v3322, %v3323
      %v3325 = vsel %vm247, %v3279, 0.0
      %v3326 = vadd.f32 %v3324, %v3325
      %v3327 = vsel %vm247, %v3280, 0.0
      %v3328 = vadd.f32 %v3326, %v3327
      %v3329 = vsel %vm247, %v3281, 0.0
      %v3330 = vadd.f32 %v3328, %v3329
      %v3331 = vsel %vm247, %v3282, 0.0
      %v3332 = vadd.f32 %v3330, %v3331
      %v3333 = vsel %vm247, %v3283, 0.0
      %v3334 = vadd.f32 %v3332, %v3333
      %v3335 = vsel %vm247, %v3284, 0.0
      %v3336 = vadd.f32 %v3334, %v3335
      %v3337 = vsel %vm247, %v3285, 0.0
      %v3338 = vadd.f32 %v3336, %v3337
      %v3339 = vsel %vm247, %v3286, 0.0
      %v3340 = vadd.f32 %v3338, %v3339
      %v3341 = vsel %vm247, %v3287, 0.0
      %v3342 = vadd.f32 %v3340, %v3341
      %v3343 = vsel %vm247, %v3288, 0.0
      %v3344 = vadd.f32 %v3342, %v3343
      %v3345 = vsel %vm247, %v3289, 0.0
      %v3346 = vadd.f32 %v3344, %v3345
      %v3347 = vsel %vm247, %v3290, 0.0
      %v3348 = vadd.f32 %v3346, %v3347
      %v3349 = vsel %vm247, %v3291, 0.0
      %v3350 = vadd.f32 %v3348, %v3349
      %v3351 = vsel %vm247, %v3292, 0.0
      %v3352 = vadd.f32 %v3350, %v3351
      %v3353 = vsel %vm247, %v3293, 0.0
      %v3354 = vadd.f32 %v3352, %v3353
      %v3355 = vsel %vm247, %v3294, 0.0
      %v3356 = vadd.f32 %v3354, %v3355
      %v3357 = vsel %vm247, %v3295, 0.0
      %v3358 = vadd.f32 %v3356, %v3357
      %v3359 = vrot.slane %v3358, 4
      %v3360 = vadd.f32 %v3358, %v3359
      %v3361 = vrot.slane %v3360, 2
      %v3362 = vadd.f32 %v3360, %v3361
      %v3363 = vrot.slane %v3362, 1
      %v3364 = vadd.f32 %v3362, %v3363
      %3365 = vst.msk [vmem:[%s214] sm:$0x1] %vm3262, %v3364
      %p3366 = scmp.lt.s32.totalorder %s16, 1
      %s3367 = scalar_select %p3366, %s16, 1
      %s3368 = smul.addr %s3367, 32
      %s3369 = smul.addr %s3368, 8
      %s3370 = scalar_lea.vmem %s2, %s3369
      %p3371 = scmp.lt.s32.totalorder %s16, 1
      %s3372 = scalar_select %p3371, %s16, 1
      %s3373 = scalar_lea.vmem %s3, %s3372
      %p3374 = scmp.lt.s32.totalorder %s16, 1
      %s3375 = scalar_select %p3374, %s16, 1
      %s3376 = scalar_lea.vmem %s4, %s3375
      // Predicated region
      $region29: #{restnet_basic_block.3} parent=27 // pred_check
        %p3377 = pneg %p81
      $region30: #{restnet_basic_block.3} parent=27 // pred_check_branch
        %3379 = sbr.rel (%p3377) target = $region32
      $region31: #{restnet_basic_block.3} parent=27 // pred_region
        _
      $region32: #{restnet_basic_block.3} parent=27 // pred_fallthru
        _
      // Predicated region
      $region33: #{restnet_basic_block.3} parent=27 // pred_check
        %p3380 = pneg %p107
      $region34: #{restnet_basic_block.3} parent=27 // pred_check_branch
        %3382 = sbr.rel (%p3380) target = $region36
      $region35: #{restnet_basic_block.3} parent=27 // pred_region
        _
      $region36: #{restnet_basic_block.3} parent=27 // pred_fallthru
        _
      // Predicated region
      $region37: #{restnet_basic_block.3} parent=27 // pred_check
        %p3383 = pneg %p133
      $region38: #{restnet_basic_block.3} parent=27 // pred_check_branch
        %3385 = sbr.rel (%p3383) target = $region40
      $region39: #{restnet_basic_block.3} parent=27 // pred_region
        _
      $region40: #{restnet_basic_block.3} parent=27 // pred_fallthru
        _
    $region28: #{restnet_basic_block.3} parent=5 // pred_fallthru
      _
    %p3386 = scmp.le.s32.totalorder 2, %s11
    // Predicated region
    $region41: #{restnet_basic_block.3} parent=5 // pred_check
      %p3387 = pneg %p3386
    $region42: #{restnet_basic_block.3} parent=5 // pred_check_branch
      %3389 = sbr.rel (%p3387) target = $region44
    $region43: #{restnet_basic_block.3} parent=5 // pred_region
      %s3390 = ssub.s32 %s11, 2
      // Predicated region
      $region45: #{restnet_basic_block.3} parent=43 // pred_check
        %p3391 = pneg %p87
      $region46: #{restnet_basic_block.3} parent=43 // pred_check_branch
        %3393 = sbr.rel (%p3391) target = $region48
      $region47: #{restnet_basic_block.3} parent=43 // pred_region
        %p3394 = scmp.lt.s32.totalorder %s17, 1
        %s3395 = scalar_select %p3394, %s17, 1
        %s3396 = smul.addr %s3395, 32
        %s3397 = smul.addr %s3396, 8
        %s3398 = scalar_lea.vmem %s2, %s3397
      $region48: #{restnet_basic_block.3} parent=43 // pred_fallthru
        _
      // Predicated region
      $region49: #{restnet_basic_block.3} parent=43 // pred_check
        %p3399 = pneg %p113
      $region50: #{restnet_basic_block.3} parent=43 // pred_check_branch
        %3401 = sbr.rel (%p3399) target = $region52
      $region51: #{restnet_basic_block.3} parent=43 // pred_region
        %p3402 = scmp.lt.s32.totalorder %s17, 1
        %s3403 = scalar_select %p3402, %s17, 1
        %s3404 = scalar_lea.vmem %s3, %s3403
      $region52: #{restnet_basic_block.3} parent=43 // pred_fallthru
        _
      // Predicated region
      $region53: #{restnet_basic_block.3} parent=43 // pred_check
        %p3405 = pneg %p139
      $region54: #{restnet_basic_block.3} parent=43 // pred_check_branch
        %3407 = sbr.rel (%p3405) target = $region56
      $region55: #{restnet_basic_block.3} parent=43 // pred_region
        %p3408 = scmp.lt.s32.totalorder %s17, 1
        %s3409 = scalar_select %p3408, %s17, 1
        %s3410 = scalar_lea.vmem %s4, %s3409
      $region56: #{restnet_basic_block.3} parent=43 // pred_fallthru
        _
    $region44: #{restnet_basic_block.3} parent=5 // pred_fallthru
      _
  $region6: #{restnet_basic_block.3} parent=0 // loop_footer
    %s15 = sadd.s32 1, %s11
  $region7: #{restnet_basic_block.3} parent=0 // loop_footer_branch
    %10 = sbr.rel target = $region3
  $region8: #{restnet_basic_block.3} parent=0 // loop_exit
    _

// kernel: restnet_basic_block.4
$region0: #{restnet_basic_block.4}
  #allocation0 [shape = 'u32[]', space=smem, size = 0x4, offset = 0x4, fixed_abs, tag = 'smem constant byte address 0x4 - core index']
  #allocation1 [shape = 'u32[144,128]{1,0:T(1,128)}', space=vmem, size = 0x12000, scoped, tag = 'internal scratch']
  #allocation2 [shape = 'f32[18,32,8]{2,1,0:T(8,128)}', space=vmem, size = 0x48000, scoped, tag = 'scratch operand']
  %s0 = inlined_call_operand.vmem [shape: f32[2,16,16,8], index: 0, kind: input, shape index: {}]
  %s1 = inlined_call_operand.vmem [shape: f32[9,8,8], index: 1, kind: input, shape index: {}]
  %s2 = inlined_call_operand.vmem [shape: f32[1,8], index: 2, kind: input, shape index: {}]
  %s3 = inlined_call_operand.vmem [shape: f32[1,8], index: 3, kind: input, shape index: {}]
  %s4 = inlined_call_operand.vmem [shape: f32[2,16,16,8], index: 4, kind: output, shape index: {0}]
  %s5 = inlined_call_operand.vmem [shape: f32[2,1,8], index: 5, kind: output, shape index: {1}]
  %s6 = inlined_call_operand.vmem [shape: f32[2,1,8], index: 6, kind: output, shape index: {2}]
  %7 = xla_tuple %s4, %s5, %s6
  %s8 = sld [smem:[#allocation0]]
  $region65: #{restnet_basic_block.4} parent=0
    _
  %s10 = ssub.s32 1, %s8
  %s11 = scalar_select 0, %s10, %s8
  loop: start=0, step=1, limit=4
  $region2: #{restnet_basic_block.4} parent=0 // loop_pre_header
    _
  $region3: #{restnet_basic_block.4} parent=0 // loop_header
    %s13 = sphi 0, %s17
    %p14 = scmp.ge.s32.totalorder %s13, 4
    %s23 = sphi 0, %s25
    %s26 = sphi 0, %s23
    %s27 = sphi 0, %s26
    %s43 = sphi 0, %s27
    %s47 = sphi 0, %s47
    %s49 = sphi 0, %s47
    %s50 = sphi 0, %s49
    %s64 = sphi 0, %s50
    %s68 = sphi 0, %s68
    %s70 = sphi 0, %s68
    %s71 = sphi 0, %s70
    %s85 = sphi 0, %s71
    %s89 = sphi 0, %s89
    %s91 = sphi 0, %s89
    %s92 = sphi 0, %s91
    %s106 = sphi 0, %s92
    %s112 = sphi 0, %s114
    %s115 = sphi 0, %s112
    %s116 = sphi 0, %s115
    %s132 = sphi 0, %s116
    %s138 = sphi 0, %s140
    %s141 = sphi 0, %s138
    %s142 = sphi 0, %s141
    %s158 = sphi 0, %s142
    %s164 = sphi 0, %s166
    %s167 = sphi 0, %s164
    %s168 = sphi 0, %s167
    %s184 = sphi 0, %s168
  $region4: #{restnet_basic_block.4} parent=0 // loop_header_branch
    %16 = sbr.rel (%p14) target = $region8
  $region5: #{restnet_basic_block.4} parent=0 // loop_body
    %s18 = ssub.s32 %s13, 1
    %s19 = ssub.s32 %s13, 2
    %s20 = sadd.s32 %s13, 1
    %s21 = ssub.s32 %s13, %s20
    %p22 = scmp.eq.s32.totalorder %s21, 0
    %s24 = sadd.s32 %s23, 1
    %s25 = scalar_select %p22, %s23, %s24
    %p28 = pneg %p22
    %p29 = scmp.eq.s32.totalorder %s13, 1
    %p30 = por %p28, %p29
    %p31 = scmp.ne.s32.totalorder %s23, %s26
    %p32 = scmp.eq.s32.totalorder %s13, 0
    %p33 = por %p31, %p32
    %p34 = scmp.ne.s32.totalorder %s23, %s26
    %p35 = scmp.eq.s32.totalorder %s18, 1
    %p36 = por %p34, %p35
    %p37 = scmp.ne.s32.totalorder %s26, %s27
    %p38 = scmp.eq.s32.totalorder %s18, 0
    %p39 = por %p37, %p38
    %p40 = scmp.ne.s32.totalorder %s26, %s27
    %p41 = scmp.eq.s32.totalorder %s19, 1
    %p42 = por %p40, %p41
    %p44 = scmp.ne.s32.totalorder %s27, %s43
    %p45 = scmp.eq.s32.totalorder %s19, 0
    %p46 = por %p44, %p45
    %s48 = sadd.s32 %s47, 1
    %p51 = scmp.eq.s32.totalorder %s13, 1
    %p52 = scmp.ne.s32.totalorder %s47, %s49
    %p53 = scmp.eq.s32.totalorder %s13, 0
    %p54 = por %p52, %p53
    %p55 = scmp.ne.s32.totalorder %s47, %s49
    %p56 = scmp.eq.s32.totalorder %s18, 1
    %p57 = por %p55, %p56
    %p58 = scmp.ne.s32.totalorder %s49, %s50
    %p59 = scmp.eq.s32.totalorder %s18, 0
    %p60 = por %p58, %p59
    %p61 = scmp.ne.s32.totalorder %s49, %s50
    %p62 = scmp.eq.s32.totalorder %s19, 1
    %p63 = por %p61, %p62
    %p65 = scmp.ne.s32.totalorder %s50, %s64
    %p66 = scmp.eq.s32.totalorder %s19, 0
    %p67 = por %p65, %p66
    %s69 = sadd.s32 %s68, 1
    %p72 = scmp.eq.s32.totalorder %s13, 1
    %p73 = scmp.ne.s32.totalorder %s68, %s70
    %p74 = scmp.eq.s32.totalorder %s13, 0
    %p75 = por %p73, %p74
    %p76 = scmp.ne.s32.totalorder %s68, %s70
    %p77 = scmp.eq.s32.totalorder %s18, 1
    %p78 = por %p76, %p77
    %p79 = scmp.ne.s32.totalorder %s70, %s71
    %p80 = scmp.eq.s32.totalorder %s18, 0
    %p81 = por %p79, %p80
    %p82 = scmp.ne.s32.totalorder %s70, %s71
    %p83 = scmp.eq.s32.totalorder %s19, 1
    %p84 = por %p82, %p83
    %p86 = scmp.ne.s32.totalorder %s71, %s85
    %p87 = scmp.eq.s32.totalorder %s19, 0
    %p88 = por %p86, %p87
    %s90 = sadd.s32 %s89, 1
    %p93 = scmp.eq.s32.totalorder %s13, 1
    %p94 = scmp.ne.s32.totalorder %s89, %s91
    %p95 = scmp.eq.s32.totalorder %s13, 0
    %p96 = por %p94, %p95
    %p97 = scmp.ne.s32.totalorder %s89, %s91
    %p98 = scmp.eq.s32.totalorder %s18, 1
    %p99 = por %p97, %p98
    %p100 = scmp.ne.s32.totalorder %s91, %s92
    %p101 = scmp.eq.s32.totalorder %s18, 0
    %p102 = por %p100, %p101
    %p103 = scmp.ne.s32.totalorder %s91, %s92
    %p104 = scmp.eq.s32.totalorder %s19, 1
    %p105 = por %p103, %p104
    %p107 = scmp.ne.s32.totalorder %s92, %s106
    %p108 = scmp.eq.s32.totalorder %s19, 0
    %p109 = por %p107, %p108
    %s110 = ssub.s32 %s13, %s20
    %p111 = scmp.eq.s32.totalorder %s110, 0
    %s113 = sadd.s32 %s112, 1
    %s114 = scalar_select %p111, %s112, %s113
    %p117 = pneg %p111
    %p118 = scmp.eq.s32.totalorder %s13, 1
    %p119 = por %p117, %p118
    %p120 = scmp.ne.s32.totalorder %s112, %s115
    %p121 = scmp.eq.s32.totalorder %s13, 0
    %p122 = por %p120, %p121
    %p123 = scmp.ne.s32.totalorder %s112, %s115
    %p124 = scmp.eq.s32.totalorder %s18, 1
    %p125 = por %p123, %p124
    %p126 = scmp.ne.s32.totalorder %s115, %s116
    %p127 = scmp.eq.s32.totalorder %s18, 0
    %p128 = por %p126, %p127
    %p129 = scmp.ne.s32.totalorder %s115, %s116
    %p130 = scmp.eq.s32.totalorder %s19, 1
    %p131 = por %p129, %p130
    %p133 = scmp.ne.s32.totalorder %s116, %s132
    %p134 = scmp.eq.s32.totalorder %s19, 0
    %p135 = por %p133, %p134
    %s136 = ssub.s32 %s13, %s20
    %p137 = scmp.eq.s32.totalorder %s136, 0
    %s139 = sadd.s32 %s138, 1
    %s140 = scalar_select %p137, %s138, %s139
    %p143 = pneg %p137
    %p144 = scmp.eq.s32.totalorder %s13, 1
    %p145 = por %p143, %p144
    %p146 = scmp.ne.s32.totalorder %s138, %s141
    %p147 = scmp.eq.s32.totalorder %s13, 0
    %p148 = por %p146, %p147
    %p149 = scmp.ne.s32.totalorder %s138, %s141
    %p150 = scmp.eq.s32.totalorder %s18, 1
    %p151 = por %p149, %p150
    %p152 = scmp.ne.s32.totalorder %s141, %s142
    %p153 = scmp.eq.s32.totalorder %s18, 0
    %p154 = por %p152, %p153
    %p155 = scmp.ne.s32.totalorder %s141, %s142
    %p156 = scmp.eq.s32.totalorder %s19, 1
    %p157 = por %p155, %p156
    %p159 = scmp.ne.s32.totalorder %s142, %s158
    %p160 = scmp.eq.s32.totalorder %s19, 0
    %p161 = por %p159, %p160
    %s162 = ssub.s32 %s13, %s20
    %p163 = scmp.eq.s32.totalorder %s162, 0
    %s165 = sadd.s32 %s164, 1
    %s166 = scalar_select %p163, %s164, %s165
    %p169 = pneg %p163
    %p170 = scmp.eq.s32.totalorder %s13, 1
    %p171 = por %p169, %p170
    %p172 = scmp.ne.s32.totalorder %s164, %s167
    %p173 = scmp.eq.s32.totalorder %s13, 0
    %p174 = por %p172, %p173
    %p175 = scmp.ne.s32.totalorder %s164, %s167
    %p176 = scmp.eq.s32.totalorder %s18, 1
    %p177 = por %p175, %p176
    %p178 = scmp.ne.s32.totalorder %s167, %s168
    %p179 = scmp.eq.s32.totalorder %s18, 0
    %p180 = por %p178, %p179
    %p181 = scmp.ne.s32.totalorder %s167, %s168
    %p182 = scmp.eq.s32.totalorder %s19, 1
    %p183 = por %p181, %p182
    %p185 = scmp.ne.s32.totalorder %s168, %s184
    %p186 = scmp.eq.s32.totalorder %s19, 0
    %p187 = por %p185, %p186
    %p188 = scmp.le.s32.totalorder 1, %s13
    %p189 = scmp.lt.s32.totalorder %s13, 3
    %p190 = pnand %p188, %p189
    %p191 = pneg %p190
    // Predicated region
    $region9: #{restnet_basic_block.4} parent=5 // pred_check
      _
    $region10: #{restnet_basic_block.4} parent=5 // pred_check_branch
      %193 = sbr.rel (%p190) target = $region12
    $region11: #{restnet_basic_block.4} parent=5 // pred_region
      %s194 = ssub.s32 %s13, 1
      // Predicated region
      $region13: #{restnet_basic_block.4} parent=11 // pred_check
        %p195 = pneg %p60
      $region14: #{restnet_basic_block.4} parent=11 // pred_check_branch
        %197 = sbr.rel (%p195) target = $region16
      $region15: #{restnet_basic_block.4} parent=11 // pred_region
        _
      $region16: #{restnet_basic_block.4} parent=11 // pred_fallthru
        _
      // Predicated region
      $region17: #{restnet_basic_block.4} parent=11 // pred_check
        %p198 = pneg %p81
      $region18: #{restnet_basic_block.4} parent=11 // pred_check_branch
        %200 = sbr.rel (%p198) target = $region20
      $region19: #{restnet_basic_block.4} parent=11 // pred_region
        _
      $region20: #{restnet_basic_block.4} parent=11 // pred_fallthru
        _
      // Predicated region
      $region21: #{restnet_basic_block.4} parent=11 // pred_check
        %p201 = pneg %p102
      $region22: #{restnet_basic_block.4} parent=11 // pred_check_branch
        %203 = sbr.rel (%p201) target = $region24
      $region23: #{restnet_basic_block.4} parent=11 // pred_region
        _
      $region24: #{restnet_basic_block.4} parent=11 // pred_fallthru
        _
    $region12: #{restnet_basic_block.4} parent=5 // pred_fallthru
      _
    %p204 = scmp.lt.s32.totalorder %s13, 2
    // Predicated region
    $region25: #{restnet_basic_block.4} parent=5 // pred_check
      %p205 = pneg %p204
    $region26: #{restnet_basic_block.4} parent=5 // pred_check_branch
      %207 = sbr.rel (%p205) target = $region28
    $region27: #{restnet_basic_block.4} parent=5 // pred_region
      // Predicated region
      $region29: #{restnet_basic_block.4} parent=27 // pred_check
        %p208 = pneg %p33
      $region30: #{restnet_basic_block.4} parent=27 // pred_check_branch
        %210 = sbr.rel (%p208) target = $region32
      $region31: #{restnet_basic_block.4} parent=27 // pred_region
        %p211 = scmp.lt.s32.totalorder %s13, 1
        %s212 = scalar_select %p211, %s13, 1
        %s213 = smul.addr %s212, 32
        %s214 = smul.addr %s213, 8
        %s215 = scalar_lea.vmem %s0, %s214
      $region32: #{restnet_basic_block.4} parent=27 // pred_fallthru
        _
    $region28: #{restnet_basic_block.4} parent=5 // pred_fallthru
      _
    %p216 = scmp.le.s32.totalorder 1, %s13
    %p217 = scmp.lt.s32.totalorder %s13, 3
    %p218 = pnand %p216, %p217
    %p219 = pneg %p218
    // Predicated region
    $region33: #{restnet_basic_block.4} parent=5 // pred_check
      _
    $region34: #{restnet_basic_block.4} parent=5 // pred_check_branch
      %221 = sbr.rel (%p218) target = $region36
    $region35: #{restnet_basic_block.4} parent=5 // pred_region
      %s222 = ssub.s32 %s13, 1
      %p223 = scmp.lt.s32.totalorder %s18, 1
      %s224 = scalar_select %p223, %s18, 1
      %s225 = smul.addr %s224, 32
      %s226 = smul.addr %s225, 8
      %s227 = scalar_lea.vmem %s0, %s226
      %p228 = pneg %p39
      %p229 = pneg %p36
      %p230 = pneg %p60
      %p231 = pneg %p57
      %p232 = pneg %p81
      %p233 = pneg %p78
      %p234 = pneg %p102
      %p235 = pneg %p99
      %p236 = pneg %p128
      %p237 = pneg %p125
      %p238 = scmp.lt.s32.totalorder %s18, 1
      %s239 = scalar_select %p238, %s18, 1
      %s240 = smul.addr %s239, 32
      %s241 = smul.addr %s240, 8
      %s242 = scalar_lea.vmem %s4, %s241
      %p243 = pneg %p154
      %p244 = pneg %p151
      %p245 = scmp.lt.s32.totalorder %s18, 1
      %s246 = scalar_select %p245, %s18, 1
      %s247 = scalar_lea.vmem %s5, %s246
      %p248 = pneg %p180
      %p249 = pneg %p177
      %p250 = scmp.lt.s32.totalorder %s18, 1
      %s251 = scalar_select %p250, %s18, 1
      %s252 = scalar_lea.vmem %s6, %s251
      %p253 = scmp.lt.s32.totalorder %s18, 1
      %s254 = scalar_select %p253, %s18, 1
      %s255 = smul.addr %s254, 32
      %s256 = smul.addr %s255, 8
      %s257 = scalar_lea.vmem %s0, %s256
      %p258 = scmp.lt.s32.totalorder %s18, 1
      %s259 = scalar_select %p258, %s18, 1
      %s260 = smul.addr %s259, 32
      %s261 = smul.addr %s260, 8
      %s262 = scalar_lea.vmem %s4, %s261
      %p263 = scmp.lt.s32.totalorder %s18, 1
      %s264 = scalar_select %p263, %s18, 1
      %s265 = scalar_lea.vmem %s5, %s264
      %p266 = scmp.lt.s32.totalorder %s18, 1
      %s267 = scalar_select %p266, %s18, 1
      %s268 = scalar_lea.vmem %s6, %s267
      %v269 = vld [vmem:[%s257] sm:$0xff]
      %v270 = vld [vmem:[%s257 + $0x8] sm:$0xff]
      %v271 = vld [vmem:[%s257 + $0x10] sm:$0xff]
      %v272 = vld [vmem:[%s257 + $0x18] sm:$0xff]
      %v273 = vld [vmem:[%s257 + $0x20] sm:$0xff]
      %v274 = vld [vmem:[%s257 + $0x28] sm:$0xff]
      %v275 = vld [vmem:[%s257 + $0x30] sm:$0xff]
      %v276 = vld [vmem:[%s257 + $0x38] sm:$0xff]
      %v277 = vld [vmem:[%s257 + $0x40] sm:$0xff]
      %v278 = vld [vmem:[%s257 + $0x48] sm:$0xff]
      %v279 = vld [vmem:[%s257 + $0x50] sm:$0xff]
      %v280 = vld [vmem:[%s257 + $0x58] sm:$0xff]
      %v281 = vld [vmem:[%s257 + $0x60] sm:$0xff]
      %v282 = vld [vmem:[%s257 + $0x68] sm:$0xff]
      %v283 = vld [vmem:[%s257 + $0x70] sm:$0xff]
      %v284 = vld [vmem:[%s257 + $0x78] sm:$0xff]
      %v285 = vld [vmem:[%s257 + $0x80] sm:$0xff]
      %v286 = vld [vmem:[%s257 + $0x88] sm:$0xff]
      %v287 = vld [vmem:[%s257 + $0x90] sm:$0xff]
      %v288 = vld [vmem:[%s257 + $0x98] sm:$0xff]
      %v289 = vld [vmem:[%s257 + $0xa0] sm:$0xff]
      %v290 = vld [vmem:[%s257 + $0xa8] sm:$0xff]
      %v291 = vld [vmem:[%s257 + $0xb0] sm:$0xff]
      %v292 = vld [vmem:[%s257 + $0xb8] sm:$0xff]
      %v293 = vld [vmem:[%s257 + $0xc0] sm:$0xff]
      %v294 = vld [vmem:[%s257 + $0xc8] sm:$0xff]
      %v295 = vld [vmem:[%s257 + $0xd0] sm:$0xff]
      %v296 = vld [vmem:[%s257 + $0xd8] sm:$0xff]
      %v297 = vld [vmem:[%s257 + $0xe0] sm:$0xff]
      %v298 = vld [vmem:[%s257 + $0xe8] sm:$0xff]
      %v299 = vld [vmem:[%s257 + $0xf0] sm:$0xff]
      %v300 = vld [vmem:[%s257 + $0xf8] sm:$0xff]
      %v301 = vld [vmem:[%s2] sm:$0x1]
      %v303 = vlaneseq
      %v304 = vshrl.u32 %v303, 7
      %v305 = vsub.s32 0, %v304
      %v306 = vrot.slane %v301, %v305
      %v308 = vmul.f32 %v269, %v306
      %v309 = vmul.f32 %v270, %v306
      %v310 = vmul.f32 %v271, %v306
      %v311 = vmul.f32 %v272, %v306
      %v312 = vmul.f32 %v273, %v306
      %v313 = vmul.f32 %v274, %v306
      %v314 = vmul.f32 %v275, %v306
      %v315 = vmul.f32 %v276, %v306
      %v316 = vmul.f32 %v277, %v306
      %v317 = vmul.f32 %v278, %v306
      %v318 = vmul.f32 %v279, %v306
      %v319 = vmul.f32 %v280, %v306
      %v320 = vmul.f32 %v281, %v306
      %v321 = vmul.f32 %v282, %v306
      %v322 = vmul.f32 %v283, %v306
      %v323 = vmul.f32 %v284, %v306
      %v324 = vmul.f32 %v285, %v306
      %v325 = vmul.f32 %v286, %v306
      %v326 = vmul.f32 %v287, %v306
      %v327 = vmul.f32 %v288, %v306
      %v328 = vmul.f32 %v289, %v306
      %v329 = vmul.f32 %v290, %v306
      %v330 = vmul.f32 %v291, %v306
      %v331 = vmul.f32 %v292, %v306
      %v332 = vmul.f32 %v293, %v306
      %v333 = vmul.f32 %v294, %v306
      %v334 = vmul.f32 %v295, %v306
      %v335 = vmul.f32 %v296, %v306
      %v336 = vmul.f32 %v297, %v306
      %v337 = vmul.f32 %v298, %v306
      %v338 = vmul.f32 %v299, %v306
      %v339 = vmul.f32 %v300, %v306
      %v340 = vld [vmem:[%s3] sm:$0x1]
      %v342 = vlaneseq
      %v343 = vshrl.u32 %v342, 7
      %v344 = vsub.s32 0, %v343
      %v345 = vrot.slane %v340, %v344
      %v347 = vadd.f32 %v308, %v345
      %v348 = vadd.f32 %v309, %v345
      %v349 = vadd.f32 %v310, %v345
      %v350 = vadd.f32 %v311, %v345
      %v351 = vadd.f32 %v312, %v345
      %v352 = vadd.f32 %v313, %v345
      %v353 = vadd.f32 %v314, %v345
      %v354 = vadd.f32 %v315, %v345
      %v355 = vadd.f32 %v316, %v345
      %v356 = vadd.f32 %v317, %v345
      %v357 = vadd.f32 %v318, %v345
      %v358 = vadd.f32 %v319, %v345
      %v359 = vadd.f32 %v320, %v345
      %v360 = vadd.f32 %v321, %v345
      %v361 = vadd.f32 %v322, %v345
      %v362 = vadd.f32 %v323, %v345
      %v363 = vadd.f32 %v324, %v345
      %v364 = vadd.f32 %v325, %v345
      %v365 = vadd.f32 %v326, %v345
      %v366 = vadd.f32 %v327, %v345
      %v367 = vadd.f32 %v328, %v345
      %v368 = vadd.f32 %v329, %v345
      %v369 = vadd.f32 %v330, %v345
      %v370 = vadd.f32 %v331, %v345
      %v371 = vadd.f32 %v332, %v345
      %v372 = vadd.f32 %v333, %v345
      %v373 = vadd.f32 %v334, %v345
      %v374 = vadd.f32 %v335, %v345
      %v375 = vadd.f32 %v336, %v345
      %v376 = vadd.f32 %v337, %v345
      %v377 = vadd.f32 %v338, %v345
      %v378 = vadd.f32 %v339, %v345
      %v379 = vmax.f32 %v347, 0.0
      %v380 = vmax.f32 %v348, 0.0
      %v381 = vmax.f32 %v349, 0.0
      %v382 = vmax.f32 %v350, 0.0
      %v383 = vmax.f32 %v351, 0.0
      %v384 = vmax.f32 %v352, 0.0
      %v385 = vmax.f32 %v353, 0.0
      %v386 = vmax.f32 %v354, 0.0
      %v387 = vmax.f32 %v355, 0.0
      %v388 = vmax.f32 %v356, 0.0
      %v389 = vmax.f32 %v357, 0.0
      %v390 = vmax.f32 %v358, 0.0
      %v391 = vmax.f32 %v359, 0.0
      %v392 = vmax.f32 %v360, 0.0
      %v393 = vmax.f32 %v361, 0.0
      %v394 = vmax.f32 %v362, 0.0
      %v395 = vmax.f32 %v363, 0.0
      %v396 = vmax.f32 %v364, 0.0
      %v397 = vmax.f32 %v365, 0.0
      %v398 = vmax.f32 %v366, 0.0
      %v399 = vmax.f32 %v367, 0.0
      %v400 = vmax.f32 %v368, 0.0
      %v401 = vmax.f32 %v369, 0.0
      %v402 = vmax.f32 %v370, 0.0
      %v403 = vmax.f32 %v371, 0.0
      %v404 = vmax.f32 %v372, 0.0
      %v405 = vmax.f32 %v373, 0.0
      %v406 = vmax.f32 %v374, 0.0
      %v407 = vmax.f32 %v375, 0.0
      %v408 = vmax.f32 %v376, 0.0
      %v409 = vmax.f32 %v377, 0.0
      %v410 = vmax.f32 %v378, 0.0
      %vm411 = vcmask 64512
      %412 = vst.msk [vmem:[#allocation2] sm:$0xff] %vm411, 0.0
      %413 = vst.msk [vmem:[#allocation2 + $0x8] sm:$0xff] %vm411, 0.0
      %414 = vst.msk [vmem:[#allocation2 + $0x10] sm:$0xff] %vm411, 0.0
      %415 = vst.msk [vmem:[#allocation2 + $0x18] sm:$0xff] %vm411, 0.0
      %416 = vst.msk [vmem:[#allocation2 + $0x20] sm:$0xff] %vm411, 0.0
      %417 = vst.msk [vmem:[#allocation2 + $0x28] sm:$0xff] %vm411, 0.0
      %418 = vst.msk [vmem:[#allocation2 + $0x30] sm:$0xff] %vm411, 0.0
      %419 = vst.msk [vmem:[#allocation2 + $0x38] sm:$0xff] %vm411, 0.0
      %420 = vst.msk [vmem:[#allocation2 + $0x40] sm:$0xff] %vm411, 0.0
      %421 = vst.msk [vmem:[#allocation2 + $0x48] sm:$0xff] %vm411, 0.0
      %422 = vst.msk [vmem:[#allocation2 + $0x50] sm:$0xff] %vm411, 0.0
      %423 = vst.msk [vmem:[#allocation2 + $0x58] sm:$0xff] %vm411, 0.0
      %424 = vst.msk [vmem:[#allocation2 + $0x60] sm:$0xff] %vm411, 0.0
      %425 = vst.msk [vmem:[#allocation2 + $0x68] sm:$0xff] %vm411, 0.0
      %426 = vst.msk [vmem:[#allocation2 + $0x70] sm:$0xff] %vm411, 0.0
      %427 = vst.msk [vmem:[#allocation2 + $0x78] sm:$0xff] %vm411, 0.0
      %428 = vst.msk [vmem:[#allocation2 + $0x80] sm:$0xff] %vm411, 0.0
      %429 = vst.msk [vmem:[#allocation2 + $0x88] sm:$0xff] %vm411, 0.0
      %430 = vst.msk [vmem:[#allocation2 + $0x90] sm:$0xff] %vm411, 0.0
      %431 = vst.msk [vmem:[#allocation2 + $0x98] sm:$0xff] %vm411, 0.0
      %432 = vst.msk [vmem:[#allocation2 + $0xa0] sm:$0xff] %vm411, 0.0
      %433 = vst.msk [vmem:[#allocation2 + $0xa8] sm:$0xff] %vm411, 0.0
      %434 = vst.msk [vmem:[#allocation2 + $0xb0] sm:$0xff] %vm411, 0.0
      %435 = vst.msk [vmem:[#allocation2 + $0xb8] sm:$0xff] %vm411, 0.0
      %436 = vst.msk [vmem:[#allocation2 + $0xc0] sm:$0xff] %vm411, 0.0
      %437 = vst.msk [vmem:[#allocation2 + $0xc8] sm:$0xff] %vm411, 0.0
      %438 = vst.msk [vmem:[#allocation2 + $0xd0] sm:$0xff] %vm411, 0.0
      %439 = vst.msk [vmem:[#allocation2 + $0xd8] sm:$0xff] %vm411, 0.0
      %440 = vst.msk [vmem:[#allocation2 + $0xe0] sm:$0xff] %vm411, 0.0
      %441 = vst.msk [vmem:[#allocation2 + $0xe8] sm:$0xff] %vm411, 0.0
      %442 = vst.msk [vmem:[#allocation2 + $0xf0] sm:$0xff] %vm411, 0.0
      %443 = vst.msk [vmem:[#allocation2 + $0xf8] sm:$0xff] %vm411, 0.0
      %444 = vst.msk [vmem:[#allocation2 + $0x100] sm:$0xff] %vm411, 0.0
      %445 = vst.msk [vmem:[#allocation2 + $0x108] sm:$0xff] %vm411, 0.0
      %446 = vst.msk [vmem:[#allocation2 + $0x110] sm:$0xff] %vm411, 0.0
      %447 = vst.msk [vmem:[#allocation2 + $0x118] sm:$0xff] %vm411, 0.0
      %448 = vst.msk [vmem:[#allocation2 + $0x120] sm:$0xff] %vm411, 0.0
      %449 = vst.msk [vmem:[#allocation2 + $0x128] sm:$0xff] %vm411, 0.0
      %450 = vst.msk [vmem:[#allocation2 + $0x130] sm:$0xff] %vm411, 0.0
      %451 = vst.msk [vmem:[#allocation2 + $0x138] sm:$0xff] %vm411, 0.0
      %452 = vst.msk [vmem:[#allocation2 + $0x140] sm:$0xff] %vm411, 0.0
      %453 = vst.msk [vmem:[#allocation2 + $0x148] sm:$0xff] %vm411, 0.0
      %454 = vst.msk [vmem:[#allocation2 + $0x150] sm:$0xff] %vm411, 0.0
      %455 = vst.msk [vmem:[#allocation2 + $0x158] sm:$0xff] %vm411, 0.0
      %456 = vst.msk [vmem:[#allocation2 + $0x160] sm:$0xff] %vm411, 0.0
      %457 = vst.msk [vmem:[#allocation2 + $0x168] sm:$0xff] %vm411, 0.0
      %458 = vst.msk [vmem:[#allocation2 + $0x170] sm:$0xff] %vm411, 0.0
      %459 = vst.msk [vmem:[#allocation2 + $0x178] sm:$0xff] %vm411, 0.0
      %460 = vst.msk [vmem:[#allocation2 + $0x180] sm:$0xff] %vm411, 0.0
      %461 = vst.msk [vmem:[#allocation2 + $0x188] sm:$0xff] %vm411, 0.0
      %462 = vst.msk [vmem:[#allocation2 + $0x190] sm:$0xff] %vm411, 0.0
      %463 = vst.msk [vmem:[#allocation2 + $0x198] sm:$0xff] %vm411, 0.0
      %464 = vst.msk [vmem:[#allocation2 + $0x1a0] sm:$0xff] %vm411, 0.0
      %465 = vst.msk [vmem:[#allocation2 + $0x1a8] sm:$0xff] %vm411, 0.0
      %466 = vst.msk [vmem:[#allocation2 + $0x1b0] sm:$0xff] %vm411, 0.0
      %467 = vst.msk [vmem:[#allocation2 + $0x1b8] sm:$0xff] %vm411, 0.0
      %468 = vst.msk [vmem:[#allocation2 + $0x1c0] sm:$0xff] %vm411, 0.0
      %469 = vst.msk [vmem:[#allocation2 + $0x1c8] sm:$0xff] %vm411, 0.0
      %470 = vst.msk [vmem:[#allocation2 + $0x1d0] sm:$0xff] %vm411, 0.0
      %471 = vst.msk [vmem:[#allocation2 + $0x1d8] sm:$0xff] %vm411, 0.0
      %472 = vst.msk [vmem:[#allocation2 + $0x1e0] sm:$0xff] %vm411, 0.0
      %473 = vst.msk [vmem:[#allocation2 + $0x1e8] sm:$0xff] %vm411, 0.0
      %474 = vst.msk [vmem:[#allocation2 + $0x1f0] sm:$0xff] %vm411, 0.0
      %475 = vst.msk [vmem:[#allocation2 + $0x1f8] sm:$0xff] %vm411, 0.0
      %476 = vst.msk [vmem:[#allocation2 + $0x200] sm:$0xff] %vm411, 0.0
      %477 = vst.msk [vmem:[#allocation2 + $0x208] sm:$0xff] %vm411, 0.0
      %478 = vst.msk [vmem:[#allocation2 + $0x210] sm:$0xff] %vm411, 0.0
      %479 = vst.msk [vmem:[#allocation2 + $0x218] sm:$0xff] %vm411, 0.0
      %480 = vst.msk [vmem:[#allocation2 + $0x220] sm:$0xff] %vm411, 0.0
      %481 = vst.msk [vmem:[#allocation2 + $0x228] sm:$0xff] %vm411, 0.0
      %482 = vst.msk [vmem:[#allocation2 + $0x230] sm:$0xff] %vm411, 0.0
      %483 = vst.msk [vmem:[#allocation2 + $0x238] sm:$0xff] %vm411, 0.0
      %s484 = scalar_lea.vmem [#allocation2], 32
      %485 = vst.msk [vmem:[%s484 + $0x8] sm:$0xff] %vm411, %v379
      %486 = vst.msk [vmem:[%s484 + $0x10] sm:$0xff] %vm411, %v380
      %487 = vst.msk [vmem:[%s484 + $0x28] sm:$0xff] %vm411, %v381
      %488 = vst.msk [vmem:[%s484 + $0x30] sm:$0xff] %vm411, %v382
      %489 = vst.msk [vmem:[%s484 + $0x48] sm:$0xff] %vm411, %v383
      %490 = vst.msk [vmem:[%s484 + $0x50] sm:$0xff] %vm411, %v384
      %491 = vst.msk [vmem:[%s484 + $0x68] sm:$0xff] %vm411, %v385
      %492 = vst.msk [vmem:[%s484 + $0x70] sm:$0xff] %vm411, %v386
      %493 = vst.msk [vmem:[%s484 + $0x88] sm:$0xff] %vm411, %v387
      %494 = vst.msk [vmem:[%s484 + $0x90] sm:$0xff] %vm411, %v388
      %495 = vst.msk [vmem:[%s484 + $0xa8] sm:$0xff] %vm411, %v389
      %496 = vst.msk [vmem:[%s484 + $0xb0] sm:$0xff] %vm411, %v390
      %497 = vst.msk [vmem:[%s484 + $0xc8] sm:$0xff] %vm411, %v391
      %498 = vst.msk [vmem:[%s484 + $0xd0] sm:$0xff] %vm411, %v392
      %499 = vst.msk [vmem:[%s484 + $0xe8] sm:$0xff] %vm411, %v393
      %500 = vst.msk [vmem:[%s484 + $0xf0] sm:$0xff] %vm411, %v394
      %501 = vst.msk [vmem:[%s484 + $0x108] sm:$0xff] %vm411, %v395
      %502 = vst.msk [vmem:[%s484 + $0x110] sm:$0xff] %vm411, %v396
      %503 = vst.msk [vmem:[%s484 + $0x128] sm:$0xff] %vm411, %v397
      %504 = vst.msk [vmem:[%s484 + $0x130] sm:$0xff] %vm411, %v398
      %505 = vst.msk [vmem:[%s484 + $0x148] sm:$0xff] %vm411, %v399
      %506 = vst.msk [vmem:[%s484 + $0x150] sm:$0xff] %vm411, %v400
      %507 = vst.msk [vmem:[%s484 + $0x168] sm:$0xff] %vm411, %v401
      %508 = vst.msk [vmem:[%s484 + $0x170] sm:$0xff] %vm411, %v402
      %509 = vst.msk [vmem:[%s484 + $0x188] sm:$0xff] %vm411, %v403
      %510 = vst.msk [vmem:[%s484 + $0x190] sm:$0xff] %vm411, %v404
      %511 = vst.msk [vmem:[%s484 + $0x1a8] sm:$0xff] %vm411, %v405
      %512 = vst.msk [vmem:[%s484 + $0x1b0] sm:$0xff] %vm411, %v406
      %513 = vst.msk [vmem:[%s484 + $0x1c8] sm:$0xff] %vm411, %v407
      %514 = vst.msk [vmem:[%s484 + $0x1d0] sm:$0xff] %vm411, %v408
      %515 = vst.msk [vmem:[%s484 + $0x1e8] sm:$0xff] %vm411, %v409
      %516 = vst.msk [vmem:[%s484 + $0x1f0] sm:$0xff] %vm411, %v410
      %v517 = vld [vmem:[#allocation2] sm:$0xff]
      %v518 = vld [vmem:[#allocation2 + $0x8] sm:$0xff]
      %v519 = vld [vmem:[#allocation2 + $0x10] sm:$0xff]
      %v520 = vld [vmem:[#allocation2 + $0x18] sm:$0xff]
      %v521 = vld [vmem:[#allocation2 + $0x20] sm:$0xff]
      %v522 = vld [vmem:[#allocation2 + $0x28] sm:$0xff]
      %v523 = vld [vmem:[#allocation2 + $0x30] sm:$0xff]
      %v524 = vld [vmem:[#allocation2 + $0x38] sm:$0xff]
      %v525 = vld [vmem:[#allocation2 + $0x40] sm:$0xff]
      %v526 = vld [vmem:[#allocation2 + $0x48] sm:$0xff]
      %v527 = vld [vmem:[#allocation2 + $0x50] sm:$0xff]
      %v528 = vld [vmem:[#allocation2 + $0x58] sm:$0xff]
      %v529 = vld [vmem:[#allocation2 + $0x60] sm:$0xff]
      %v530 = vld [vmem:[#allocation2 + $0x68] sm:$0xff]
      %v531 = vld [vmem:[#allocation2 + $0x70] sm:$0xff]
      %v532 = vld [vmem:[#allocation2 + $0x78] sm:$0xff]
      %v533 = vld [vmem:[#allocation2 + $0x80] sm:$0xff]
      %v534 = vld [vmem:[#allocation2 + $0x88] sm:$0xff]
      %v535 = vld [vmem:[#allocation2 + $0x90] sm:$0xff]
      %v536 = vld [vmem:[#allocation2 + $0x98] sm:$0xff]
      %v537 = vld [vmem:[#allocation2 + $0xa0] sm:$0xff]
      %v538 = vld [vmem:[#allocation2 + $0xa8] sm:$0xff]
      %v539 = vld [vmem:[#allocation2 + $0xb0] sm:$0xff]
      %v540 = vld [vmem:[#allocation2 + $0xb8] sm:$0xff]
      %v541 = vld [vmem:[#allocation2 + $0xc0] sm:$0xff]
      %v542 = vld [vmem:[#allocation2 + $0xc8] sm:$0xff]
      %v543 = vld [vmem:[#allocation2 + $0xd0] sm:$0xff]
      %v544 = vld [vmem:[#allocation2 + $0xd8] sm:$0xff]
      %v545 = vld [vmem:[#allocation2 + $0xe0] sm:$0xff]
      %v546 = vld [vmem:[#allocation2 + $0xe8] sm:$0xff]
      %v547 = vld [vmem:[#allocation2 + $0xf0] sm:$0xff]
      %v548 = vld [vmem:[#allocation2 + $0xf8] sm:$0xff]
      %v549 = vld [vmem:[#allocation2 + $0x100] sm:$0xff]
      %v550 = vld [vmem:[#allocation2 + $0x108] sm:$0xff]
      %v551 = vld [vmem:[#allocation2 + $0x110] sm:$0xff]
      %v552 = vld [vmem:[#allocation2 + $0x118] sm:$0xff]
      %v553 = vld [vmem:[#allocation2 + $0x120] sm:$0xff]
      %v554 = vld [vmem:[#allocation2 + $0x128] sm:$0xff]
      %v555 = vld [vmem:[#allocation2 + $0x130] sm:$0xff]
      %v556 = vld [vmem:[#allocation2 + $0x138] sm:$0xff]
      %v557 = vld [vmem:[#allocation2 + $0x140] sm:$0xff]
      %v558 = vld [vmem:[#allocation2 + $0x148] sm:$0xff]
      %v559 = vld [vmem:[#allocation2 + $0x150] sm:$0xff]
      %v560 = vld [vmem:[#allocation2 + $0x158] sm:$0xff]
      %v561 = vld [vmem:[#allocation2 + $0x160] sm:$0xff]
      %v562 = vld [vmem:[#allocation2 + $0x168] sm:$0xff]
      %v563 = vld [vmem:[#allocation2 + $0x170] sm:$0xff]
      %v564 = vld [vmem:[#allocation2 + $0x178] sm:$0xff]
      %v565 = vld [vmem:[#allocation2 + $0x180] sm:$0xff]
      %v566 = vld [vmem:[#allocation2 + $0x188] sm:$0xff]
      %v567 = vld [vmem:[#allocation2 + $0x190] sm:$0xff]
      %v568 = vld [vmem:[#allocation2 + $0x198] sm:$0xff]
      %v569 = vld [vmem:[#allocation2 + $0x1a0] sm:$0xff]
      %v570 = vld [vmem:[#allocation2 + $0x1a8] sm:$0xff]
      %v571 = vld [vmem:[#allocation2 + $0x1b0] sm:$0xff]
      %v572 = vld [vmem:[#allocation2 + $0x1b8] sm:$0xff]
      %v573 = vld [vmem:[#allocation2 + $0x1c0] sm:$0xff]
      %v574 = vld [vmem:[#allocation2 + $0x1c8] sm:$0xff]
      %v575 = vld [vmem:[#allocation2 + $0x1d0] sm:$0xff]
      %v576 = vld [vmem:[#allocation2 + $0x1d8] sm:$0xff]
      %v577 = vld [vmem:[#allocation2 + $0x1e0] sm:$0xff]
      %v578 = vld [vmem:[#allocation2 + $0x1e8] sm:$0xff]
      %v579 = vld [vmem:[#allocation2 + $0x1f0] sm:$0xff]
      %v580 = vld [vmem:[#allocation2 + $0x1f8] sm:$0xff]
      %v581 = vld [vmem:[#allocation2 + $0x200] sm:$0xff]
      %v582 = vld [vmem:[#allocation2 + $0x208] sm:$0xff]
      %v583 = vld [vmem:[#allocation2 + $0x210] sm:$0xff]
      %v584 = vld [vmem:[#allocation2 + $0x218] sm:$0xff]
      %v585 = vld [vmem:[#allocation2 + $0x220] sm:$0xff]
      %v586 = vld [vmem:[#allocation2 + $0x228] sm:$0xff]
      %v587 = vld [vmem:[#allocation2 + $0x230] sm:$0xff]
      %v588 = vld [vmem:[#allocation2 + $0x238] sm:$0xff]
      %vm637 = vcmask 1040384
      %v638 = vrot.slane %v517, 7
      %v639 = vrot.slane %v518, 7
      %v640 = vsel %vm637, %v638, %v639
      %v641 = vrot.slane %v519, 7
      %v642 = vsel %vm637, %v639, %v641
      %v643 = vrot.slane %v521, 7
      %v644 = vrot.slane %v522, 7
      %v645 = vsel %vm637, %v643, %v644
      %v646 = vrot.slane %v523, 7
      %v647 = vsel %vm637, %v644, %v646
      %v648 = vrot.slane %v525, 7
      %v649 = vrot.slane %v526, 7
      %v650 = vsel %vm637, %v648, %v649
      %v651 = vrot.slane %v527, 7
      %v652 = vsel %vm637, %v649, %v651
      %v653 = vrot.slane %v529, 7
      %v654 = vrot.slane %v530, 7
      %v655 = vsel %vm637, %v653, %v654
      %v656 = vrot.slane %v531, 7
      %v657 = vsel %vm637, %v654, %v656
      %v658 = vrot.slane %v533, 7
      %v659 = vrot.slane %v534, 7
      %v660 = vsel %vm637, %v658, %v659
      %v661 = vrot.slane %v535, 7
      %v662 = vsel %vm637, %v659, %v661
      %v663 = vrot.slane %v537, 7
      %v664 = vrot.slane %v538, 7
      %v665 = vsel %vm637, %v663, %v664
      %v666 = vrot.slane %v539, 7
      %v667 = vsel %vm637, %v664, %v666
      %v668 = vrot.slane %v541, 7
      %v669 = vrot.slane %v542, 7
      %v670 = vsel %vm637, %v668, %v669
      %v671 = vrot.slane %v543, 7
      %v672 = vsel %vm637, %v669, %v671
      %v673 = vrot.slane %v545, 7
      %v674 = vrot.slane %v546, 7
      %v675 = vsel %vm637, %v673, %v674
      %v676 = vrot.slane %v547, 7
      %v677 = vsel %vm637, %v674, %v676
      %v678 = vrot.slane %v549, 7
      %v679 = vrot.slane %v550, 7
      %v680 = vsel %vm637, %v678, %v679
      %v681 = vrot.slane %v551, 7
      %v682 = vsel %vm637, %v679, %v681
      %v683 = vrot.slane %v553, 7
      %v684 = vrot.slane %v554, 7
      %v685 = vsel %vm637, %v683, %v684
      %v686 = vrot.slane %v555, 7
      %v687 = vsel %vm637, %v684, %v686
      %v688 = vrot.slane %v557, 7
      %v689 = vrot.slane %v558, 7
      %v690 = vsel %vm637, %v688, %v689
      %v691 = vrot.slane %v559, 7
      %v692 = vsel %vm637, %v689, %v691
      %v693 = vrot.slane %v561, 7
      %v694 = vrot.slane %v562, 7
      %v695 = vsel %vm637, %v693, %v694
      %v696 = vrot.slane %v563, 7
      %v697 = vsel %vm637, %v694, %v696
      %v698 = vrot.slane %v565, 7
      %v699 = vrot.slane %v566, 7
      %v700 = vsel %vm637, %v698, %v699
      %v701 = vrot.slane %v567, 7
      %v702 = vsel %vm637, %v699, %v701
      %v703 = vrot.slane %v569, 7
      %v704 = vrot.slane %v570, 7
      %v705 = vsel %vm637, %v703, %v704
      %v706 = vrot.slane %v571, 7
      %v707 = vsel %vm637, %v704, %v706
      %v708 = vrot.slane %v573, 7
      %v709 = vrot.slane %v574, 7
      %v710 = vsel %vm637, %v708, %v709
      %v711 = vrot.slane %v575, 7
      %v712 = vsel %vm637, %v709, %v711
      %v713 = vrot.slane %v577, 7
      %v714 = vrot.slane %v578, 7
      %v715 = vsel %vm637, %v713, %v714
      %v716 = vrot.slane %v579, 7
      %v717 = vsel %vm637, %v714, %v716
      %v718 = vld [vmem:[%s1] sm:$0xff]
      %s719 = scalar_lea.vmem %s1, 8
      %v720 = vld [vmem:[%s719] sm:$0xff]
      %v721 = vsel %vm411, %v518, 0
      %v723 = vsel %vm411, %v519, 0
      %v725 = vsel %vm411, %v522, 0
      %v727 = vsel %vm411, %v523, 0
      %v729 = vsel %vm411, %v526, 0
      %v731 = vsel %vm411, %v527, 0
      %v733 = vsel %vm411, %v530, 0
      %v735 = vsel %vm411, %v531, 0
      %v737 = vsel %vm411, %v534, 0
      %v739 = vsel %vm411, %v535, 0
      %v741 = vsel %vm411, %v538, 0
      %v743 = vsel %vm411, %v539, 0
      %v745 = vsel %vm411, %v542, 0
      %v747 = vsel %vm411, %v543, 0
      %v749 = vsel %vm411, %v546, 0
      %v751 = vsel %vm411, %v547, 0
      %v753 = vsel %vm411, %v550, 0
      %v755 = vsel %vm411, %v551, 0
      %v757 = vsel %vm411, %v554, 0
      %v759 = vsel %vm411, %v555, 0
      %v761 = vsel %vm411, %v558, 0
      %v763 = vsel %vm411, %v559, 0
      %v765 = vsel %vm411, %v562, 0
      %v767 = vsel %vm411, %v563, 0
      %v769 = vsel %vm411, %v566, 0
      %v771 = vsel %vm411, %v567, 0
      %v773 = vsel %vm411, %v570, 0
      %v775 = vsel %vm411, %v571, 0
      %v777 = vsel %vm411, %v574, 0
      %v779 = vsel %vm411, %v575, 0
      %v781 = vsel %vm411, %v578, 0
      %v783 = vsel %vm411, %v579, 0
      %785 = vmatprep.subr.mxu0 0.0
      %786 = vmatpush1.msra.mxu0 %v720
      %787 = vmatprep.subr.mxu0 0.0
      %788 = vmatpush1.msra.mxu0 0.0
      %789 = vmatprep.subr.mxu0 0.0
      %790 = vmatpush1.msra.mxu0 0.0
      %791 = vmatprep.subr.mxu0 0.0
      %792 = vmatpush1.msra.mxu0 0.0
      %793 = vmatprep.subr.mxu0 0.0
      %794 = vmatpush1.msra.mxu0 0.0
      %795 = vmatprep.subr.mxu0 0.0
      %796 = vmatpush1.msra.mxu0 0.0
      %797 = vmatprep.subr.mxu0 0.0
      %798 = vmatpush1.msra.mxu0 0.0
      %799 = vmatprep.subr.mxu0 0.0
      %800 = vmatpush1.msra.mxu0 0.0
      %801 = vmatprep.subr.mxu0 0.0
      %802 = vmatpush1.msra.mxu0 0.0
      %803 = vmatprep.subr.mxu0 0.0
      %804 = vmatpush1.msra.mxu0 0.0
      %805 = vmatprep.subr.mxu0 0.0
      %806 = vmatpush1.msra.mxu0 0.0
      %807 = vmatprep.subr.mxu0 0.0
      %808 = vmatpush1.msra.mxu0 0.0
      %809 = vmatprep.subr.mxu0 0.0
      %810 = vmatpush1.msra.mxu0 0.0
      %811 = vmatprep.subr.mxu0 0.0
      %812 = vmatpush1.msra.mxu0 0.0
      %813 = vmatprep.subr.mxu0 0.0
      %814 = vmatpush1.msra.mxu0 0.0
      %815 = vmatprep.subr.mxu0 0.0
      %816 = vmatpush1.msra.mxu0 0.0
      %817 = vmatprep.subr.mxu0 0.0
      %818 = vmatpush1.msra.mxu0 0.0
      %819 = vmatprep.subr.mxu0 0.0
      %820 = vmatpush1.msra.mxu0 0.0
      %821 = vmatprep.subr.mxu0 0.0
      %822 = vmatpush1.msra.mxu0 0.0
      %823 = vmatprep.subr.mxu0 0.0
      %824 = vmatpush1.msra.mxu0 0.0
      %825 = vmatprep.subr.mxu0 0.0
      %826 = vmatpush1.msra.mxu0 0.0
      %827 = vmatprep.subr.mxu0 0.0
      %828 = vmatpush1.msra.mxu0 0.0
      %829 = vmatprep.subr.mxu0 0.0
      %830 = vmatpush1.msra.mxu0 0.0
      %831 = vmatprep.subr.mxu0 0.0
      %832 = vmatpush1.msra.mxu0 0.0
      %833 = vmatprep.subr.mxu0 0.0
      %834 = vmatpush1.msra.mxu0 0.0
      %835 = vmatprep.subr.mxu0 0.0
      %836 = vmatpush1.msra.mxu0 0.0
      %837 = vmatprep.subr.mxu0 0.0
      %838 = vmatpush1.msra.mxu0 0.0
      %839 = vmatprep.subr.mxu0 0.0
      %840 = vmatpush1.msra.mxu0 0.0
      %841 = vmatprep.subr.mxu0 0.0
      %842 = vmatpush1.msra.mxu0 0.0
      %843 = vmatprep.subr.mxu0 0.0
      %844 = vmatpush1.msra.mxu0 0.0
      %845 = vmatprep.subr.mxu0 0.0
      %846 = vmatpush1.msra.mxu0 0.0
      %847 = vmatprep.subr.mxu0 0.0
      %848 = vmatpush1.msra.mxu0 0.0
      %849 = vmatprep.mubr.f32.mxu0 0.0
      %850 = vmatmul.mubr.f32.gmra.mrb[0].mxu0 %v721
      %v851 = vpop.f32.mrb[0].mxu0
      %v852 = vadd.f32 0.0, %v851
      %v853 = vpop.f32.mrb[0].mxu0
      %854 = vmatprep.mubr.f32.mxu0 0.0
      %855 = vmatmul.mubr.f32.gmra.mrb[0].mxu0 %v723
      %v856 = vpop.f32.mrb[0].mxu0
      %v857 = vadd.f32 0.0, %v856
      %v858 = vpop.f32.mrb[0].mxu0
      %859 = vmatprep.mubr.f32.mxu0 0.0
      %860 = vmatmul.mubr.f32.gmra.mrb[0].mxu0 %v725
      %v861 = vpop.f32.mrb[0].mxu0
      %v862 = vadd.f32 0.0, %v861
      %v863 = vpop.f32.mrb[0].mxu0
      %864 = vmatprep.mubr.f32.mxu0 0.0
      %865 = vmatmul.mubr.f32.gmra.mrb[0].mxu0 %v727
      %v866 = vpop.f32.mrb[0].mxu0
      %v867 = vadd.f32 0.0, %v866
      %v868 = vpop.f32.mrb[0].mxu0
      %869 = vmatprep.mubr.f32.mxu0 0.0
      %870 = vmatmul.mubr.f32.gmra.mrb[0].mxu0 %v729
      %v871 = vpop.f32.mrb[0].mxu0
      %v872 = vadd.f32 0.0, %v871
      %v873 = vpop.f32.mrb[0].mxu0
      %874 = vmatprep.mubr.f32.mxu0 0.0
      %875 = vmatmul.mubr.f32.gmra.mrb[0].mxu0 %v731
      %v876 = vpop.f32.mrb[0].mxu0
      %v877 = vadd.f32 0.0, %v876
      %v878 = vpop.f32.mrb[0].mxu0
      %879 = vmatprep.mubr.f32.mxu0 0.0
      %880 = vmatmul.mubr.f32.gmra.mrb[0].mxu0 %v733
      %v881 = vpop.f32.mrb[0].mxu0
      %v882 = vadd.f32 0.0, %v881
      %v883 = vpop.f32.mrb[0].mxu0
      %884 = vmatprep.mubr.f32.mxu0 0.0
      %885 = vmatmul.mubr.f32.gmra.mrb[0].mxu0 %v735
      %v886 = vpop.f32.mrb[0].mxu0
      %v887 = vadd.f32 0.0, %v886
      %v888 = vpop.f32.mrb[0].mxu0
      %889 = vmatprep.mubr.f32.mxu0 0.0
      %890 = vmatmul.mubr.f32.gmra.mrb[0].mxu0 %v737
      %v891 = vpop.f32.mrb[0].mxu0
      %v892 = vadd.f32 0.0, %v891
      %v893 = vpop.f32.mrb[0].mxu0
      %894 = vmatprep.mubr.f32.mxu0 0.0
      %895 = vmatmul.mubr.f32.gmra.mrb[0].mxu0 %v739
      %v896 = vpop.f32.mrb[0].mxu0
      %v897 = vadd.f32 0.0, %v896
      %v898 = vpop.f32.mrb[0].mxu0
      %899 = vmatprep.mubr.f32.mxu0 0.0
      %900 = vmatmul.mubr.f32.gmra.mrb[0].mxu0 %v741
      %v901 = vpop.f32.mrb[0].mxu0
      %v902 = vadd.f32 0.0, %v901
      %v903 = vpop.f32.mrb[0].mxu0
      %904 = vmatprep.mubr.f32.mxu0 0.0
      %905 = vmatmul.mubr.f32.gmra.mrb[0].mxu0 %v743
      %v906 = vpop.f32.mrb[0].mxu0
      %v907 = vadd.f32 0.0, %v906
      %v908 = vpop.f32.mrb[0].mxu0
      %909 = vmatprep.mubr.f32.mxu0 0.0
      %910 = vmatmul.mubr.f32.gmra.mrb[0].mxu0 %v745
      %v911 = vpop.f32.mrb[0].mxu0
      %v912 = vadd.f32 0.0, %v911
      %v913 = vpop.f32.mrb[0].mxu0
      %914 = vmatprep.mubr.f32.mxu0 0.0
      %915 = vmatmul.mubr.f32.gmra.mrb[0].mxu0 %v747
      %v916 = vpop.f32.mrb[0].mxu0
      %v917 = vadd.f32 0.0, %v916
      %v918 = vpop.f32.mrb[0].mxu0
      %919 = vmatprep.mubr.f32.mxu0 0.0
      %920 = vmatmul.mubr.f32.gmra.mrb[0].mxu0 %v749
      %v921 = vpop.f32.mrb[0].mxu0
      %v922 = vadd.f32 0.0, %v921
      %v923 = vpop.f32.mrb[0].mxu0
      %924 = vmatprep.mubr.f32.mxu0 0.0
      %925 = vmatmul.mubr.f32.gmra.mrb[0].mxu0 %v751
      %v926 = vpop.f32.mrb[0].mxu0
      %v927 = vadd.f32 0.0, %v926
      %v928 = vpop.f32.mrb[0].mxu0
      %929 = vmatprep.mubr.f32.mxu0 0.0
      %930 = vmatmul.mubr.f32.gmra.mrb[0].mxu0 %v753
      %v931 = vpop.f32.mrb[0].mxu0
      %v932 = vadd.f32 0.0, %v931
      %v933 = vpop.f32.mrb[0].mxu0
      %934 = vmatprep.mubr.f32.mxu0 0.0
      %935 = vmatmul.mubr.f32.gmra.mrb[0].mxu0 %v755
      %v936 = vpop.f32.mrb[0].mxu0
      %v937 = vadd.f32 0.0, %v936
      %v938 = vpop.f32.mrb[0].mxu0
      %939 = vmatprep.mubr.f32.mxu0 0.0
      %940 = vmatmul.mubr.f32.gmra.mrb[0].mxu0 %v757
      %v941 = vpop.f32.mrb[0].mxu0
      %v942 = vadd.f32 0.0, %v941
      %v943 = vpop.f32.mrb[0].mxu0
      %944 = vmatprep.mubr.f32.mxu0 0.0
      %945 = vmatmul.mubr.f32.gmra.mrb[0].mxu0 %v759
      %v946 = vpop.f32.mrb[0].mxu0
      %v947 = vadd.f32 0.0, %v946
      %v948 = vpop.f32.mrb[0].mxu0
      %949 = vmatprep.mubr.f32.mxu0 0.0
      %950 = vmatmul.mubr.f32.gmra.mrb[0].mxu0 %v761
      %v951 = vpop.f32.mrb[0].mxu0
      %v952 = vadd.f32 0.0, %v951
      %v953 = vpop.f32.mrb[0].mxu0
      %954 = vmatprep.mubr.f32.mxu0 0.0
      %955 = vmatmul.mubr.f32.gmra.mrb[0].mxu0 %v763
      %v956 = vpop.f32.mrb[0].mxu0
      %v957 = vadd.f32 0.0, %v956
      %v958 = vpop.f32.mrb[0].mxu0
      %959 = vmatprep.mubr.f32.mxu0 0.0
      %960 = vmatmul.mubr.f32.gmra.mrb[0].mxu0 %v765
      %v961 = vpop.f32.mrb[0].mxu0
      %v962 = vadd.f32 0.0, %v961
      %v963 = vpop.f32.mrb[0].mxu0
      %964 = vmatprep.mubr.f32.mxu0 0.0
      %965 = vmatmul.mubr.f32.gmra.mrb[0].mxu0 %v767
      %v966 = vpop.f32.mrb[0].mxu0
      %v967 = vadd.f32 0.0, %v966
      %v968 = vpop.f32.mrb[0].mxu0
      %969 = vmatprep.mubr.f32.mxu0 0.0
      %970 = vmatmul.mubr.f32.gmra.mrb[0].mxu0 %v769
      %v971 = vpop.f32.mrb[0].mxu0
      %v972 = vadd.f32 0.0, %v971
      %v973 = vpop.f32.mrb[0].mxu0
      %974 = vmatprep.mubr.f32.mxu0 0.0
      %975 = vmatmul.mubr.f32.gmra.mrb[0].mxu0 %v771
      %v976 = vpop.f32.mrb[0].mxu0
      %v977 = vadd.f32 0.0, %v976
      %v978 = vpop.f32.mrb[0].mxu0
      %979 = vmatprep.mubr.f32.mxu0 0.0
      %980 = vmatmul.mubr.f32.gmra.mrb[0].mxu0 %v773
      %v981 = vpop.f32.mrb[0].mxu0
      %v982 = vadd.f32 0.0, %v981
      %v983 = vpop.f32.mrb[0].mxu0
      %984 = vmatprep.mubr.f32.mxu0 0.0
      %985 = vmatmul.mubr.f32.gmra.mrb[0].mxu0 %v775
      %v986 = vpop.f32.mrb[0].mxu0
      %v987 = vadd.f32 0.0, %v986
      %v988 = vpop.f32.mrb[0].mxu0
      %989 = vmatprep.mubr.f32.mxu0 0.0
      %990 = vmatmul.mubr.f32.gmra.mrb[0].mxu0 %v777
      %v991 = vpop.f32.mrb[0].mxu0
      %v992 = vadd.f32 0.0, %v991
      %v993 = vpop.f32.mrb[0].mxu0
      %994 = vmatprep.mubr.f32.mxu0 0.0
      %995 = vmatmul.mubr.f32.gmra.mrb[0].mxu0 %v779
      %v996 = vpop.f32.mrb[0].mxu0
      %v997 = vadd.f32 0.0, %v996
      %v998 = vpop.f32.mrb[0].mxu0
      %999 = vmatprep.mubr.f32.mxu0 0.0
      %1000 = vmatmul.mubr.f32.gmra.mrb[0].mxu0 %v781
      %v1001 = vpop.f32.mrb[0].mxu0
      %v1002 = vadd.f32 0.0, %v1001
      %v1003 = vpop.f32.mrb[0].mxu0
      %1004 = vmatprep.mubr.f32.mxu0 0.0
      %1005 = vmatmul.mubr.f32.gmra.mrb[0].mxu0 %v783
      %v1006 = vpop.f32.mrb[0].mxu0
      %v1007 = vadd.f32 0.0, %v1006
      %v1008 = vpop.f32.mrb[0].mxu0
      %1009 = vdwg.mxu0
      %v1010 = vsel %vm411, %v640, 0
      %v1012 = vsel %vm411, %v642, 0
      %v1014 = vsel %vm411, %v645, 0
      %v1016 = vsel %vm411, %v647, 0
      %v1018 = vsel %vm411, %v650, 0
      %v1020 = vsel %vm411, %v652, 0
      %v1022 = vsel %vm411, %v655, 0
      %v1024 = vsel %vm411, %v657, 0
      %v1026 = vsel %vm411, %v660, 0
      %v1028 = vsel %vm411, %v662, 0
      %v1030 = vsel %vm411, %v665, 0
      %v1032 = vsel %vm411, %v667, 0
      %v1034 = vsel %vm411, %v670, 0
      %v1036 = vsel %vm411, %v672, 0
      %v1038 = vsel %vm411, %v675, 0
      %v1040 = vsel %vm411, %v677, 0
      %v1042 = vsel %vm411, %v680, 0
      %v1044 = vsel %vm411, %v682, 0
      %v1046 = vsel %vm411, %v685, 0
      %v1048 = vsel %vm411, %v687, 0
      %v1050 = vsel %vm411, %v690, 0
      %v1052 = vsel %vm411, %v692, 0
      %v1054 = vsel %vm411, %v695, 0
      %v1056 = vsel %vm411, %v697, 0
      %v1058 = vsel %vm411, %v700, 0
      %v1060 = vsel %vm411, %v702, 0
      %v1062 = vsel %vm411, %v705, 0
      %v1064 = vsel %vm411, %v707, 0
      %v1066 = vsel %vm411, %v710, 0
      %v1068 = vsel %vm411, %v712, 0
      %v1070 = vsel %vm411, %v715, 0
      %v1072 = vsel %vm411, %v717, 0
      %1074 = vmatprep.subr.mxu0 0.0
      %1075 = vmatpush1.msra.mxu0 %v718
      %1076 = vmatprep.subr.mxu0 0.0
      %1077 = vmatpush1.msra.mxu0 0.0
      %1078 = vmatprep.subr.mxu0 0.0
      %1079 = vmatpush1.msra.mxu0 0.0
      %1080 = vmatprep.subr.mxu0 0.0
      %1081 = vmatpush1.msra.mxu0 0.0
      %1082 = vmatprep.subr.mxu0 0.0
      %1083 = vmatpush1.msra.mxu0 0.0
      %1084 = vmatprep.subr.mxu0 0.0
      %1085 = vmatpush1.msra.mxu0 0.0
      %1086 = vmatprep.subr.mxu0 0.0
      %1087 = vmatpush1.msra.mxu0 0.0
      %1088 = vmatprep.subr.mxu0 0.0
      %1089 = vmatpush1.msra.mxu0 0.0
      %1090 = vmatprep.subr.mxu0 0.0
      %1091 = vmatpush1.msra.mxu0 0.0
      %1092 = vmatprep.subr.mxu0 0.0
      %1093 = vmatpush1.msra.mxu0 0.0
      %1094 = vmatprep.subr.mxu0 0.0
      %1095 = vmatpush1.msra.mxu0 0.0
      %1096 = vmatprep.subr.mxu0 0.0
      %1097 = vmatpush1.msra.mxu0 0.0
      %1098 = vmatprep.subr.mxu0 0.0
      %1099 = vmatpush1.msra.mxu0 0.0
      %1100 = vmatprep.subr.mxu0 0.0
      %1101 = vmatpush1.msra.mxu0 0.0
      %1102 = vmatprep.subr.mxu0 0.0
      %1103 = vmatpush1.msra.mxu0 0.0
      %1104 = vmatprep.subr.mxu0 0.0
      %1105 = vmatpush1.msra.mxu0 0.0
      %1106 = vmatprep.subr.mxu0 0.0
      %1107 = vmatpush1.msra.mxu0 0.0
      %1108 = vmatprep.subr.mxu0 0.0
      %1109 = vmatpush1.msra.mxu0 0.0
      %1110 = vmatprep.subr.mxu0 0.0
      %1111 = vmatpush1.msra.mxu0 0.0
      %1112 = vmatprep.subr.mxu0 0.0
      %1113 = vmatpush1.msra.mxu0 0.0
      %1114 = vmatprep.subr.mxu0 0.0
      %1115 = vmatpush1.msra.mxu0 0.0
      %1116 = vmatprep.subr.mxu0 0.0
      %1117 = vmatpush1.msra.mxu0 0.0
      %1118 = vmatprep.subr.mxu0 0.0
      %1119 = vmatpush1.msra.mxu0 0.0
      %1120 = vmatprep.subr.mxu0 0.0
      %1121 = vmatpush1.msra.mxu0 0.0
      %1122 = vmatprep.subr.mxu0 0.0
      %1123 = vmatpush1.msra.mxu0 0.0
      %1124 = vmatprep.subr.mxu0 0.0
      %1125 = vmatpush1.msra.mxu0 0.0
      %1126 = vmatprep.subr.mxu0 0.0
      %1127 = vmatpush1.msra.mxu0 0.0
      %1128 = vmatprep.subr.mxu0 0.0
      %1129 = vmatpush1.msra.mxu0 0.0
      %1130 = vmatprep.subr.mxu0 0.0
      %1131 = vmatpush1.msra.mxu0 0.0
      %1132 = vmatprep.subr.mxu0 0.0
      %1133 = vmatpush1.msra.mxu0 0.0
      %1134 = vmatprep.subr.mxu0 0.0
      %1135 = vmatpush1.msra.mxu0 0.0
      %1136 = vmatprep.subr.mxu0 0.0
      %1137 = vmatpush1.msra.mxu0 0.0
      %1138 = vmatprep.mubr.f32.mxu0 0.0
      %1139 = vmatmul.mubr.f32.gmra.mrb[0].mxu0 %v1010
      %v1140 = vpop.f32.mrb[0].mxu0
      %v1141 = vadd.f32 %v852, %v1140
      %v1142 = vpop.f32.mrb[0].mxu0
      %1143 = vmatprep.mubr.f32.mxu0 0.0
      %1144 = vmatmul.mubr.f32.gmra.mrb[0].mxu0 %v1012
      %v1145 = vpop.f32.mrb[0].mxu0
      %v1146 = vadd.f32 %v857, %v1145
      %v1147 = vpop.f32.mrb[0].mxu0
      %1148 = vmatprep.mubr.f32.mxu0 0.0
      %1149 = vmatmul.mubr.f32.gmra.mrb[0].mxu0 %v1014
      %v1150 = vpop.f32.mrb[0].mxu0
      %v1151 = vadd.f32 %v862, %v1150
      %v1152 = vpop.f32.mrb[0].mxu0
      %1153 = vmatprep.mubr.f32.mxu0 0.0
      %1154 = vmatmul.mubr.f32.gmra.mrb[0].mxu0 %v1016
      %v1155 = vpop.f32.mrb[0].mxu0
      %v1156 = vadd.f32 %v867, %v1155
      %v1157 = vpop.f32.mrb[0].mxu0
      %1158 = vmatprep.mubr.f32.mxu0 0.0
      %1159 = vmatmul.mubr.f32.gmra.mrb[0].mxu0 %v1018
      %v1160 = vpop.f32.mrb[0].mxu0
      %v1161 = vadd.f32 %v872, %v1160
      %v1162 = vpop.f32.mrb[0].mxu0
      %1163 = vmatprep.mubr.f32.mxu0 0.0
      %1164 = vmatmul.mubr.f32.gmra.mrb[0].mxu0 %v1020
      %v1165 = vpop.f32.mrb[0].mxu0
      %v1166 = vadd.f32 %v877, %v1165
      %v1167 = vpop.f32.mrb[0].mxu0
      %1168 = vmatprep.mubr.f32.mxu0 0.0
      %1169 = vmatmul.mubr.f32.gmra.mrb[0].mxu0 %v1022
      %v1170 = vpop.f32.mrb[0].mxu0
      %v1171 = vadd.f32 %v882, %v1170
      %v1172 = vpop.f32.mrb[0].mxu0
      %1173 = vmatprep.mubr.f32.mxu0 0.0
      %1174 = vmatmul.mubr.f32.gmra.mrb[0].mxu0 %v1024
      %v1175 = vpop.f32.mrb[0].mxu0
      %v1176 = vadd.f32 %v887, %v1175
      %v1177 = vpop.f32.mrb[0].mxu0
      %1178 = vmatprep.mubr.f32.mxu0 0.0
      %1179 = vmatmul.mubr.f32.gmra.mrb[0].mxu0 %v1026
      %v1180 = vpop.f32.mrb[0].mxu0
      %v1181 = vadd.f32 %v892, %v1180
      %v1182 = vpop.f32.mrb[0].mxu0
      %1183 = vmatprep.mubr.f32.mxu0 0.0
      %1184 = vmatmul.mubr.f32.gmra.mrb[0].mxu0 %v1028
      %v1185 = vpop.f32.mrb[0].mxu0
      %v1186 = vadd.f32 %v897, %v1185
      %v1187 = vpop.f32.mrb[0].mxu0
      %1188 = vmatprep.mubr.f32.mxu0 0.0
      %1189 = vmatmul.mubr.f32.gmra.mrb[0].mxu0 %v1030
      %v1190 = vpop.f32.mrb[0].mxu0
      %v1191 = vadd.f32 %v902, %v1190
      %v1192 = vpop.f32.mrb[0].mxu0
      %1193 = vmatprep.mubr.f32.mxu0 0.0
      %1194 = vmatmul.mubr.f32.gmra.mrb[0].mxu0 %v1032
      %v1195 = vpop.f32.mrb[0].mxu0
      %v1196 = vadd.f32 %v907, %v1195
      %v1197 = vpop.f32.mrb[0].mxu0
      %1198 = vmatprep.mubr.f32.mxu0 0.0
      %1199 = vmatmul.mubr.f32.gmra.mrb[0].mxu0 %v1034
      %v1200 = vpop.f32.mrb[0].mxu0
      %v1201 = vadd.f32 %v912, %v1200
      %v1202 = vpop.f32.mrb[0].mxu0
      %1203 = vmatprep.mubr.f32.mxu0 0.0
      %1204 = vmatmul.mubr.f32.gmra.mrb[0].mxu0 %v1036
      %v1205 = vpop.f32.mrb[0].mxu0
      %v1206 = vadd.f32 %v917, %v1205
      %v1207 = vpop.f32.mrb[0].mxu0
      %1208 = vmatprep.mubr.f32.mxu0 0.0
      %1209 = vmatmul.mubr.f32.gmra.mrb[0].mxu0 %v1038
      %v1210 = vpop.f32.mrb[0].mxu0
      %v1211 = vadd.f32 %v922, %v1210
      %v1212 = vpop.f32.mrb[0].mxu0
      %1213 = vmatprep.mubr.f32.mxu0 0.0
      %1214 = vmatmul.mubr.f32.gmra.mrb[0].mxu0 %v1040
      %v1215 = vpop.f32.mrb[0].mxu0
      %v1216 = vadd.f32 %v927, %v1215
      %v1217 = vpop.f32.mrb[0].mxu0
      %1218 = vmatprep.mubr.f32.mxu0 0.0
      %1219 = vmatmul.mubr.f32.gmra.mrb[0].mxu0 %v1042
      %v1220 = vpop.f32.mrb[0].mxu0
      %v1221 = vadd.f32 %v932, %v1220
      %v1222 = vpop.f32.mrb[0].mxu0
      %1223 = vmatprep.mubr.f32.mxu0 0.0
      %1224 = vmatmul.mubr.f32.gmra.mrb[0].mxu0 %v1044
      %v1225 = vpop.f32.mrb[0].mxu0
      %v1226 = vadd.f32 %v937, %v1225
      %v1227 = vpop.f32.mrb[0].mxu0
      %1228 = vmatprep.mubr.f32.mxu0 0.0
      %1229 = vmatmul.mubr.f32.gmra.mrb[0].mxu0 %v1046
      %v1230 = vpop.f32.mrb[0].mxu0
      %v1231 = vadd.f32 %v942, %v1230
      %v1232 = vpop.f32.mrb[0].mxu0
      %1233 = vmatprep.mubr.f32.mxu0 0.0
      %1234 = vmatmul.mubr.f32.gmra.mrb[0].mxu0 %v1048
      %v1235 = vpop.f32.mrb[0].mxu0
      %v1236 = vadd.f32 %v947, %v1235
      %v1237 = vpop.f32.mrb[0].mxu0
      %1238 = vmatprep.mubr.f32.mxu0 0.0
      %1239 = vmatmul.mubr.f32.gmra.mrb[0].mxu0 %v1050
      %v1240 = vpop.f32.mrb[0].mxu0
      %v1241 = vadd.f32 %v952, %v1240
      %v1242 = vpop.f32.mrb[0].mxu0
      %1243 = vmatprep.mubr.f32.mxu0 0.0
      %1244 = vmatmul.mubr.f32.gmra.mrb[0].mxu0 %v1052
      %v1245 = vpop.f32.mrb[0].mxu0
      %v1246 = vadd.f32 %v957, %v1245
      %v1247 = vpop.f32.mrb[0].mxu0
      %1248 = vmatprep.mubr.f32.mxu0 0.0
      %1249 = vmatmul.mubr.f32.gmra.mrb[0].mxu0 %v1054
      %v1250 = vpop.f32.mrb[0].mxu0
      %v1251 = vadd.f32 %v962, %v1250
      %v1252 = vpop.f32.mrb[0].mxu0
      %1253 = vmatprep.mubr.f32.mxu0 0.0
      %1254 = vmatmul.mubr.f32.gmra.mrb[0].mxu0 %v1056
      %v1255 = vpop.f32.mrb[0].mxu0
      %v1256 = vadd.f32 %v967, %v1255
      %v1257 = vpop.f32.mrb[0].mxu0
      %1258 = vmatprep.mubr.f32.mxu0 0.0
      %1259 = vmatmul.mubr.f32.gmra.mrb[0].mxu0 %v1058
      %v1260 = vpop.f32.mrb[0].mxu0
      %v1261 = vadd.f32 %v972, %v1260
      %v1262 = vpop.f32.mrb[0].mxu0
      %1263 = vmatprep.mubr.f32.mxu0 0.0
      %1264 = vmatmul.mubr.f32.gmra.mrb[0].mxu0 %v1060
      %v1265 = vpop.f32.mrb[0].mxu0
      %v1266 = vadd.f32 %v977, %v1265
      %v1267 = vpop.f32.mrb[0].mxu0
      %1268 = vmatprep.mubr.f32.mxu0 0.0
      %1269 = vmatmul.mubr.f32.gmra.mrb[0].mxu0 %v1062
      %v1270 = vpop.f32.mrb[0].mxu0
      %v1271 = vadd.f32 %v982, %v1270
      %v1272 = vpop.f32.mrb[0].mxu0
      %1273 = vmatprep.mubr.f32.mxu0 0.0
      %1274 = vmatmul.mubr.f32.gmra.mrb[0].mxu0 %v1064
      %v1275 = vpop.f32.mrb[0].mxu0
      %v1276 = vadd.f32 %v987, %v1275
      %v1277 = vpop.f32.mrb[0].mxu0
      %1278 = vmatprep.mubr.f32.mxu0 0.0
      %1279 = vmatmul.mubr.f32.gmra.mrb[0].mxu0 %v1066
      %v1280 = vpop.f32.mrb[0].mxu0
      %v1281 = vadd.f32 %v992, %v1280
      %v1282 = vpop.f32.mrb[0].mxu0
      %1283 = vmatprep.mubr.f32.mxu0 0.0
      %1284 = vmatmul.mubr.f32.gmra.mrb[0].mxu0 %v1068
      %v1285 = vpop.f32.mrb[0].mxu0
      %v1286 = vadd.f32 %v997, %v1285
      %v1287 = vpop.f32.mrb[0].mxu0
      %1288 = vmatprep.mubr.f32.mxu0 0.0
      %1289 = vmatmul.mubr.f32.gmra.mrb[0].mxu0 %v1070
      %v1290 = vpop.f32.mrb[0].mxu0
      %v1291 = vadd.f32 %v1002, %v1290
      %v1292 = vpop.f32.mrb[0].mxu0
      %1293 = vmatprep.mubr.f32.mxu0 0.0
      %1294 = vmatmul.mubr.f32.gmra.mrb[0].mxu0 %v1072
      %v1295 = vpop.f32.mrb[0].mxu0
      %v1296 = vadd.f32 %v1007, %v1295
      %v1297 = vpop.f32.mrb[0].mxu0
      %1298 = vdwg.mxu0
      %vm1315 = vcmask 1046528
      %v1316 = vrot.slane %v518, 1
      %v1317 = vrot.slane %v519, 1
      %v1318 = vsel %vm1315, %v1316, %v1317
      %v1319 = vrot.slane %v520, 1
      %v1320 = vsel %vm1315, %v1317, %v1319
      %v1321 = vrot.slane %v522, 1
      %v1322 = vrot.slane %v523, 1
      %v1323 = vsel %vm1315, %v1321, %v1322
      %v1324 = vrot.slane %v524, 1
      %v1325 = vsel %vm1315, %v1322, %v1324
      %v1326 = vrot.slane %v526, 1
      %v1327 = vrot.slane %v527, 1
      %v1328 = vsel %vm1315, %v1326, %v1327
      %v1329 = vrot.slane %v528, 1
      %v1330 = vsel %vm1315, %v1327, %v1329
      %v1331 = vrot.slane %v530, 1
      %v1332 = vrot.slane %v531, 1
      %v1333 = vsel %vm1315, %v1331, %v1332
      %v1334 = vrot.slane %v532, 1
      %v1335 = vsel %vm1315, %v1332, %v1334
      %v1336 = vrot.slane %v534, 1
      %v1337 = vrot.slane %v535, 1
      %v1338 = vsel %vm1315, %v1336, %v1337
      %v1339 = vrot.slane %v536, 1
      %v1340 = vsel %vm1315, %v1337, %v1339
      %v1341 = vrot.slane %v538, 1
      %v1342 = vrot.slane %v539, 1
      %v1343 = vsel %vm1315, %v1341, %v1342
      %v1344 = vrot.slane %v540, 1
      %v1345 = vsel %vm1315, %v1342, %v1344
      %v1346 = vrot.slane %v542, 1
      %v1347 = vrot.slane %v543, 1
      %v1348 = vsel %vm1315, %v1346, %v1347
      %v1349 = vrot.slane %v544, 1
      %v1350 = vsel %vm1315, %v1347, %v1349
      %v1351 = vrot.slane %v546, 1
      %v1352 = vrot.slane %v547, 1
      %v1353 = vsel %vm1315, %v1351, %v1352
      %v1354 = vrot.slane %v548, 1
      %v1355 = vsel %vm1315, %v1352, %v1354
      %v1356 = vrot.slane %v550, 1
      %v1357 = vrot.slane %v551, 1
      %v1358 = vsel %vm1315, %v1356, %v1357
      %v1359 = vrot.slane %v552, 1
      %v1360 = vsel %vm1315, %v1357, %v1359
      %v1361 = vrot.slane %v554, 1
      %v1362 = vrot.slane %v555, 1
      %v1363 = vsel %vm1315, %v1361, %v1362
      %v1364 = vrot.slane %v556, 1
      %v1365 = vsel %vm1315, %v1362, %v1364
      %v1366 = vrot.slane %v558, 1
      %v1367 = vrot.slane %v559, 1
      %v1368 = vsel %vm1315, %v1366, %v1367
      %v1369 = vrot.slane %v560, 1
      %v1370 = vsel %vm1315, %v1367, %v1369
      %v1371 = vrot.slane %v562, 1
      %v1372 = vrot.slane %v563, 1
      %v1373 = vsel %vm1315, %v1371, %v1372
      %v1374 = vrot.slane %v564, 1
      %v1375 = vsel %vm1315, %v1372, %v1374
      %v1376 = vrot.slane %v566, 1
      %v1377 = vrot.slane %v567, 1
      %v1378 = vsel %vm1315, %v1376, %v1377
      %v1379 = vrot.slane %v568, 1
      %v1380 = vsel %vm1315, %v1377, %v1379
      %v1381 = vrot.slane %v570, 1
      %v1382 = vrot.slane %v571, 1
      %v1383 = vsel %vm1315, %v1381, %v1382
      %v1384 = vrot.slane %v572, 1
      %v1385 = vsel %vm1315, %v1382, %v1384
      %v1386 = vrot.slane %v574, 1
      %v1387 = vrot.slane %v575, 1
      %v1388 = vsel %vm1315, %v1386, %v1387
      %v1389 = vrot.slane %v576, 1
      %v1390 = vsel %vm1315, %v1387, %v1389
      %v1391 = vrot.slane %v578, 1
      %v1392 = vrot.slane %v579, 1
      %v1393 = vsel %vm1315, %v1391, %v1392
      %v1394 = vrot.slane %v580, 1
      %v1395 = vsel %vm1315, %v1392, %v1394
      %s1396 = scalar_lea.vmem %s1, 16
      %v1397 = vld [vmem:[%s1396] sm:$0xff]
      %v1398 = vsel %vm411, %v1318, 0
      %v1400 = vsel %vm411, %v1320, 0
      %v1402 = vsel %vm411, %v1323, 0
      %v1404 = vsel %vm411, %v1325, 0
      %v1406 = vsel %vm411, %v1328, 0
      %v1408 = vsel %vm411, %v1330, 0
      %v1410 = vsel %vm411, %v1333, 0
      %v1412 = vsel %vm411, %v1335, 0
      %v1414 = vsel %vm411, %v1338, 0
      %v1416 = vsel %vm411, %v1340, 0
      %v1418 = vsel %vm411, %v1343, 0
      %v1420 = vsel %vm411, %v1345, 0
      %v1422 = vsel %vm411, %v1348, 0
      %v1424 = vsel %vm411, %v1350, 0
      %v1426 = vsel %vm411, %v1353, 0
      %v1428 = vsel %vm411, %v1355, 0
      %v1430 = vsel %vm411, %v1358, 0
      %v1432 = vsel %vm411, %v1360, 0
      %v1434 = vsel %vm411, %v1363, 0
      %v1436 = vsel %vm411, %v1365, 0
      %v1438 = vsel %vm411, %v1368, 0
      %v1440 = vsel %vm411, %v1370, 0
      %v1442 = vsel %vm411, %v1373, 0
      %v1444 = vsel %vm411, %v1375, 0
      %v1446 = vsel %vm411, %v1378, 0
      %v1448 = vsel %vm411, %v1380, 0
      %v1450 = vsel %vm411, %v1383, 0
      %v1452 = vsel %vm411, %v1385, 0
      %v1454 = vsel %vm411, %v1388, 0
      %v1456 = vsel %vm411, %v1390, 0
      %v1458 = vsel %vm411, %v1393, 0
      %v1460 = vsel %vm411, %v1395, 0
      %1462 = vmatprep.subr.mxu0 0.0
      %1463 = vmatpush1.msra.mxu0 %v1397
      %1464 = vmatprep.subr.mxu0 0.0
      %1465 = vmatpush1.msra.mxu0 0.0
      %1466 = vmatprep.subr.mxu0 0.0
      %1467 = vmatpush1.msra.mxu0 0.0
      %1468 = vmatprep.subr.mxu0 0.0
      %1469 = vmatpush1.msra.mxu0 0.0
      %1470 = vmatprep.subr.mxu0 0.0
      %1471 = vmatpush1.msra.mxu0 0.0
      %1472 = vmatprep.subr.mxu0 0.0
      %1473 = vmatpush1.msra.mxu0 0.0
      %1474 = vmatprep.subr.mxu0 0.0
      %1475 = vmatpush1.msra.mxu0 0.0
      %1476 = vmatprep.subr.mxu0 0.0
      %1477 = vmatpush1.msra.mxu0 0.0
      %1478 = vmatprep.subr.mxu0 0.0
      %1479 = vmatpush1.msra.mxu0 0.0
      %1480 = vmatprep.subr.mxu0 0.0
      %1481 = vmatpush1.msra.mxu0 0.0
      %1482 = vmatprep.subr.mxu0 0.0
      %1483 = vmatpush1.msra.mxu0 0.0
      %1484 = vmatprep.subr.mxu0 0.0
      %1485 = vmatpush1.msra.mxu0 0.0
      %1486 = vmatprep.subr.mxu0 0.0
      %1487 = vmatpush1.msra.mxu0 0.0
      %1488 = vmatprep.subr.mxu0 0.0
      %1489 = vmatpush1.msra.mxu0 0.0
      %1490 = vmatprep.subr.mxu0 0.0
      %1491 = vmatpush1.msra.mxu0 0.0
      %1492 = vmatprep.subr.mxu0 0.0
      %1493 = vmatpush1.msra.mxu0 0.0
      %1494 = vmatprep.subr.mxu0 0.0
      %1495 = vmatpush1.msra.mxu0 0.0
      %1496 = vmatprep.subr.mxu0 0.0
      %1497 = vmatpush1.msra.mxu0 0.0
      %1498 = vmatprep.subr.mxu0 0.0
      %1499 = vmatpush1.msra.mxu0 0.0
      %1500 = vmatprep.subr.mxu0 0.0
      %1501 = vmatpush1.msra.mxu0 0.0
      %1502 = vmatprep.subr.mxu0 0.0
      %1503 = vmatpush1.msra.mxu0 0.0
      %1504 = vmatprep.subr.mxu0 0.0
      %1505 = vmatpush1.msra.mxu0 0.0
      %1506 = vmatprep.subr.mxu0 0.0
      %1507 = vmatpush1.msra.mxu0 0.0
      %1508 = vmatprep.subr.mxu0 0.0
      %1509 = vmatpush1.msra.mxu0 0.0
      %1510 = vmatprep.subr.mxu0 0.0
      %1511 = vmatpush1.msra.mxu0 0.0
      %1512 = vmatprep.subr.mxu0 0.0
      %1513 = vmatpush1.msra.mxu0 0.0
      %1514 = vmatprep.subr.mxu0 0.0
      %1515 = vmatpush1.msra.mxu0 0.0
      %1516 = vmatprep.subr.mxu0 0.0
      %1517 = vmatpush1.msra.mxu0 0.0
      %1518 = vmatprep.subr.mxu0 0.0
      %1519 = vmatpush1.msra.mxu0 0.0
      %1520 = vmatprep.subr.mxu0 0.0
      %1521 = vmatpush1.msra.mxu0 0.0
      %1522 = vmatprep.subr.mxu0 0.0
      %1523 = vmatpush1.msra.mxu0 0.0
      %1524 = vmatprep.subr.mxu0 0.0
      %1525 = vmatpush1.msra.mxu0 0.0
      %1526 = vmatprep.mubr.f32.mxu0 0.0
      %1527 = vmatmul.mubr.f32.gmra.mrb[0].mxu0 %v1398
      %v1528 = vpop.f32.mrb[0].mxu0
      %v1529 = vadd.f32 0.0, %v1528
      %v1530 = vpop.f32.mrb[0].mxu0
      %1531 = vmatprep.mubr.f32.mxu0 0.0
      %1532 = vmatmul.mubr.f32.gmra.mrb[0].mxu0 %v1400
      %v1533 = vpop.f32.mrb[0].mxu0
      %v1534 = vadd.f32 0.0, %v1533
      %v1535 = vpop.f32.mrb[0].mxu0
      %1536 = vmatprep.mubr.f32.mxu0 0.0
      %1537 = vmatmul.mubr.f32.gmra.mrb[0].mxu0 %v1402
      %v1538 = vpop.f32.mrb[0].mxu0
      %v1539 = vadd.f32 0.0, %v1538
      %v1540 = vpop.f32.mrb[0].mxu0
      %1541 = vmatprep.mubr.f32.mxu0 0.0
      %1542 = vmatmul.mubr.f32.gmra.mrb[0].mxu0 %v1404
      %v1543 = vpop.f32.mrb[0].mxu0
      %v1544 = vadd.f32 0.0, %v1543
      %v1545 = vpop.f32.mrb[0].mxu0
      %1546 = vmatprep.mubr.f32.mxu0 0.0
      %1547 = vmatmul.mubr.f32.gmra.mrb[0].mxu0 %v1406
      %v1548 = vpop.f32.mrb[0].mxu0
      %v1549 = vadd.f32 0.0, %v1548
      %v1550 = vpop.f32.mrb[0].mxu0
      %1551 = vmatprep.mubr.f32.mxu0 0.0
      %1552 = vmatmul.mubr.f32.gmra.mrb[0].mxu0 %v1408
      %v1553 = vpop.f32.mrb[0].mxu0
      %v1554 = vadd.f32 0.0, %v1553
      %v1555 = vpop.f32.mrb[0].mxu0
      %1556 = vmatprep.mubr.f32.mxu0 0.0
      %1557 = vmatmul.mubr.f32.gmra.mrb[0].mxu0 %v1410
      %v1558 = vpop.f32.mrb[0].mxu0
      %v1559 = vadd.f32 0.0, %v1558
      %v1560 = vpop.f32.mrb[0].mxu0
      %1561 = vmatprep.mubr.f32.mxu0 0.0
      %1562 = vmatmul.mubr.f32.gmra.mrb[0].mxu0 %v1412
      %v1563 = vpop.f32.mrb[0].mxu0
      %v1564 = vadd.f32 0.0, %v1563
      %v1565 = vpop.f32.mrb[0].mxu0
      %1566 = vmatprep.mubr.f32.mxu0 0.0
      %1567 = vmatmul.mubr.f32.gmra.mrb[0].mxu0 %v1414
      %v1568 = vpop.f32.mrb[0].mxu0
      %v1569 = vadd.f32 0.0, %v1568
      %v1570 = vpop.f32.mrb[0].mxu0
      %1571 = vmatprep.mubr.f32.mxu0 0.0
      %1572 = vmatmul.mubr.f32.gmra.mrb[0].mxu0 %v1416
      %v1573 = vpop.f32.mrb[0].mxu0
      %v1574 = vadd.f32 0.0, %v1573
      %v1575 = vpop.f32.mrb[0].mxu0
      %1576 = vmatprep.mubr.f32.mxu0 0.0
      %1577 = vmatmul.mubr.f32.gmra.mrb[0].mxu0 %v1418
      %v1578 = vpop.f32.mrb[0].mxu0
      %v1579 = vadd.f32 0.0, %v1578
      %v1580 = vpop.f32.mrb[0].mxu0
      %1581 = vmatprep.mubr.f32.mxu0 0.0
      %1582 = vmatmul.mubr.f32.gmra.mrb[0].mxu0 %v1420
      %v1583 = vpop.f32.mrb[0].mxu0
      %v1584 = vadd.f32 0.0, %v1583
      %v1585 = vpop.f32.mrb[0].mxu0
      %1586 = vmatprep.mubr.f32.mxu0 0.0
      %1587 = vmatmul.mubr.f32.gmra.mrb[0].mxu0 %v1422
      %v1588 = vpop.f32.mrb[0].mxu0
      %v1589 = vadd.f32 0.0, %v1588
      %v1590 = vpop.f32.mrb[0].mxu0
      %1591 = vmatprep.mubr.f32.mxu0 0.0
      %1592 = vmatmul.mubr.f32.gmra.mrb[0].mxu0 %v1424
      %v1593 = vpop.f32.mrb[0].mxu0
      %v1594 = vadd.f32 0.0, %v1593
      %v1595 = vpop.f32.mrb[0].mxu0
      %1596 = vmatprep.mubr.f32.mxu0 0.0
      %1597 = vmatmul.mubr.f32.gmra.mrb[0].mxu0 %v1426
      %v1598 = vpop.f32.mrb[0].mxu0
      %v1599 = vadd.f32 0.0, %v1598
      %v1600 = vpop.f32.mrb[0].mxu0
      %1601 = vmatprep.mubr.f32.mxu0 0.0
      %1602 = vmatmul.mubr.f32.gmra.mrb[0].mxu0 %v1428
      %v1603 = vpop.f32.mrb[0].mxu0
      %v1604 = vadd.f32 0.0, %v1603
      %v1605 = vpop.f32.mrb[0].mxu0
      %1606 = vmatprep.mubr.f32.mxu0 0.0
      %1607 = vmatmul.mubr.f32.gmra.mrb[0].mxu0 %v1430
      %v1608 = vpop.f32.mrb[0].mxu0
      %v1609 = vadd.f32 0.0, %v1608
      %v1610 = vpop.f32.mrb[0].mxu0
      %1611 = vmatprep.mubr.f32.mxu0 0.0
      %1612 = vmatmul.mubr.f32.gmra.mrb[0].mxu0 %v1432
      %v1613 = vpop.f32.mrb[0].mxu0
      %v1614 = vadd.f32 0.0, %v1613
      %v1615 = vpop.f32.mrb[0].mxu0
      %1616 = vmatprep.mubr.f32.mxu0 0.0
      %1617 = vmatmul.mubr.f32.gmra.mrb[0].mxu0 %v1434
      %v1618 = vpop.f32.mrb[0].mxu0
      %v1619 = vadd.f32 0.0, %v1618
      %v1620 = vpop.f32.mrb[0].mxu0
      %1621 = vmatprep.mubr.f32.mxu0 0.0
      %1622 = vmatmul.mubr.f32.gmra.mrb[0].mxu0 %v1436
      %v1623 = vpop.f32.mrb[0].mxu0
      %v1624 = vadd.f32 0.0, %v1623
      %v1625 = vpop.f32.mrb[0].mxu0
      %1626 = vmatprep.mubr.f32.mxu0 0.0
      %1627 = vmatmul.mubr.f32.gmra.mrb[0].mxu0 %v1438
      %v1628 = vpop.f32.mrb[0].mxu0
      %v1629 = vadd.f32 0.0, %v1628
      %v1630 = vpop.f32.mrb[0].mxu0
      %1631 = vmatprep.mubr.f32.mxu0 0.0
      %1632 = vmatmul.mubr.f32.gmra.mrb[0].mxu0 %v1440
      %v1633 = vpop.f32.mrb[0].mxu0
      %v1634 = vadd.f32 0.0, %v1633
      %v1635 = vpop.f32.mrb[0].mxu0
      %1636 = vmatprep.mubr.f32.mxu0 0.0
      %1637 = vmatmul.mubr.f32.gmra.mrb[0].mxu0 %v1442
      %v1638 = vpop.f32.mrb[0].mxu0
      %v1639 = vadd.f32 0.0, %v1638
      %v1640 = vpop.f32.mrb[0].mxu0
      %1641 = vmatprep.mubr.f32.mxu0 0.0
      %1642 = vmatmul.mubr.f32.gmra.mrb[0].mxu0 %v1444
      %v1643 = vpop.f32.mrb[0].mxu0
      %v1644 = vadd.f32 0.0, %v1643
      %v1645 = vpop.f32.mrb[0].mxu0
      %1646 = vmatprep.mubr.f32.mxu0 0.0
      %1647 = vmatmul.mubr.f32.gmra.mrb[0].mxu0 %v1446
      %v1648 = vpop.f32.mrb[0].mxu0
      %v1649 = vadd.f32 0.0, %v1648
      %v1650 = vpop.f32.mrb[0].mxu0
      %1651 = vmatprep.mubr.f32.mxu0 0.0
      %1652 = vmatmul.mubr.f32.gmra.mrb[0].mxu0 %v1448
      %v1653 = vpop.f32.mrb[0].mxu0
      %v1654 = vadd.f32 0.0, %v1653
      %v1655 = vpop.f32.mrb[0].mxu0
      %1656 = vmatprep.mubr.f32.mxu0 0.0
      %1657 = vmatmul.mubr.f32.gmra.mrb[0].mxu0 %v1450
      %v1658 = vpop.f32.mrb[0].mxu0
      %v1659 = vadd.f32 0.0, %v1658
      %v1660 = vpop.f32.mrb[0].mxu0
      %1661 = vmatprep.mubr.f32.mxu0 0.0
      %1662 = vmatmul.mubr.f32.gmra.mrb[0].mxu0 %v1452
      %v1663 = vpop.f32.mrb[0].mxu0
      %v1664 = vadd.f32 0.0, %v1663
      %v1665 = vpop.f32.mrb[0].mxu0
      %1666 = vmatprep.mubr.f32.mxu0 0.0
      %1667 = vmatmul.mubr.f32.gmra.mrb[0].mxu0 %v1454
      %v1668 = vpop.f32.mrb[0].mxu0
      %v1669 = vadd.f32 0.0, %v1668
      %v1670 = vpop.f32.mrb[0].mxu0
      %1671 = vmatprep.mubr.f32.mxu0 0.0
      %1672 = vmatmul.mubr.f32.gmra.mrb[0].mxu0 %v1456
      %v1673 = vpop.f32.mrb[0].mxu0
      %v1674 = vadd.f32 0.0, %v1673
      %v1675 = vpop.f32.mrb[0].mxu0
      %1676 = vmatprep.mubr.f32.mxu0 0.0
      %1677 = vmatmul.mubr.f32.gmra.mrb[0].mxu0 %v1458
      %v1678 = vpop.f32.mrb[0].mxu0
      %v1679 = vadd.f32 0.0, %v1678
      %v1680 = vpop.f32.mrb[0].mxu0
      %1681 = vmatprep.mubr.f32.mxu0 0.0
      %1682 = vmatmul.mubr.f32.gmra.mrb[0].mxu0 %v1460
      %v1683 = vpop.f32.mrb[0].mxu0
      %v1684 = vadd.f32 0.0, %v1683
      %v1685 = vpop.f32.mrb[0].mxu0
      %1686 = vdwg.mxu0
      %v1687 = vadd.f32 %v1141, %v1529
      %v1688 = vadd.f32 %v1146, %v1534
      %v1689 = vadd.f32 %v1151, %v1539
      %v1690 = vadd.f32 %v1156, %v1544
      %v1691 = vadd.f32 %v1161, %v1549
      %v1692 = vadd.f32 %v1166, %v1554
      %v1693 = vadd.f32 %v1171, %v1559
      %v1694 = vadd.f32 %v1176, %v1564
      %v1695 = vadd.f32 %v1181, %v1569
      %v1696 = vadd.f32 %v1186, %v1574
      %v1697 = vadd.f32 %v1191, %v1579
      %v1698 = vadd.f32 %v1196, %v1584
      %v1699 = vadd.f32 %v1201, %v1589
      %v1700 = vadd.f32 %v1206, %v1594
      %v1701 = vadd.f32 %v1211, %v1599
      %v1702 = vadd.f32 %v1216, %v1604
      %v1703 = vadd.f32 %v1221, %v1609
      %v1704 = vadd.f32 %v1226, %v1614
      %v1705 = vadd.f32 %v1231, %v1619
      %v1706 = vadd.f32 %v1236, %v1624
      %v1707 = vadd.f32 %v1241, %v1629
      %v1708 = vadd.f32 %v1246, %v1634
      %v1709 = vadd.f32 %v1251, %v1639
      %v1710 = vadd.f32 %v1256, %v1644
      %v1711 = vadd.f32 %v1261, %v1649
      %v1712 = vadd.f32 %v1266, %v1654
      %v1713 = vadd.f32 %v1271, %v1659
      %v1714 = vadd.f32 %v1276, %v1664
      %v1715 = vadd.f32 %v1281, %v1669
      %v1716 = vadd.f32 %v1286, %v1674
      %v1717 = vadd.f32 %v1291, %v1679
      %v1718 = vadd.f32 %v1296, %v1684
      %v1722 = vrot.slane %v581, 7
      %v1723 = vrot.slane %v582, 7
      %v1724 = vsel %vm637, %v1722, %v1723
      %v1725 = vrot.slane %v583, 7
      %v1726 = vsel %vm637, %v1723, %v1725
      %s1727 = scalar_lea.vmem %s1, 24
      %v1728 = vld [vmem:[%s1727] sm:$0xff]
      %v1729 = vsel %vm411, %v1724, 0
      %v1731 = vsel %vm411, %v1726, 0
      %1733 = vmatprep.subr.mxu0 0.0
      %1734 = vmatpush1.msra.mxu0 %v1728
      %1735 = vmatprep.subr.mxu0 0.0
      %1736 = vmatpush1.msra.mxu0 0.0
      %1737 = vmatprep.subr.mxu0 0.0
      %1738 = vmatpush1.msra.mxu0 0.0
      %1739 = vmatprep.subr.mxu0 0.0
      %1740 = vmatpush1.msra.mxu0 0.0
      %1741 = vmatprep.subr.mxu0 0.0
      %1742 = vmatpush1.msra.mxu0 0.0
      %1743 = vmatprep.subr.mxu0 0.0
      %1744 = vmatpush1.msra.mxu0 0.0
      %1745 = vmatprep.subr.mxu0 0.0
      %1746 = vmatpush1.msra.mxu0 0.0
      %1747 = vmatprep.subr.mxu0 0.0
      %1748 = vmatpush1.msra.mxu0 0.0
      %1749 = vmatprep.subr.mxu0 0.0
      %1750 = vmatpush1.msra.mxu0 0.0
      %1751 = vmatprep.subr.mxu0 0.0
      %1752 = vmatpush1.msra.mxu0 0.0
      %1753 = vmatprep.subr.mxu0 0.0
      %1754 = vmatpush1.msra.mxu0 0.0
      %1755 = vmatprep.subr.mxu0 0.0
      %1756 = vmatpush1.msra.mxu0 0.0
      %1757 = vmatprep.subr.mxu0 0.0
      %1758 = vmatpush1.msra.mxu0 0.0
      %1759 = vmatprep.subr.mxu0 0.0
      %1760 = vmatpush1.msra.mxu0 0.0
      %1761 = vmatprep.subr.mxu0 0.0
      %1762 = vmatpush1.msra.mxu0 0.0
      %1763 = vmatprep.subr.mxu0 0.0
      %1764 = vmatpush1.msra.mxu0 0.0
      %1765 = vmatprep.subr.mxu0 0.0
      %1766 = vmatpush1.msra.mxu0 0.0
      %1767 = vmatprep.subr.mxu0 0.0
      %1768 = vmatpush1.msra.mxu0 0.0
      %1769 = vmatprep.subr.mxu0 0.0
      %1770 = vmatpush1.msra.mxu0 0.0
      %1771 = vmatprep.subr.mxu0 0.0
      %1772 = vmatpush1.msra.mxu0 0.0
      %1773 = vmatprep.subr.mxu0 0.0
      %1774 = vmatpush1.msra.mxu0 0.0
      %1775 = vmatprep.subr.mxu0 0.0
      %1776 = vmatpush1.msra.mxu0 0.0
      %1777 = vmatprep.subr.mxu0 0.0
      %1778 = vmatpush1.msra.mxu0 0.0
      %1779 = vmatprep.subr.mxu0 0.0
      %1780 = vmatpush1.msra.mxu0 0.0
      %1781 = vmatprep.subr.mxu0 0.0
      %1782 = vmatpush1.msra.mxu0 0.0
      %1783 = vmatprep.subr.mxu0 0.0
      %1784 = vmatpush1.msra.mxu0 0.0
      %1785 = vmatprep.subr.mxu0 0.0
      %1786 = vmatpush1.msra.mxu0 0.0
      %1787 = vmatprep.subr.mxu0 0.0
      %1788 = vmatpush1.msra.mxu0 0.0
      %1789 = vmatprep.subr.mxu0 0.0
      %1790 = vmatpush1.msra.mxu0 0.0
      %1791 = vmatprep.subr.mxu0 0.0
      %1792 = vmatpush1.msra.mxu0 0.0
      %1793 = vmatprep.subr.mxu0 0.0
      %1794 = vmatpush1.msra.mxu0 0.0
      %1795 = vmatprep.subr.mxu0 0.0
      %1796 = vmatpush1.msra.mxu0 0.0
      %1797 = vmatprep.mubr.f32.mxu0 0.0
      %1798 = vmatmul.mubr.f32.gmra.mrb[0].mxu0 %v1014
      %v1799 = vpop.f32.mrb[0].mxu0
      %v1800 = vadd.f32 0.0, %v1799
      %v1801 = vpop.f32.mrb[0].mxu0
      %1802 = vmatprep.mubr.f32.mxu0 0.0
      %1803 = vmatmul.mubr.f32.gmra.mrb[0].mxu0 %v1016
      %v1804 = vpop.f32.mrb[0].mxu0
      %v1805 = vadd.f32 0.0, %v1804
      %v1806 = vpop.f32.mrb[0].mxu0
      %1807 = vmatprep.mubr.f32.mxu0 0.0
      %1808 = vmatmul.mubr.f32.gmra.mrb[0].mxu0 %v1018
      %v1809 = vpop.f32.mrb[0].mxu0
      %v1810 = vadd.f32 0.0, %v1809
      %v1811 = vpop.f32.mrb[0].mxu0
      %1812 = vmatprep.mubr.f32.mxu0 0.0
      %1813 = vmatmul.mubr.f32.gmra.mrb[0].mxu0 %v1020
      %v1814 = vpop.f32.mrb[0].mxu0
      %v1815 = vadd.f32 0.0, %v1814
      %v1816 = vpop.f32.mrb[0].mxu0
      %1817 = vmatprep.mubr.f32.mxu0 0.0
      %1818 = vmatmul.mubr.f32.gmra.mrb[0].mxu0 %v1022
      %v1819 = vpop.f32.mrb[0].mxu0
      %v1820 = vadd.f32 0.0, %v1819
      %v1821 = vpop.f32.mrb[0].mxu0
      %1822 = vmatprep.mubr.f32.mxu0 0.0
      %1823 = vmatmul.mubr.f32.gmra.mrb[0].mxu0 %v1024
      %v1824 = vpop.f32.mrb[0].mxu0
      %v1825 = vadd.f32 0.0, %v1824
      %v1826 = vpop.f32.mrb[0].mxu0
      %1827 = vmatprep.mubr.f32.mxu0 0.0
      %1828 = vmatmul.mubr.f32.gmra.mrb[0].mxu0 %v1026
      %v1829 = vpop.f32.mrb[0].mxu0
      %v1830 = vadd.f32 0.0, %v1829
      %v1831 = vpop.f32.mrb[0].mxu0
      %1832 = vmatprep.mubr.f32.mxu0 0.0
      %1833 = vmatmul.mubr.f32.gmra.mrb[0].mxu0 %v1028
      %v1834 = vpop.f32.mrb[0].mxu0
      %v1835 = vadd.f32 0.0, %v1834
      %v1836 = vpop.f32.mrb[0].mxu0
      %1837 = vmatprep.mubr.f32.mxu0 0.0
      %1838 = vmatmul.mubr.f32.gmra.mrb[0].mxu0 %v1030
      %v1839 = vpop.f32.mrb[0].mxu0
      %v1840 = vadd.f32 0.0, %v1839
      %v1841 = vpop.f32.mrb[0].mxu0
      %1842 = vmatprep.mubr.f32.mxu0 0.0
      %1843 = vmatmul.mubr.f32.gmra.mrb[0].mxu0 %v1032
      %v1844 = vpop.f32.mrb[0].mxu0
      %v1845 = vadd.f32 0.0, %v1844
      %v1846 = vpop.f32.mrb[0].mxu0
      %1847 = vmatprep.mubr.f32.mxu0 0.0
      %1848 = vmatmul.mubr.f32.gmra.mrb[0].mxu0 %v1034
      %v1849 = vpop.f32.mrb[0].mxu0
      %v1850 = vadd.f32 0.0, %v1849
      %v1851 = vpop.f32.mrb[0].mxu0
      %1852 = vmatprep.mubr.f32.mxu0 0.0
      %1853 = vmatmul.mubr.f32.gmra.mrb[0].mxu0 %v1036
      %v1854 = vpop.f32.mrb[0].mxu0
      %v1855 = vadd.f32 0.0, %v1854
      %v1856 = vpop.f32.mrb[0].mxu0
      %1857 = vmatprep.mubr.f32.mxu0 0.0
      %1858 = vmatmul.mubr.f32.gmra.mrb[0].mxu0 %v1038
      %v1859 = vpop.f32.mrb[0].mxu0
      %v1860 = vadd.f32 0.0, %v1859
      %v1861 = vpop.f32.mrb[0].mxu0
      %1862 = vmatprep.mubr.f32.mxu0 0.0
      %1863 = vmatmul.mubr.f32.gmra.mrb[0].mxu0 %v1040
      %v1864 = vpop.f32.mrb[0].mxu0
      %v1865 = vadd.f32 0.0, %v1864
      %v1866 = vpop.f32.mrb[0].mxu0
      %1867 = vmatprep.mubr.f32.mxu0 0.0
      %1868 = vmatmul.mubr.f32.gmra.mrb[0].mxu0 %v1042
      %v1869 = vpop.f32.mrb[0].mxu0
      %v1870 = vadd.f32 0.0, %v1869
      %v1871 = vpop.f32.mrb[0].mxu0
      %1872 = vmatprep.mubr.f32.mxu0 0.0
      %1873 = vmatmul.mubr.f32.gmra.mrb[0].mxu0 %v1044
      %v1874 = vpop.f32.mrb[0].mxu0
      %v1875 = vadd.f32 0.0, %v1874
      %v1876 = vpop.f32.mrb[0].mxu0
      %1877 = vmatprep.mubr.f32.mxu0 0.0
      %1878 = vmatmul.mubr.f32.gmra.mrb[0].mxu0 %v1046
      %v1879 = vpop.f32.mrb[0].mxu0
      %v1880 = vadd.f32 0.0, %v1879
      %v1881 = vpop.f32.mrb[0].mxu0
      %1882 = vmatprep.mubr.f32.mxu0 0.0
      %1883 = vmatmul.mubr.f32.gmra.mrb[0].mxu0 %v1048
      %v1884 = vpop.f32.mrb[0].mxu0
      %v1885 = vadd.f32 0.0, %v1884
      %v1886 = vpop.f32.mrb[0].mxu0
      %1887 = vmatprep.mubr.f32.mxu0 0.0
      %1888 = vmatmul.mubr.f32.gmra.mrb[0].mxu0 %v1050
      %v1889 = vpop.f32.mrb[0].mxu0
      %v1890 = vadd.f32 0.0, %v1889
      %v1891 = vpop.f32.mrb[0].mxu0
      %1892 = vmatprep.mubr.f32.mxu0 0.0
      %1893 = vmatmul.mubr.f32.gmra.mrb[0].mxu0 %v1052
      %v1894 = vpop.f32.mrb[0].mxu0
      %v1895 = vadd.f32 0.0, %v1894
      %v1896 = vpop.f32.mrb[0].mxu0
      %1897 = vmatprep.mubr.f32.mxu0 0.0
      %1898 = vmatmul.mubr.f32.gmra.mrb[0].mxu0 %v1054
      %v1899 = vpop.f32.mrb[0].mxu0
      %v1900 = vadd.f32 0.0, %v1899
      %v1901 = vpop.f32.mrb[0].mxu0
      %1902 = vmatprep.mubr.f32.mxu0 0.0
      %1903 = vmatmul.mubr.f32.gmra.mrb[0].mxu0 %v1056
      %v1904 = vpop.f32.mrb[0].mxu0
      %v1905 = vadd.f32 0.0, %v1904
      %v1906 = vpop.f32.mrb[0].mxu0
      %1907 = vmatprep.mubr.f32.mxu0 0.0
      %1908 = vmatmul.mubr.f32.gmra.mrb[0].mxu0 %v1058
      %v1909 = vpop.f32.mrb[0].mxu0
      %v1910 = vadd.f32 0.0, %v1909
      %v1911 = vpop.f32.mrb[0].mxu0
      %1912 = vmatprep.mubr.f32.mxu0 0.0
      %1913 = vmatmul.mubr.f32.gmra.mrb[0].mxu0 %v1060
      %v1914 = vpop.f32.mrb[0].mxu0
      %v1915 = vadd.f32 0.0, %v1914
      %v1916 = vpop.f32.mrb[0].mxu0
      %1917 = vmatprep.mubr.f32.mxu0 0.0
      %1918 = vmatmul.mubr.f32.gmra.mrb[0].mxu0 %v1062
      %v1919 = vpop.f32.mrb[0].mxu0
      %v1920 = vadd.f32 0.0, %v1919
      %v1921 = vpop.f32.mrb[0].mxu0
      %1922 = vmatprep.mubr.f32.mxu0 0.0
      %1923 = vmatmul.mubr.f32.gmra.mrb[0].mxu0 %v1064
      %v1924 = vpop.f32.mrb[0].mxu0
      %v1925 = vadd.f32 0.0, %v1924
      %v1926 = vpop.f32.mrb[0].mxu0
      %1927 = vmatprep.mubr.f32.mxu0 0.0
      %1928 = vmatmul.mubr.f32.gmra.mrb[0].mxu0 %v1066
      %v1929 = vpop.f32.mrb[0].mxu0
      %v1930 = vadd.f32 0.0, %v1929
      %v1931 = vpop.f32.mrb[0].mxu0
      %1932 = vmatprep.mubr.f32.mxu0 0.0
      %1933 = vmatmul.mubr.f32.gmra.mrb[0].mxu0 %v1068
      %v1934 = vpop.f32.mrb[0].mxu0
      %v1935 = vadd.f32 0.0, %v1934
      %v1936 = vpop.f32.mrb[0].mxu0
      %1937 = vmatprep.mubr.f32.mxu0 0.0
      %1938 = vmatmul.mubr.f32.gmra.mrb[0].mxu0 %v1070
      %v1939 = vpop.f32.mrb[0].mxu0
      %v1940 = vadd.f32 0.0, %v1939
      %v1941 = vpop.f32.mrb[0].mxu0
      %1942 = vmatprep.mubr.f32.mxu0 0.0
      %1943 = vmatmul.mubr.f32.gmra.mrb[0].mxu0 %v1072
      %v1944 = vpop.f32.mrb[0].mxu0
      %v1945 = vadd.f32 0.0, %v1944
      %v1946 = vpop.f32.mrb[0].mxu0
      %1947 = vmatprep.mubr.f32.mxu0 0.0
      %1948 = vmatmul.mubr.f32.gmra.mrb[0].mxu0 %v1729
      %v1949 = vpop.f32.mrb[0].mxu0
      %v1950 = vadd.f32 0.0, %v1949
      %v1951 = vpop.f32.mrb[0].mxu0
      %1952 = vmatprep.mubr.f32.mxu0 0.0
      %1953 = vmatmul.mubr.f32.gmra.mrb[0].mxu0 %v1731
      %v1954 = vpop.f32.mrb[0].mxu0
      %v1955 = vadd.f32 0.0, %v1954
      %v1956 = vpop.f32.mrb[0].mxu0
      %1957 = vdwg.mxu0
      %v1958 = vadd.f32 %v1687, %v1800
      %v1959 = vadd.f32 %v1688, %v1805
      %v1960 = vadd.f32 %v1689, %v1810
      %v1961 = vadd.f32 %v1690, %v1815
      %v1962 = vadd.f32 %v1691, %v1820
      %v1963 = vadd.f32 %v1692, %v1825
      %v1964 = vadd.f32 %v1693, %v1830
      %v1965 = vadd.f32 %v1694, %v1835
      %v1966 = vadd.f32 %v1695, %v1840
      %v1967 = vadd.f32 %v1696, %v1845
      %v1968 = vadd.f32 %v1697, %v1850
      %v1969 = vadd.f32 %v1698, %v1855
      %v1970 = vadd.f32 %v1699, %v1860
      %v1971 = vadd.f32 %v1700, %v1865
      %v1972 = vadd.f32 %v1701, %v1870
      %v1973 = vadd.f32 %v1702, %v1875
      %v1974 = vadd.f32 %v1703, %v1880
      %v1975 = vadd.f32 %v1704, %v1885
      %v1976 = vadd.f32 %v1705, %v1890
      %v1977 = vadd.f32 %v1706, %v1895
      %v1978 = vadd.f32 %v1707, %v1900
      %v1979 = vadd.f32 %v1708, %v1905
      %v1980 = vadd.f32 %v1709, %v1910
      %v1981 = vadd.f32 %v1710, %v1915
      %v1982 = vadd.f32 %v1711, %v1920
      %v1983 = vadd.f32 %v1712, %v1925
      %v1984 = vadd.f32 %v1713, %v1930
      %v1985 = vadd.f32 %v1714, %v1935
      %v1986 = vadd.f32 %v1715, %v1940
      %v1987 = vadd.f32 %v1716, %v1945
      %v1988 = vadd.f32 %v1717, %v1950
      %v1989 = vadd.f32 %v1718, %v1955
      %s1990 = scalar_lea.vmem %s1, 32
      %v1991 = vld [vmem:[%s1990] sm:$0xff]
      %v1992 = vsel %vm411, %v582, 0
      %v1994 = vsel %vm411, %v583, 0
      %1996 = vmatprep.subr.mxu0 0.0
      %1997 = vmatpush1.msra.mxu0 %v1991
      %1998 = vmatprep.subr.mxu0 0.0
      %1999 = vmatpush1.msra.mxu0 0.0
      %2000 = vmatprep.subr.mxu0 0.0
      %2001 = vmatpush1.msra.mxu0 0.0
      %2002 = vmatprep.subr.mxu0 0.0
      %2003 = vmatpush1.msra.mxu0 0.0
      %2004 = vmatprep.subr.mxu0 0.0
      %2005 = vmatpush1.msra.mxu0 0.0
      %2006 = vmatprep.subr.mxu0 0.0
      %2007 = vmatpush1.msra.mxu0 0.0
      %2008 = vmatprep.subr.mxu0 0.0
      %2009 = vmatpush1.msra.mxu0 0.0
      %2010 = vmatprep.subr.mxu0 0.0
      %2011 = vmatpush1.msra.mxu0 0.0
      %2012 = vmatprep.subr.mxu0 0.0
      %2013 = vmatpush1.msra.mxu0 0.0
      %2014 = vmatprep.subr.mxu0 0.0
      %2015 = vmatpush1.msra.mxu0 0.0
      %2016 = vmatprep.subr.mxu0 0.0
      %2017 = vmatpush1.msra.mxu0 0.0
      %2018 = vmatprep.subr.mxu0 0.0
      %2019 = vmatpush1.msra.mxu0 0.0
      %2020 = vmatprep.subr.mxu0 0.0
      %2021 = vmatpush1.msra.mxu0 0.0
      %2022 = vmatprep.subr.mxu0 0.0
      %2023 = vmatpush1.msra.mxu0 0.0
      %2024 = vmatprep.subr.mxu0 0.0
      %2025 = vmatpush1.msra.mxu0 0.0
      %2026 = vmatprep.subr.mxu0 0.0
      %2027 = vmatpush1.msra.mxu0 0.0
      %2028 = vmatprep.subr.mxu0 0.0
      %2029 = vmatpush1.msra.mxu0 0.0
      %2030 = vmatprep.subr.mxu0 0.0
      %2031 = vmatpush1.msra.mxu0 0.0
      %2032 = vmatprep.subr.mxu0 0.0
      %2033 = vmatpush1.msra.mxu0 0.0
      %2034 = vmatprep.subr.mxu0 0.0
      %2035 = vmatpush1.msra.mxu0 0.0
      %2036 = vmatprep.subr.mxu0 0.0
      %2037 = vmatpush1.msra.mxu0 0.0
      %2038 = vmatprep.subr.mxu0 0.0
      %2039 = vmatpush1.msra.mxu0 0.0
      %2040 = vmatprep.subr.mxu0 0.0
      %2041 = vmatpush1.msra.mxu0 0.0
      %2042 = vmatprep.subr.mxu0 0.0
      %2043 = vmatpush1.msra.mxu0 0.0
      %2044 = vmatprep.subr.mxu0 0.0
      %2045 = vmatpush1.msra.mxu0 0.0
      %2046 = vmatprep.subr.mxu0 0.0
      %2047 = vmatpush1.msra.mxu0 0.0
      %2048 = vmatprep.subr.mxu0 0.0
      %2049 = vmatpush1.msra.mxu0 0.0
      %2050 = vmatprep.subr.mxu0 0.0
      %2051 = vmatpush1.msra.mxu0 0.0
      %2052 = vmatprep.subr.mxu0 0.0
      %2053 = vmatpush1.msra.mxu0 0.0
      %2054 = vmatprep.subr.mxu0 0.0
      %2055 = vmatpush1.msra.mxu0 0.0
      %2056 = vmatprep.subr.mxu0 0.0
      %2057 = vmatpush1.msra.mxu0 0.0
      %2058 = vmatprep.subr.mxu0 0.0
      %2059 = vmatpush1.msra.mxu0 0.0
      %2060 = vmatprep.mubr.f32.mxu0 0.0
      %2061 = vmatmul.mubr.f32.gmra.mrb[0].mxu0 %v725
      %v2062 = vpop.f32.mrb[0].mxu0
      %v2063 = vadd.f32 0.0, %v2062
      %v2064 = vpop.f32.mrb[0].mxu0
      %2065 = vmatprep.mubr.f32.mxu0 0.0
      %2066 = vmatmul.mubr.f32.gmra.mrb[0].mxu0 %v727
      %v2067 = vpop.f32.mrb[0].mxu0
      %v2068 = vadd.f32 0.0, %v2067
      %v2069 = vpop.f32.mrb[0].mxu0
      %2070 = vmatprep.mubr.f32.mxu0 0.0
      %2071 = vmatmul.mubr.f32.gmra.mrb[0].mxu0 %v729
      %v2072 = vpop.f32.mrb[0].mxu0
      %v2073 = vadd.f32 0.0, %v2072
      %v2074 = vpop.f32.mrb[0].mxu0
      %2075 = vmatprep.mubr.f32.mxu0 0.0
      %2076 = vmatmul.mubr.f32.gmra.mrb[0].mxu0 %v731
      %v2077 = vpop.f32.mrb[0].mxu0
      %v2078 = vadd.f32 0.0, %v2077
      %v2079 = vpop.f32.mrb[0].mxu0
      %2080 = vmatprep.mubr.f32.mxu0 0.0
      %2081 = vmatmul.mubr.f32.gmra.mrb[0].mxu0 %v733
      %v2082 = vpop.f32.mrb[0].mxu0
      %v2083 = vadd.f32 0.0, %v2082
      %v2084 = vpop.f32.mrb[0].mxu0
      %2085 = vmatprep.mubr.f32.mxu0 0.0
      %2086 = vmatmul.mubr.f32.gmra.mrb[0].mxu0 %v735
      %v2087 = vpop.f32.mrb[0].mxu0
      %v2088 = vadd.f32 0.0, %v2087
      %v2089 = vpop.f32.mrb[0].mxu0
      %2090 = vmatprep.mubr.f32.mxu0 0.0
      %2091 = vmatmul.mubr.f32.gmra.mrb[0].mxu0 %v737
      %v2092 = vpop.f32.mrb[0].mxu0
      %v2093 = vadd.f32 0.0, %v2092
      %v2094 = vpop.f32.mrb[0].mxu0
      %2095 = vmatprep.mubr.f32.mxu0 0.0
      %2096 = vmatmul.mubr.f32.gmra.mrb[0].mxu0 %v739
      %v2097 = vpop.f32.mrb[0].mxu0
      %v2098 = vadd.f32 0.0, %v2097
      %v2099 = vpop.f32.mrb[0].mxu0
      %2100 = vmatprep.mubr.f32.mxu0 0.0
      %2101 = vmatmul.mubr.f32.gmra.mrb[0].mxu0 %v741
      %v2102 = vpop.f32.mrb[0].mxu0
      %v2103 = vadd.f32 0.0, %v2102
      %v2104 = vpop.f32.mrb[0].mxu0
      %2105 = vmatprep.mubr.f32.mxu0 0.0
      %2106 = vmatmul.mubr.f32.gmra.mrb[0].mxu0 %v743
      %v2107 = vpop.f32.mrb[0].mxu0
      %v2108 = vadd.f32 0.0, %v2107
      %v2109 = vpop.f32.mrb[0].mxu0
      %2110 = vmatprep.mubr.f32.mxu0 0.0
      %2111 = vmatmul.mubr.f32.gmra.mrb[0].mxu0 %v745
      %v2112 = vpop.f32.mrb[0].mxu0
      %v2113 = vadd.f32 0.0, %v2112
      %v2114 = vpop.f32.mrb[0].mxu0
      %2115 = vmatprep.mubr.f32.mxu0 0.0
      %2116 = vmatmul.mubr.f32.gmra.mrb[0].mxu0 %v747
      %v2117 = vpop.f32.mrb[0].mxu0
      %v2118 = vadd.f32 0.0, %v2117
      %v2119 = vpop.f32.mrb[0].mxu0
      %2120 = vmatprep.mubr.f32.mxu0 0.0
      %2121 = vmatmul.mubr.f32.gmra.mrb[0].mxu0 %v749
      %v2122 = vpop.f32.mrb[0].mxu0
      %v2123 = vadd.f32 0.0, %v2122
      %v2124 = vpop.f32.mrb[0].mxu0
      %2125 = vmatprep.mubr.f32.mxu0 0.0
      %2126 = vmatmul.mubr.f32.gmra.mrb[0].mxu0 %v751
      %v2127 = vpop.f32.mrb[0].mxu0
      %v2128 = vadd.f32 0.0, %v2127
      %v2129 = vpop.f32.mrb[0].mxu0
      %2130 = vmatprep.mubr.f32.mxu0 0.0
      %2131 = vmatmul.mubr.f32.gmra.mrb[0].mxu0 %v753
      %v2132 = vpop.f32.mrb[0].mxu0
      %v2133 = vadd.f32 0.0, %v2132
      %v2134 = vpop.f32.mrb[0].mxu0
      %2135 = vmatprep.mubr.f32.mxu0 0.0
      %2136 = vmatmul.mubr.f32.gmra.mrb[0].mxu0 %v755
      %v2137 = vpop.f32.mrb[0].mxu0
      %v2138 = vadd.f32 0.0, %v2137
      %v2139 = vpop.f32.mrb[0].mxu0
      %2140 = vmatprep.mubr.f32.mxu0 0.0
      %2141 = vmatmul.mubr.f32.gmra.mrb[0].mxu0 %v757
      %v2142 = vpop.f32.mrb[0].mxu0
      %v2143 = vadd.f32 0.0, %v2142
      %v2144 = vpop.f32.mrb[0].mxu0
      %2145 = vmatprep.mubr.f32.mxu0 0.0
      %2146 = vmatmul.mubr.f32.gmra.mrb[0].mxu0 %v759
      %v2147 = vpop.f32.mrb[0].mxu0
      %v2148 = vadd.f32 0.0, %v2147
      %v2149 = vpop.f32.mrb[0].mxu0
      %2150 = vmatprep.mubr.f32.mxu0 0.0
      %2151 = vmatmul.mubr.f32.gmra.mrb[0].mxu0 %v761
      %v2152 = vpop.f32.mrb[0].mxu0
      %v2153 = vadd.f32 0.0, %v2152
      %v2154 = vpop.f32.mrb[0].mxu0
      %2155 = vmatprep.mubr.f32.mxu0 0.0
      %2156 = vmatmul.mubr.f32.gmra.mrb[0].mxu0 %v763
      %v2157 = vpop.f32.mrb[0].mxu0
      %v2158 = vadd.f32 0.0, %v2157
      %v2159 = vpop.f32.mrb[0].mxu0
      %2160 = vmatprep.mubr.f32.mxu0 0.0
      %2161 = vmatmul.mubr.f32.gmra.mrb[0].mxu0 %v765
      %v2162 = vpop.f32.mrb[0].mxu0
      %v2163 = vadd.f32 0.0, %v2162
      %v2164 = vpop.f32.mrb[0].mxu0
      %2165 = vmatprep.mubr.f32.mxu0 0.0
      %2166 = vmatmul.mubr.f32.gmra.mrb[0].mxu0 %v767
      %v2167 = vpop.f32.mrb[0].mxu0
      %v2168 = vadd.f32 0.0, %v2167
      %v2169 = vpop.f32.mrb[0].mxu0
      %2170 = vmatprep.mubr.f32.mxu0 0.0
      %2171 = vmatmul.mubr.f32.gmra.mrb[0].mxu0 %v769
      %v2172 = vpop.f32.mrb[0].mxu0
      %v2173 = vadd.f32 0.0, %v2172
      %v2174 = vpop.f32.mrb[0].mxu0
      %2175 = vmatprep.mubr.f32.mxu0 0.0
      %2176 = vmatmul.mubr.f32.gmra.mrb[0].mxu0 %v771
      %v2177 = vpop.f32.mrb[0].mxu0
      %v2178 = vadd.f32 0.0, %v2177
      %v2179 = vpop.f32.mrb[0].mxu0
      %2180 = vmatprep.mubr.f32.mxu0 0.0
      %2181 = vmatmul.mubr.f32.gmra.mrb[0].mxu0 %v773
      %v2182 = vpop.f32.mrb[0].mxu0
      %v2183 = vadd.f32 0.0, %v2182
      %v2184 = vpop.f32.mrb[0].mxu0
      %2185 = vmatprep.mubr.f32.mxu0 0.0
      %2186 = vmatmul.mubr.f32.gmra.mrb[0].mxu0 %v775
      %v2187 = vpop.f32.mrb[0].mxu0
      %v2188 = vadd.f32 0.0, %v2187
      %v2189 = vpop.f32.mrb[0].mxu0
      %2190 = vmatprep.mubr.f32.mxu0 0.0
      %2191 = vmatmul.mubr.f32.gmra.mrb[0].mxu0 %v777
      %v2192 = vpop.f32.mrb[0].mxu0
      %v2193 = vadd.f32 0.0, %v2192
      %v2194 = vpop.f32.mrb[0].mxu0
      %2195 = vmatprep.mubr.f32.mxu0 0.0
      %2196 = vmatmul.mubr.f32.gmra.mrb[0].mxu0 %v779
      %v2197 = vpop.f32.mrb[0].mxu0
      %v2198 = vadd.f32 0.0, %v2197
      %v2199 = vpop.f32.mrb[0].mxu0
      %2200 = vmatprep.mubr.f32.mxu0 0.0
      %2201 = vmatmul.mubr.f32.gmra.mrb[0].mxu0 %v781
      %v2202 = vpop.f32.mrb[0].mxu0
      %v2203 = vadd.f32 0.0, %v2202
      %v2204 = vpop.f32.mrb[0].mxu0
      %2205 = vmatprep.mubr.f32.mxu0 0.0
      %2206 = vmatmul.mubr.f32.gmra.mrb[0].mxu0 %v783
      %v2207 = vpop.f32.mrb[0].mxu0
      %v2208 = vadd.f32 0.0, %v2207
      %v2209 = vpop.f32.mrb[0].mxu0
      %2210 = vmatprep.mubr.f32.mxu0 0.0
      %2211 = vmatmul.mubr.f32.gmra.mrb[0].mxu0 %v1992
      %v2212 = vpop.f32.mrb[0].mxu0
      %v2213 = vadd.f32 0.0, %v2212
      %v2214 = vpop.f32.mrb[0].mxu0
      %2215 = vmatprep.mubr.f32.mxu0 0.0
      %2216 = vmatmul.mubr.f32.gmra.mrb[0].mxu0 %v1994
      %v2217 = vpop.f32.mrb[0].mxu0
      %v2218 = vadd.f32 0.0, %v2217
      %v2219 = vpop.f32.mrb[0].mxu0
      %2220 = vdwg.mxu0
      %v2221 = vadd.f32 %v1958, %v2063
      %v2222 = vadd.f32 %v1959, %v2068
      %v2223 = vadd.f32 %v1960, %v2073
      %v2224 = vadd.f32 %v1961, %v2078
      %v2225 = vadd.f32 %v1962, %v2083
      %v2226 = vadd.f32 %v1963, %v2088
      %v2227 = vadd.f32 %v1964, %v2093
      %v2228 = vadd.f32 %v1965, %v2098
      %v2229 = vadd.f32 %v1966, %v2103
      %v2230 = vadd.f32 %v1967, %v2108
      %v2231 = vadd.f32 %v1968, %v2113
      %v2232 = vadd.f32 %v1969, %v2118
      %v2233 = vadd.f32 %v1970, %v2123
      %v2234 = vadd.f32 %v1971, %v2128
      %v2235 = vadd.f32 %v1972, %v2133
      %v2236 = vadd.f32 %v1973, %v2138
      %v2237 = vadd.f32 %v1974, %v2143
      %v2238 = vadd.f32 %v1975, %v2148
      %v2239 = vadd.f32 %v1976, %v2153
      %v2240 = vadd.f32 %v1977, %v2158
      %v2241 = vadd.f32 %v1978, %v2163
      %v2242 = vadd.f32 %v1979, %v2168
      %v2243 = vadd.f32 %v1980, %v2173
      %v2244 = vadd.f32 %v1981, %v2178
      %v2245 = vadd.f32 %v1982, %v2183
      %v2246 = vadd.f32 %v1983, %v2188
      %v2247 = vadd.f32 %v1984, %v2193
      %v2248 = vadd.f32 %v1985, %v2198
      %v2249 = vadd.f32 %v1986, %v2203
      %v2250 = vadd.f32 %v1987, %v2208
      %v2251 = vadd.f32 %v1988, %v2213
      %v2252 = vadd.f32 %v1989, %v2218
      %v2254 = vrot.slane %v582, 1
      %v2255 = vrot.slane %v583, 1
      %v2256 = vsel %vm1315, %v2254, %v2255
      %v2257 = vrot.slane %v584, 1
      %v2258 = vsel %vm1315, %v2255, %v2257
      %s2259 = scalar_lea.vmem %s1, 40
      %v2260 = vld [vmem:[%s2259] sm:$0xff]
      %v2261 = vsel %vm411, %v2256, 0
      %v2263 = vsel %vm411, %v2258, 0
      %2265 = vmatprep.subr.mxu0 0.0
      %2266 = vmatpush1.msra.mxu0 %v2260
      %2267 = vmatprep.subr.mxu0 0.0
      %2268 = vmatpush1.msra.mxu0 0.0
      %2269 = vmatprep.subr.mxu0 0.0
      %2270 = vmatpush1.msra.mxu0 0.0
      %2271 = vmatprep.subr.mxu0 0.0
      %2272 = vmatpush1.msra.mxu0 0.0
      %2273 = vmatprep.subr.mxu0 0.0
      %2274 = vmatpush1.msra.mxu0 0.0
      %2275 = vmatprep.subr.mxu0 0.0
      %2276 = vmatpush1.msra.mxu0 0.0
      %2277 = vmatprep.subr.mxu0 0.0
      %2278 = vmatpush1.msra.mxu0 0.0
      %2279 = vmatprep.subr.mxu0 0.0
      %2280 = vmatpush1.msra.mxu0 0.0
      %2281 = vmatprep.subr.mxu0 0.0
      %2282 = vmatpush1.msra.mxu0 0.0
      %2283 = vmatprep.subr.mxu0 0.0
      %2284 = vmatpush1.msra.mxu0 0.0
      %2285 = vmatprep.subr.mxu0 0.0
      %2286 = vmatpush1.msra.mxu0 0.0
      %2287 = vmatprep.subr.mxu0 0.0
      %2288 = vmatpush1.msra.mxu0 0.0
      %2289 = vmatprep.subr.mxu0 0.0
      %2290 = vmatpush1.msra.mxu0 0.0
      %2291 = vmatprep.subr.mxu0 0.0
      %2292 = vmatpush1.msra.mxu0 0.0
      %2293 = vmatprep.subr.mxu0 0.0
      %2294 = vmatpush1.msra.mxu0 0.0
      %2295 = vmatprep.subr.mxu0 0.0
      %2296 = vmatpush1.msra.mxu0 0.0
      %2297 = vmatprep.subr.mxu0 0.0
      %2298 = vmatpush1.msra.mxu0 0.0
      %2299 = vmatprep.subr.mxu0 0.0
      %2300 = vmatpush1.msra.mxu0 0.0
      %2301 = vmatprep.subr.mxu0 0.0
      %2302 = vmatpush1.msra.mxu0 0.0
      %2303 = vmatprep.subr.mxu0 0.0
      %2304 = vmatpush1.msra.mxu0 0.0
      %2305 = vmatprep.subr.mxu0 0.0
      %2306 = vmatpush1.msra.mxu0 0.0
      %2307 = vmatprep.subr.mxu0 0.0
      %2308 = vmatpush1.msra.mxu0 0.0
      %2309 = vmatprep.subr.mxu0 0.0
      %2310 = vmatpush1.msra.mxu0 0.0
      %2311 = vmatprep.subr.mxu0 0.0
      %2312 = vmatpush1.msra.mxu0 0.0
      %2313 = vmatprep.subr.mxu0 0.0
      %2314 = vmatpush1.msra.mxu0 0.0
      %2315 = vmatprep.subr.mxu0 0.0
      %2316 = vmatpush1.msra.mxu0 0.0
      %2317 = vmatprep.subr.mxu0 0.0
      %2318 = vmatpush1.msra.mxu0 0.0
      %2319 = vmatprep.subr.mxu0 0.0
      %2320 = vmatpush1.msra.mxu0 0.0
      %2321 = vmatprep.subr.mxu0 0.0
      %2322 = vmatpush1.msra.mxu0 0.0
      %2323 = vmatprep.subr.mxu0 0.0
      %2324 = vmatpush1.msra.mxu0 0.0
      %2325 = vmatprep.subr.mxu0 0.0
      %2326 = vmatpush1.msra.mxu0 0.0
      %2327 = vmatprep.subr.mxu0 0.0
      %2328 = vmatpush1.msra.mxu0 0.0
      %2329 = vmatprep.mubr.f32.mxu0 0.0
      %2330 = vmatmul.mubr.f32.gmra.mrb[0].mxu0 %v1402
      %v2331 = vpop.f32.mrb[0].mxu0
      %v2332 = vadd.f32 0.0, %v2331
      %v2333 = vpop.f32.mrb[0].mxu0
      %2334 = vmatprep.mubr.f32.mxu0 0.0
      %2335 = vmatmul.mubr.f32.gmra.mrb[0].mxu0 %v1404
      %v2336 = vpop.f32.mrb[0].mxu0
      %v2337 = vadd.f32 0.0, %v2336
      %v2338 = vpop.f32.mrb[0].mxu0
      %2339 = vmatprep.mubr.f32.mxu0 0.0
      %2340 = vmatmul.mubr.f32.gmra.mrb[0].mxu0 %v1406
      %v2341 = vpop.f32.mrb[0].mxu0
      %v2342 = vadd.f32 0.0, %v2341
      %v2343 = vpop.f32.mrb[0].mxu0
      %2344 = vmatprep.mubr.f32.mxu0 0.0
      %2345 = vmatmul.mubr.f32.gmra.mrb[0].mxu0 %v1408
      %v2346 = vpop.f32.mrb[0].mxu0
      %v2347 = vadd.f32 0.0, %v2346
      %v2348 = vpop.f32.mrb[0].mxu0
      %2349 = vmatprep.mubr.f32.mxu0 0.0
      %2350 = vmatmul.mubr.f32.gmra.mrb[0].mxu0 %v1410
      %v2351 = vpop.f32.mrb[0].mxu0
      %v2352 = vadd.f32 0.0, %v2351
      %v2353 = vpop.f32.mrb[0].mxu0
      %2354 = vmatprep.mubr.f32.mxu0 0.0
      %2355 = vmatmul.mubr.f32.gmra.mrb[0].mxu0 %v1412
      %v2356 = vpop.f32.mrb[0].mxu0
      %v2357 = vadd.f32 0.0, %v2356
      %v2358 = vpop.f32.mrb[0].mxu0
      %2359 = vmatprep.mubr.f32.mxu0 0.0
      %2360 = vmatmul.mubr.f32.gmra.mrb[0].mxu0 %v1414
      %v2361 = vpop.f32.mrb[0].mxu0
      %v2362 = vadd.f32 0.0, %v2361
      %v2363 = vpop.f32.mrb[0].mxu0
      %2364 = vmatprep.mubr.f32.mxu0 0.0
      %2365 = vmatmul.mubr.f32.gmra.mrb[0].mxu0 %v1416
      %v2366 = vpop.f32.mrb[0].mxu0
      %v2367 = vadd.f32 0.0, %v2366
      %v2368 = vpop.f32.mrb[0].mxu0
      %2369 = vmatprep.mubr.f32.mxu0 0.0
      %2370 = vmatmul.mubr.f32.gmra.mrb[0].mxu0 %v1418
      %v2371 = vpop.f32.mrb[0].mxu0
      %v2372 = vadd.f32 0.0, %v2371
      %v2373 = vpop.f32.mrb[0].mxu0
      %2374 = vmatprep.mubr.f32.mxu0 0.0
      %2375 = vmatmul.mubr.f32.gmra.mrb[0].mxu0 %v1420
      %v2376 = vpop.f32.mrb[0].mxu0
      %v2377 = vadd.f32 0.0, %v2376
      %v2378 = vpop.f32.mrb[0].mxu0
      %2379 = vmatprep.mubr.f32.mxu0 0.0
      %2380 = vmatmul.mubr.f32.gmra.mrb[0].mxu0 %v1422
      %v2381 = vpop.f32.mrb[0].mxu0
      %v2382 = vadd.f32 0.0, %v2381
      %v2383 = vpop.f32.mrb[0].mxu0
      %2384 = vmatprep.mubr.f32.mxu0 0.0
      %2385 = vmatmul.mubr.f32.gmra.mrb[0].mxu0 %v1424
      %v2386 = vpop.f32.mrb[0].mxu0
      %v2387 = vadd.f32 0.0, %v2386
      %v2388 = vpop.f32.mrb[0].mxu0
      %2389 = vmatprep.mubr.f32.mxu0 0.0
      %2390 = vmatmul.mubr.f32.gmra.mrb[0].mxu0 %v1426
      %v2391 = vpop.f32.mrb[0].mxu0
      %v2392 = vadd.f32 0.0, %v2391
      %v2393 = vpop.f32.mrb[0].mxu0
      %2394 = vmatprep.mubr.f32.mxu0 0.0
      %2395 = vmatmul.mubr.f32.gmra.mrb[0].mxu0 %v1428
      %v2396 = vpop.f32.mrb[0].mxu0
      %v2397 = vadd.f32 0.0, %v2396
      %v2398 = vpop.f32.mrb[0].mxu0
      %2399 = vmatprep.mubr.f32.mxu0 0.0
      %2400 = vmatmul.mubr.f32.gmra.mrb[0].mxu0 %v1430
      %v2401 = vpop.f32.mrb[0].mxu0
      %v2402 = vadd.f32 0.0, %v2401
      %v2403 = vpop.f32.mrb[0].mxu0
      %2404 = vmatprep.mubr.f32.mxu0 0.0
      %2405 = vmatmul.mubr.f32.gmra.mrb[0].mxu0 %v1432
      %v2406 = vpop.f32.mrb[0].mxu0
      %v2407 = vadd.f32 0.0, %v2406
      %v2408 = vpop.f32.mrb[0].mxu0
      %2409 = vmatprep.mubr.f32.mxu0 0.0
      %2410 = vmatmul.mubr.f32.gmra.mrb[0].mxu0 %v1434
      %v2411 = vpop.f32.mrb[0].mxu0
      %v2412 = vadd.f32 0.0, %v2411
      %v2413 = vpop.f32.mrb[0].mxu0
      %2414 = vmatprep.mubr.f32.mxu0 0.0
      %2415 = vmatmul.mubr.f32.gmra.mrb[0].mxu0 %v1436
      %v2416 = vpop.f32.mrb[0].mxu0
      %v2417 = vadd.f32 0.0, %v2416
      %v2418 = vpop.f32.mrb[0].mxu0
      %2419 = vmatprep.mubr.f32.mxu0 0.0
      %2420 = vmatmul.mubr.f32.gmra.mrb[0].mxu0 %v1438
      %v2421 = vpop.f32.mrb[0].mxu0
      %v2422 = vadd.f32 0.0, %v2421
      %v2423 = vpop.f32.mrb[0].mxu0
      %2424 = vmatprep.mubr.f32.mxu0 0.0
      %2425 = vmatmul.mubr.f32.gmra.mrb[0].mxu0 %v1440
      %v2426 = vpop.f32.mrb[0].mxu0
      %v2427 = vadd.f32 0.0, %v2426
      %v2428 = vpop.f32.mrb[0].mxu0
      %2429 = vmatprep.mubr.f32.mxu0 0.0
      %2430 = vmatmul.mubr.f32.gmra.mrb[0].mxu0 %v1442
      %v2431 = vpop.f32.mrb[0].mxu0
      %v2432 = vadd.f32 0.0, %v2431
      %v2433 = vpop.f32.mrb[0].mxu0
      %2434 = vmatprep.mubr.f32.mxu0 0.0
      %2435 = vmatmul.mubr.f32.gmra.mrb[0].mxu0 %v1444
      %v2436 = vpop.f32.mrb[0].mxu0
      %v2437 = vadd.f32 0.0, %v2436
      %v2438 = vpop.f32.mrb[0].mxu0
      %2439 = vmatprep.mubr.f32.mxu0 0.0
      %2440 = vmatmul.mubr.f32.gmra.mrb[0].mxu0 %v1446
      %v2441 = vpop.f32.mrb[0].mxu0
      %v2442 = vadd.f32 0.0, %v2441
      %v2443 = vpop.f32.mrb[0].mxu0
      %2444 = vmatprep.mubr.f32.mxu0 0.0
      %2445 = vmatmul.mubr.f32.gmra.mrb[0].mxu0 %v1448
      %v2446 = vpop.f32.mrb[0].mxu0
      %v2447 = vadd.f32 0.0, %v2446
      %v2448 = vpop.f32.mrb[0].mxu0
      %2449 = vmatprep.mubr.f32.mxu0 0.0
      %2450 = vmatmul.mubr.f32.gmra.mrb[0].mxu0 %v1450
      %v2451 = vpop.f32.mrb[0].mxu0
      %v2452 = vadd.f32 0.0, %v2451
      %v2453 = vpop.f32.mrb[0].mxu0
      %2454 = vmatprep.mubr.f32.mxu0 0.0
      %2455 = vmatmul.mubr.f32.gmra.mrb[0].mxu0 %v1452
      %v2456 = vpop.f32.mrb[0].mxu0
      %v2457 = vadd.f32 0.0, %v2456
      %v2458 = vpop.f32.mrb[0].mxu0
      %2459 = vmatprep.mubr.f32.mxu0 0.0
      %2460 = vmatmul.mubr.f32.gmra.mrb[0].mxu0 %v1454
      %v2461 = vpop.f32.mrb[0].mxu0
      %v2462 = vadd.f32 0.0, %v2461
      %v2463 = vpop.f32.mrb[0].mxu0
      %2464 = vmatprep.mubr.f32.mxu0 0.0
      %2465 = vmatmul.mubr.f32.gmra.mrb[0].mxu0 %v1456
      %v2466 = vpop.f32.mrb[0].mxu0
      %v2467 = vadd.f32 0.0, %v2466
      %v2468 = vpop.f32.mrb[0].mxu0
      %2469 = vmatprep.mubr.f32.mxu0 0.0
      %2470 = vmatmul.mubr.f32.gmra.mrb[0].mxu0 %v1458
      %v2471 = vpop.f32.mrb[0].mxu0
      %v2472 = vadd.f32 0.0, %v2471
      %v2473 = vpop.f32.mrb[0].mxu0
      %2474 = vmatprep.mubr.f32.mxu0 0.0
      %2475 = vmatmul.mubr.f32.gmra.mrb[0].mxu0 %v1460
      %v2476 = vpop.f32.mrb[0].mxu0
      %v2477 = vadd.f32 0.0, %v2476
      %v2478 = vpop.f32.mrb[0].mxu0
      %2479 = vmatprep.mubr.f32.mxu0 0.0
      %2480 = vmatmul.mubr.f32.gmra.mrb[0].mxu0 %v2261
      %v2481 = vpop.f32.mrb[0].mxu0
      %v2482 = vadd.f32 0.0, %v2481
      %v2483 = vpop.f32.mrb[0].mxu0
      %2484 = vmatprep.mubr.f32.mxu0 0.0
      %2485 = vmatmul.mubr.f32.gmra.mrb[0].mxu0 %v2263
      %v2486 = vpop.f32.mrb[0].mxu0
      %v2487 = vadd.f32 0.0, %v2486
      %v2488 = vpop.f32.mrb[0].mxu0
      %2489 = vdwg.mxu0
      %v2490 = vadd.f32 %v2221, %v2332
      %v2491 = vadd.f32 %v2222, %v2337
      %v2492 = vadd.f32 %v2223, %v2342
      %v2493 = vadd.f32 %v2224, %v2347
      %v2494 = vadd.f32 %v2225, %v2352
      %v2495 = vadd.f32 %v2226, %v2357
      %v2496 = vadd.f32 %v2227, %v2362
      %v2497 = vadd.f32 %v2228, %v2367
      %v2498 = vadd.f32 %v2229, %v2372
      %v2499 = vadd.f32 %v2230, %v2377
      %v2500 = vadd.f32 %v2231, %v2382
      %v2501 = vadd.f32 %v2232, %v2387
      %v2502 = vadd.f32 %v2233, %v2392
      %v2503 = vadd.f32 %v2234, %v2397
      %v2504 = vadd.f32 %v2235, %v2402
      %v2505 = vadd.f32 %v2236, %v2407
      %v2506 = vadd.f32 %v2237, %v2412
      %v2507 = vadd.f32 %v2238, %v2417
      %v2508 = vadd.f32 %v2239, %v2422
      %v2509 = vadd.f32 %v2240, %v2427
      %v2510 = vadd.f32 %v2241, %v2432
      %v2511 = vadd.f32 %v2242, %v2437
      %v2512 = vadd.f32 %v2243, %v2442
      %v2513 = vadd.f32 %v2244, %v2447
      %v2514 = vadd.f32 %v2245, %v2452
      %v2515 = vadd.f32 %v2246, %v2457
      %v2516 = vadd.f32 %v2247, %v2462
      %v2517 = vadd.f32 %v2248, %v2467
      %v2518 = vadd.f32 %v2249, %v2472
      %v2519 = vadd.f32 %v2250, %v2477
      %v2520 = vadd.f32 %v2251, %v2482
      %v2521 = vadd.f32 %v2252, %v2487
      %v2525 = vrot.slane %v585, 7
      %v2526 = vrot.slane %v586, 7
      %v2527 = vsel %vm637, %v2525, %v2526
      %v2528 = vrot.slane %v587, 7
      %v2529 = vsel %vm637, %v2526, %v2528
      %s2530 = scalar_lea.vmem %s1, 48
      %v2531 = vld [vmem:[%s2530] sm:$0xff]
      %v2532 = vsel %vm411, %v2527, 0
      %v2534 = vsel %vm411, %v2529, 0
      %2536 = vmatprep.subr.mxu0 0.0
      %2537 = vmatpush1.msra.mxu0 %v2531
      %2538 = vmatprep.subr.mxu0 0.0
      %2539 = vmatpush1.msra.mxu0 0.0
      %2540 = vmatprep.subr.mxu0 0.0
      %2541 = vmatpush1.msra.mxu0 0.0
      %2542 = vmatprep.subr.mxu0 0.0
      %2543 = vmatpush1.msra.mxu0 0.0
      %2544 = vmatprep.subr.mxu0 0.0
      %2545 = vmatpush1.msra.mxu0 0.0
      %2546 = vmatprep.subr.mxu0 0.0
      %2547 = vmatpush1.msra.mxu0 0.0
      %2548 = vmatprep.subr.mxu0 0.0
      %2549 = vmatpush1.msra.mxu0 0.0
      %2550 = vmatprep.subr.mxu0 0.0
      %2551 = vmatpush1.msra.mxu0 0.0
      %2552 = vmatprep.subr.mxu0 0.0
      %2553 = vmatpush1.msra.mxu0 0.0
      %2554 = vmatprep.subr.mxu0 0.0
      %2555 = vmatpush1.msra.mxu0 0.0
      %2556 = vmatprep.subr.mxu0 0.0
      %2557 = vmatpush1.msra.mxu0 0.0
      %2558 = vmatprep.subr.mxu0 0.0
      %2559 = vmatpush1.msra.mxu0 0.0
      %2560 = vmatprep.subr.mxu0 0.0
      %2561 = vmatpush1.msra.mxu0 0.0
      %2562 = vmatprep.subr.mxu0 0.0
      %2563 = vmatpush1.msra.mxu0 0.0
      %2564 = vmatprep.subr.mxu0 0.0
      %2565 = vmatpush1.msra.mxu0 0.0
      %2566 = vmatprep.subr.mxu0 0.0
      %2567 = vmatpush1.msra.mxu0 0.0
      %2568 = vmatprep.subr.mxu0 0.0
      %2569 = vmatpush1.msra.mxu0 0.0
      %2570 = vmatprep.subr.mxu0 0.0
      %2571 = vmatpush1.msra.mxu0 0.0
      %2572 = vmatprep.subr.mxu0 0.0
      %2573 = vmatpush1.msra.mxu0 0.0
      %2574 = vmatprep.subr.mxu0 0.0
      %2575 = vmatpush1.msra.mxu0 0.0
      %2576 = vmatprep.subr.mxu0 0.0
      %2577 = vmatpush1.msra.mxu0 0.0
      %2578 = vmatprep.subr.mxu0 0.0
      %2579 = vmatpush1.msra.mxu0 0.0
      %2580 = vmatprep.subr.mxu0 0.0
      %2581 = vmatpush1.msra.mxu0 0.0
      %2582 = vmatprep.subr.mxu0 0.0
      %2583 = vmatpush1.msra.mxu0 0.0
      %2584 = vmatprep.subr.mxu0 0.0
      %2585 = vmatpush1.msra.mxu0 0.0
      %2586 = vmatprep.subr.mxu0 0.0
      %2587 = vmatpush1.msra.mxu0 0.0
      %2588 = vmatprep.subr.mxu0 0.0
      %2589 = vmatpush1.msra.mxu0 0.0
      %2590 = vmatprep.subr.mxu0 0.0
      %2591 = vmatpush1.msra.mxu0 0.0
      %2592 = vmatprep.subr.mxu0 0.0
      %2593 = vmatpush1.msra.mxu0 0.0
      %2594 = vmatprep.subr.mxu0 0.0
      %2595 = vmatpush1.msra.mxu0 0.0
      %2596 = vmatprep.subr.mxu0 0.0
      %2597 = vmatpush1.msra.mxu0 0.0
      %2598 = vmatprep.subr.mxu0 0.0
      %2599 = vmatpush1.msra.mxu0 0.0
      %2600 = vmatprep.mubr.f32.mxu0 0.0
      %2601 = vmatmul.mubr.f32.gmra.mrb[0].mxu0 %v1018
      %v2602 = vpop.f32.mrb[0].mxu0
      %v2603 = vadd.f32 0.0, %v2602
      %v2604 = vpop.f32.mrb[0].mxu0
      %2605 = vmatprep.mubr.f32.mxu0 0.0
      %2606 = vmatmul.mubr.f32.gmra.mrb[0].mxu0 %v1020
      %v2607 = vpop.f32.mrb[0].mxu0
      %v2608 = vadd.f32 0.0, %v2607
      %v2609 = vpop.f32.mrb[0].mxu0
      %2610 = vmatprep.mubr.f32.mxu0 0.0
      %2611 = vmatmul.mubr.f32.gmra.mrb[0].mxu0 %v1022
      %v2612 = vpop.f32.mrb[0].mxu0
      %v2613 = vadd.f32 0.0, %v2612
      %v2614 = vpop.f32.mrb[0].mxu0
      %2615 = vmatprep.mubr.f32.mxu0 0.0
      %2616 = vmatmul.mubr.f32.gmra.mrb[0].mxu0 %v1024
      %v2617 = vpop.f32.mrb[0].mxu0
      %v2618 = vadd.f32 0.0, %v2617
      %v2619 = vpop.f32.mrb[0].mxu0
      %2620 = vmatprep.mubr.f32.mxu0 0.0
      %2621 = vmatmul.mubr.f32.gmra.mrb[0].mxu0 %v1026
      %v2622 = vpop.f32.mrb[0].mxu0
      %v2623 = vadd.f32 0.0, %v2622
      %v2624 = vpop.f32.mrb[0].mxu0
      %2625 = vmatprep.mubr.f32.mxu0 0.0
      %2626 = vmatmul.mubr.f32.gmra.mrb[0].mxu0 %v1028
      %v2627 = vpop.f32.mrb[0].mxu0
      %v2628 = vadd.f32 0.0, %v2627
      %v2629 = vpop.f32.mrb[0].mxu0
      %2630 = vmatprep.mubr.f32.mxu0 0.0
      %2631 = vmatmul.mubr.f32.gmra.mrb[0].mxu0 %v1030
      %v2632 = vpop.f32.mrb[0].mxu0
      %v2633 = vadd.f32 0.0, %v2632
      %v2634 = vpop.f32.mrb[0].mxu0
      %2635 = vmatprep.mubr.f32.mxu0 0.0
      %2636 = vmatmul.mubr.f32.gmra.mrb[0].mxu0 %v1032
      %v2637 = vpop.f32.mrb[0].mxu0
      %v2638 = vadd.f32 0.0, %v2637
      %v2639 = vpop.f32.mrb[0].mxu0
      %2640 = vmatprep.mubr.f32.mxu0 0.0
      %2641 = vmatmul.mubr.f32.gmra.mrb[0].mxu0 %v1034
      %v2642 = vpop.f32.mrb[0].mxu0
      %v2643 = vadd.f32 0.0, %v2642
      %v2644 = vpop.f32.mrb[0].mxu0
      %2645 = vmatprep.mubr.f32.mxu0 0.0
      %2646 = vmatmul.mubr.f32.gmra.mrb[0].mxu0 %v1036
      %v2647 = vpop.f32.mrb[0].mxu0
      %v2648 = vadd.f32 0.0, %v2647
      %v2649 = vpop.f32.mrb[0].mxu0
      %2650 = vmatprep.mubr.f32.mxu0 0.0
      %2651 = vmatmul.mubr.f32.gmra.mrb[0].mxu0 %v1038
      %v2652 = vpop.f32.mrb[0].mxu0
      %v2653 = vadd.f32 0.0, %v2652
      %v2654 = vpop.f32.mrb[0].mxu0
      %2655 = vmatprep.mubr.f32.mxu0 0.0
      %2656 = vmatmul.mubr.f32.gmra.mrb[0].mxu0 %v1040
      %v2657 = vpop.f32.mrb[0].mxu0
      %v2658 = vadd.f32 0.0, %v2657
      %v2659 = vpop.f32.mrb[0].mxu0
      %2660 = vmatprep.mubr.f32.mxu0 0.0
      %2661 = vmatmul.mubr.f32.gmra.mrb[0].mxu0 %v1042
      %v2662 = vpop.f32.mrb[0].mxu0
      %v2663 = vadd.f32 0.0, %v2662
      %v2664 = vpop.f32.mrb[0].mxu0
      %2665 = vmatprep.mubr.f32.mxu0 0.0
      %2666 = vmatmul.mubr.f32.gmra.mrb[0].mxu0 %v1044
      %v2667 = vpop.f32.mrb[0].mxu0
      %v2668 = vadd.f32 0.0, %v2667
      %v2669 = vpop.f32.mrb[0].mxu0
      %2670 = vmatprep.mubr.f32.mxu0 0.0
      %2671 = vmatmul.mubr.f32.gmra.mrb[0].mxu0 %v1046
      %v2672 = vpop.f32.mrb[0].mxu0
      %v2673 = vadd.f32 0.0, %v2672
      %v2674 = vpop.f32.mrb[0].mxu0
      %2675 = vmatprep.mubr.f32.mxu0 0.0
      %2676 = vmatmul.mubr.f32.gmra.mrb[0].mxu0 %v1048
      %v2677 = vpop.f32.mrb[0].mxu0
      %v2678 = vadd.f32 0.0, %v2677
      %v2679 = vpop.f32.mrb[0].mxu0
      %2680 = vmatprep.mubr.f32.mxu0 0.0
      %2681 = vmatmul.mubr.f32.gmra.mrb[0].mxu0 %v1050
      %v2682 = vpop.f32.mrb[0].mxu0
      %v2683 = vadd.f32 0.0, %v2682
      %v2684 = vpop.f32.mrb[0].mxu0
      %2685 = vmatprep.mubr.f32.mxu0 0.0
      %2686 = vmatmul.mubr.f32.gmra.mrb[0].mxu0 %v1052
      %v2687 = vpop.f32.mrb[0].mxu0
      %v2688 = vadd.f32 0.0, %v2687
      %v2689 = vpop.f32.mrb[0].mxu0
      %2690 = vmatprep.mubr.f32.mxu0 0.0
      %2691 = vmatmul.mubr.f32.gmra.mrb[0].mxu0 %v1054
      %v2692 = vpop.f32.mrb[0].mxu0
      %v2693 = vadd.f32 0.0, %v2692
      %v2694 = vpop.f32.mrb[0].mxu0
      %2695 = vmatprep.mubr.f32.mxu0 0.0
      %2696 = vmatmul.mubr.f32.gmra.mrb[0].mxu0 %v1056
      %v2697 = vpop.f32.mrb[0].mxu0
      %v2698 = vadd.f32 0.0, %v2697
      %v2699 = vpop.f32.mrb[0].mxu0
      %2700 = vmatprep.mubr.f32.mxu0 0.0
      %2701 = vmatmul.mubr.f32.gmra.mrb[0].mxu0 %v1058
      %v2702 = vpop.f32.mrb[0].mxu0
      %v2703 = vadd.f32 0.0, %v2702
      %v2704 = vpop.f32.mrb[0].mxu0
      %2705 = vmatprep.mubr.f32.mxu0 0.0
      %2706 = vmatmul.mubr.f32.gmra.mrb[0].mxu0 %v1060
      %v2707 = vpop.f32.mrb[0].mxu0
      %v2708 = vadd.f32 0.0, %v2707
      %v2709 = vpop.f32.mrb[0].mxu0
      %2710 = vmatprep.mubr.f32.mxu0 0.0
      %2711 = vmatmul.mubr.f32.gmra.mrb[0].mxu0 %v1062
      %v2712 = vpop.f32.mrb[0].mxu0
      %v2713 = vadd.f32 0.0, %v2712
      %v2714 = vpop.f32.mrb[0].mxu0
      %2715 = vmatprep.mubr.f32.mxu0 0.0
      %2716 = vmatmul.mubr.f32.gmra.mrb[0].mxu0 %v1064
      %v2717 = vpop.f32.mrb[0].mxu0
      %v2718 = vadd.f32 0.0, %v2717
      %v2719 = vpop.f32.mrb[0].mxu0
      %2720 = vmatprep.mubr.f32.mxu0 0.0
      %2721 = vmatmul.mubr.f32.gmra.mrb[0].mxu0 %v1066
      %v2722 = vpop.f32.mrb[0].mxu0
      %v2723 = vadd.f32 0.0, %v2722
      %v2724 = vpop.f32.mrb[0].mxu0
      %2725 = vmatprep.mubr.f32.mxu0 0.0
      %2726 = vmatmul.mubr.f32.gmra.mrb[0].mxu0 %v1068
      %v2727 = vpop.f32.mrb[0].mxu0
      %v2728 = vadd.f32 0.0, %v2727
      %v2729 = vpop.f32.mrb[0].mxu0
      %2730 = vmatprep.mubr.f32.mxu0 0.0
      %2731 = vmatmul.mubr.f32.gmra.mrb[0].mxu0 %v1070
      %v2732 = vpop.f32.mrb[0].mxu0
      %v2733 = vadd.f32 0.0, %v2732
      %v2734 = vpop.f32.mrb[0].mxu0
      %2735 = vmatprep.mubr.f32.mxu0 0.0
      %2736 = vmatmul.mubr.f32.gmra.mrb[0].mxu0 %v1072
      %v2737 = vpop.f32.mrb[0].mxu0
      %v2738 = vadd.f32 0.0, %v2737
      %v2739 = vpop.f32.mrb[0].mxu0
      %2740 = vmatprep.mubr.f32.mxu0 0.0
      %2741 = vmatmul.mubr.f32.gmra.mrb[0].mxu0 %v1729
      %v2742 = vpop.f32.mrb[0].mxu0
      %v2743 = vadd.f32 0.0, %v2742
      %v2744 = vpop.f32.mrb[0].mxu0
      %2745 = vmatprep.mubr.f32.mxu0 0.0
      %2746 = vmatmul.mubr.f32.gmra.mrb[0].mxu0 %v1731
      %v2747 = vpop.f32.mrb[0].mxu0
      %v2748 = vadd.f32 0.0, %v2747
      %v2749 = vpop.f32.mrb[0].mxu0
      %2750 = vmatprep.mubr.f32.mxu0 0.0
      %2751 = vmatmul.mubr.f32.gmra.mrb[0].mxu0 %v2532
      %v2752 = vpop.f32.mrb[0].mxu0
      %v2753 = vadd.f32 0.0, %v2752
      %v2754 = vpop.f32.mrb[0].mxu0
      %2755 = vmatprep.mubr.f32.mxu0 0.0
      %2756 = vmatmul.mubr.f32.gmra.mrb[0].mxu0 %v2534
      %v2757 = vpop.f32.mrb[0].mxu0
      %v2758 = vadd.f32 0.0, %v2757
      %v2759 = vpop.f32.mrb[0].mxu0
      %2760 = vdwg.mxu0
      %v2761 = vadd.f32 %v2490, %v2603
      %v2762 = vadd.f32 %v2491, %v2608
      %v2763 = vadd.f32 %v2492, %v2613
      %v2764 = vadd.f32 %v2493, %v2618
      %v2765 = vadd.f32 %v2494, %v2623
      %v2766 = vadd.f32 %v2495, %v2628
      %v2767 = vadd.f32 %v2496, %v2633
      %v2768 = vadd.f32 %v2497, %v2638
      %v2769 = vadd.f32 %v2498, %v2643
      %v2770 = vadd.f32 %v2499, %v2648
      %v2771 = vadd.f32 %v2500, %v2653
      %v2772 = vadd.f32 %v2501, %v2658
      %v2773 = vadd.f32 %v2502, %v2663
      %v2774 = vadd.f32 %v2503, %v2668
      %v2775 = vadd.f32 %v2504, %v2673
      %v2776 = vadd.f32 %v2505, %v2678
      %v2777 = vadd.f32 %v2506, %v2683
      %v2778 = vadd.f32 %v2507, %v2688
      %v2779 = vadd.f32 %v2508, %v2693
      %v2780 = vadd.f32 %v2509, %v2698
      %v2781 = vadd.f32 %v2510, %v2703
      %v2782 = vadd.f32 %v2511, %v2708
      %v2783 = vadd.f32 %v2512, %v2713
      %v2784 = vadd.f32 %v2513, %v2718
      %v2785 = vadd.f32 %v2514, %v2723
      %v2786 = vadd.f32 %v2515, %v2728
      %v2787 = vadd.f32 %v2516, %v2733
      %v2788 = vadd.f32 %v2517, %v2738
      %v2789 = vadd.f32 %v2518, %v2743
      %v2790 = vadd.f32 %v2519, %v2748
      %v2791 = vadd.f32 %v2520, %v2753
      %v2792 = vadd.f32 %v2521, %v2758
      %s2793 = scalar_lea.vmem %s1, 56
      %v2794 = vld [vmem:[%s2793] sm:$0xff]
      %v2795 = vsel %vm411, %v586, 0
      %v2797 = vsel %vm411, %v587, 0
      %2799 = vmatprep.subr.mxu0 0.0
      %2800 = vmatpush1.msra.mxu0 %v2794
      %2801 = vmatprep.subr.mxu0 0.0
      %2802 = vmatpush1.msra.mxu0 0.0
      %2803 = vmatprep.subr.mxu0 0.0
      %2804 = vmatpush1.msra.mxu0 0.0
      %2805 = vmatprep.subr.mxu0 0.0
      %2806 = vmatpush1.msra.mxu0 0.0
      %2807 = vmatprep.subr.mxu0 0.0
      %2808 = vmatpush1.msra.mxu0 0.0
      %2809 = vmatprep.subr.mxu0 0.0
      %2810 = vmatpush1.msra.mxu0 0.0
      %2811 = vmatprep.subr.mxu0 0.0
      %2812 = vmatpush1.msra.mxu0 0.0
      %2813 = vmatprep.subr.mxu0 0.0
      %2814 = vmatpush1.msra.mxu0 0.0
      %2815 = vmatprep.subr.mxu0 0.0
      %2816 = vmatpush1.msra.mxu0 0.0
      %2817 = vmatprep.subr.mxu0 0.0
      %2818 = vmatpush1.msra.mxu0 0.0
      %2819 = vmatprep.subr.mxu0 0.0
      %2820 = vmatpush1.msra.mxu0 0.0
      %2821 = vmatprep.subr.mxu0 0.0
      %2822 = vmatpush1.msra.mxu0 0.0
      %2823 = vmatprep.subr.mxu0 0.0
      %2824 = vmatpush1.msra.mxu0 0.0
      %2825 = vmatprep.subr.mxu0 0.0
      %2826 = vmatpush1.msra.mxu0 0.0
      %2827 = vmatprep.subr.mxu0 0.0
      %2828 = vmatpush1.msra.mxu0 0.0
      %2829 = vmatprep.subr.mxu0 0.0
      %2830 = vmatpush1.msra.mxu0 0.0
      %2831 = vmatprep.subr.mxu0 0.0
      %2832 = vmatpush1.msra.mxu0 0.0
      %2833 = vmatprep.subr.mxu0 0.0
      %2834 = vmatpush1.msra.mxu0 0.0
      %2835 = vmatprep.subr.mxu0 0.0
      %2836 = vmatpush1.msra.mxu0 0.0
      %2837 = vmatprep.subr.mxu0 0.0
      %2838 = vmatpush1.msra.mxu0 0.0
      %2839 = vmatprep.subr.mxu0 0.0
      %2840 = vmatpush1.msra.mxu0 0.0
      %2841 = vmatprep.subr.mxu0 0.0
      %2842 = vmatpush1.msra.mxu0 0.0
      %2843 = vmatprep.subr.mxu0 0.0
      %2844 = vmatpush1.msra.mxu0 0.0
      %2845 = vmatprep.subr.mxu0 0.0
      %2846 = vmatpush1.msra.mxu0 0.0
      %2847 = vmatprep.subr.mxu0 0.0
      %2848 = vmatpush1.msra.mxu0 0.0
      %2849 = vmatprep.subr.mxu0 0.0
      %2850 = vmatpush1.msra.mxu0 0.0
      %2851 = vmatprep.subr.mxu0 0.0
      %2852 = vmatpush1.msra.mxu0 0.0
      %2853 = vmatprep.subr.mxu0 0.0
      %2854 = vmatpush1.msra.mxu0 0.0
      %2855 = vmatprep.subr.mxu0 0.0
      %2856 = vmatpush1.msra.mxu0 0.0
      %2857 = vmatprep.subr.mxu0 0.0
      %2858 = vmatpush1.msra.mxu0 0.0
      %2859 = vmatprep.subr.mxu0 0.0
      %2860 = vmatpush1.msra.mxu0 0.0
      %2861 = vmatprep.subr.mxu0 0.0
      %2862 = vmatpush1.msra.mxu0 0.0
      %2863 = vmatprep.mubr.f32.mxu0 0.0
      %2864 = vmatmul.mubr.f32.gmra.mrb[0].mxu0 %v729
      %v2865 = vpop.f32.mrb[0].mxu0
      %v2866 = vadd.f32 0.0, %v2865
      %v2867 = vpop.f32.mrb[0].mxu0
      %2868 = vmatprep.mubr.f32.mxu0 0.0
      %2869 = vmatmul.mubr.f32.gmra.mrb[0].mxu0 %v731
      %v2870 = vpop.f32.mrb[0].mxu0
      %v2871 = vadd.f32 0.0, %v2870
      %v2872 = vpop.f32.mrb[0].mxu0
      %2873 = vmatprep.mubr.f32.mxu0 0.0
      %2874 = vmatmul.mubr.f32.gmra.mrb[0].mxu0 %v733
      %v2875 = vpop.f32.mrb[0].mxu0
      %v2876 = vadd.f32 0.0, %v2875
      %v2877 = vpop.f32.mrb[0].mxu0
      %2878 = vmatprep.mubr.f32.mxu0 0.0
      %2879 = vmatmul.mubr.f32.gmra.mrb[0].mxu0 %v735
      %v2880 = vpop.f32.mrb[0].mxu0
      %v2881 = vadd.f32 0.0, %v2880
      %v2882 = vpop.f32.mrb[0].mxu0
      %2883 = vmatprep.mubr.f32.mxu0 0.0
      %2884 = vmatmul.mubr.f32.gmra.mrb[0].mxu0 %v737
      %v2885 = vpop.f32.mrb[0].mxu0
      %v2886 = vadd.f32 0.0, %v2885
      %v2887 = vpop.f32.mrb[0].mxu0
      %2888 = vmatprep.mubr.f32.mxu0 0.0
      %2889 = vmatmul.mubr.f32.gmra.mrb[0].mxu0 %v739
      %v2890 = vpop.f32.mrb[0].mxu0
      %v2891 = vadd.f32 0.0, %v2890
      %v2892 = vpop.f32.mrb[0].mxu0
      %2893 = vmatprep.mubr.f32.mxu0 0.0
      %2894 = vmatmul.mubr.f32.gmra.mrb[0].mxu0 %v741
      %v2895 = vpop.f32.mrb[0].mxu0
      %v2896 = vadd.f32 0.0, %v2895
      %v2897 = vpop.f32.mrb[0].mxu0
      %2898 = vmatprep.mubr.f32.mxu0 0.0
      %2899 = vmatmul.mubr.f32.gmra.mrb[0].mxu0 %v743
      %v2900 = vpop.f32.mrb[0].mxu0
      %v2901 = vadd.f32 0.0, %v2900
      %v2902 = vpop.f32.mrb[0].mxu0
      %2903 = vmatprep.mubr.f32.mxu0 0.0
      %2904 = vmatmul.mubr.f32.gmra.mrb[0].mxu0 %v745
      %v2905 = vpop.f32.mrb[0].mxu0
      %v2906 = vadd.f32 0.0, %v2905
      %v2907 = vpop.f32.mrb[0].mxu0
      %2908 = vmatprep.mubr.f32.mxu0 0.0
      %2909 = vmatmul.mubr.f32.gmra.mrb[0].mxu0 %v747
      %v2910 = vpop.f32.mrb[0].mxu0
      %v2911 = vadd.f32 0.0, %v2910
      %v2912 = vpop.f32.mrb[0].mxu0
      %2913 = vmatprep.mubr.f32.mxu0 0.0
      %2914 = vmatmul.mubr.f32.gmra.mrb[0].mxu0 %v749
      %v2915 = vpop.f32.mrb[0].mxu0
      %v2916 = vadd.f32 0.0, %v2915
      %v2917 = vpop.f32.mrb[0].mxu0
      %2918 = vmatprep.mubr.f32.mxu0 0.0
      %2919 = vmatmul.mubr.f32.gmra.mrb[0].mxu0 %v751
      %v2920 = vpop.f32.mrb[0].mxu0
      %v2921 = vadd.f32 0.0, %v2920
      %v2922 = vpop.f32.mrb[0].mxu0
      %2923 = vmatprep.mubr.f32.mxu0 0.0
      %2924 = vmatmul.mubr.f32.gmra.mrb[0].mxu0 %v753
      %v2925 = vpop.f32.mrb[0].mxu0
      %v2926 = vadd.f32 0.0, %v2925
      %v2927 = vpop.f32.mrb[0].mxu0
      %2928 = vmatprep.mubr.f32.mxu0 0.0
      %2929 = vmatmul.mubr.f32.gmra.mrb[0].mxu0 %v755
      %v2930 = vpop.f32.mrb[0].mxu0
      %v2931 = vadd.f32 0.0, %v2930
      %v2932 = vpop.f32.mrb[0].mxu0
      %2933 = vmatprep.mubr.f32.mxu0 0.0
      %2934 = vmatmul.mubr.f32.gmra.mrb[0].mxu0 %v757
      %v2935 = vpop.f32.mrb[0].mxu0
      %v2936 = vadd.f32 0.0, %v2935
      %v2937 = vpop.f32.mrb[0].mxu0
      %2938 = vmatprep.mubr.f32.mxu0 0.0
      %2939 = vmatmul.mubr.f32.gmra.mrb[0].mxu0 %v759
      %v2940 = vpop.f32.mrb[0].mxu0
      %v2941 = vadd.f32 0.0, %v2940
      %v2942 = vpop.f32.mrb[0].mxu0
      %2943 = vmatprep.mubr.f32.mxu0 0.0
      %2944 = vmatmul.mubr.f32.gmra.mrb[0].mxu0 %v761
      %v2945 = vpop.f32.mrb[0].mxu0
      %v2946 = vadd.f32 0.0, %v2945
      %v2947 = vpop.f32.mrb[0].mxu0
      %2948 = vmatprep.mubr.f32.mxu0 0.0
      %2949 = vmatmul.mubr.f32.gmra.mrb[0].mxu0 %v763
      %v2950 = vpop.f32.mrb[0].mxu0
      %v2951 = vadd.f32 0.0, %v2950
      %v2952 = vpop.f32.mrb[0].mxu0
      %2953 = vmatprep.mubr.f32.mxu0 0.0
      %2954 = vmatmul.mubr.f32.gmra.mrb[0].mxu0 %v765
      %v2955 = vpop.f32.mrb[0].mxu0
      %v2956 = vadd.f32 0.0, %v2955
      %v2957 = vpop.f32.mrb[0].mxu0
      %2958 = vmatprep.mubr.f32.mxu0 0.0
      %2959 = vmatmul.mubr.f32.gmra.mrb[0].mxu0 %v767
      %v2960 = vpop.f32.mrb[0].mxu0
      %v2961 = vadd.f32 0.0, %v2960
      %v2962 = vpop.f32.mrb[0].mxu0
      %2963 = vmatprep.mubr.f32.mxu0 0.0
      %2964 = vmatmul.mubr.f32.gmra.mrb[0].mxu0 %v769
      %v2965 = vpop.f32.mrb[0].mxu0
      %v2966 = vadd.f32 0.0, %v2965
      %v2967 = vpop.f32.mrb[0].mxu0
      %2968 = vmatprep.mubr.f32.mxu0 0.0
      %2969 = vmatmul.mubr.f32.gmra.mrb[0].mxu0 %v771
      %v2970 = vpop.f32.mrb[0].mxu0
      %v2971 = vadd.f32 0.0, %v2970
      %v2972 = vpop.f32.mrb[0].mxu0
      %2973 = vmatprep.mubr.f32.mxu0 0.0
      %2974 = vmatmul.mubr.f32.gmra.mrb[0].mxu0 %v773
      %v2975 = vpop.f32.mrb[0].mxu0
      %v2976 = vadd.f32 0.0, %v2975
      %v2977 = vpop.f32.mrb[0].mxu0
      %2978 = vmatprep.mubr.f32.mxu0 0.0
      %2979 = vmatmul.mubr.f32.gmra.mrb[0].mxu0 %v775
      %v2980 = vpop.f32.mrb[0].mxu0
      %v2981 = vadd.f32 0.0, %v2980
      %v2982 = vpop.f32.mrb[0].mxu0
      %2983 = vmatprep.mubr.f32.mxu0 0.0
      %2984 = vmatmul.mubr.f32.gmra.mrb[0].mxu0 %v777
      %v2985 = vpop.f32.mrb[0].mxu0
      %v2986 = vadd.f32 0.0, %v2985
      %v2987 = vpop.f32.mrb[0].mxu0
      %2988 = vmatprep.mubr.f32.mxu0 0.0
      %2989 = vmatmul.mubr.f32.gmra.mrb[0].mxu0 %v779
      %v2990 = vpop.f32.mrb[0].mxu0
      %v2991 = vadd.f32 0.0, %v2990
      %v2992 = vpop.f32.mrb[0].mxu0
      %2993 = vmatprep.mubr.f32.mxu0 0.0
      %2994 = vmatmul.mubr.f32.gmra.mrb[0].mxu0 %v781
      %v2995 = vpop.f32.mrb[0].mxu0
      %v2996 = vadd.f32 0.0, %v2995
      %v2997 = vpop.f32.mrb[0].mxu0
      %2998 = vmatprep.mubr.f32.mxu0 0.0
      %2999 = vmatmul.mubr.f32.gmra.mrb[0].mxu0 %v783
      %v3000 = vpop.f32.mrb[0].mxu0
      %v3001 = vadd.f32 0.0, %v3000
      %v3002 = vpop.f32.mrb[0].mxu0
      %3003 = vmatprep.mubr.f32.mxu0 0.0
      %3004 = vmatmul.mubr.f32.gmra.mrb[0].mxu0 %v1992
      %v3005 = vpop.f32.mrb[0].mxu0
      %v3006 = vadd.f32 0.0, %v3005
      %v3007 = vpop.f32.mrb[0].mxu0
      %3008 = vmatprep.mubr.f32.mxu0 0.0
      %3009 = vmatmul.mubr.f32.gmra.mrb[0].mxu0 %v1994
      %v3010 = vpop.f32.mrb[0].mxu0
      %v3011 = vadd.f32 0.0, %v3010
      %v3012 = vpop.f32.mrb[0].mxu0
      %3013 = vmatprep.mubr.f32.mxu0 0.0
      %3014 = vmatmul.mubr.f32.gmra.mrb[0].mxu0 %v2795
      %v3015 = vpop.f32.mrb[0].mxu0
      %v3016 = vadd.f32 0.0, %v3015
      %v3017 = vpop.f32.mrb[0].mxu0
      %3018 = vmatprep.mubr.f32.mxu0 0.0
      %3019 = vmatmul.mubr.f32.gmra.mrb[0].mxu0 %v2797
      %v3020 = vpop.f32.mrb[0].mxu0
      %v3021 = vadd.f32 0.0, %v3020
      %v3022 = vpop.f32.mrb[0].mxu0
      %3023 = vdwg.mxu0
      %v3024 = vadd.f32 %v2761, %v2866
      %v3025 = vadd.f32 %v2762, %v2871
      %v3026 = vadd.f32 %v2763, %v2876
      %v3027 = vadd.f32 %v2764, %v2881
      %v3028 = vadd.f32 %v2765, %v2886
      %v3029 = vadd.f32 %v2766, %v2891
      %v3030 = vadd.f32 %v2767, %v2896
      %v3031 = vadd.f32 %v2768, %v2901
      %v3032 = vadd.f32 %v2769, %v2906
      %v3033 = vadd.f32 %v2770, %v2911
      %v3034 = vadd.f32 %v2771, %v2916
      %v3035 = vadd.f32 %v2772, %v2921
      %v3036 = vadd.f32 %v2773, %v2926
      %v3037 = vadd.f32 %v2774, %v2931
      %v3038 = vadd.f32 %v2775, %v2936
      %v3039 = vadd.f32 %v2776, %v2941
      %v3040 = vadd.f32 %v2777, %v2946
      %v3041 = vadd.f32 %v2778, %v2951
      %v3042 = vadd.f32 %v2779, %v2956
      %v3043 = vadd.f32 %v2780, %v2961
      %v3044 = vadd.f32 %v2781, %v2966
      %v3045 = vadd.f32 %v2782, %v2971
      %v3046 = vadd.f32 %v2783, %v2976
      %v3047 = vadd.f32 %v2784, %v2981
      %v3048 = vadd.f32 %v2785, %v2986
      %v3049 = vadd.f32 %v2786, %v2991
      %v3050 = vadd.f32 %v2787, %v2996
      %v3051 = vadd.f32 %v2788, %v3001
      %v3052 = vadd.f32 %v2789, %v3006
      %v3053 = vadd.f32 %v2790, %v3011
      %v3054 = vadd.f32 %v2791, %v3016
      %v3055 = vadd.f32 %v2792, %v3021
      %v3057 = vrot.slane %v586, 1
      %v3058 = vrot.slane %v587, 1
      %v3059 = vsel %vm1315, %v3057, %v3058
      %v3060 = vrot.slane %v588, 1
      %v3061 = vsel %vm1315, %v3058, %v3060
      %s3062 = scalar_lea.vmem %s1, 64
      %v3063 = vld [vmem:[%s3062] sm:$0xff]
      %v3064 = vsel %vm411, %v3059, 0
      %v3066 = vsel %vm411, %v3061, 0
      %3068 = vmatprep.subr.mxu0 0.0
      %3069 = vmatpush1.msra.mxu0 %v3063
      %3070 = vmatprep.subr.mxu0 0.0
      %3071 = vmatpush1.msra.mxu0 0.0
      %3072 = vmatprep.subr.mxu0 0.0
      %3073 = vmatpush1.msra.mxu0 0.0
      %3074 = vmatprep.subr.mxu0 0.0
      %3075 = vmatpush1.msra.mxu0 0.0
      %3076 = vmatprep.subr.mxu0 0.0
      %3077 = vmatpush1.msra.mxu0 0.0
      %3078 = vmatprep.subr.mxu0 0.0
      %3079 = vmatpush1.msra.mxu0 0.0
      %3080 = vmatprep.subr.mxu0 0.0
      %3081 = vmatpush1.msra.mxu0 0.0
      %3082 = vmatprep.subr.mxu0 0.0
      %3083 = vmatpush1.msra.mxu0 0.0
      %3084 = vmatprep.subr.mxu0 0.0
      %3085 = vmatpush1.msra.mxu0 0.0
      %3086 = vmatprep.subr.mxu0 0.0
      %3087 = vmatpush1.msra.mxu0 0.0
      %3088 = vmatprep.subr.mxu0 0.0
      %3089 = vmatpush1.msra.mxu0 0.0
      %3090 = vmatprep.subr.mxu0 0.0
      %3091 = vmatpush1.msra.mxu0 0.0
      %3092 = vmatprep.subr.mxu0 0.0
      %3093 = vmatpush1.msra.mxu0 0.0
      %3094 = vmatprep.subr.mxu0 0.0
      %3095 = vmatpush1.msra.mxu0 0.0
      %3096 = vmatprep.subr.mxu0 0.0
      %3097 = vmatpush1.msra.mxu0 0.0
      %3098 = vmatprep.subr.mxu0 0.0
      %3099 = vmatpush1.msra.mxu0 0.0
      %3100 = vmatprep.subr.mxu0 0.0
      %3101 = vmatpush1.msra.mxu0 0.0
      %3102 = vmatprep.subr.mxu0 0.0
      %3103 = vmatpush1.msra.mxu0 0.0
      %3104 = vmatprep.subr.mxu0 0.0
      %3105 = vmatpush1.msra.mxu0 0.0
      %3106 = vmatprep.subr.mxu0 0.0
      %3107 = vmatpush1.msra.mxu0 0.0
      %3108 = vmatprep.subr.mxu0 0.0
      %3109 = vmatpush1.msra.mxu0 0.0
      %3110 = vmatprep.subr.mxu0 0.0
      %3111 = vmatpush1.msra.mxu0 0.0
      %3112 = vmatprep.subr.mxu0 0.0
      %3113 = vmatpush1.msra.mxu0 0.0
      %3114 = vmatprep.subr.mxu0 0.0
      %3115 = vmatpush1.msra.mxu0 0.0
      %3116 = vmatprep.subr.mxu0 0.0
      %3117 = vmatpush1.msra.mxu0 0.0
      %3118 = vmatprep.subr.mxu0 0.0
      %3119 = vmatpush1.msra.mxu0 0.0
      %3120 = vmatprep.subr.mxu0 0.0
      %3121 = vmatpush1.msra.mxu0 0.0
      %3122 = vmatprep.subr.mxu0 0.0
      %3123 = vmatpush1.msra.mxu0 0.0
      %3124 = vmatprep.subr.mxu0 0.0
      %3125 = vmatpush1.msra.mxu0 0.0
      %3126 = vmatprep.subr.mxu0 0.0
      %3127 = vmatpush1.msra.mxu0 0.0
      %3128 = vmatprep.subr.mxu0 0.0
      %3129 = vmatpush1.msra.mxu0 0.0
      %3130 = vmatprep.subr.mxu0 0.0
      %3131 = vmatpush1.msra.mxu0 0.0
      %3132 = vmatprep.mubr.f32.mxu0 0.0
      %3133 = vmatmul.mubr.f32.gmra.mrb[0].mxu0 %v1406
      %v3134 = vpop.f32.mrb[0].mxu0
      %v3135 = vadd.f32 0.0, %v3134
      %v3136 = vpop.f32.mrb[0].mxu0
      %3137 = vmatprep.mubr.f32.mxu0 0.0
      %3138 = vmatmul.mubr.f32.gmra.mrb[0].mxu0 %v1408
      %v3139 = vpop.f32.mrb[0].mxu0
      %v3140 = vadd.f32 0.0, %v3139
      %v3141 = vpop.f32.mrb[0].mxu0
      %3142 = vmatprep.mubr.f32.mxu0 0.0
      %3143 = vmatmul.mubr.f32.gmra.mrb[0].mxu0 %v1410
      %v3144 = vpop.f32.mrb[0].mxu0
      %v3145 = vadd.f32 0.0, %v3144
      %v3146 = vpop.f32.mrb[0].mxu0
      %3147 = vmatprep.mubr.f32.mxu0 0.0
      %3148 = vmatmul.mubr.f32.gmra.mrb[0].mxu0 %v1412
      %v3149 = vpop.f32.mrb[0].mxu0
      %v3150 = vadd.f32 0.0, %v3149
      %v3151 = vpop.f32.mrb[0].mxu0
      %3152 = vmatprep.mubr.f32.mxu0 0.0
      %3153 = vmatmul.mubr.f32.gmra.mrb[0].mxu0 %v1414
      %v3154 = vpop.f32.mrb[0].mxu0
      %v3155 = vadd.f32 0.0, %v3154
      %v3156 = vpop.f32.mrb[0].mxu0
      %3157 = vmatprep.mubr.f32.mxu0 0.0
      %3158 = vmatmul.mubr.f32.gmra.mrb[0].mxu0 %v1416
      %v3159 = vpop.f32.mrb[0].mxu0
      %v3160 = vadd.f32 0.0, %v3159
      %v3161 = vpop.f32.mrb[0].mxu0
      %3162 = vmatprep.mubr.f32.mxu0 0.0
      %3163 = vmatmul.mubr.f32.gmra.mrb[0].mxu0 %v1418
      %v3164 = vpop.f32.mrb[0].mxu0
      %v3165 = vadd.f32 0.0, %v3164
      %v3166 = vpop.f32.mrb[0].mxu0
      %3167 = vmatprep.mubr.f32.mxu0 0.0
      %3168 = vmatmul.mubr.f32.gmra.mrb[0].mxu0 %v1420
      %v3169 = vpop.f32.mrb[0].mxu0
      %v3170 = vadd.f32 0.0, %v3169
      %v3171 = vpop.f32.mrb[0].mxu0
      %3172 = vmatprep.mubr.f32.mxu0 0.0
      %3173 = vmatmul.mubr.f32.gmra.mrb[0].mxu0 %v1422
      %v3174 = vpop.f32.mrb[0].mxu0
      %v3175 = vadd.f32 0.0, %v3174
      %v3176 = vpop.f32.mrb[0].mxu0
      %3177 = vmatprep.mubr.f32.mxu0 0.0
      %3178 = vmatmul.mubr.f32.gmra.mrb[0].mxu0 %v1424
      %v3179 = vpop.f32.mrb[0].mxu0
      %v3180 = vadd.f32 0.0, %v3179
      %v3181 = vpop.f32.mrb[0].mxu0
      %3182 = vmatprep.mubr.f32.mxu0 0.0
      %3183 = vmatmul.mubr.f32.gmra.mrb[0].mxu0 %v1426
      %v3184 = vpop.f32.mrb[0].mxu0
      %v3185 = vadd.f32 0.0, %v3184
      %v3186 = vpop.f32.mrb[0].mxu0
      %3187 = vmatprep.mubr.f32.mxu0 0.0
      %3188 = vmatmul.mubr.f32.gmra.mrb[0].mxu0 %v1428
      %v3189 = vpop.f32.mrb[0].mxu0
      %v3190 = vadd.f32 0.0, %v3189
      %v3191 = vpop.f32.mrb[0].mxu0
      %3192 = vmatprep.mubr.f32.mxu0 0.0
      %3193 = vmatmul.mubr.f32.gmra.mrb[0].mxu0 %v1430
      %v3194 = vpop.f32.mrb[0].mxu0
      %v3195 = vadd.f32 0.0, %v3194
      %v3196 = vpop.f32.mrb[0].mxu0
      %3197 = vmatprep.mubr.f32.mxu0 0.0
      %3198 = vmatmul.mubr.f32.gmra.mrb[0].mxu0 %v1432
      %v3199 = vpop.f32.mrb[0].mxu0
      %v3200 = vadd.f32 0.0, %v3199
      %v3201 = vpop.f32.mrb[0].mxu0
      %3202 = vmatprep.mubr.f32.mxu0 0.0
      %3203 = vmatmul.mubr.f32.gmra.mrb[0].mxu0 %v1434
      %v3204 = vpop.f32.mrb[0].mxu0
      %v3205 = vadd.f32 0.0, %v3204
      %v3206 = vpop.f32.mrb[0].mxu0
      %3207 = vmatprep.mubr.f32.mxu0 0.0
      %3208 = vmatmul.mubr.f32.gmra.mrb[0].mxu0 %v1436
      %v3209 = vpop.f32.mrb[0].mxu0
      %v3210 = vadd.f32 0.0, %v3209
      %v3211 = vpop.f32.mrb[0].mxu0
      %3212 = vmatprep.mubr.f32.mxu0 0.0
      %3213 = vmatmul.mubr.f32.gmra.mrb[0].mxu0 %v1438
      %v3214 = vpop.f32.mrb[0].mxu0
      %v3215 = vadd.f32 0.0, %v3214
      %v3216 = vpop.f32.mrb[0].mxu0
      %3217 = vmatprep.mubr.f32.mxu0 0.0
      %3218 = vmatmul.mubr.f32.gmra.mrb[0].mxu0 %v1440
      %v3219 = vpop.f32.mrb[0].mxu0
      %v3220 = vadd.f32 0.0, %v3219
      %v3221 = vpop.f32.mrb[0].mxu0
      %3222 = vmatprep.mubr.f32.mxu0 0.0
      %3223 = vmatmul.mubr.f32.gmra.mrb[0].mxu0 %v1442
      %v3224 = vpop.f32.mrb[0].mxu0
      %v3225 = vadd.f32 0.0, %v3224
      %v3226 = vpop.f32.mrb[0].mxu0
      %3227 = vmatprep.mubr.f32.mxu0 0.0
      %3228 = vmatmul.mubr.f32.gmra.mrb[0].mxu0 %v1444
      %v3229 = vpop.f32.mrb[0].mxu0
      %v3230 = vadd.f32 0.0, %v3229
      %v3231 = vpop.f32.mrb[0].mxu0
      %3232 = vmatprep.mubr.f32.mxu0 0.0
      %3233 = vmatmul.mubr.f32.gmra.mrb[0].mxu0 %v1446
      %v3234 = vpop.f32.mrb[0].mxu0
      %v3235 = vadd.f32 0.0, %v3234
      %v3236 = vpop.f32.mrb[0].mxu0
      %3237 = vmatprep.mubr.f32.mxu0 0.0
      %3238 = vmatmul.mubr.f32.gmra.mrb[0].mxu0 %v1448
      %v3239 = vpop.f32.mrb[0].mxu0
      %v3240 = vadd.f32 0.0, %v3239
      %v3241 = vpop.f32.mrb[0].mxu0
      %3242 = vmatprep.mubr.f32.mxu0 0.0
      %3243 = vmatmul.mubr.f32.gmra.mrb[0].mxu0 %v1450
      %v3244 = vpop.f32.mrb[0].mxu0
      %v3245 = vadd.f32 0.0, %v3244
      %v3246 = vpop.f32.mrb[0].mxu0
      %3247 = vmatprep.mubr.f32.mxu0 0.0
      %3248 = vmatmul.mubr.f32.gmra.mrb[0].mxu0 %v1452
      %v3249 = vpop.f32.mrb[0].mxu0
      %v3250 = vadd.f32 0.0, %v3249
      %v3251 = vpop.f32.mrb[0].mxu0
      %3252 = vmatprep.mubr.f32.mxu0 0.0
      %3253 = vmatmul.mubr.f32.gmra.mrb[0].mxu0 %v1454
      %v3254 = vpop.f32.mrb[0].mxu0
      %v3255 = vadd.f32 0.0, %v3254
      %v3256 = vpop.f32.mrb[0].mxu0
      %3257 = vmatprep.mubr.f32.mxu0 0.0
      %3258 = vmatmul.mubr.f32.gmra.mrb[0].mxu0 %v1456
      %v3259 = vpop.f32.mrb[0].mxu0
      %v3260 = vadd.f32 0.0, %v3259
      %v3261 = vpop.f32.mrb[0].mxu0
      %3262 = vmatprep.mubr.f32.mxu0 0.0
      %3263 = vmatmul.mubr.f32.gmra.mrb[0].mxu0 %v1458
      %v3264 = vpop.f32.mrb[0].mxu0
      %v3265 = vadd.f32 0.0, %v3264
      %v3266 = vpop.f32.mrb[0].mxu0
      %3267 = vmatprep.mubr.f32.mxu0 0.0
      %3268 = vmatmul.mubr.f32.gmra.mrb[0].mxu0 %v1460
      %v3269 = vpop.f32.mrb[0].mxu0
      %v3270 = vadd.f32 0.0, %v3269
      %v3271 = vpop.f32.mrb[0].mxu0
      %3272 = vmatprep.mubr.f32.mxu0 0.0
      %3273 = vmatmul.mubr.f32.gmra.mrb[0].mxu0 %v2261
      %v3274 = vpop.f32.mrb[0].mxu0
      %v3275 = vadd.f32 0.0, %v3274
      %v3276 = vpop.f32.mrb[0].mxu0
      %3277 = vmatprep.mubr.f32.mxu0 0.0
      %3278 = vmatmul.mubr.f32.gmra.mrb[0].mxu0 %v2263
      %v3279 = vpop.f32.mrb[0].mxu0
      %v3280 = vadd.f32 0.0, %v3279
      %v3281 = vpop.f32.mrb[0].mxu0
      %3282 = vmatprep.mubr.f32.mxu0 0.0
      %3283 = vmatmul.mubr.f32.gmra.mrb[0].mxu0 %v3064
      %v3284 = vpop.f32.mrb[0].mxu0
      %v3285 = vadd.f32 0.0, %v3284
      %v3286 = vpop.f32.mrb[0].mxu0
      %3287 = vmatprep.mubr.f32.mxu0 0.0
      %3288 = vmatmul.mubr.f32.gmra.mrb[0].mxu0 %v3066
      %v3289 = vpop.f32.mrb[0].mxu0
      %v3290 = vadd.f32 0.0, %v3289
      %v3291 = vpop.f32.mrb[0].mxu0
      %3292 = vdwg.mxu0
      %v3293 = vadd.f32 %v3024, %v3135
      %v3294 = vadd.f32 %v3025, %v3140
      %v3295 = vadd.f32 %v3026, %v3145
      %v3296 = vadd.f32 %v3027, %v3150
      %v3297 = vadd.f32 %v3028, %v3155
      %v3298 = vadd.f32 %v3029, %v3160
      %v3299 = vadd.f32 %v3030, %v3165
      %v3300 = vadd.f32 %v3031, %v3170
      %v3301 = vadd.f32 %v3032, %v3175
      %v3302 = vadd.f32 %v3033, %v3180
      %v3303 = vadd.f32 %v3034, %v3185
      %v3304 = vadd.f32 %v3035, %v3190
      %v3305 = vadd.f32 %v3036, %v3195
      %v3306 = vadd.f32 %v3037, %v3200
      %v3307 = vadd.f32 %v3038, %v3205
      %v3308 = vadd.f32 %v3039, %v3210
      %v3309 = vadd.f32 %v3040, %v3215
      %v3310 = vadd.f32 %v3041, %v3220
      %v3311 = vadd.f32 %v3042, %v3225
      %v3312 = vadd.f32 %v3043, %v3230
      %v3313 = vadd.f32 %v3044, %v3235
      %v3314 = vadd.f32 %v3045, %v3240
      %v3315 = vadd.f32 %v3046, %v3245
      %v3316 = vadd.f32 %v3047, %v3250
      %v3317 = vadd.f32 %v3048, %v3255
      %v3318 = vadd.f32 %v3049, %v3260
      %v3319 = vadd.f32 %v3050, %v3265
      %v3320 = vadd.f32 %v3051, %v3270
      %v3321 = vadd.f32 %v3052, %v3275
      %v3322 = vadd.f32 %v3053, %v3280
      %v3323 = vadd.f32 %v3054, %v3285
      %v3324 = vadd.f32 %v3055, %v3290
      %3325 = vst.msk [vmem:[%s262] sm:$0xff] %vm411, %v3293
      %3326 = vst.msk [vmem:[%s262 + $0x8] sm:$0xff] %vm411, %v3294
      %3327 = vst.msk [vmem:[%s262 + $0x10] sm:$0xff] %vm411, %v3295
      %3328 = vst.msk [vmem:[%s262 + $0x18] sm:$0xff] %vm411, %v3296
      %3329 = vst.msk [vmem:[%s262 + $0x20] sm:$0xff] %vm411, %v3297
      %3330 = vst.msk [vmem:[%s262 + $0x28] sm:$0xff] %vm411, %v3298
      %3331 = vst.msk [vmem:[%s262 + $0x30] sm:$0xff] %vm411, %v3299
      %3332 = vst.msk [vmem:[%s262 + $0x38] sm:$0xff] %vm411, %v3300
      %3333 = vst.msk [vmem:[%s262 + $0x40] sm:$0xff] %vm411, %v3301
      %3334 = vst.msk [vmem:[%s262 + $0x48] sm:$0xff] %vm411, %v3302
      %3335 = vst.msk [vmem:[%s262 + $0x50] sm:$0xff] %vm411, %v3303
      %3336 = vst.msk [vmem:[%s262 + $0x58] sm:$0xff] %vm411, %v3304
      %3337 = vst.msk [vmem:[%s262 + $0x60] sm:$0xff] %vm411, %v3305
      %3338 = vst.msk [vmem:[%s262 + $0x68] sm:$0xff] %vm411, %v3306
      %3339 = vst.msk [vmem:[%s262 + $0x70] sm:$0xff] %vm411, %v3307
      %3340 = vst.msk [vmem:[%s262 + $0x78] sm:$0xff] %vm411, %v3308
      %3341 = vst.msk [vmem:[%s262 + $0x80] sm:$0xff] %vm411, %v3309
      %3342 = vst.msk [vmem:[%s262 + $0x88] sm:$0xff] %vm411, %v3310
      %3343 = vst.msk [vmem:[%s262 + $0x90] sm:$0xff] %vm411, %v3311
      %3344 = vst.msk [vmem:[%s262 + $0x98] sm:$0xff] %vm411, %v3312
      %3345 = vst.msk [vmem:[%s262 + $0xa0] sm:$0xff] %vm411, %v3313
      %3346 = vst.msk [vmem:[%s262 + $0xa8] sm:$0xff] %vm411, %v3314
      %3347 = vst.msk [vmem:[%s262 + $0xb0] sm:$0xff] %vm411, %v3315
      %3348 = vst.msk [vmem:[%s262 + $0xb8] sm:$0xff] %vm411, %v3316
      %3349 = vst.msk [vmem:[%s262 + $0xc0] sm:$0xff] %vm411, %v3317
      %3350 = vst.msk [vmem:[%s262 + $0xc8] sm:$0xff] %vm411, %v3318
      %3351 = vst.msk [vmem:[%s262 + $0xd0] sm:$0xff] %vm411, %v3319
      %3352 = vst.msk [vmem:[%s262 + $0xd8] sm:$0xff] %vm411, %v3320
      %3353 = vst.msk [vmem:[%s262 + $0xe0] sm:$0xff] %vm411, %v3321
      %3354 = vst.msk [vmem:[%s262 + $0xe8] sm:$0xff] %vm411, %v3322
      %3355 = vst.msk [vmem:[%s262 + $0xf0] sm:$0xff] %vm411, %v3323
      %3356 = vst.msk [vmem:[%s262 + $0xf8] sm:$0xff] %vm411, %v3324
      %v3357 = vsel %vm411, %v3293, 0.0
      %v3358 = vsel %vm411, %v3294, 0.0
      %v3359 = vadd.f32 %v3357, %v3358
      %v3360 = vsel %vm411, %v3295, 0.0
      %v3361 = vadd.f32 %v3359, %v3360
      %v3362 = vsel %vm411, %v3296, 0.0
      %v3363 = vadd.f32 %v3361, %v3362
      %v3364 = vsel %vm411, %v3297, 0.0
      %v3365 = vadd.f32 %v3363, %v3364
      %v3366 = vsel %vm411, %v3298, 0.0
      %v3367 = vadd.f32 %v3365, %v3366
      %v3368 = vsel %vm411, %v3299, 0.0
      %v3369 = vadd.f32 %v3367, %v3368
      %v3370 = vsel %vm411, %v3300, 0.0
      %v3371 = vadd.f32 %v3369, %v3370
      %v3372 = vsel %vm411, %v3301, 0.0
      %v3373 = vadd.f32 %v3371, %v3372
      %v3374 = vsel %vm411, %v3302, 0.0
      %v3375 = vadd.f32 %v3373, %v3374
      %v3376 = vsel %vm411, %v3303, 0.0
      %v3377 = vadd.f32 %v3375, %v3376
      %v3378 = vsel %vm411, %v3304, 0.0
      %v3379 = vadd.f32 %v3377, %v3378
      %v3380 = vsel %vm411, %v3305, 0.0
      %v3381 = vadd.f32 %v3379, %v3380
      %v3382 = vsel %vm411, %v3306, 0.0
      %v3383 = vadd.f32 %v3381, %v3382
      %v3384 = vsel %vm411, %v3307, 0.0
      %v3385 = vadd.f32 %v3383, %v3384
      %v3386 = vsel %vm411, %v3308, 0.0
      %v3387 = vadd.f32 %v3385, %v3386
      %v3388 = vsel %vm411, %v3309, 0.0
      %v3389 = vadd.f32 %v3387, %v3388
      %v3390 = vsel %vm411, %v3310, 0.0
      %v3391 = vadd.f32 %v3389, %v3390
      %v3392 = vsel %vm411, %v3311, 0.0
      %v3393 = vadd.f32 %v3391, %v3392
      %v3394 = vsel %vm411, %v3312, 0.0
      %v3395 = vadd.f32 %v3393, %v3394
      %v3396 = vsel %vm411, %v3313, 0.0
      %v3397 = vadd.f32 %v3395, %v3396
      %v3398 = vsel %vm411, %v3314, 0.0
      %v3399 = vadd.f32 %v3397, %v3398
      %v3400 = vsel %vm411, %v3315, 0.0
      %v3401 = vadd.f32 %v3399, %v3400
      %v3402 = vsel %vm411, %v3316, 0.0
      %v3403 = vadd.f32 %v3401, %v3402
      %v3404 = vsel %vm411, %v3317, 0.0
      %v3405 = vadd.f32 %v3403, %v3404
      %v3406 = vsel %vm411, %v3318, 0.0
      %v3407 = vadd.f32 %v3405, %v3406
      %v3408 = vsel %vm411, %v3319, 0.0
      %v3409 = vadd.f32 %v3407, %v3408
      %v3410 = vsel %vm411, %v3320, 0.0
      %v3411 = vadd.f32 %v3409, %v3410
      %v3412 = vsel %vm411, %v3321, 0.0
      %v3413 = vadd.f32 %v3411, %v3412
      %v3414 = vsel %vm411, %v3322, 0.0
      %v3415 = vadd.f32 %v3413, %v3414
      %v3416 = vsel %vm411, %v3323, 0.0
      %v3417 = vadd.f32 %v3415, %v3416
      %v3418 = vsel %vm411, %v3324, 0.0
      %v3419 = vadd.f32 %v3417, %v3418
      %v3420 = vrot.slane %v3419, 4
      %v3421 = vadd.f32 %v3419, %v3420
      %v3422 = vrot.slane %v3421, 2
      %v3423 = vadd.f32 %v3421, %v3422
      %v3424 = vrot.slane %v3423, 1
      %v3425 = vadd.f32 %v3423, %v3424
      %vm3426 = vcmask 57344
      %3427 = vst.msk [vmem:[%s265] sm:$0x1] %vm3426, %v3425
      %v3428 = vmul.f32 %v3293, %v3293
      %v3429 = vmul.f32 %v3294, %v3294
      %v3430 = vmul.f32 %v3295, %v3295
      %v3431 = vmul.f32 %v3296, %v3296
      %v3432 = vmul.f32 %v3297, %v3297
      %v3433 = vmul.f32 %v3298, %v3298
      %v3434 = vmul.f32 %v3299, %v3299
      %v3435 = vmul.f32 %v3300, %v3300
      %v3436 = vmul.f32 %v3301, %v3301
      %v3437 = vmul.f32 %v3302, %v3302
      %v3438 = vmul.f32 %v3303, %v3303
      %v3439 = vmul.f32 %v3304, %v3304
      %v3440 = vmul.f32 %v3305, %v3305
      %v3441 = vmul.f32 %v3306, %v3306
      %v3442 = vmul.f32 %v3307, %v3307
      %v3443 = vmul.f32 %v3308, %v3308
      %v3444 = vmul.f32 %v3309, %v3309
      %v3445 = vmul.f32 %v3310, %v3310
      %v3446 = vmul.f32 %v3311, %v3311
      %v3447 = vmul.f32 %v3312, %v3312
      %v3448 = vmul.f32 %v3313, %v3313
      %v3449 = vmul.f32 %v3314, %v3314
      %v3450 = vmul.f32 %v3315, %v3315
      %v3451 = vmul.f32 %v3316, %v3316
      %v3452 = vmul.f32 %v3317, %v3317
      %v3453 = vmul.f32 %v3318, %v3318
      %v3454 = vmul.f32 %v3319, %v3319
      %v3455 = vmul.f32 %v3320, %v3320
      %v3456 = vmul.f32 %v3321, %v3321
      %v3457 = vmul.f32 %v3322, %v3322
      %v3458 = vmul.f32 %v3323, %v3323
      %v3459 = vmul.f32 %v3324, %v3324
      %v3460 = vsel %vm411, %v3428, 0.0
      %v3461 = vsel %vm411, %v3429, 0.0
      %v3462 = vadd.f32 %v3460, %v3461
      %v3463 = vsel %vm411, %v3430, 0.0
      %v3464 = vadd.f32 %v3462, %v3463
      %v3465 = vsel %vm411, %v3431, 0.0
      %v3466 = vadd.f32 %v3464, %v3465
      %v3467 = vsel %vm411, %v3432, 0.0
      %v3468 = vadd.f32 %v3466, %v3467
      %v3469 = vsel %vm411, %v3433, 0.0
      %v3470 = vadd.f32 %v3468, %v3469
      %v3471 = vsel %vm411, %v3434, 0.0
      %v3472 = vadd.f32 %v3470, %v3471
      %v3473 = vsel %vm411, %v3435, 0.0
      %v3474 = vadd.f32 %v3472, %v3473
      %v3475 = vsel %vm411, %v3436, 0.0
      %v3476 = vadd.f32 %v3474, %v3475
      %v3477 = vsel %vm411, %v3437, 0.0
      %v3478 = vadd.f32 %v3476, %v3477
      %v3479 = vsel %vm411, %v3438, 0.0
      %v3480 = vadd.f32 %v3478, %v3479
      %v3481 = vsel %vm411, %v3439, 0.0
      %v3482 = vadd.f32 %v3480, %v3481
      %v3483 = vsel %vm411, %v3440, 0.0
      %v3484 = vadd.f32 %v3482, %v3483
      %v3485 = vsel %vm411, %v3441, 0.0
      %v3486 = vadd.f32 %v3484, %v3485
      %v3487 = vsel %vm411, %v3442, 0.0
      %v3488 = vadd.f32 %v3486, %v3487
      %v3489 = vsel %vm411, %v3443, 0.0
      %v3490 = vadd.f32 %v3488, %v3489
      %v3491 = vsel %vm411, %v3444, 0.0
      %v3492 = vadd.f32 %v3490, %v3491
      %v3493 = vsel %vm411, %v3445, 0.0
      %v3494 = vadd.f32 %v3492, %v3493
      %v3495 = vsel %vm411, %v3446, 0.0
      %v3496 = vadd.f32 %v3494, %v3495
      %v3497 = vsel %vm411, %v3447, 0.0
      %v3498 = vadd.f32 %v3496, %v3497
      %v3499 = vsel %vm411, %v3448, 0.0
      %v3500 = vadd.f32 %v3498, %v3499
      %v3501 = vsel %vm411, %v3449, 0.0
      %v3502 = vadd.f32 %v3500, %v3501
      %v3503 = vsel %vm411, %v3450, 0.0
      %v3504 = vadd.f32 %v3502, %v3503
      %v3505 = vsel %vm411, %v3451, 0.0
      %v3506 = vadd.f32 %v3504, %v3505
      %v3507 = vsel %vm411, %v3452, 0.0
      %v3508 = vadd.f32 %v3506, %v3507
      %v3509 = vsel %vm411, %v3453, 0.0
      %v3510 = vadd.f32 %v3508, %v3509
      %v3511 = vsel %vm411, %v3454, 0.0
      %v3512 = vadd.f32 %v3510, %v3511
      %v3513 = vsel %vm411, %v3455, 0.0
      %v3514 = vadd.f32 %v3512, %v3513
      %v3515 = vsel %vm411, %v3456, 0.0
      %v3516 = vadd.f32 %v3514, %v3515
      %v3517 = vsel %vm411, %v3457, 0.0
      %v3518 = vadd.f32 %v3516, %v3517
      %v3519 = vsel %vm411, %v3458, 0.0
      %v3520 = vadd.f32 %v3518, %v3519
      %v3521 = vsel %vm411, %v3459, 0.0
      %v3522 = vadd.f32 %v3520, %v3521
      %v3523 = vrot.slane %v3522, 4
      %v3524 = vadd.f32 %v3522, %v3523
      %v3525 = vrot.slane %v3524, 2
      %v3526 = vadd.f32 %v3524, %v3525
      %v3527 = vrot.slane %v3526, 1
      %v3528 = vadd.f32 %v3526, %v3527
      %3529 = vst.msk [vmem:[%s268] sm:$0x1] %vm3426, %v3528
      %p3530 = scmp.lt.s32.totalorder %s18, 1
      %s3531 = scalar_select %p3530, %s18, 1
      %s3532 = smul.addr %s3531, 32
      %s3533 = smul.addr %s3532, 8
      %s3534 = scalar_lea.vmem %s4, %s3533
      %p3535 = scmp.lt.s32.totalorder %s18, 1
      %s3536 = scalar_select %p3535, %s18, 1
      %s3537 = scalar_lea.vmem %s5, %s3536
      %p3538 = scmp.lt.s32.totalorder %s18, 1
      %s3539 = scalar_select %p3538, %s18, 1
      %s3540 = scalar_lea.vmem %s6, %s3539
      // Predicated region
      $region37: #{restnet_basic_block.4} parent=35 // pred_check
        %p3541 = pneg %p125
      $region38: #{restnet_basic_block.4} parent=35 // pred_check_branch
        %3543 = sbr.rel (%p3541) target = $region40
      $region39: #{restnet_basic_block.4} parent=35 // pred_region
        _
      $region40: #{restnet_basic_block.4} parent=35 // pred_fallthru
        _
      // Predicated region
      $region41: #{restnet_basic_block.4} parent=35 // pred_check
        %p3544 = pneg %p151
      $region42: #{restnet_basic_block.4} parent=35 // pred_check_branch
        %3546 = sbr.rel (%p3544) target = $region44
      $region43: #{restnet_basic_block.4} parent=35 // pred_region
        _
      $region44: #{restnet_basic_block.4} parent=35 // pred_fallthru
        _
      // Predicated region
      $region45: #{restnet_basic_block.4} parent=35 // pred_check
        %p3547 = pneg %p177
      $region46: #{restnet_basic_block.4} parent=35 // pred_check_branch
        %3549 = sbr.rel (%p3547) target = $region48
      $region47: #{restnet_basic_block.4} parent=35 // pred_region
        _
      $region48: #{restnet_basic_block.4} parent=35 // pred_fallthru
        _
    $region36: #{restnet_basic_block.4} parent=5 // pred_fallthru
      _
    %p3550 = scmp.le.s32.totalorder 2, %s13
    // Predicated region
    $region49: #{restnet_basic_block.4} parent=5 // pred_check
      %p3551 = pneg %p3550
    $region50: #{restnet_basic_block.4} parent=5 // pred_check_branch
      %3553 = sbr.rel (%p3551) target = $region52
    $region51: #{restnet_basic_block.4} parent=5 // pred_region
      %s3554 = ssub.s32 %s13, 2
      // Predicated region
      $region53: #{restnet_basic_block.4} parent=51 // pred_check
        %p3555 = pneg %p131
      $region54: #{restnet_basic_block.4} parent=51 // pred_check_branch
        %3557 = sbr.rel (%p3555) target = $region56
      $region55: #{restnet_basic_block.4} parent=51 // pred_region
        %p3558 = scmp.lt.s32.totalorder %s19, 1
        %s3559 = scalar_select %p3558, %s19, 1
        %s3560 = smul.addr %s3559, 32
        %s3561 = smul.addr %s3560, 8
        %s3562 = scalar_lea.vmem %s4, %s3561
      $region56: #{restnet_basic_block.4} parent=51 // pred_fallthru
        _
      // Predicated region
      $region57: #{restnet_basic_block.4} parent=51 // pred_check
        %p3563 = pneg %p157
      $region58: #{restnet_basic_block.4} parent=51 // pred_check_branch
        %3565 = sbr.rel (%p3563) target = $region60
      $region59: #{restnet_basic_block.4} parent=51 // pred_region
        %p3566 = scmp.lt.s32.totalorder %s19, 1
        %s3567 = scalar_select %p3566, %s19, 1
        %s3568 = scalar_lea.vmem %s5, %s3567
      $region60: #{restnet_basic_block.4} parent=51 // pred_fallthru
        _
      // Predicated region
      $region61: #{restnet_basic_block.4} parent=51 // pred_check
        %p3569 = pneg %p183
      $region62: #{restnet_basic_block.4} parent=51 // pred_check_branch
        %3571 = sbr.rel (%p3569) target = $region64
      $region63: #{restnet_basic_block.4} parent=51 // pred_region
        %p3572 = scmp.lt.s32.totalorder %s19, 1
        %s3573 = scalar_select %p3572, %s19, 1
        %s3574 = scalar_lea.vmem %s6, %s3573
      $region64: #{restnet_basic_block.4} parent=51 // pred_fallthru
        _
    $region52: #{restnet_basic_block.4} parent=5 // pred_fallthru
      _
  $region6: #{restnet_basic_block.4} parent=0 // loop_footer
    %s17 = sadd.s32 1, %s13
  $region7: #{restnet_basic_block.4} parent=0 // loop_footer_branch
    %12 = sbr.rel target = $region3
  $region8: #{restnet_basic_block.4} parent=0 // loop_exit
    _

</llo_original>
